<compile_context>
chip_gen: v7x
topology: tpu7x:2x2x1
jax: 0.10.0
libtpu: 0.0.40
codegen_flags: <defaults>
</compile_context>

<pallas_src>
import math

import jax
import jax.numpy as jnp
from jax.experimental import pallas as pl
from jax.experimental.pallas import tpu as pltpu  # noqa: F401  (TPU backend assumed)

# ---- synthetic small RadBERT / RoBERTa config ----
VOCAB = 100
HIDDEN = 64
N_HEADS = 4
HEAD_DIM = HIDDEN // N_HEADS
INTERMEDIATE = 128
N_LAYERS = 2
MAX_POS = 64
N_CLASSES = 10
CLS_PAD = 128              # classifier output padded to a full lane width (lane-dense store)
LN_EPS = 1e-5
PAD_IDX = 1
ATTN_SCALE = 1.0 / math.sqrt(HEAD_DIM)


# --------------------------- in-kernel helpers (f32 math) ---------------------------

def _ln(x, g, b):
    mean = jnp.mean(x, axis=-1, keepdims=True)
    var = jnp.mean(jnp.square(x - mean), axis=-1, keepdims=True)
    return (x - mean) * jax.lax.rsqrt(var + LN_EPS) * g + b


def _gelu(x):
    # TODO(synk): HF RoBERTa uses exact erf-GELU; tanh approximation used here.
    return 0.5 * x * (1.0 + jnp.tanh(0.7978845608028654 * (x + 0.044715 * x * x * x)))


def _bf16(x):
    return x.astype(jnp.bfloat16)


# --------------------------- single fused Pallas kernel ---------------------------

def _fused_forward_kernel(emb_ref, bias_ref,
                          emb_g_ref, emb_b_ref,
                          wq_ref, wk_ref, wv_ref, qb_ref, kb_ref, vb_ref,
                          wo_ref, ao_b_ref, ln1_g_ref, ln1_b_ref,
                          iw_ref, ib_ref, ow_ref, ob_ref, ln2_g_ref, ln2_b_ref,
                          pool_w_ref, pool_b_ref, cls_w_ref, cls_b_ref,
                          out_ref):
    """Entire RadBERT forward for the whole (B, S) batch; everything lives in VMEM."""
    BS, H = emb_ref.shape
    BNH, _, S = bias_ref.shape           # (B*N_HEADS, 1, S)
    B = BS // S

    bias = bias_ref[...]                 # additive attention mask, f32

    # ---- embedding LayerNorm ----
    x = _ln(emb_ref[...], emb_g_ref[...], emb_b_ref[...])                    # (BS, H) f32

    # ---- transformer layers (static unroll; weights stacked on a leading layer axis) ----
    for l in range(N_LAYERS):
        # head-batched view of the activations: (B*N_HEADS, S, H)
        xh = _bf16(jnp.broadcast_to(x.reshape(B, 1, S, H),
                                    (B, N_HEADS, S, H)).reshape(BNH, S, H))

        # Q/K/V projections as head-batched matmuls (no lane slicing, no transposes)
        q = jnp.einsum('bsc,bcd->bsd', xh, wq_ref[l],
                       preferred_element_type=jnp.float32) + qb_ref[l]       # (BNH, S, HD)
        k = jnp.einsum('bsc,bcd->bsd', xh, wk_ref[l],
                       preferred_element_type=jnp.float32) + kb_ref[l]
        v = jnp.einsum('bsc,bcd->bsd', xh, wv_ref[l],
                       preferred_element_type=jnp.float32) + vb_ref[l]

        # scaled dot-product attention; softmax stays f32
        s = jnp.einsum('bqd,bkd->bqk', _bf16(q), _bf16(k),
                       preferred_element_type=jnp.float32) * ATTN_SCALE + bias
        s = s - jnp.max(s, axis=-1, keepdims=True)
        p = jnp.exp(s)
        p = p * pl.reciprocal(jnp.sum(p, axis=-1, keepdims=True), approx=True)

        ctx = jnp.einsum('bqk,bkd->bqd', _bf16(p), _bf16(v),
                         preferred_element_type=jnp.float32)                 # (BNH, S, HD)

        # attention output projection: per-head batched matmul, then sum over heads
        ao = jnp.einsum('bqd,bdo->bqo', _bf16(ctx), wo_ref[l],
                        preferred_element_type=jnp.float32)                  # (BNH, S, H)
        attn = jnp.sum(ao.reshape(B, N_HEADS, S, H), axis=1).reshape(BS, H) + ao_b_ref[l]

        x1 = _ln(attn + x, ln1_g_ref[l], ln1_b_ref[l])

        # FFN (GELU) + residual + LN2
        inter = _gelu(jnp.dot(_bf16(x1), iw_ref[l],
                              preferred_element_type=jnp.float32) + ib_ref[l])
        ffn = jnp.dot(_bf16(inter), ow_ref[l],
                      preferred_element_type=jnp.float32) + ob_ref[l]
        x = _ln(ffn + x1, ln2_g_ref[l], ln2_b_ref[l])

    # ---- pooler (CLS token, tanh) + classifier, fused in the same kernel ----
    cls_tok = x.reshape(B, S, H)[:, 0, :]                                    # (B, H)
    pooled = jnp.tanh(jnp.dot(_bf16(cls_tok), pool_w_ref[...],
                              preferred_element_type=jnp.float32) + pool_b_ref[...])
    logits = jnp.dot(_bf16(pooled), cls_w_ref[...],
                     preferred_element_type=jnp.float32) + cls_b_ref[...]    # (B, CLS_PAD)
    out_ref[...] = logits


# --------------------------- parameters ---------------------------

def init_params(key):
    """HF-style ('logical') RoBERTa weights at the synthetic config above."""
    keys = iter(jax.random.split(key, 64))

    def nrm(shape, scale=0.02):
        return scale * jax.random.normal(next(keys), shape, jnp.float32)

    p = {
        "word_emb": nrm((VOCAB, HIDDEN)),
        "pos_emb": nrm((MAX_POS, HIDDEN)),
        "type_emb": nrm((2, HIDDEN)),
        "emb_ln_g": jnp.ones((HIDDEN,), jnp.float32),
        "emb_ln_b": jnp.zeros((HIDDEN,), jnp.float32),
        "layers": [],
        "pooler_w": nrm((HIDDEN, HIDDEN)),
        "pooler_b": jnp.zeros((HIDDEN,), jnp.float32),
        "cls_w": nrm((HIDDEN, N_CLASSES)),
        "cls_b": jnp.zeros((N_CLASSES,), jnp.float32),
    }
    for _ in range(N_LAYERS):
        p["layers"].append({
            "wq": nrm((HIDDEN, HIDDEN)), "bq": jnp.zeros((HIDDEN,), jnp.float32),
            "wk": nrm((HIDDEN, HIDDEN)), "bk": jnp.zeros((HIDDEN,), jnp.float32),
            "wv": nrm((HIDDEN, HIDDEN)), "bv": jnp.zeros((HIDDEN,), jnp.float32),
            "wo": nrm((HIDDEN, HIDDEN)), "bo": jnp.zeros((HIDDEN,), jnp.float32),
            "ln1_g": jnp.ones((HIDDEN,), jnp.float32),
            "ln1_b": jnp.zeros((HIDDEN,), jnp.float32),
            "iw": nrm((HIDDEN, INTERMEDIATE)),
            "ib": jnp.zeros((INTERMEDIATE,), jnp.float32),
            "ow": nrm((INTERMEDIATE, HIDDEN)),
            "ob": jnp.zeros((HIDDEN,), jnp.float32),
            "ln2_g": jnp.ones((HIDDEN,), jnp.float32),
            "ln2_b": jnp.zeros((HIDDEN,), jnp.float32),
        })
    return p


def prep_kernel_params(p, batch):
    """Rearrange logical weights into the fused-kernel layout:
       - per-head attention weights (head-batched, tiled across the batch so the kernel's
         batched einsums need no in-kernel broadcast of weights),
       - all layers stacked on a leading axis,
       - matmul weights cast to bf16 (biases / LayerNorm params stay f32),
       - classifier padded to CLS_PAD=128 output lanes (lane-dense final HBM store)."""
    bf16 = jnp.bfloat16

    def head_w(w):   # (H, H) -> (batch*N_HEADS, H, HEAD_DIM)
        hw = w.reshape(HIDDEN, N_HEADS, HEAD_DIM).transpose(1, 0, 2)
        return jnp.tile(hw, (batch, 1, 1)).astype(bf16)

    def head_b(b):   # (H,) -> (batch*N_HEADS, 1, HEAD_DIM)
        return jnp.tile(b.reshape(N_HEADS, 1, HEAD_DIM), (batch, 1, 1))

    def out_w(w):    # (H, H) -> (batch*N_HEADS, HEAD_DIM, H)
        return jnp.tile(w.reshape(N_HEADS, HEAD_DIM, HIDDEN), (batch, 1, 1)).astype(bf16)

    L = p["layers"]
    stack = lambda f: jnp.stack([f(l) for l in L])

    return {
        "word_emb": p["word_emb"], "pos_emb": p["pos_emb"], "type_emb": p["type_emb"],
        "emb_g": p["emb_ln_g"].reshape(1, HIDDEN),
        "emb_b": p["emb_ln_b"].reshape(1, HIDDEN),
        "wq": stack(lambda l: head_w(l["wq"])),
        "wk": stack(lambda l: head_w(l["wk"])),
        "wv": stack(lambda l: head_w(l["wv"])),
        "qb": stack(lambda l: head_b(l["bq"])),
        "kb": stack(lambda l: head_b(l["bk"])),
        "vb": stack(lambda l: head_b(l["bv"])),
        "wo": stack(lambda l: out_w(l["wo"])),
        "ao_b": stack(lambda l: l["bo"].reshape(1, HIDDEN)),
        "ln1_g": stack(lambda l: l["ln1_g"].reshape(1, HIDDEN)),
        "ln1_b": stack(lambda l: l["ln1_b"].reshape(1, HIDDEN)),
        "iw": stack(lambda l: l["iw"].astype(bf16)),
        "ib": stack(lambda l: l["ib"].reshape(1, INTERMEDIATE)),
        "ow": stack(lambda l: l["ow"].astype(bf16)),
        "ob": stack(lambda l: l["ob"].reshape(1, HIDDEN)),
        "ln2_g": stack(lambda l: l["ln2_g"].reshape(1, HIDDEN)),
        "ln2_b": stack(lambda l: l["ln2_b"].reshape(1, HIDDEN)),
        "pool_w": p["pooler_w"].astype(bf16),
        "pool_b": p["pooler_b"].reshape(1, HIDDEN),
        "cls_w": jnp.zeros((HIDDEN, CLS_PAD), jnp.float32)
                    .at[:, :N_CLASSES].set(p["cls_w"]).astype(bf16),
        "cls_b": jnp.zeros((1, CLS_PAD), jnp.float32)
                    .at[:, :N_CLASSES].set(p["cls_b"]),
    }


# --------------------------- forward pass ---------------------------

def radbert_classifier_forward(kp, input_ids, attn_mask):
    """Mirrors RadBertClassifier.forward: encoder -> pooler_output -> classifier(logits)."""
    B, S = input_ids.shape

    # RoBERTa-style position ids + embedding gathers (plain-JAX glue)
    pos_ids = (jnp.cumsum(attn_mask, axis=1) * attn_mask).astype(jnp.int32) + PAD_IDX
    emb = (kp["word_emb"][input_ids]
           + kp["pos_emb"][pos_ids]
           + kp["type_emb"][jnp.zeros_like(input_ids)]).reshape(B * S, HIDDEN)

    # additive attention mask, pre-expanded to the (B*N_HEADS, 1, S) score layout
    neg_bias = (1.0 - attn_mask.astype(jnp.float32)) * (-1e9)                # (B, S)
    neg_bias = jnp.broadcast_to(neg_bias[:, None, None, :],
                                (B, N_HEADS, 1, S)).reshape(B * N_HEADS, 1, S)

    logits_pad = pl.pallas_call(
        _fused_forward_kernel,
        out_shape=jax.ShapeDtypeStruct((B, CLS_PAD), jnp.float32),
    )(emb, neg_bias,
      kp["emb_g"], kp["emb_b"],
      kp["wq"], kp["wk"], kp["wv"], kp["qb"], kp["kb"], kp["vb"],
      kp["wo"], kp["ao_b"], kp["ln1_g"], kp["ln1_b"],
      kp["iw"], kp["ib"], kp["ow"], kp["ob"], kp["ln2_g"], kp["ln2_b"],
      kp["pool_w"], kp["pool_b"], kp["cls_w"], kp["cls_b"])

    return logits_pad[:, :N_CLASSES]


# --------------------------- main ---------------------------

if __name__ == "__main__":
    key = jax.random.PRNGKey(0)
    pkey, ikey = jax.random.split(key)
    params = init_params(pkey)

    B, S = 2, 8
    kparams = prep_kernel_params(params, batch=B)

    input_ids = jax.random.randint(ikey, (B, S), 2, VOCAB, dtype=jnp.int32)
    attn_mask = jnp.ones((B, S), dtype=jnp.int32)
    attn_mask = attn_mask.at[1, -2:].set(0)   # exercise the padding mask

    fwd = jax.jit(radbert_classifier_forward)
    logits = jax.block_until_ready(fwd(kparams, input_ids, attn_mask))

    assert logits.shape == (B, N_CLASSES) and logits.dtype == jnp.float32
    assert bool(jnp.all(jnp.isfinite(logits)))
    print("KERNEL_OK")
</pallas_src>

<mosaic_0001>
module attributes {stable_mosaic.version = 11 : i64} {
  func.func @_fused_forward_kernel(%arg0: memref<16x64xf32, #tpu.memory_space<vmem>>, %arg1: memref<8x1x8xf32, #tpu.memory_space<vmem>>, %arg2: memref<1x64xf32, #tpu.memory_space<vmem>>, %arg3: memref<1x64xf32, #tpu.memory_space<vmem>>, %arg4: memref<2x8x64x16xbf16, #tpu.memory_space<vmem>>, %arg5: memref<2x8x64x16xbf16, #tpu.memory_space<vmem>>, %arg6: memref<2x8x64x16xbf16, #tpu.memory_space<vmem>>, %arg7: memref<2x8x1x16xf32, #tpu.memory_space<vmem>>, %arg8: memref<2x8x1x16xf32, #tpu.memory_space<vmem>>, %arg9: memref<2x8x1x16xf32, #tpu.memory_space<vmem>>, %arg10: memref<2x8x16x64xbf16, #tpu.memory_space<vmem>>, %arg11: memref<2x1x64xf32, #tpu.memory_space<vmem>>, %arg12: memref<2x1x64xf32, #tpu.memory_space<vmem>>, %arg13: memref<2x1x64xf32, #tpu.memory_space<vmem>>, %arg14: memref<2x64x128xbf16, #tpu.memory_space<vmem>>, %arg15: memref<2x1x128xf32, #tpu.memory_space<vmem>>, %arg16: memref<2x128x64xbf16, #tpu.memory_space<vmem>>, %arg17: memref<2x1x64xf32, #tpu.memory_space<vmem>>, %arg18: memref<2x1x64xf32, #tpu.memory_space<vmem>>, %arg19: memref<2x1x64xf32, #tpu.memory_space<vmem>>, %arg20: memref<64x64xbf16, #tpu.memory_space<vmem>>, %arg21: memref<1x64xf32, #tpu.memory_space<vmem>>, %arg22: memref<64x128xbf16, #tpu.memory_space<vmem>>, %arg23: memref<1x128xf32, #tpu.memory_space<vmem>>, %arg24: memref<2x128xf32, #tpu.memory_space<vmem>>) attributes {dimension_semantics = [], scalar_prefetch = 0 : i64, scratch_operands = 0 : i64, tpu.core_type = #tpu.core_type<tc>} {
    %c0 = arith.constant 0 : index
    %c0_0 = arith.constant 0 : index
    %c0_1 = arith.constant 0 : index
    %0 = vector.load %arg1[%c0, %c0_0, %c0_1] : memref<8x1x8xf32, #tpu.memory_space<vmem>>, vector<8x1x8xf32>
    %c0_2 = arith.constant 0 : index
    %c0_3 = arith.constant 0 : index
    %1 = vector.load %arg0[%c0_2, %c0_3] : memref<16x64xf32, #tpu.memory_space<vmem>>, vector<16x64xf32>
    %c0_4 = arith.constant 0 : index
    %c0_5 = arith.constant 0 : index
    %2 = vector.load %arg2[%c0_4, %c0_5] : memref<1x64xf32, #tpu.memory_space<vmem>>, vector<1x64xf32>
    %c0_6 = arith.constant 0 : index
    %c0_7 = arith.constant 0 : index
    %3 = vector.load %arg3[%c0_6, %c0_7] : memref<1x64xf32, #tpu.memory_space<vmem>>, vector<1x64xf32>
    %cst = arith.constant dense<0.000000e+00> : vector<16xf32>
    %4 = vector.multi_reduction <add>, %1, %cst [1] : vector<16x64xf32> to vector<16xf32>
    %5 = vector.shape_cast %4 : vector<16xf32> to vector<16x1xf32>
    %cst_8 = arith.constant 6.400000e+01 : f32
    %6 = vector.broadcast %cst_8 : f32 to vector<16x1xf32>
    %7 = arith.divf %5, %6 : vector<16x1xf32>
    %8 = vector.broadcast %7 : vector<16x1xf32> to vector<16x64xf32>
    %9 = arith.subf %1, %8 : vector<16x64xf32>
    %10 = arith.mulf %9, %9 : vector<16x64xf32>
    %cst_9 = arith.constant dense<0.000000e+00> : vector<16xf32>
    %11 = vector.multi_reduction <add>, %10, %cst_9 [1] : vector<16x64xf32> to vector<16xf32>
    %12 = vector.shape_cast %11 : vector<16xf32> to vector<16x1xf32>
    %cst_10 = arith.constant 6.400000e+01 : f32
    %13 = vector.broadcast %cst_10 : f32 to vector<16x1xf32>
    %14 = arith.divf %12, %13 : vector<16x1xf32>
    %15 = vector.broadcast %7 : vector<16x1xf32> to vector<16x64xf32>
    %16 = arith.subf %1, %15 : vector<16x64xf32>
    %cst_11 = arith.constant 9.99999974E-6 : f32
    %17 = vector.broadcast %cst_11 : f32 to vector<16x1xf32>
    %18 = arith.addf %14, %17 : vector<16x1xf32>
    %19 = math.rsqrt %18 : vector<16x1xf32>
    %20 = vector.broadcast %19 : vector<16x1xf32> to vector<16x64xf32>
    %21 = arith.mulf %16, %20 : vector<16x64xf32>
    %22 = vector.broadcast %2 : vector<1x64xf32> to vector<16x64xf32>
    %23 = arith.mulf %21, %22 : vector<16x64xf32>
    %24 = vector.broadcast %3 : vector<1x64xf32> to vector<16x64xf32>
    %25 = arith.addf %23, %24 : vector<16x64xf32>
    %26 = vector.shape_cast %25 : vector<16x64xf32> to vector<2x1x8x64xf32>
    %27 = vector.shape_cast %26 : vector<2x1x8x64xf32> to vector<2x1x8x64xf32>
    %28 = vector.broadcast %27 : vector<2x1x8x64xf32> to vector<2x4x8x64xf32>
    %29 = vector.shape_cast %28 : vector<2x4x8x64xf32> to vector<8x8x64xf32>
    %30 = arith.truncf %29 : vector<8x8x64xf32> to vector<8x8x64xbf16>
    %c0_12 = arith.constant 0 : index
    %c0_13 = arith.constant 0 : index
    %c0_14 = arith.constant 0 : index
    %c0_15 = arith.constant 0 : index
    %31 = vector.load %arg4[%c0_12, %c0_13, %c0_14, %c0_15] : memref<2x8x64x16xbf16, #tpu.memory_space<vmem>>, vector<1x8x64x16xbf16>
    %32 = vector.shape_cast %31 : vector<1x8x64x16xbf16> to vector<8x64x16xbf16>
    "tpu.trace_start"() <{level = 10 : i32, message = "bsc,bcd->bsd"}> : () -> ()
    %cst_16 = arith.constant dense<0.000000e+00> : vector<8x8x16xf32>
    %33 = tpu.matmul %30, %32, %cst_16 {dimension_numbers = #tpu.dot_dimension_numbers<[2], [1], [1], [2], [0, 0, 0, 1, 1, 2], [0], [0]>} : vector<8x8x64xbf16>, vector<8x64x16xbf16>, vector<8x8x16xf32> -> vector<8x8x16xf32>
    "tpu.trace_stop"() : () -> ()
    %c0_17 = arith.constant 0 : index
    %c0_18 = arith.constant 0 : index
    %c0_19 = arith.constant 0 : index
    %c0_20 = arith.constant 0 : index
    %34 = vector.load %arg7[%c0_17, %c0_18, %c0_19, %c0_20] : memref<2x8x1x16xf32, #tpu.memory_space<vmem>>, vector<1x8x1x16xf32>
    %35 = vector.shape_cast %34 : vector<1x8x1x16xf32> to vector<8x1x16xf32>
    %36 = vector.broadcast %35 : vector<8x1x16xf32> to vector<8x8x16xf32>
    %37 = arith.addf %33, %36 : vector<8x8x16xf32>
    %c0_21 = arith.constant 0 : index
    %c0_22 = arith.constant 0 : index
    %c0_23 = arith.constant 0 : index
    %c0_24 = arith.constant 0 : index
    %38 = vector.load %arg5[%c0_21, %c0_22, %c0_23, %c0_24] : memref<2x8x64x16xbf16, #tpu.memory_space<vmem>>, vector<1x8x64x16xbf16>
    %39 = vector.shape_cast %38 : vector<1x8x64x16xbf16> to vector<8x64x16xbf16>
    "tpu.trace_start"() <{level = 10 : i32, message = "bsc,bcd->bsd"}> : () -> ()
    %cst_25 = arith.constant dense<0.000000e+00> : vector<8x8x16xf32>
    %40 = tpu.matmul %30, %39, %cst_25 {dimension_numbers = #tpu.dot_dimension_numbers<[2], [1], [1], [2], [0, 0, 0, 1, 1, 2], [0], [0]>} : vector<8x8x64xbf16>, vector<8x64x16xbf16>, vector<8x8x16xf32> -> vector<8x8x16xf32>
    "tpu.trace_stop"() : () -> ()
    %c0_26 = arith.constant 0 : index
    %c0_27 = arith.constant 0 : index
    %c0_28 = arith.constant 0 : index
    %c0_29 = arith.constant 0 : index
    %41 = vector.load %arg8[%c0_26, %c0_27, %c0_28, %c0_29] : memref<2x8x1x16xf32, #tpu.memory_space<vmem>>, vector<1x8x1x16xf32>
    %42 = vector.shape_cast %41 : vector<1x8x1x16xf32> to vector<8x1x16xf32>
    %43 = vector.broadcast %42 : vector<8x1x16xf32> to vector<8x8x16xf32>
    %44 = arith.addf %40, %43 : vector<8x8x16xf32>
    %c0_30 = arith.constant 0 : index
    %c0_31 = arith.constant 0 : index
    %c0_32 = arith.constant 0 : index
    %c0_33 = arith.constant 0 : index
    %45 = vector.load %arg6[%c0_30, %c0_31, %c0_32, %c0_33] : memref<2x8x64x16xbf16, #tpu.memory_space<vmem>>, vector<1x8x64x16xbf16>
    %46 = vector.shape_cast %45 : vector<1x8x64x16xbf16> to vector<8x64x16xbf16>
    "tpu.trace_start"() <{level = 10 : i32, message = "bsc,bcd->bsd"}> : () -> ()
    %cst_34 = arith.constant dense<0.000000e+00> : vector<8x8x16xf32>
    %47 = tpu.matmul %30, %46, %cst_34 {dimension_numbers = #tpu.dot_dimension_numbers<[2], [1], [1], [2], [0, 0, 0, 1, 1, 2], [0], [0]>} : vector<8x8x64xbf16>, vector<8x64x16xbf16>, vector<8x8x16xf32> -> vector<8x8x16xf32>
    "tpu.trace_stop"() : () -> ()
    %c0_35 = arith.constant 0 : index
    %c0_36 = arith.constant 0 : index
    %c0_37 = arith.constant 0 : index
    %c0_38 = arith.constant 0 : index
    %48 = vector.load %arg9[%c0_35, %c0_36, %c0_37, %c0_38] : memref<2x8x1x16xf32, #tpu.memory_space<vmem>>, vector<1x8x1x16xf32>
    %49 = vector.shape_cast %48 : vector<1x8x1x16xf32> to vector<8x1x16xf32>
    %50 = vector.broadcast %49 : vector<8x1x16xf32> to vector<8x8x16xf32>
    %51 = arith.addf %47, %50 : vector<8x8x16xf32>
    %52 = arith.truncf %37 : vector<8x8x16xf32> to vector<8x8x16xbf16>
    %53 = arith.truncf %44 : vector<8x8x16xf32> to vector<8x8x16xbf16>
    "tpu.trace_start"() <{level = 10 : i32, message = "bqd,bkd->bqk"}> : () -> ()
    %cst_39 = arith.constant dense<0.000000e+00> : vector<8x8x8xf32>
    %54 = tpu.matmul %52, %53, %cst_39 {dimension_numbers = #tpu.dot_dimension_numbers<[2], [2], [1], [1], [0, 0, 0, 1, 1, 1], [0], [0]>} : vector<8x8x16xbf16>, vector<8x8x16xbf16>, vector<8x8x8xf32> -> vector<8x8x8xf32>
    "tpu.trace_stop"() : () -> ()
    %cst_40 = arith.constant 2.500000e-01 : f32
    %55 = vector.broadcast %cst_40 : f32 to vector<8x8x8xf32>
    %56 = arith.mulf %54, %55 : vector<8x8x8xf32>
    %57 = vector.broadcast %0 : vector<8x1x8xf32> to vector<8x8x8xf32>
    %58 = arith.addf %56, %57 : vector<8x8x8xf32>
    %cst_41 = arith.constant dense<0xFF800000> : vector<8x8xf32>
    %59 = vector.multi_reduction <maximumf>, %58, %cst_41 [2] : vector<8x8x8xf32> to vector<8x8xf32>
    %60 = vector.shape_cast %59 : vector<8x8xf32> to vector<8x8x1xf32>
    %61 = vector.broadcast %60 : vector<8x8x1xf32> to vector<8x8x8xf32>
    %62 = arith.subf %58, %61 : vector<8x8x8xf32>
    %63 = math.exp %62 : vector<8x8x8xf32>
    %cst_42 = arith.constant dense<0.000000e+00> : vector<8x8xf32>
    %64 = vector.multi_reduction <add>, %63, %cst_42 [2] : vector<8x8x8xf32> to vector<8x8xf32>
    %65 = vector.shape_cast %64 : vector<8x8xf32> to vector<8x8x1xf32>
    %66 = tpu.reciprocal %65 {approx = true} : vector<8x8x1xf32> -> vector<8x8x1xf32>
    %67 = vector.broadcast %66 : vector<8x8x1xf32> to vector<8x8x8xf32>
    %68 = arith.mulf %63, %67 : vector<8x8x8xf32>
    %69 = arith.truncf %68 : vector<8x8x8xf32> to vector<8x8x8xbf16>
    %70 = arith.truncf %51 : vector<8x8x16xf32> to vector<8x8x16xbf16>
    "tpu.trace_start"() <{level = 10 : i32, message = "bqk,bkd->bqd"}> : () -> ()
    %cst_43 = arith.constant dense<0.000000e+00> : vector<8x8x16xf32>
    %71 = tpu.matmul %69, %70, %cst_43 {dimension_numbers = #tpu.dot_dimension_numbers<[2], [1], [1], [2], [0, 0, 0, 1, 1, 2], [0], [0]>} : vector<8x8x8xbf16>, vector<8x8x16xbf16>, vector<8x8x16xf32> -> vector<8x8x16xf32>
    "tpu.trace_stop"() : () -> ()
    %72 = arith.truncf %71 : vector<8x8x16xf32> to vector<8x8x16xbf16>
    %c0_44 = arith.constant 0 : index
    %c0_45 = arith.constant 0 : index
    %c0_46 = arith.constant 0 : index
    %c0_47 = arith.constant 0 : index
    %73 = vector.load %arg10[%c0_44, %c0_45, %c0_46, %c0_47] : memref<2x8x16x64xbf16, #tpu.memory_space<vmem>>, vector<1x8x16x64xbf16>
    %74 = vector.shape_cast %73 : vector<1x8x16x64xbf16> to vector<8x16x64xbf16>
    "tpu.trace_start"() <{level = 10 : i32, message = "bqd,bdo->bqo"}> : () -> ()
    %cst_48 = arith.constant dense<0.000000e+00> : vector<8x8x64xf32>
    %75 = tpu.matmul %72, %74, %cst_48 {dimension_numbers = #tpu.dot_dimension_numbers<[2], [1], [1], [2], [0, 0, 0, 1, 1, 2], [0], [0]>} : vector<8x8x16xbf16>, vector<8x16x64xbf16>, vector<8x8x64xf32> -> vector<8x8x64xf32>
    "tpu.trace_stop"() : () -> ()
    %76 = vector.shape_cast %75 : vector<8x8x64xf32> to vector<2x4x8x64xf32>
    %cst_49 = arith.constant dense<0.000000e+00> : vector<2x8x64xf32>
    %77 = vector.multi_reduction <add>, %76, %cst_49 [1] : vector<2x4x8x64xf32> to vector<2x8x64xf32>
    %78 = vector.shape_cast %77 : vector<2x8x64xf32> to vector<16x64xf32>
    %c0_50 = arith.constant 0 : index
    %c0_51 = arith.constant 0 : index
    %c0_52 = arith.constant 0 : index
    %79 = vector.load %arg11[%c0_50, %c0_51, %c0_52] : memref<2x1x64xf32, #tpu.memory_space<vmem>>, vector<1x1x64xf32>
    %80 = vector.shape_cast %79 : vector<1x1x64xf32> to vector<1x64xf32>
    %81 = vector.broadcast %80 : vector<1x64xf32> to vector<16x64xf32>
    %82 = arith.addf %78, %81 : vector<16x64xf32>
    %83 = arith.addf %82, %25 : vector<16x64xf32>
    %c0_53 = arith.constant 0 : index
    %c0_54 = arith.constant 0 : index
    %c0_55 = arith.constant 0 : index
    %84 = vector.load %arg12[%c0_53, %c0_54, %c0_55] : memref<2x1x64xf32, #tpu.memory_space<vmem>>, vector<1x1x64xf32>
    %85 = vector.shape_cast %84 : vector<1x1x64xf32> to vector<1x64xf32>
    %c0_56 = arith.constant 0 : index
    %c0_57 = arith.constant 0 : index
    %c0_58 = arith.constant 0 : index
    %86 = vector.load %arg13[%c0_56, %c0_57, %c0_58] : memref<2x1x64xf32, #tpu.memory_space<vmem>>, vector<1x1x64xf32>
    %87 = vector.shape_cast %86 : vector<1x1x64xf32> to vector<1x64xf32>
    %cst_59 = arith.constant dense<0.000000e+00> : vector<16xf32>
    %88 = vector.multi_reduction <add>, %83, %cst_59 [1] : vector<16x64xf32> to vector<16xf32>
    %89 = vector.shape_cast %88 : vector<16xf32> to vector<16x1xf32>
    %cst_60 = arith.constant 6.400000e+01 : f32
    %90 = vector.broadcast %cst_60 : f32 to vector<16x1xf32>
    %91 = arith.divf %89, %90 : vector<16x1xf32>
    %92 = vector.broadcast %91 : vector<16x1xf32> to vector<16x64xf32>
    %93 = arith.subf %83, %92 : vector<16x64xf32>
    %94 = arith.mulf %93, %93 : vector<16x64xf32>
    %cst_61 = arith.constant dense<0.000000e+00> : vector<16xf32>
    %95 = vector.multi_reduction <add>, %94, %cst_61 [1] : vector<16x64xf32> to vector<16xf32>
    %96 = vector.shape_cast %95 : vector<16xf32> to vector<16x1xf32>
    %cst_62 = arith.constant 6.400000e+01 : f32
    %97 = vector.broadcast %cst_62 : f32 to vector<16x1xf32>
    %98 = arith.divf %96, %97 : vector<16x1xf32>
    %99 = vector.broadcast %91 : vector<16x1xf32> to vector<16x64xf32>
    %100 = arith.subf %83, %99 : vector<16x64xf32>
    %cst_63 = arith.constant 9.99999974E-6 : f32
    %101 = vector.broadcast %cst_63 : f32 to vector<16x1xf32>
    %102 = arith.addf %98, %101 : vector<16x1xf32>
    %103 = math.rsqrt %102 : vector<16x1xf32>
    %104 = vector.broadcast %103 : vector<16x1xf32> to vector<16x64xf32>
    %105 = arith.mulf %100, %104 : vector<16x64xf32>
    %106 = vector.broadcast %85 : vector<1x64xf32> to vector<16x64xf32>
    %107 = arith.mulf %105, %106 : vector<16x64xf32>
    %108 = vector.broadcast %87 : vector<1x64xf32> to vector<16x64xf32>
    %109 = arith.addf %107, %108 : vector<16x64xf32>
    %110 = arith.truncf %109 : vector<16x64xf32> to vector<16x64xbf16>
    %c0_64 = arith.constant 0 : index
    %c0_65 = arith.constant 0 : index
    %c0_66 = arith.constant 0 : index
    %111 = vector.load %arg14[%c0_64, %c0_65, %c0_66] : memref<2x64x128xbf16, #tpu.memory_space<vmem>>, vector<1x64x128xbf16>
    %112 = vector.shape_cast %111 : vector<1x64x128xbf16> to vector<64x128xbf16>
    %cst_67 = arith.constant dense<0.000000e+00> : vector<16x128xf32>
    %113 = tpu.matmul %110, %112, %cst_67 {dimension_numbers = #tpu.dot_dimension_numbers<[1], [0], [0], [1], [0, 0, 1, 1], [], []>} : vector<16x64xbf16>, vector<64x128xbf16>, vector<16x128xf32> -> vector<16x128xf32>
    %c0_68 = arith.constant 0 : index
    %c0_69 = arith.constant 0 : index
    %c0_70 = arith.constant 0 : index
    %114 = vector.load %arg15[%c0_68, %c0_69, %c0_70] : memref<2x1x128xf32, #tpu.memory_space<vmem>>, vector<1x1x128xf32>
    %115 = vector.shape_cast %114 : vector<1x1x128xf32> to vector<1x128xf32>
    %116 = vector.broadcast %115 : vector<1x128xf32> to vector<16x128xf32>
    %117 = arith.addf %113, %116 : vector<16x128xf32>
    %cst_71 = arith.constant 5.000000e-01 : f32
    %118 = vector.broadcast %cst_71 : f32 to vector<16x128xf32>
    %119 = arith.mulf %118, %117 : vector<16x128xf32>
    %cst_72 = arith.constant 4.471500e-02 : f32
    %120 = vector.broadcast %cst_72 : f32 to vector<16x128xf32>
    %121 = arith.mulf %120, %117 : vector<16x128xf32>
    %122 = arith.mulf %121, %117 : vector<16x128xf32>
    %123 = arith.mulf %122, %117 : vector<16x128xf32>
    %124 = arith.addf %117, %123 : vector<16x128xf32>
    %cst_73 = arith.constant 0.797884583 : f32
    %125 = vector.broadcast %cst_73 : f32 to vector<16x128xf32>
    %126 = arith.mulf %125, %124 : vector<16x128xf32>
    %127 = math.tanh %126 : vector<16x128xf32>
    %cst_74 = arith.constant 1.000000e+00 : f32
    %128 = vector.broadcast %cst_74 : f32 to vector<16x128xf32>
    %129 = arith.addf %128, %127 : vector<16x128xf32>
    %130 = arith.mulf %119, %129 : vector<16x128xf32>
    %131 = arith.truncf %130 : vector<16x128xf32> to vector<16x128xbf16>
    %c0_75 = arith.constant 0 : index
    %c0_76 = arith.constant 0 : index
    %c0_77 = arith.constant 0 : index
    %132 = vector.load %arg16[%c0_75, %c0_76, %c0_77] : memref<2x128x64xbf16, #tpu.memory_space<vmem>>, vector<1x128x64xbf16>
    %133 = vector.shape_cast %132 : vector<1x128x64xbf16> to vector<128x64xbf16>
    %cst_78 = arith.constant dense<0.000000e+00> : vector<16x64xf32>
    %134 = tpu.matmul %131, %133, %cst_78 {dimension_numbers = #tpu.dot_dimension_numbers<[1], [0], [0], [1], [0, 0, 1, 1], [], []>} : vector<16x128xbf16>, vector<128x64xbf16>, vector<16x64xf32> -> vector<16x64xf32>
    %c0_79 = arith.constant 0 : index
    %c0_80 = arith.constant 0 : index
    %c0_81 = arith.constant 0 : index
    %135 = vector.load %arg17[%c0_79, %c0_80, %c0_81] : memref<2x1x64xf32, #tpu.memory_space<vmem>>, vector<1x1x64xf32>
    %136 = vector.shape_cast %135 : vector<1x1x64xf32> to vector<1x64xf32>
    %137 = vector.broadcast %136 : vector<1x64xf32> to vector<16x64xf32>
    %138 = arith.addf %134, %137 : vector<16x64xf32>
    %139 = arith.addf %138, %109 : vector<16x64xf32>
    %c0_82 = arith.constant 0 : index
    %c0_83 = arith.constant 0 : index
    %c0_84 = arith.constant 0 : index
    %140 = vector.load %arg18[%c0_82, %c0_83, %c0_84] : memref<2x1x64xf32, #tpu.memory_space<vmem>>, vector<1x1x64xf32>
    %141 = vector.shape_cast %140 : vector<1x1x64xf32> to vector<1x64xf32>
    %c0_85 = arith.constant 0 : index
    %c0_86 = arith.constant 0 : index
    %c0_87 = arith.constant 0 : index
    %142 = vector.load %arg19[%c0_85, %c0_86, %c0_87] : memref<2x1x64xf32, #tpu.memory_space<vmem>>, vector<1x1x64xf32>
    %143 = vector.shape_cast %142 : vector<1x1x64xf32> to vector<1x64xf32>
    %cst_88 = arith.constant dense<0.000000e+00> : vector<16xf32>
    %144 = vector.multi_reduction <add>, %139, %cst_88 [1] : vector<16x64xf32> to vector<16xf32>
    %145 = vector.shape_cast %144 : vector<16xf32> to vector<16x1xf32>
    %cst_89 = arith.constant 6.400000e+01 : f32
    %146 = vector.broadcast %cst_89 : f32 to vector<16x1xf32>
    %147 = arith.divf %145, %146 : vector<16x1xf32>
    %148 = vector.broadcast %147 : vector<16x1xf32> to vector<16x64xf32>
    %149 = arith.subf %139, %148 : vector<16x64xf32>
    %150 = arith.mulf %149, %149 : vector<16x64xf32>
    %cst_90 = arith.constant dense<0.000000e+00> : vector<16xf32>
    %151 = vector.multi_reduction <add>, %150, %cst_90 [1] : vector<16x64xf32> to vector<16xf32>
    %152 = vector.shape_cast %151 : vector<16xf32> to vector<16x1xf32>
    %cst_91 = arith.constant 6.400000e+01 : f32
    %153 = vector.broadcast %cst_91 : f32 to vector<16x1xf32>
    %154 = arith.divf %152, %153 : vector<16x1xf32>
    %155 = vector.broadcast %147 : vector<16x1xf32> to vector<16x64xf32>
    %156 = arith.subf %139, %155 : vector<16x64xf32>
    %cst_92 = arith.constant 9.99999974E-6 : f32
    %157 = vector.broadcast %cst_92 : f32 to vector<16x1xf32>
    %158 = arith.addf %154, %157 : vector<16x1xf32>
    %159 = math.rsqrt %158 : vector<16x1xf32>
    %160 = vector.broadcast %159 : vector<16x1xf32> to vector<16x64xf32>
    %161 = arith.mulf %156, %160 : vector<16x64xf32>
    %162 = vector.broadcast %141 : vector<1x64xf32> to vector<16x64xf32>
    %163 = arith.mulf %161, %162 : vector<16x64xf32>
    %164 = vector.broadcast %143 : vector<1x64xf32> to vector<16x64xf32>
    %165 = arith.addf %163, %164 : vector<16x64xf32>
    %166 = vector.shape_cast %165 : vector<16x64xf32> to vector<2x1x8x64xf32>
    %167 = vector.shape_cast %166 : vector<2x1x8x64xf32> to vector<2x1x8x64xf32>
    %168 = vector.broadcast %167 : vector<2x1x8x64xf32> to vector<2x4x8x64xf32>
    %169 = vector.shape_cast %168 : vector<2x4x8x64xf32> to vector<8x8x64xf32>
    %170 = arith.truncf %169 : vector<8x8x64xf32> to vector<8x8x64xbf16>
    %c1 = arith.constant 1 : index
    %c0_93 = arith.constant 0 : index
    %c0_94 = arith.constant 0 : index
    %c0_95 = arith.constant 0 : index
    %171 = vector.load %arg4[%c1, %c0_93, %c0_94, %c0_95] : memref<2x8x64x16xbf16, #tpu.memory_space<vmem>>, vector<1x8x64x16xbf16>
    %172 = vector.shape_cast %171 : vector<1x8x64x16xbf16> to vector<8x64x16xbf16>
    "tpu.trace_start"() <{level = 10 : i32, message = "bsc,bcd->bsd"}> : () -> ()
    %cst_96 = arith.constant dense<0.000000e+00> : vector<8x8x16xf32>
    %173 = tpu.matmul %170, %172, %cst_96 {dimension_numbers = #tpu.dot_dimension_numbers<[2], [1], [1], [2], [0, 0, 0, 1, 1, 2], [0], [0]>} : vector<8x8x64xbf16>, vector<8x64x16xbf16>, vector<8x8x16xf32> -> vector<8x8x16xf32>
    "tpu.trace_stop"() : () -> ()
    %c1_97 = arith.constant 1 : index
    %c0_98 = arith.constant 0 : index
    %c0_99 = arith.constant 0 : index
    %c0_100 = arith.constant 0 : index
    %174 = vector.load %arg7[%c1_97, %c0_98, %c0_99, %c0_100] : memref<2x8x1x16xf32, #tpu.memory_space<vmem>>, vector<1x8x1x16xf32>
    %175 = vector.shape_cast %174 : vector<1x8x1x16xf32> to vector<8x1x16xf32>
    %176 = vector.broadcast %175 : vector<8x1x16xf32> to vector<8x8x16xf32>
    %177 = arith.addf %173, %176 : vector<8x8x16xf32>
    %c1_101 = arith.constant 1 : index
    %c0_102 = arith.constant 0 : index
    %c0_103 = arith.constant 0 : index
    %c0_104 = arith.constant 0 : index
    %178 = vector.load %arg5[%c1_101, %c0_102, %c0_103, %c0_104] : memref<2x8x64x16xbf16, #tpu.memory_space<vmem>>, vector<1x8x64x16xbf16>
    %179 = vector.shape_cast %178 : vector<1x8x64x16xbf16> to vector<8x64x16xbf16>
    "tpu.trace_start"() <{level = 10 : i32, message = "bsc,bcd->bsd"}> : () -> ()
    %cst_105 = arith.constant dense<0.000000e+00> : vector<8x8x16xf32>
    %180 = tpu.matmul %170, %179, %cst_105 {dimension_numbers = #tpu.dot_dimension_numbers<[2], [1], [1], [2], [0, 0, 0, 1, 1, 2], [0], [0]>} : vector<8x8x64xbf16>, vector<8x64x16xbf16>, vector<8x8x16xf32> -> vector<8x8x16xf32>
    "tpu.trace_stop"() : () -> ()
    %c1_106 = arith.constant 1 : index
    %c0_107 = arith.constant 0 : index
    %c0_108 = arith.constant 0 : index
    %c0_109 = arith.constant 0 : index
    %181 = vector.load %arg8[%c1_106, %c0_107, %c0_108, %c0_109] : memref<2x8x1x16xf32, #tpu.memory_space<vmem>>, vector<1x8x1x16xf32>
    %182 = vector.shape_cast %181 : vector<1x8x1x16xf32> to vector<8x1x16xf32>
    %183 = vector.broadcast %182 : vector<8x1x16xf32> to vector<8x8x16xf32>
    %184 = arith.addf %180, %183 : vector<8x8x16xf32>
    %c1_110 = arith.constant 1 : index
    %c0_111 = arith.constant 0 : index
    %c0_112 = arith.constant 0 : index
    %c0_113 = arith.constant 0 : index
    %185 = vector.load %arg6[%c1_110, %c0_111, %c0_112, %c0_113] : memref<2x8x64x16xbf16, #tpu.memory_space<vmem>>, vector<1x8x64x16xbf16>
    %186 = vector.shape_cast %185 : vector<1x8x64x16xbf16> to vector<8x64x16xbf16>
    "tpu.trace_start"() <{level = 10 : i32, message = "bsc,bcd->bsd"}> : () -> ()
    %cst_114 = arith.constant dense<0.000000e+00> : vector<8x8x16xf32>
    %187 = tpu.matmul %170, %186, %cst_114 {dimension_numbers = #tpu.dot_dimension_numbers<[2], [1], [1], [2], [0, 0, 0, 1, 1, 2], [0], [0]>} : vector<8x8x64xbf16>, vector<8x64x16xbf16>, vector<8x8x16xf32> -> vector<8x8x16xf32>
    "tpu.trace_stop"() : () -> ()
    %c1_115 = arith.constant 1 : index
    %c0_116 = arith.constant 0 : index
    %c0_117 = arith.constant 0 : index
    %c0_118 = arith.constant 0 : index
    %188 = vector.load %arg9[%c1_115, %c0_116, %c0_117, %c0_118] : memref<2x8x1x16xf32, #tpu.memory_space<vmem>>, vector<1x8x1x16xf32>
    %189 = vector.shape_cast %188 : vector<1x8x1x16xf32> to vector<8x1x16xf32>
    %190 = vector.broadcast %189 : vector<8x1x16xf32> to vector<8x8x16xf32>
    %191 = arith.addf %187, %190 : vector<8x8x16xf32>
    %192 = arith.truncf %177 : vector<8x8x16xf32> to vector<8x8x16xbf16>
    %193 = arith.truncf %184 : vector<8x8x16xf32> to vector<8x8x16xbf16>
    "tpu.trace_start"() <{level = 10 : i32, message = "bqd,bkd->bqk"}> : () -> ()
    %cst_119 = arith.constant dense<0.000000e+00> : vector<8x8x8xf32>
    %194 = tpu.matmul %192, %193, %cst_119 {dimension_numbers = #tpu.dot_dimension_numbers<[2], [2], [1], [1], [0, 0, 0, 1, 1, 1], [0], [0]>} : vector<8x8x16xbf16>, vector<8x8x16xbf16>, vector<8x8x8xf32> -> vector<8x8x8xf32>
    "tpu.trace_stop"() : () -> ()
    %cst_120 = arith.constant 2.500000e-01 : f32
    %195 = vector.broadcast %cst_120 : f32 to vector<8x8x8xf32>
    %196 = arith.mulf %194, %195 : vector<8x8x8xf32>
    %197 = vector.broadcast %0 : vector<8x1x8xf32> to vector<8x8x8xf32>
    %198 = arith.addf %196, %197 : vector<8x8x8xf32>
    %cst_121 = arith.constant dense<0xFF800000> : vector<8x8xf32>
    %199 = vector.multi_reduction <maximumf>, %198, %cst_121 [2] : vector<8x8x8xf32> to vector<8x8xf32>
    %200 = vector.shape_cast %199 : vector<8x8xf32> to vector<8x8x1xf32>
    %201 = vector.broadcast %200 : vector<8x8x1xf32> to vector<8x8x8xf32>
    %202 = arith.subf %198, %201 : vector<8x8x8xf32>
    %203 = math.exp %202 : vector<8x8x8xf32>
    %cst_122 = arith.constant dense<0.000000e+00> : vector<8x8xf32>
    %204 = vector.multi_reduction <add>, %203, %cst_122 [2] : vector<8x8x8xf32> to vector<8x8xf32>
    %205 = vector.shape_cast %204 : vector<8x8xf32> to vector<8x8x1xf32>
    %206 = tpu.reciprocal %205 {approx = true} : vector<8x8x1xf32> -> vector<8x8x1xf32>
    %207 = vector.broadcast %206 : vector<8x8x1xf32> to vector<8x8x8xf32>
    %208 = arith.mulf %203, %207 : vector<8x8x8xf32>
    %209 = arith.truncf %208 : vector<8x8x8xf32> to vector<8x8x8xbf16>
    %210 = arith.truncf %191 : vector<8x8x16xf32> to vector<8x8x16xbf16>
    "tpu.trace_start"() <{level = 10 : i32, message = "bqk,bkd->bqd"}> : () -> ()
    %cst_123 = arith.constant dense<0.000000e+00> : vector<8x8x16xf32>
    %211 = tpu.matmul %209, %210, %cst_123 {dimension_numbers = #tpu.dot_dimension_numbers<[2], [1], [1], [2], [0, 0, 0, 1, 1, 2], [0], [0]>} : vector<8x8x8xbf16>, vector<8x8x16xbf16>, vector<8x8x16xf32> -> vector<8x8x16xf32>
    "tpu.trace_stop"() : () -> ()
    %212 = arith.truncf %211 : vector<8x8x16xf32> to vector<8x8x16xbf16>
    %c1_124 = arith.constant 1 : index
    %c0_125 = arith.constant 0 : index
    %c0_126 = arith.constant 0 : index
    %c0_127 = arith.constant 0 : index
    %213 = vector.load %arg10[%c1_124, %c0_125, %c0_126, %c0_127] : memref<2x8x16x64xbf16, #tpu.memory_space<vmem>>, vector<1x8x16x64xbf16>
    %214 = vector.shape_cast %213 : vector<1x8x16x64xbf16> to vector<8x16x64xbf16>
    "tpu.trace_start"() <{level = 10 : i32, message = "bqd,bdo->bqo"}> : () -> ()
    %cst_128 = arith.constant dense<0.000000e+00> : vector<8x8x64xf32>
    %215 = tpu.matmul %212, %214, %cst_128 {dimension_numbers = #tpu.dot_dimension_numbers<[2], [1], [1], [2], [0, 0, 0, 1, 1, 2], [0], [0]>} : vector<8x8x16xbf16>, vector<8x16x64xbf16>, vector<8x8x64xf32> -> vector<8x8x64xf32>
    "tpu.trace_stop"() : () -> ()
    %216 = vector.shape_cast %215 : vector<8x8x64xf32> to vector<2x4x8x64xf32>
    %cst_129 = arith.constant dense<0.000000e+00> : vector<2x8x64xf32>
    %217 = vector.multi_reduction <add>, %216, %cst_129 [1] : vector<2x4x8x64xf32> to vector<2x8x64xf32>
    %218 = vector.shape_cast %217 : vector<2x8x64xf32> to vector<16x64xf32>
    %c1_130 = arith.constant 1 : index
    %c0_131 = arith.constant 0 : index
    %c0_132 = arith.constant 0 : index
    %219 = vector.load %arg11[%c1_130, %c0_131, %c0_132] : memref<2x1x64xf32, #tpu.memory_space<vmem>>, vector<1x1x64xf32>
    %220 = vector.shape_cast %219 : vector<1x1x64xf32> to vector<1x64xf32>
    %221 = vector.broadcast %220 : vector<1x64xf32> to vector<16x64xf32>
    %222 = arith.addf %218, %221 : vector<16x64xf32>
    %223 = arith.addf %222, %165 : vector<16x64xf32>
    %c1_133 = arith.constant 1 : index
    %c0_134 = arith.constant 0 : index
    %c0_135 = arith.constant 0 : index
    %224 = vector.load %arg12[%c1_133, %c0_134, %c0_135] : memref<2x1x64xf32, #tpu.memory_space<vmem>>, vector<1x1x64xf32>
    %225 = vector.shape_cast %224 : vector<1x1x64xf32> to vector<1x64xf32>
    %c1_136 = arith.constant 1 : index
    %c0_137 = arith.constant 0 : index
    %c0_138 = arith.constant 0 : index
    %226 = vector.load %arg13[%c1_136, %c0_137, %c0_138] : memref<2x1x64xf32, #tpu.memory_space<vmem>>, vector<1x1x64xf32>
    %227 = vector.shape_cast %226 : vector<1x1x64xf32> to vector<1x64xf32>
    %cst_139 = arith.constant dense<0.000000e+00> : vector<16xf32>
    %228 = vector.multi_reduction <add>, %223, %cst_139 [1] : vector<16x64xf32> to vector<16xf32>
    %229 = vector.shape_cast %228 : vector<16xf32> to vector<16x1xf32>
    %cst_140 = arith.constant 6.400000e+01 : f32
    %230 = vector.broadcast %cst_140 : f32 to vector<16x1xf32>
    %231 = arith.divf %229, %230 : vector<16x1xf32>
    %232 = vector.broadcast %231 : vector<16x1xf32> to vector<16x64xf32>
    %233 = arith.subf %223, %232 : vector<16x64xf32>
    %234 = arith.mulf %233, %233 : vector<16x64xf32>
    %cst_141 = arith.constant dense<0.000000e+00> : vector<16xf32>
    %235 = vector.multi_reduction <add>, %234, %cst_141 [1] : vector<16x64xf32> to vector<16xf32>
    %236 = vector.shape_cast %235 : vector<16xf32> to vector<16x1xf32>
    %cst_142 = arith.constant 6.400000e+01 : f32
    %237 = vector.broadcast %cst_142 : f32 to vector<16x1xf32>
    %238 = arith.divf %236, %237 : vector<16x1xf32>
    %239 = vector.broadcast %231 : vector<16x1xf32> to vector<16x64xf32>
    %240 = arith.subf %223, %239 : vector<16x64xf32>
    %cst_143 = arith.constant 9.99999974E-6 : f32
    %241 = vector.broadcast %cst_143 : f32 to vector<16x1xf32>
    %242 = arith.addf %238, %241 : vector<16x1xf32>
    %243 = math.rsqrt %242 : vector<16x1xf32>
    %244 = vector.broadcast %243 : vector<16x1xf32> to vector<16x64xf32>
    %245 = arith.mulf %240, %244 : vector<16x64xf32>
    %246 = vector.broadcast %225 : vector<1x64xf32> to vector<16x64xf32>
    %247 = arith.mulf %245, %246 : vector<16x64xf32>
    %248 = vector.broadcast %227 : vector<1x64xf32> to vector<16x64xf32>
    %249 = arith.addf %247, %248 : vector<16x64xf32>
    %250 = arith.truncf %249 : vector<16x64xf32> to vector<16x64xbf16>
    %c1_144 = arith.constant 1 : index
    %c0_145 = arith.constant 0 : index
    %c0_146 = arith.constant 0 : index
    %251 = vector.load %arg14[%c1_144, %c0_145, %c0_146] : memref<2x64x128xbf16, #tpu.memory_space<vmem>>, vector<1x64x128xbf16>
    %252 = vector.shape_cast %251 : vector<1x64x128xbf16> to vector<64x128xbf16>
    %cst_147 = arith.constant dense<0.000000e+00> : vector<16x128xf32>
    %253 = tpu.matmul %250, %252, %cst_147 {dimension_numbers = #tpu.dot_dimension_numbers<[1], [0], [0], [1], [0, 0, 1, 1], [], []>} : vector<16x64xbf16>, vector<64x128xbf16>, vector<16x128xf32> -> vector<16x128xf32>
    %c1_148 = arith.constant 1 : index
    %c0_149 = arith.constant 0 : index
    %c0_150 = arith.constant 0 : index
    %254 = vector.load %arg15[%c1_148, %c0_149, %c0_150] : memref<2x1x128xf32, #tpu.memory_space<vmem>>, vector<1x1x128xf32>
    %255 = vector.shape_cast %254 : vector<1x1x128xf32> to vector<1x128xf32>
    %256 = vector.broadcast %255 : vector<1x128xf32> to vector<16x128xf32>
    %257 = arith.addf %253, %256 : vector<16x128xf32>
    %cst_151 = arith.constant 5.000000e-01 : f32
    %258 = vector.broadcast %cst_151 : f32 to vector<16x128xf32>
    %259 = arith.mulf %258, %257 : vector<16x128xf32>
    %cst_152 = arith.constant 4.471500e-02 : f32
    %260 = vector.broadcast %cst_152 : f32 to vector<16x128xf32>
    %261 = arith.mulf %260, %257 : vector<16x128xf32>
    %262 = arith.mulf %261, %257 : vector<16x128xf32>
    %263 = arith.mulf %262, %257 : vector<16x128xf32>
    %264 = arith.addf %257, %263 : vector<16x128xf32>
    %cst_153 = arith.constant 0.797884583 : f32
    %265 = vector.broadcast %cst_153 : f32 to vector<16x128xf32>
    %266 = arith.mulf %265, %264 : vector<16x128xf32>
    %267 = math.tanh %266 : vector<16x128xf32>
    %cst_154 = arith.constant 1.000000e+00 : f32
    %268 = vector.broadcast %cst_154 : f32 to vector<16x128xf32>
    %269 = arith.addf %268, %267 : vector<16x128xf32>
    %270 = arith.mulf %259, %269 : vector<16x128xf32>
    %271 = arith.truncf %270 : vector<16x128xf32> to vector<16x128xbf16>
    %c1_155 = arith.constant 1 : index
    %c0_156 = arith.constant 0 : index
    %c0_157 = arith.constant 0 : index
    %272 = vector.load %arg16[%c1_155, %c0_156, %c0_157] : memref<2x128x64xbf16, #tpu.memory_space<vmem>>, vector<1x128x64xbf16>
    %273 = vector.shape_cast %272 : vector<1x128x64xbf16> to vector<128x64xbf16>
    %cst_158 = arith.constant dense<0.000000e+00> : vector<16x64xf32>
    %274 = tpu.matmul %271, %273, %cst_158 {dimension_numbers = #tpu.dot_dimension_numbers<[1], [0], [0], [1], [0, 0, 1, 1], [], []>} : vector<16x128xbf16>, vector<128x64xbf16>, vector<16x64xf32> -> vector<16x64xf32>
    %c1_159 = arith.constant 1 : index
    %c0_160 = arith.constant 0 : index
    %c0_161 = arith.constant 0 : index
    %275 = vector.load %arg17[%c1_159, %c0_160, %c0_161] : memref<2x1x64xf32, #tpu.memory_space<vmem>>, vector<1x1x64xf32>
    %276 = vector.shape_cast %275 : vector<1x1x64xf32> to vector<1x64xf32>
    %277 = vector.broadcast %276 : vector<1x64xf32> to vector<16x64xf32>
    %278 = arith.addf %274, %277 : vector<16x64xf32>
    %279 = arith.addf %278, %249 : vector<16x64xf32>
    %c1_162 = arith.constant 1 : index
    %c0_163 = arith.constant 0 : index
    %c0_164 = arith.constant 0 : index
    %280 = vector.load %arg18[%c1_162, %c0_163, %c0_164] : memref<2x1x64xf32, #tpu.memory_space<vmem>>, vector<1x1x64xf32>
    %281 = vector.shape_cast %280 : vector<1x1x64xf32> to vector<1x64xf32>
    %c1_165 = arith.constant 1 : index
    %c0_166 = arith.constant 0 : index
    %c0_167 = arith.constant 0 : index
    %282 = vector.load %arg19[%c1_165, %c0_166, %c0_167] : memref<2x1x64xf32, #tpu.memory_space<vmem>>, vector<1x1x64xf32>
    %283 = vector.shape_cast %282 : vector<1x1x64xf32> to vector<1x64xf32>
    %cst_168 = arith.constant dense<0.000000e+00> : vector<16xf32>
    %284 = vector.multi_reduction <add>, %279, %cst_168 [1] : vector<16x64xf32> to vector<16xf32>
    %285 = vector.shape_cast %284 : vector<16xf32> to vector<16x1xf32>
    %cst_169 = arith.constant 6.400000e+01 : f32
    %286 = vector.broadcast %cst_169 : f32 to vector<16x1xf32>
    %287 = arith.divf %285, %286 : vector<16x1xf32>
    %288 = vector.broadcast %287 : vector<16x1xf32> to vector<16x64xf32>
    %289 = arith.subf %279, %288 : vector<16x64xf32>
    %290 = arith.mulf %289, %289 : vector<16x64xf32>
    %cst_170 = arith.constant dense<0.000000e+00> : vector<16xf32>
    %291 = vector.multi_reduction <add>, %290, %cst_170 [1] : vector<16x64xf32> to vector<16xf32>
    %292 = vector.shape_cast %291 : vector<16xf32> to vector<16x1xf32>
    %cst_171 = arith.constant 6.400000e+01 : f32
    %293 = vector.broadcast %cst_171 : f32 to vector<16x1xf32>
    %294 = arith.divf %292, %293 : vector<16x1xf32>
    %295 = vector.broadcast %287 : vector<16x1xf32> to vector<16x64xf32>
    %296 = arith.subf %279, %295 : vector<16x64xf32>
    %cst_172 = arith.constant 9.99999974E-6 : f32
    %297 = vector.broadcast %cst_172 : f32 to vector<16x1xf32>
    %298 = arith.addf %294, %297 : vector<16x1xf32>
    %299 = math.rsqrt %298 : vector<16x1xf32>
    %300 = vector.broadcast %299 : vector<16x1xf32> to vector<16x64xf32>
    %301 = arith.mulf %296, %300 : vector<16x64xf32>
    %302 = vector.broadcast %281 : vector<1x64xf32> to vector<16x64xf32>
    %303 = arith.mulf %301, %302 : vector<16x64xf32>
    %304 = vector.broadcast %283 : vector<1x64xf32> to vector<16x64xf32>
    %305 = arith.addf %303, %304 : vector<16x64xf32>
    %306 = vector.shape_cast %305 : vector<16x64xf32> to vector<2x8x64xf32>
    %307 = vector.extract_strided_slice %306 {offsets = [0, 0, 0], sizes = [2, 1, 64], strides = [1, 1, 1]} : vector<2x8x64xf32> to vector<2x1x64xf32>
    %308 = vector.shape_cast %307 : vector<2x1x64xf32> to vector<2x64xf32>
    %309 = arith.truncf %308 : vector<2x64xf32> to vector<2x64xbf16>
    %c0_173 = arith.constant 0 : index
    %c0_174 = arith.constant 0 : index
    %310 = vector.load %arg20[%c0_173, %c0_174] : memref<64x64xbf16, #tpu.memory_space<vmem>>, vector<64x64xbf16>
    %cst_175 = arith.constant dense<0.000000e+00> : vector<2x64xf32>
    %311 = tpu.matmul %309, %310, %cst_175 {dimension_numbers = #tpu.dot_dimension_numbers<[1], [0], [0], [1], [0, 0, 1, 1], [], []>} : vector<2x64xbf16>, vector<64x64xbf16>, vector<2x64xf32> -> vector<2x64xf32>
    %c0_176 = arith.constant 0 : index
    %c0_177 = arith.constant 0 : index
    %312 = vector.load %arg21[%c0_176, %c0_177] : memref<1x64xf32, #tpu.memory_space<vmem>>, vector<1x64xf32>
    %313 = vector.broadcast %312 : vector<1x64xf32> to vector<2x64xf32>
    %314 = arith.addf %311, %313 : vector<2x64xf32>
    %315 = math.tanh %314 : vector<2x64xf32>
    %316 = arith.truncf %315 : vector<2x64xf32> to vector<2x64xbf16>
    %c0_178 = arith.constant 0 : index
    %c0_179 = arith.constant 0 : index
    %317 = vector.load %arg22[%c0_178, %c0_179] : memref<64x128xbf16, #tpu.memory_space<vmem>>, vector<64x128xbf16>
    %cst_180 = arith.constant dense<0.000000e+00> : vector<2x128xf32>
    %318 = tpu.matmul %316, %317, %cst_180 {dimension_numbers = #tpu.dot_dimension_numbers<[1], [0], [0], [1], [0, 0, 1, 1], [], []>} : vector<2x64xbf16>, vector<64x128xbf16>, vector<2x128xf32> -> vector<2x128xf32>
    %c0_181 = arith.constant 0 : index
    %c0_182 = arith.constant 0 : index
    %319 = vector.load %arg23[%c0_181, %c0_182] : memref<1x128xf32, #tpu.memory_space<vmem>>, vector<1x128xf32>
    %320 = vector.broadcast %319 : vector<1x128xf32> to vector<2x128xf32>
    %321 = arith.addf %318, %320 : vector<2x128xf32>
    %c0_183 = arith.constant 0 : index
    %c0_184 = arith.constant 0 : index
    %322 = vector.load %arg24[%c0_183, %c0_184] : memref<2x128xf32, #tpu.memory_space<vmem>>, vector<2x128xf32>
    tpu.vector_store %arg24[%c0_183, %c0_184], %321 {strides = array<i32>} : memref<2x128xf32, #tpu.memory_space<vmem>>, vector<2x128xf32>,
    return
  }
}

</mosaic_0001>

<llo_original>
// kernel: radbert_classifier_forward.1
$region0: #{radbert_classifier_forward.1}
  #allocation0 [shape = 'u32[]', space=smem, size = 0x4, offset = 0x4, fixed_abs, tag = 'smem constant byte address 0x4 - core index']
  #allocation1 [shape = 'u32[144,128]{1,0:T(1,128)}', space=vmem, size = 0x12000, scoped, tag = 'internal scratch']
  %s0 = inlined_call_operand.vmem [shape: f32[16,64], index: 0, kind: input, shape index: {}]
  %s1 = inlined_call_operand.vmem [shape: f32[8,1,8], index: 1, kind: input, shape index: {}]
  %s2 = inlined_call_operand.vmem [shape: f32[1,64], index: 2, kind: input, shape index: {}]
  %s3 = inlined_call_operand.vmem [shape: f32[1,64], index: 3, kind: input, shape index: {}]
  %s4 = inlined_call_operand.vmem [shape: bf16[2,8,64,16], index: 4, kind: input, shape index: {}]
  %s5 = inlined_call_operand.vmem [shape: bf16[2,8,64,16], index: 5, kind: input, shape index: {}]
  %s6 = inlined_call_operand.vmem [shape: bf16[2,8,64,16], index: 6, kind: input, shape index: {}]
  %s7 = inlined_call_operand.vmem [shape: f32[2,8,1,16], index: 7, kind: input, shape index: {}]
  %s8 = inlined_call_operand.vmem [shape: f32[2,8,1,16], index: 8, kind: input, shape index: {}]
  %s9 = inlined_call_operand.vmem [shape: f32[2,8,1,16], index: 9, kind: input, shape index: {}]
  %s10 = inlined_call_operand.vmem [shape: bf16[2,8,16,64], index: 10, kind: input, shape index: {}]
  %s11 = inlined_call_operand.vmem [shape: f32[2,1,64], index: 11, kind: input, shape index: {}]
  %s12 = inlined_call_operand.vmem [shape: f32[2,1,64], index: 12, kind: input, shape index: {}]
  %s13 = inlined_call_operand.vmem [shape: f32[2,1,64], index: 13, kind: input, shape index: {}]
  %s14 = inlined_call_operand.vmem [shape: bf16[2,64,128], index: 14, kind: input, shape index: {}]
  %s15 = inlined_call_operand.vmem [shape: f32[2,1,128], index: 15, kind: input, shape index: {}]
  %s16 = inlined_call_operand.vmem [shape: bf16[2,128,64], index: 16, kind: input, shape index: {}]
  %s17 = inlined_call_operand.vmem [shape: f32[2,1,64], index: 17, kind: input, shape index: {}]
  %s18 = inlined_call_operand.vmem [shape: f32[2,1,64], index: 18, kind: input, shape index: {}]
  %s19 = inlined_call_operand.vmem [shape: f32[2,1,64], index: 19, kind: input, shape index: {}]
  %s20 = inlined_call_operand.vmem [shape: bf16[64,64], index: 20, kind: input, shape index: {}]
  %s21 = inlined_call_operand.vmem [shape: f32[1,64], index: 21, kind: input, shape index: {}]
  %s22 = inlined_call_operand.vmem [shape: bf16[64,128], index: 22, kind: input, shape index: {}]
  %s23 = inlined_call_operand.vmem [shape: f32[1,128], index: 23, kind: input, shape index: {}]
  %s24 = inlined_call_operand.hbm [shape: f32[2,128], index: 24, kind: output, shape index: {}]
  %s25 = sld [smem:[#allocation0]]
  $region106: #{radbert_classifier_forward.1} parent=0
    _
  %s27 = ssub.s32 1, %s25
  %s28 = scalar_select 0, %s27, %s25
  $region1: #{radbert_classifier_forward.1} parent=0
    #allocation2 [shape = 'u8[1024]{0}', space=vmem, size = 0x400, scoped, tag = 'output window, operand 0, single buffered']
    #allocation3 [shape = 's32[1]{0}', space=sflag, size = 0x4, scoped, tag = 'scoped memory for radbert_classifier_forward.1']
    %29 = vsyncpa [#allocation3], 0
    // Predicated region
    $region2: #{radbert_classifier_forward.1} parent=1 // pred_check
      _
    $region3: #{radbert_classifier_forward.1} parent=1 // pred_check_branch
      %31 = sbr.rel (0) target = $region5
    $region4: #{radbert_classifier_forward.1} parent=1 // pred_region
      _
    $region5: #{radbert_classifier_forward.1} parent=1 // pred_fallthru
      _
    // Predicated region
    $region6: #{radbert_classifier_forward.1} parent=1 // pred_check
      _
    $region7: #{radbert_classifier_forward.1} parent=1 // pred_check_branch
      %33 = sbr.rel (0) target = $region9
    $region8: #{radbert_classifier_forward.1} parent=1 // pred_region
      _
    $region9: #{radbert_classifier_forward.1} parent=1 // pred_fallthru
      _
    // Predicated region
    $region10: #{radbert_classifier_forward.1} parent=1 // pred_check
      _
    $region11: #{radbert_classifier_forward.1} parent=1 // pred_check_branch
      %35 = sbr.rel (0) target = $region13
    $region12: #{radbert_classifier_forward.1} parent=1 // pred_region
      _
    $region13: #{radbert_classifier_forward.1} parent=1 // pred_fallthru
      _
    // Predicated region
    $region14: #{radbert_classifier_forward.1} parent=1 // pred_check
      _
    $region15: #{radbert_classifier_forward.1} parent=1 // pred_check_branch
      %37 = sbr.rel (0) target = $region17
    $region16: #{radbert_classifier_forward.1} parent=1 // pred_region
      _
    $region17: #{radbert_classifier_forward.1} parent=1 // pred_fallthru
      _
    // Predicated region
    $region18: #{radbert_classifier_forward.1} parent=1 // pred_check
      _
    $region19: #{radbert_classifier_forward.1} parent=1 // pred_check_branch
      %39 = sbr.rel (0) target = $region21
    $region20: #{radbert_classifier_forward.1} parent=1 // pred_region
      _
    $region21: #{radbert_classifier_forward.1} parent=1 // pred_fallthru
      _
    // Predicated region
    $region22: #{radbert_classifier_forward.1} parent=1 // pred_check
      _
    $region23: #{radbert_classifier_forward.1} parent=1 // pred_check_branch
      %41 = sbr.rel (0) target = $region25
    $region24: #{radbert_classifier_forward.1} parent=1 // pred_region
      _
    $region25: #{radbert_classifier_forward.1} parent=1 // pred_fallthru
      _
    // Predicated region
    $region26: #{radbert_classifier_forward.1} parent=1 // pred_check
      _
    $region27: #{radbert_classifier_forward.1} parent=1 // pred_check_branch
      %43 = sbr.rel (0) target = $region29
    $region28: #{radbert_classifier_forward.1} parent=1 // pred_region
      _
    $region29: #{radbert_classifier_forward.1} parent=1 // pred_fallthru
      _
    // Predicated region
    $region30: #{radbert_classifier_forward.1} parent=1 // pred_check
      _
    $region31: #{radbert_classifier_forward.1} parent=1 // pred_check_branch
      %45 = sbr.rel (0) target = $region33
    $region32: #{radbert_classifier_forward.1} parent=1 // pred_region
      _
    $region33: #{radbert_classifier_forward.1} parent=1 // pred_fallthru
      _
    // Predicated region
    $region34: #{radbert_classifier_forward.1} parent=1 // pred_check
      _
    $region35: #{radbert_classifier_forward.1} parent=1 // pred_check_branch
      %47 = sbr.rel (0) target = $region37
    $region36: #{radbert_classifier_forward.1} parent=1 // pred_region
      _
    $region37: #{radbert_classifier_forward.1} parent=1 // pred_fallthru
      _
    // Predicated region
    $region38: #{radbert_classifier_forward.1} parent=1 // pred_check
      _
    $region39: #{radbert_classifier_forward.1} parent=1 // pred_check_branch
      %49 = sbr.rel (0) target = $region41
    $region40: #{radbert_classifier_forward.1} parent=1 // pred_region
      _
    $region41: #{radbert_classifier_forward.1} parent=1 // pred_fallthru
      _
    // Predicated region
    $region42: #{radbert_classifier_forward.1} parent=1 // pred_check
      _
    $region43: #{radbert_classifier_forward.1} parent=1 // pred_check_branch
      %51 = sbr.rel (0) target = $region45
    $region44: #{radbert_classifier_forward.1} parent=1 // pred_region
      _
    $region45: #{radbert_classifier_forward.1} parent=1 // pred_fallthru
      _
    // Predicated region
    $region46: #{radbert_classifier_forward.1} parent=1 // pred_check
      _
    $region47: #{radbert_classifier_forward.1} parent=1 // pred_check_branch
      %53 = sbr.rel (0) target = $region49
    $region48: #{radbert_classifier_forward.1} parent=1 // pred_region
      _
    $region49: #{radbert_classifier_forward.1} parent=1 // pred_fallthru
      _
    // Predicated region
    $region50: #{radbert_classifier_forward.1} parent=1 // pred_check
      _
    $region51: #{radbert_classifier_forward.1} parent=1 // pred_check_branch
      %55 = sbr.rel (0) target = $region53
    $region52: #{radbert_classifier_forward.1} parent=1 // pred_region
      _
    $region53: #{radbert_classifier_forward.1} parent=1 // pred_fallthru
      _
    // Predicated region
    $region54: #{radbert_classifier_forward.1} parent=1 // pred_check
      _
    $region55: #{radbert_classifier_forward.1} parent=1 // pred_check_branch
      %57 = sbr.rel (0) target = $region57
    $region56: #{radbert_classifier_forward.1} parent=1 // pred_region
      _
    $region57: #{radbert_classifier_forward.1} parent=1 // pred_fallthru
      _
    // Predicated region
    $region58: #{radbert_classifier_forward.1} parent=1 // pred_check
      _
    $region59: #{radbert_classifier_forward.1} parent=1 // pred_check_branch
      %59 = sbr.rel (0) target = $region61
    $region60: #{radbert_classifier_forward.1} parent=1 // pred_region
      _
    $region61: #{radbert_classifier_forward.1} parent=1 // pred_fallthru
      _
    // Predicated region
    $region62: #{radbert_classifier_forward.1} parent=1 // pred_check
      _
    $region63: #{radbert_classifier_forward.1} parent=1 // pred_check_branch
      %61 = sbr.rel (0) target = $region65
    $region64: #{radbert_classifier_forward.1} parent=1 // pred_region
      _
    $region65: #{radbert_classifier_forward.1} parent=1 // pred_fallthru
      _
    // Predicated region
    $region66: #{radbert_classifier_forward.1} parent=1 // pred_check
      _
    $region67: #{radbert_classifier_forward.1} parent=1 // pred_check_branch
      %63 = sbr.rel (0) target = $region69
    $region68: #{radbert_classifier_forward.1} parent=1 // pred_region
      _
    $region69: #{radbert_classifier_forward.1} parent=1 // pred_fallthru
      _
    // Predicated region
    $region70: #{radbert_classifier_forward.1} parent=1 // pred_check
      _
    $region71: #{radbert_classifier_forward.1} parent=1 // pred_check_branch
      %65 = sbr.rel (0) target = $region73
    $region72: #{radbert_classifier_forward.1} parent=1 // pred_region
      _
    $region73: #{radbert_classifier_forward.1} parent=1 // pred_fallthru
      _
    // Predicated region
    $region74: #{radbert_classifier_forward.1} parent=1 // pred_check
      _
    $region75: #{radbert_classifier_forward.1} parent=1 // pred_check_branch
      %67 = sbr.rel (0) target = $region77
    $region76: #{radbert_classifier_forward.1} parent=1 // pred_region
      _
    $region77: #{radbert_classifier_forward.1} parent=1 // pred_fallthru
      _
    // Predicated region
    $region78: #{radbert_classifier_forward.1} parent=1 // pred_check
      _
    $region79: #{radbert_classifier_forward.1} parent=1 // pred_check_branch
      %69 = sbr.rel (0) target = $region81
    $region80: #{radbert_classifier_forward.1} parent=1 // pred_region
      _
    $region81: #{radbert_classifier_forward.1} parent=1 // pred_fallthru
      _
    // Predicated region
    $region82: #{radbert_classifier_forward.1} parent=1 // pred_check
      _
    $region83: #{radbert_classifier_forward.1} parent=1 // pred_check_branch
      %71 = sbr.rel (0) target = $region85
    $region84: #{radbert_classifier_forward.1} parent=1 // pred_region
      _
    $region85: #{radbert_classifier_forward.1} parent=1 // pred_fallthru
      _
    // Predicated region
    $region86: #{radbert_classifier_forward.1} parent=1 // pred_check
      _
    $region87: #{radbert_classifier_forward.1} parent=1 // pred_check_branch
      %73 = sbr.rel (0) target = $region89
    $region88: #{radbert_classifier_forward.1} parent=1 // pred_region
      _
    $region89: #{radbert_classifier_forward.1} parent=1 // pred_fallthru
      _
    // Predicated region
    $region90: #{radbert_classifier_forward.1} parent=1 // pred_check
      _
    $region91: #{radbert_classifier_forward.1} parent=1 // pred_check_branch
      %75 = sbr.rel (0) target = $region93
    $region92: #{radbert_classifier_forward.1} parent=1 // pred_region
      _
    $region93: #{radbert_classifier_forward.1} parent=1 // pred_fallthru
      _
    // Predicated region
    $region94: #{radbert_classifier_forward.1} parent=1 // pred_check
      _
    $region95: #{radbert_classifier_forward.1} parent=1 // pred_check_branch
      %77 = sbr.rel (0) target = $region97
    $region96: #{radbert_classifier_forward.1} parent=1 // pred_region
      _
    $region97: #{radbert_classifier_forward.1} parent=1 // pred_fallthru
      _
    %v79 = vld [vmem:[%s1] sm:$0x1]
    %v80 = vld [vmem:[%s1 + $0x1] sm:$0x1]
    %v81 = vld [vmem:[%s1 + $0x2] sm:$0x1]
    %v82 = vld [vmem:[%s1 + $0x3] sm:$0x1]
    %v83 = vld [vmem:[%s1 + $0x4] sm:$0x1]
    %v84 = vld [vmem:[%s1 + $0x5] sm:$0x1]
    %v85 = vld [vmem:[%s1 + $0x6] sm:$0x1]
    %v86 = vld [vmem:[%s1 + $0x7] sm:$0x1]
    %v87 = vld [vmem:[%s0] sm:$0xff]
    %v88 = vld [vmem:[%s0 + $0x8] sm:$0xff]
    %v89 = vld [vmem:[%s2] sm:$0x1]
    %v90 = vld [vmem:[%s3] sm:$0x1]
    %vm91 = vcmask 523264
    %v92 = vsel %vm91, %v87, 0.0
    %93 = vadd.xlane.f32.xlu0 %v92
    %v94 = vpop.xlane.xlu0 %93
    %v95 = vsel %vm91, %v88, 0.0
    %96 = vadd.xlane.f32.xlu0 %v95
    %v97 = vpop.xlane.xlu0 %96
    %v98 = vrcp.pop 64.0
    %v99 = vmul.f32 %v94, %v98
    %v100 = vmul.f32 %v97, %v98
    %v101 = vsub.f32 %v87, %v99
    %v102 = vsub.f32 %v88, %v100
    %v103 = vmul.f32 %v101, %v101
    %v104 = vmul.f32 %v102, %v102
    %v105 = vsel %vm91, %v103, 0.0
    %106 = vadd.xlane.f32.xlu0 %v105
    %v107 = vpop.xlane.xlu0 %106
    %v108 = vsel %vm91, %v104, 0.0
    %109 = vadd.xlane.f32.xlu0 %v108
    %v110 = vpop.xlane.xlu0 %109
    %v111 = vmul.f32 %v107, %v98
    %v112 = vmul.f32 %v110, %v98
    %v113 = vadd.f32 %v111, 1e-05
    %v114 = vadd.f32 %v112, 1e-05
    %v115 = vrsqrt.pop %v113
    %v116 = vrsqrt.pop %v114
    %v117 = vmul.f32 %v101, %v115
    %v118 = vmul.f32 %v102, %v116
    %v120 = vlaneseq
    %v121 = vshrl.u32 %v120, 7
    %v122 = vsub.s32 0, %v121
    %v123 = vrot.slane %v89, %v122
    %v125 = vmul.f32 %v117, %v123
    %v126 = vmul.f32 %v118, %v123
    %v128 = vlaneseq
    %v129 = vshrl.u32 %v128, 7
    %v130 = vsub.s32 0, %v129
    %v131 = vrot.slane %v90, %v130
    %v133 = vadd.f32 %v125, %v131
    %v134 = vadd.f32 %v126, %v131
    %v135 = vpack.c.bf16 %v133, %v133
    %v136 = vpack.c.bf16 %v134, %v134
    %v137 = vld [vmem:[%s4] sm:$0xf]
    %v138 = vld [vmem:[%s4 + $0x4] sm:$0xf]
    %v139 = vld [vmem:[%s4 + $0x8] sm:$0xf]
    %v140 = vld [vmem:[%s4 + $0xc] sm:$0xf]
    %v141 = vld [vmem:[%s4 + $0x10] sm:$0xf]
    %v142 = vld [vmem:[%s4 + $0x14] sm:$0xf]
    %v143 = vld [vmem:[%s4 + $0x18] sm:$0xf]
    %v144 = vld [vmem:[%s4 + $0x1c] sm:$0xf]
    %v145 = vld [vmem:[%s4 + $0x20] sm:$0xf]
    %v146 = vld [vmem:[%s4 + $0x24] sm:$0xf]
    %v147 = vld [vmem:[%s4 + $0x28] sm:$0xf]
    %v148 = vld [vmem:[%s4 + $0x2c] sm:$0xf]
    %v149 = vld [vmem:[%s4 + $0x30] sm:$0xf]
    %v150 = vld [vmem:[%s4 + $0x34] sm:$0xf]
    %v151 = vld [vmem:[%s4 + $0x38] sm:$0xf]
    %v152 = vld [vmem:[%s4 + $0x3c] sm:$0xf]
    %v153 = vld [vmem:[%s4 + $0x40] sm:$0xf]
    %v154 = vld [vmem:[%s4 + $0x44] sm:$0xf]
    %v155 = vld [vmem:[%s4 + $0x48] sm:$0xf]
    %v156 = vld [vmem:[%s4 + $0x4c] sm:$0xf]
    %v157 = vld [vmem:[%s4 + $0x50] sm:$0xf]
    %v158 = vld [vmem:[%s4 + $0x54] sm:$0xf]
    %v159 = vld [vmem:[%s4 + $0x58] sm:$0xf]
    %v160 = vld [vmem:[%s4 + $0x5c] sm:$0xf]
    %v161 = vld [vmem:[%s4 + $0x60] sm:$0xf]
    %v162 = vld [vmem:[%s4 + $0x64] sm:$0xf]
    %v163 = vld [vmem:[%s4 + $0x68] sm:$0xf]
    %v164 = vld [vmem:[%s4 + $0x6c] sm:$0xf]
    %v165 = vld [vmem:[%s4 + $0x70] sm:$0xf]
    %v166 = vld [vmem:[%s4 + $0x74] sm:$0xf]
    %v167 = vld [vmem:[%s4 + $0x78] sm:$0xf]
    %v168 = vld [vmem:[%s4 + $0x7c] sm:$0xf]
    %v169 = vld [vmem:[%s4 + $0x80] sm:$0xf]
    %v170 = vld [vmem:[%s4 + $0x84] sm:$0xf]
    %v171 = vld [vmem:[%s4 + $0x88] sm:$0xf]
    %v172 = vld [vmem:[%s4 + $0x8c] sm:$0xf]
    %v173 = vld [vmem:[%s4 + $0x90] sm:$0xf]
    %v174 = vld [vmem:[%s4 + $0x94] sm:$0xf]
    %v175 = vld [vmem:[%s4 + $0x98] sm:$0xf]
    %v176 = vld [vmem:[%s4 + $0x9c] sm:$0xf]
    %v177 = vld [vmem:[%s4 + $0xa0] sm:$0xf]
    %v178 = vld [vmem:[%s4 + $0xa4] sm:$0xf]
    %v179 = vld [vmem:[%s4 + $0xa8] sm:$0xf]
    %v180 = vld [vmem:[%s4 + $0xac] sm:$0xf]
    %v181 = vld [vmem:[%s4 + $0xb0] sm:$0xf]
    %v182 = vld [vmem:[%s4 + $0xb4] sm:$0xf]
    %v183 = vld [vmem:[%s4 + $0xb8] sm:$0xf]
    %v184 = vld [vmem:[%s4 + $0xbc] sm:$0xf]
    %v185 = vld [vmem:[%s4 + $0xc0] sm:$0xf]
    %v186 = vld [vmem:[%s4 + $0xc4] sm:$0xf]
    %v187 = vld [vmem:[%s4 + $0xc8] sm:$0xf]
    %v188 = vld [vmem:[%s4 + $0xcc] sm:$0xf]
    %v189 = vld [vmem:[%s4 + $0xd0] sm:$0xf]
    %v190 = vld [vmem:[%s4 + $0xd4] sm:$0xf]
    %v191 = vld [vmem:[%s4 + $0xd8] sm:$0xf]
    %v192 = vld [vmem:[%s4 + $0xdc] sm:$0xf]
    %v193 = vld [vmem:[%s4 + $0xe0] sm:$0xf]
    %v194 = vld [vmem:[%s4 + $0xe4] sm:$0xf]
    %v195 = vld [vmem:[%s4 + $0xe8] sm:$0xf]
    %v196 = vld [vmem:[%s4 + $0xec] sm:$0xf]
    %v197 = vld [vmem:[%s4 + $0xf0] sm:$0xf]
    %v198 = vld [vmem:[%s4 + $0xf4] sm:$0xf]
    %v199 = vld [vmem:[%s4 + $0xf8] sm:$0xf]
    %v200 = vld [vmem:[%s4 + $0xfc] sm:$0xf]
    %v201 = vld [vmem:[%s7] sm:$0x1]
    %v202 = vld [vmem:[%s7 + $0x1] sm:$0x1]
    %v203 = vld [vmem:[%s7 + $0x2] sm:$0x1]
    %v204 = vld [vmem:[%s7 + $0x3] sm:$0x1]
    %v205 = vld [vmem:[%s7 + $0x4] sm:$0x1]
    %v206 = vld [vmem:[%s7 + $0x5] sm:$0x1]
    %v207 = vld [vmem:[%s7 + $0x6] sm:$0x1]
    %v208 = vld [vmem:[%s7 + $0x7] sm:$0x1]
    %v217 = vlaneseq
    %v218 = vshrl.u32 %v217, 7
    %v219 = vsub.s32 0, %v218
    %v220 = vrot.slane %v201, %v219
    %v221 = vlaneseq
    %v222 = vshrl.u32 %v221, 7
    %v223 = vsub.s32 0, %v222
    %v224 = vrot.slane %v202, %v223
    %v225 = vlaneseq
    %v226 = vshrl.u32 %v225, 7
    %v227 = vsub.s32 0, %v226
    %v228 = vrot.slane %v203, %v227
    %v229 = vlaneseq
    %v230 = vshrl.u32 %v229, 7
    %v231 = vsub.s32 0, %v230
    %v232 = vrot.slane %v204, %v231
    %v233 = vlaneseq
    %v234 = vshrl.u32 %v233, 7
    %v235 = vsub.s32 0, %v234
    %v236 = vrot.slane %v205, %v235
    %v237 = vlaneseq
    %v238 = vshrl.u32 %v237, 7
    %v239 = vsub.s32 0, %v238
    %v240 = vrot.slane %v206, %v239
    %v241 = vlaneseq
    %v242 = vshrl.u32 %v241, 7
    %v243 = vsub.s32 0, %v242
    %v244 = vrot.slane %v207, %v243
    %v245 = vlaneseq
    %v246 = vshrl.u32 %v245, 7
    %v247 = vsub.s32 0, %v246
    %v248 = vrot.slane %v208, %v247
    %v265 = vunpack.c.l.b16 %v137
    %v266 = vunpack.c.l.b16 %v138
    %v267 = vunpack.c.l.b16 %v139
    %v268 = vunpack.c.l.b16 %v140
    %v269 = vunpack.c.l.b16 %v141
    %v270 = vunpack.c.l.b16 %v142
    %v271 = vunpack.c.l.b16 %v143
    %v272 = vunpack.c.l.b16 %v144
    %v273 = vpack.c.b16 %v266, %v265
    %v274 = vpack.c.b16 %v268, %v267
    %v275 = vpack.c.b16 %v270, %v269
    %v276 = vpack.c.b16 %v272, %v271
    %v282 = vsel %vm91, %v135, 0
    %284 = vmatprep.subr.bf16.mxu0 0
    %285 = vmatpush1.bf16.msra.mxu0 %v273
    %286 = vmatprep.subr.bf16.mxu0 0
    %287 = vmatpush1.bf16.msra.mxu0 %v274
    %288 = vmatprep.subr.bf16.mxu0 0
    %289 = vmatpush1.bf16.msra.mxu0 %v275
    %290 = vmatprep.subr.bf16.mxu0 0
    %291 = vmatpush1.bf16.msra.mxu0 %v276
    %292 = vmatprep.subr.bf16.mxu0 0
    %293 = vmatpush1.bf16.msra.mxu0 0
    %294 = vmatprep.subr.bf16.mxu0 0
    %295 = vmatpush1.bf16.msra.mxu0 0
    %296 = vmatprep.subr.bf16.mxu0 0
    %297 = vmatpush1.bf16.msra.mxu0 0
    %298 = vmatprep.subr.bf16.mxu0 0
    %299 = vmatpush1.bf16.msra.mxu0 0
    %300 = vmatprep.subr.bf16.mxu0 0
    %301 = vmatpush1.bf16.msra.mxu0 0
    %302 = vmatprep.subr.bf16.mxu0 0
    %303 = vmatpush1.bf16.msra.mxu0 0
    %304 = vmatprep.subr.bf16.mxu0 0
    %305 = vmatpush1.bf16.msra.mxu0 0
    %306 = vmatprep.subr.bf16.mxu0 0
    %307 = vmatpush1.bf16.msra.mxu0 0
    %308 = vmatprep.subr.bf16.mxu0 0
    %309 = vmatpush1.bf16.msra.mxu0 0
    %310 = vmatprep.subr.bf16.mxu0 0
    %311 = vmatpush1.bf16.msra.mxu0 0
    %312 = vmatprep.subr.bf16.mxu0 0
    %313 = vmatpush1.bf16.msra.mxu0 0
    %314 = vmatprep.subr.bf16.mxu0 0
    %315 = vmatpush1.bf16.msra.mxu0 0
    %316 = vmatprep.mubr.bf16.mxu0 0
    %317 = vmatmul.mubr.bf16.gmra.mrb[0].mxu0 %v282
    %v318 = vpop.f32.mrb[0].mxu0
    %v319 = vadd.f32 %v220, %v318
    %v320 = vpop.f32.mrb[0].mxu0
    %v321 = vpop.f32.mrb[0].mxu0
    %v322 = vpop.f32.mrb[0].mxu0
    %323 = vdwg.mxu0
    %v332 = vunpack.c.l.b16 %v145
    %v333 = vunpack.c.l.b16 %v146
    %v334 = vunpack.c.l.b16 %v147
    %v335 = vunpack.c.l.b16 %v148
    %v336 = vunpack.c.l.b16 %v149
    %v337 = vunpack.c.l.b16 %v150
    %v338 = vunpack.c.l.b16 %v151
    %v339 = vunpack.c.l.b16 %v152
    %v340 = vpack.c.b16 %v333, %v332
    %v341 = vpack.c.b16 %v335, %v334
    %v342 = vpack.c.b16 %v337, %v336
    %v343 = vpack.c.b16 %v339, %v338
    %348 = vmatprep.subr.bf16.mxu0 0
    %349 = vmatpush1.bf16.msra.mxu0 %v340
    %350 = vmatprep.subr.bf16.mxu0 0
    %351 = vmatpush1.bf16.msra.mxu0 %v341
    %352 = vmatprep.subr.bf16.mxu0 0
    %353 = vmatpush1.bf16.msra.mxu0 %v342
    %354 = vmatprep.subr.bf16.mxu0 0
    %355 = vmatpush1.bf16.msra.mxu0 %v343
    %356 = vmatprep.subr.bf16.mxu0 0
    %357 = vmatpush1.bf16.msra.mxu0 0
    %358 = vmatprep.subr.bf16.mxu0 0
    %359 = vmatpush1.bf16.msra.mxu0 0
    %360 = vmatprep.subr.bf16.mxu0 0
    %361 = vmatpush1.bf16.msra.mxu0 0
    %362 = vmatprep.subr.bf16.mxu0 0
    %363 = vmatpush1.bf16.msra.mxu0 0
    %364 = vmatprep.subr.bf16.mxu0 0
    %365 = vmatpush1.bf16.msra.mxu0 0
    %366 = vmatprep.subr.bf16.mxu0 0
    %367 = vmatpush1.bf16.msra.mxu0 0
    %368 = vmatprep.subr.bf16.mxu0 0
    %369 = vmatpush1.bf16.msra.mxu0 0
    %370 = vmatprep.subr.bf16.mxu0 0
    %371 = vmatpush1.bf16.msra.mxu0 0
    %372 = vmatprep.subr.bf16.mxu0 0
    %373 = vmatpush1.bf16.msra.mxu0 0
    %374 = vmatprep.subr.bf16.mxu0 0
    %375 = vmatpush1.bf16.msra.mxu0 0
    %376 = vmatprep.subr.bf16.mxu0 0
    %377 = vmatpush1.bf16.msra.mxu0 0
    %378 = vmatprep.subr.bf16.mxu0 0
    %379 = vmatpush1.bf16.msra.mxu0 0
    %380 = vmatprep.mubr.bf16.mxu0 0
    %381 = vmatmul.mubr.bf16.gmra.mrb[0].mxu0 %v282
    %v382 = vpop.f32.mrb[0].mxu0
    %v383 = vadd.f32 %v224, %v382
    %v384 = vpop.f32.mrb[0].mxu0
    %v385 = vpop.f32.mrb[0].mxu0
    %v386 = vpop.f32.mrb[0].mxu0
    %387 = vdwg.mxu0
    %v396 = vunpack.c.l.b16 %v153
    %v397 = vunpack.c.l.b16 %v154
    %v398 = vunpack.c.l.b16 %v155
    %v399 = vunpack.c.l.b16 %v156
    %v400 = vunpack.c.l.b16 %v157
    %v401 = vunpack.c.l.b16 %v158
    %v402 = vunpack.c.l.b16 %v159
    %v403 = vunpack.c.l.b16 %v160
    %v404 = vpack.c.b16 %v397, %v396
    %v405 = vpack.c.b16 %v399, %v398
    %v406 = vpack.c.b16 %v401, %v400
    %v407 = vpack.c.b16 %v403, %v402
    %412 = vmatprep.subr.bf16.mxu0 0
    %413 = vmatpush1.bf16.msra.mxu0 %v404
    %414 = vmatprep.subr.bf16.mxu0 0
    %415 = vmatpush1.bf16.msra.mxu0 %v405
    %416 = vmatprep.subr.bf16.mxu0 0
    %417 = vmatpush1.bf16.msra.mxu0 %v406
    %418 = vmatprep.subr.bf16.mxu0 0
    %419 = vmatpush1.bf16.msra.mxu0 %v407
    %420 = vmatprep.subr.bf16.mxu0 0
    %421 = vmatpush1.bf16.msra.mxu0 0
    %422 = vmatprep.subr.bf16.mxu0 0
    %423 = vmatpush1.bf16.msra.mxu0 0
    %424 = vmatprep.subr.bf16.mxu0 0
    %425 = vmatpush1.bf16.msra.mxu0 0
    %426 = vmatprep.subr.bf16.mxu0 0
    %427 = vmatpush1.bf16.msra.mxu0 0
    %428 = vmatprep.subr.bf16.mxu0 0
    %429 = vmatpush1.bf16.msra.mxu0 0
    %430 = vmatprep.subr.bf16.mxu0 0
    %431 = vmatpush1.bf16.msra.mxu0 0
    %432 = vmatprep.subr.bf16.mxu0 0
    %433 = vmatpush1.bf16.msra.mxu0 0
    %434 = vmatprep.subr.bf16.mxu0 0
    %435 = vmatpush1.bf16.msra.mxu0 0
    %436 = vmatprep.subr.bf16.mxu0 0
    %437 = vmatpush1.bf16.msra.mxu0 0
    %438 = vmatprep.subr.bf16.mxu0 0
    %439 = vmatpush1.bf16.msra.mxu0 0
    %440 = vmatprep.subr.bf16.mxu0 0
    %441 = vmatpush1.bf16.msra.mxu0 0
    %442 = vmatprep.subr.bf16.mxu0 0
    %443 = vmatpush1.bf16.msra.mxu0 0
    %444 = vmatprep.mubr.bf16.mxu0 0
    %445 = vmatmul.mubr.bf16.gmra.mrb[0].mxu0 %v282
    %v446 = vpop.f32.mrb[0].mxu0
    %v447 = vadd.f32 %v228, %v446
    %v448 = vpop.f32.mrb[0].mxu0
    %v449 = vpop.f32.mrb[0].mxu0
    %v450 = vpop.f32.mrb[0].mxu0
    %451 = vdwg.mxu0
    %v460 = vunpack.c.l.b16 %v161
    %v461 = vunpack.c.l.b16 %v162
    %v462 = vunpack.c.l.b16 %v163
    %v463 = vunpack.c.l.b16 %v164
    %v464 = vunpack.c.l.b16 %v165
    %v465 = vunpack.c.l.b16 %v166
    %v466 = vunpack.c.l.b16 %v167
    %v467 = vunpack.c.l.b16 %v168
    %v468 = vpack.c.b16 %v461, %v460
    %v469 = vpack.c.b16 %v463, %v462
    %v470 = vpack.c.b16 %v465, %v464
    %v471 = vpack.c.b16 %v467, %v466
    %476 = vmatprep.subr.bf16.mxu0 0
    %477 = vmatpush1.bf16.msra.mxu0 %v468
    %478 = vmatprep.subr.bf16.mxu0 0
    %479 = vmatpush1.bf16.msra.mxu0 %v469
    %480 = vmatprep.subr.bf16.mxu0 0
    %481 = vmatpush1.bf16.msra.mxu0 %v470
    %482 = vmatprep.subr.bf16.mxu0 0
    %483 = vmatpush1.bf16.msra.mxu0 %v471
    %484 = vmatprep.subr.bf16.mxu0 0
    %485 = vmatpush1.bf16.msra.mxu0 0
    %486 = vmatprep.subr.bf16.mxu0 0
    %487 = vmatpush1.bf16.msra.mxu0 0
    %488 = vmatprep.subr.bf16.mxu0 0
    %489 = vmatpush1.bf16.msra.mxu0 0
    %490 = vmatprep.subr.bf16.mxu0 0
    %491 = vmatpush1.bf16.msra.mxu0 0
    %492 = vmatprep.subr.bf16.mxu0 0
    %493 = vmatpush1.bf16.msra.mxu0 0
    %494 = vmatprep.subr.bf16.mxu0 0
    %495 = vmatpush1.bf16.msra.mxu0 0
    %496 = vmatprep.subr.bf16.mxu0 0
    %497 = vmatpush1.bf16.msra.mxu0 0
    %498 = vmatprep.subr.bf16.mxu0 0
    %499 = vmatpush1.bf16.msra.mxu0 0
    %500 = vmatprep.subr.bf16.mxu0 0
    %501 = vmatpush1.bf16.msra.mxu0 0
    %502 = vmatprep.subr.bf16.mxu0 0
    %503 = vmatpush1.bf16.msra.mxu0 0
    %504 = vmatprep.subr.bf16.mxu0 0
    %505 = vmatpush1.bf16.msra.mxu0 0
    %506 = vmatprep.subr.bf16.mxu0 0
    %507 = vmatpush1.bf16.msra.mxu0 0
    %508 = vmatprep.mubr.bf16.mxu0 0
    %509 = vmatmul.mubr.bf16.gmra.mrb[0].mxu0 %v282
    %v510 = vpop.f32.mrb[0].mxu0
    %v511 = vadd.f32 %v232, %v510
    %v512 = vpop.f32.mrb[0].mxu0
    %v513 = vpop.f32.mrb[0].mxu0
    %v514 = vpop.f32.mrb[0].mxu0
    %515 = vdwg.mxu0
    %v524 = vunpack.c.l.b16 %v169
    %v525 = vunpack.c.l.b16 %v170
    %v526 = vunpack.c.l.b16 %v171
    %v527 = vunpack.c.l.b16 %v172
    %v528 = vunpack.c.l.b16 %v173
    %v529 = vunpack.c.l.b16 %v174
    %v530 = vunpack.c.l.b16 %v175
    %v531 = vunpack.c.l.b16 %v176
    %v532 = vpack.c.b16 %v525, %v524
    %v533 = vpack.c.b16 %v527, %v526
    %v534 = vpack.c.b16 %v529, %v528
    %v535 = vpack.c.b16 %v531, %v530
    %v541 = vsel %vm91, %v136, 0
    %543 = vmatprep.subr.bf16.mxu0 0
    %544 = vmatpush1.bf16.msra.mxu0 %v532
    %545 = vmatprep.subr.bf16.mxu0 0
    %546 = vmatpush1.bf16.msra.mxu0 %v533
    %547 = vmatprep.subr.bf16.mxu0 0
    %548 = vmatpush1.bf16.msra.mxu0 %v534
    %549 = vmatprep.subr.bf16.mxu0 0
    %550 = vmatpush1.bf16.msra.mxu0 %v535
    %551 = vmatprep.subr.bf16.mxu0 0
    %552 = vmatpush1.bf16.msra.mxu0 0
    %553 = vmatprep.subr.bf16.mxu0 0
    %554 = vmatpush1.bf16.msra.mxu0 0
    %555 = vmatprep.subr.bf16.mxu0 0
    %556 = vmatpush1.bf16.msra.mxu0 0
    %557 = vmatprep.subr.bf16.mxu0 0
    %558 = vmatpush1.bf16.msra.mxu0 0
    %559 = vmatprep.subr.bf16.mxu0 0
    %560 = vmatpush1.bf16.msra.mxu0 0
    %561 = vmatprep.subr.bf16.mxu0 0
    %562 = vmatpush1.bf16.msra.mxu0 0
    %563 = vmatprep.subr.bf16.mxu0 0
    %564 = vmatpush1.bf16.msra.mxu0 0
    %565 = vmatprep.subr.bf16.mxu0 0
    %566 = vmatpush1.bf16.msra.mxu0 0
    %567 = vmatprep.subr.bf16.mxu0 0
    %568 = vmatpush1.bf16.msra.mxu0 0
    %569 = vmatprep.subr.bf16.mxu0 0
    %570 = vmatpush1.bf16.msra.mxu0 0
    %571 = vmatprep.subr.bf16.mxu0 0
    %572 = vmatpush1.bf16.msra.mxu0 0
    %573 = vmatprep.subr.bf16.mxu0 0
    %574 = vmatpush1.bf16.msra.mxu0 0
    %575 = vmatprep.mubr.bf16.mxu0 0
    %576 = vmatmul.mubr.bf16.gmra.mrb[0].mxu0 %v541
    %v577 = vpop.f32.mrb[0].mxu0
    %v578 = vadd.f32 %v236, %v577
    %v579 = vpop.f32.mrb[0].mxu0
    %v580 = vpop.f32.mrb[0].mxu0
    %v581 = vpop.f32.mrb[0].mxu0
    %582 = vdwg.mxu0
    %v591 = vunpack.c.l.b16 %v177
    %v592 = vunpack.c.l.b16 %v178
    %v593 = vunpack.c.l.b16 %v179
    %v594 = vunpack.c.l.b16 %v180
    %v595 = vunpack.c.l.b16 %v181
    %v596 = vunpack.c.l.b16 %v182
    %v597 = vunpack.c.l.b16 %v183
    %v598 = vunpack.c.l.b16 %v184
    %v599 = vpack.c.b16 %v592, %v591
    %v600 = vpack.c.b16 %v594, %v593
    %v601 = vpack.c.b16 %v596, %v595
    %v602 = vpack.c.b16 %v598, %v597
    %607 = vmatprep.subr.bf16.mxu0 0
    %608 = vmatpush1.bf16.msra.mxu0 %v599
    %609 = vmatprep.subr.bf16.mxu0 0
    %610 = vmatpush1.bf16.msra.mxu0 %v600
    %611 = vmatprep.subr.bf16.mxu0 0
    %612 = vmatpush1.bf16.msra.mxu0 %v601
    %613 = vmatprep.subr.bf16.mxu0 0
    %614 = vmatpush1.bf16.msra.mxu0 %v602
    %615 = vmatprep.subr.bf16.mxu0 0
    %616 = vmatpush1.bf16.msra.mxu0 0
    %617 = vmatprep.subr.bf16.mxu0 0
    %618 = vmatpush1.bf16.msra.mxu0 0
    %619 = vmatprep.subr.bf16.mxu0 0
    %620 = vmatpush1.bf16.msra.mxu0 0
    %621 = vmatprep.subr.bf16.mxu0 0
    %622 = vmatpush1.bf16.msra.mxu0 0
    %623 = vmatprep.subr.bf16.mxu0 0
    %624 = vmatpush1.bf16.msra.mxu0 0
    %625 = vmatprep.subr.bf16.mxu0 0
    %626 = vmatpush1.bf16.msra.mxu0 0
    %627 = vmatprep.subr.bf16.mxu0 0
    %628 = vmatpush1.bf16.msra.mxu0 0
    %629 = vmatprep.subr.bf16.mxu0 0
    %630 = vmatpush1.bf16.msra.mxu0 0
    %631 = vmatprep.subr.bf16.mxu0 0
    %632 = vmatpush1.bf16.msra.mxu0 0
    %633 = vmatprep.subr.bf16.mxu0 0
    %634 = vmatpush1.bf16.msra.mxu0 0
    %635 = vmatprep.subr.bf16.mxu0 0
    %636 = vmatpush1.bf16.msra.mxu0 0
    %637 = vmatprep.subr.bf16.mxu0 0
    %638 = vmatpush1.bf16.msra.mxu0 0
    %639 = vmatprep.mubr.bf16.mxu0 0
    %640 = vmatmul.mubr.bf16.gmra.mrb[0].mxu0 %v541
    %v641 = vpop.f32.mrb[0].mxu0
    %v642 = vadd.f32 %v240, %v641
    %v643 = vpop.f32.mrb[0].mxu0
    %v644 = vpop.f32.mrb[0].mxu0
    %v645 = vpop.f32.mrb[0].mxu0
    %646 = vdwg.mxu0
    %v655 = vunpack.c.l.b16 %v185
    %v656 = vunpack.c.l.b16 %v186
    %v657 = vunpack.c.l.b16 %v187
    %v658 = vunpack.c.l.b16 %v188
    %v659 = vunpack.c.l.b16 %v189
    %v660 = vunpack.c.l.b16 %v190
    %v661 = vunpack.c.l.b16 %v191
    %v662 = vunpack.c.l.b16 %v192
    %v663 = vpack.c.b16 %v656, %v655
    %v664 = vpack.c.b16 %v658, %v657
    %v665 = vpack.c.b16 %v660, %v659
    %v666 = vpack.c.b16 %v662, %v661
    %671 = vmatprep.subr.bf16.mxu0 0
    %672 = vmatpush1.bf16.msra.mxu0 %v663
    %673 = vmatprep.subr.bf16.mxu0 0
    %674 = vmatpush1.bf16.msra.mxu0 %v664
    %675 = vmatprep.subr.bf16.mxu0 0
    %676 = vmatpush1.bf16.msra.mxu0 %v665
    %677 = vmatprep.subr.bf16.mxu0 0
    %678 = vmatpush1.bf16.msra.mxu0 %v666
    %679 = vmatprep.subr.bf16.mxu0 0
    %680 = vmatpush1.bf16.msra.mxu0 0
    %681 = vmatprep.subr.bf16.mxu0 0
    %682 = vmatpush1.bf16.msra.mxu0 0
    %683 = vmatprep.subr.bf16.mxu0 0
    %684 = vmatpush1.bf16.msra.mxu0 0
    %685 = vmatprep.subr.bf16.mxu0 0
    %686 = vmatpush1.bf16.msra.mxu0 0
    %687 = vmatprep.subr.bf16.mxu0 0
    %688 = vmatpush1.bf16.msra.mxu0 0
    %689 = vmatprep.subr.bf16.mxu0 0
    %690 = vmatpush1.bf16.msra.mxu0 0
    %691 = vmatprep.subr.bf16.mxu0 0
    %692 = vmatpush1.bf16.msra.mxu0 0
    %693 = vmatprep.subr.bf16.mxu0 0
    %694 = vmatpush1.bf16.msra.mxu0 0
    %695 = vmatprep.subr.bf16.mxu0 0
    %696 = vmatpush1.bf16.msra.mxu0 0
    %697 = vmatprep.subr.bf16.mxu0 0
    %698 = vmatpush1.bf16.msra.mxu0 0
    %699 = vmatprep.subr.bf16.mxu0 0
    %700 = vmatpush1.bf16.msra.mxu0 0
    %701 = vmatprep.subr.bf16.mxu0 0
    %702 = vmatpush1.bf16.msra.mxu0 0
    %703 = vmatprep.mubr.bf16.mxu0 0
    %704 = vmatmul.mubr.bf16.gmra.mrb[0].mxu0 %v541
    %v705 = vpop.f32.mrb[0].mxu0
    %v706 = vadd.f32 %v244, %v705
    %v707 = vpop.f32.mrb[0].mxu0
    %v708 = vpop.f32.mrb[0].mxu0
    %v709 = vpop.f32.mrb[0].mxu0
    %710 = vdwg.mxu0
    %v719 = vunpack.c.l.b16 %v193
    %v720 = vunpack.c.l.b16 %v194
    %v721 = vunpack.c.l.b16 %v195
    %v722 = vunpack.c.l.b16 %v196
    %v723 = vunpack.c.l.b16 %v197
    %v724 = vunpack.c.l.b16 %v198
    %v725 = vunpack.c.l.b16 %v199
    %v726 = vunpack.c.l.b16 %v200
    %v727 = vpack.c.b16 %v720, %v719
    %v728 = vpack.c.b16 %v722, %v721
    %v729 = vpack.c.b16 %v724, %v723
    %v730 = vpack.c.b16 %v726, %v725
    %735 = vmatprep.subr.bf16.mxu0 0
    %736 = vmatpush1.bf16.msra.mxu0 %v727
    %737 = vmatprep.subr.bf16.mxu0 0
    %738 = vmatpush1.bf16.msra.mxu0 %v728
    %739 = vmatprep.subr.bf16.mxu0 0
    %740 = vmatpush1.bf16.msra.mxu0 %v729
    %741 = vmatprep.subr.bf16.mxu0 0
    %742 = vmatpush1.bf16.msra.mxu0 %v730
    %743 = vmatprep.subr.bf16.mxu0 0
    %744 = vmatpush1.bf16.msra.mxu0 0
    %745 = vmatprep.subr.bf16.mxu0 0
    %746 = vmatpush1.bf16.msra.mxu0 0
    %747 = vmatprep.subr.bf16.mxu0 0
    %748 = vmatpush1.bf16.msra.mxu0 0
    %749 = vmatprep.subr.bf16.mxu0 0
    %750 = vmatpush1.bf16.msra.mxu0 0
    %751 = vmatprep.subr.bf16.mxu0 0
    %752 = vmatpush1.bf16.msra.mxu0 0
    %753 = vmatprep.subr.bf16.mxu0 0
    %754 = vmatpush1.bf16.msra.mxu0 0
    %755 = vmatprep.subr.bf16.mxu0 0
    %756 = vmatpush1.bf16.msra.mxu0 0
    %757 = vmatprep.subr.bf16.mxu0 0
    %758 = vmatpush1.bf16.msra.mxu0 0
    %759 = vmatprep.subr.bf16.mxu0 0
    %760 = vmatpush1.bf16.msra.mxu0 0
    %761 = vmatprep.subr.bf16.mxu0 0
    %762 = vmatpush1.bf16.msra.mxu0 0
    %763 = vmatprep.subr.bf16.mxu0 0
    %764 = vmatpush1.bf16.msra.mxu0 0
    %765 = vmatprep.subr.bf16.mxu0 0
    %766 = vmatpush1.bf16.msra.mxu0 0
    %767 = vmatprep.mubr.bf16.mxu0 0
    %768 = vmatmul.mubr.bf16.gmra.mrb[0].mxu0 %v541
    %v769 = vpop.f32.mrb[0].mxu0
    %v770 = vadd.f32 %v248, %v769
    %v771 = vpop.f32.mrb[0].mxu0
    %v772 = vpop.f32.mrb[0].mxu0
    %v773 = vpop.f32.mrb[0].mxu0
    %774 = vdwg.mxu0
    %v775 = vld [vmem:[%s5] sm:$0xf]
    %v776 = vld [vmem:[%s5 + $0x4] sm:$0xf]
    %v777 = vld [vmem:[%s5 + $0x8] sm:$0xf]
    %v778 = vld [vmem:[%s5 + $0xc] sm:$0xf]
    %v779 = vld [vmem:[%s5 + $0x10] sm:$0xf]
    %v780 = vld [vmem:[%s5 + $0x14] sm:$0xf]
    %v781 = vld [vmem:[%s5 + $0x18] sm:$0xf]
    %v782 = vld [vmem:[%s5 + $0x1c] sm:$0xf]
    %v783 = vld [vmem:[%s5 + $0x20] sm:$0xf]
    %v784 = vld [vmem:[%s5 + $0x24] sm:$0xf]
    %v785 = vld [vmem:[%s5 + $0x28] sm:$0xf]
    %v786 = vld [vmem:[%s5 + $0x2c] sm:$0xf]
    %v787 = vld [vmem:[%s5 + $0x30] sm:$0xf]
    %v788 = vld [vmem:[%s5 + $0x34] sm:$0xf]
    %v789 = vld [vmem:[%s5 + $0x38] sm:$0xf]
    %v790 = vld [vmem:[%s5 + $0x3c] sm:$0xf]
    %v791 = vld [vmem:[%s5 + $0x40] sm:$0xf]
    %v792 = vld [vmem:[%s5 + $0x44] sm:$0xf]
    %v793 = vld [vmem:[%s5 + $0x48] sm:$0xf]
    %v794 = vld [vmem:[%s5 + $0x4c] sm:$0xf]
    %v795 = vld [vmem:[%s5 + $0x50] sm:$0xf]
    %v796 = vld [vmem:[%s5 + $0x54] sm:$0xf]
    %v797 = vld [vmem:[%s5 + $0x58] sm:$0xf]
    %v798 = vld [vmem:[%s5 + $0x5c] sm:$0xf]
    %v799 = vld [vmem:[%s5 + $0x60] sm:$0xf]
    %v800 = vld [vmem:[%s5 + $0x64] sm:$0xf]
    %v801 = vld [vmem:[%s5 + $0x68] sm:$0xf]
    %v802 = vld [vmem:[%s5 + $0x6c] sm:$0xf]
    %v803 = vld [vmem:[%s5 + $0x70] sm:$0xf]
    %v804 = vld [vmem:[%s5 + $0x74] sm:$0xf]
    %v805 = vld [vmem:[%s5 + $0x78] sm:$0xf]
    %v806 = vld [vmem:[%s5 + $0x7c] sm:$0xf]
    %v807 = vld [vmem:[%s5 + $0x80] sm:$0xf]
    %v808 = vld [vmem:[%s5 + $0x84] sm:$0xf]
    %v809 = vld [vmem:[%s5 + $0x88] sm:$0xf]
    %v810 = vld [vmem:[%s5 + $0x8c] sm:$0xf]
    %v811 = vld [vmem:[%s5 + $0x90] sm:$0xf]
    %v812 = vld [vmem:[%s5 + $0x94] sm:$0xf]
    %v813 = vld [vmem:[%s5 + $0x98] sm:$0xf]
    %v814 = vld [vmem:[%s5 + $0x9c] sm:$0xf]
    %v815 = vld [vmem:[%s5 + $0xa0] sm:$0xf]
    %v816 = vld [vmem:[%s5 + $0xa4] sm:$0xf]
    %v817 = vld [vmem:[%s5 + $0xa8] sm:$0xf]
    %v818 = vld [vmem:[%s5 + $0xac] sm:$0xf]
    %v819 = vld [vmem:[%s5 + $0xb0] sm:$0xf]
    %v820 = vld [vmem:[%s5 + $0xb4] sm:$0xf]
    %v821 = vld [vmem:[%s5 + $0xb8] sm:$0xf]
    %v822 = vld [vmem:[%s5 + $0xbc] sm:$0xf]
    %v823 = vld [vmem:[%s5 + $0xc0] sm:$0xf]
    %v824 = vld [vmem:[%s5 + $0xc4] sm:$0xf]
    %v825 = vld [vmem:[%s5 + $0xc8] sm:$0xf]
    %v826 = vld [vmem:[%s5 + $0xcc] sm:$0xf]
    %v827 = vld [vmem:[%s5 + $0xd0] sm:$0xf]
    %v828 = vld [vmem:[%s5 + $0xd4] sm:$0xf]
    %v829 = vld [vmem:[%s5 + $0xd8] sm:$0xf]
    %v830 = vld [vmem:[%s5 + $0xdc] sm:$0xf]
    %v831 = vld [vmem:[%s5 + $0xe0] sm:$0xf]
    %v832 = vld [vmem:[%s5 + $0xe4] sm:$0xf]
    %v833 = vld [vmem:[%s5 + $0xe8] sm:$0xf]
    %v834 = vld [vmem:[%s5 + $0xec] sm:$0xf]
    %v835 = vld [vmem:[%s5 + $0xf0] sm:$0xf]
    %v836 = vld [vmem:[%s5 + $0xf4] sm:$0xf]
    %v837 = vld [vmem:[%s5 + $0xf8] sm:$0xf]
    %v838 = vld [vmem:[%s5 + $0xfc] sm:$0xf]
    %v839 = vld [vmem:[%s8] sm:$0x1]
    %v840 = vld [vmem:[%s8 + $0x1] sm:$0x1]
    %v841 = vld [vmem:[%s8 + $0x2] sm:$0x1]
    %v842 = vld [vmem:[%s8 + $0x3] sm:$0x1]
    %v843 = vld [vmem:[%s8 + $0x4] sm:$0x1]
    %v844 = vld [vmem:[%s8 + $0x5] sm:$0x1]
    %v845 = vld [vmem:[%s8 + $0x6] sm:$0x1]
    %v846 = vld [vmem:[%s8 + $0x7] sm:$0x1]
    %v855 = vlaneseq
    %v856 = vshrl.u32 %v855, 7
    %v857 = vsub.s32 0, %v856
    %v858 = vrot.slane %v839, %v857
    %v859 = vlaneseq
    %v860 = vshrl.u32 %v859, 7
    %v861 = vsub.s32 0, %v860
    %v862 = vrot.slane %v840, %v861
    %v863 = vlaneseq
    %v864 = vshrl.u32 %v863, 7
    %v865 = vsub.s32 0, %v864
    %v866 = vrot.slane %v841, %v865
    %v867 = vlaneseq
    %v868 = vshrl.u32 %v867, 7
    %v869 = vsub.s32 0, %v868
    %v870 = vrot.slane %v842, %v869
    %v871 = vlaneseq
    %v872 = vshrl.u32 %v871, 7
    %v873 = vsub.s32 0, %v872
    %v874 = vrot.slane %v843, %v873
    %v875 = vlaneseq
    %v876 = vshrl.u32 %v875, 7
    %v877 = vsub.s32 0, %v876
    %v878 = vrot.slane %v844, %v877
    %v879 = vlaneseq
    %v880 = vshrl.u32 %v879, 7
    %v881 = vsub.s32 0, %v880
    %v882 = vrot.slane %v845, %v881
    %v883 = vlaneseq
    %v884 = vshrl.u32 %v883, 7
    %v885 = vsub.s32 0, %v884
    %v886 = vrot.slane %v846, %v885
    %v903 = vunpack.c.l.b16 %v775
    %v904 = vunpack.c.l.b16 %v776
    %v905 = vunpack.c.l.b16 %v777
    %v906 = vunpack.c.l.b16 %v778
    %v907 = vunpack.c.l.b16 %v779
    %v908 = vunpack.c.l.b16 %v780
    %v909 = vunpack.c.l.b16 %v781
    %v910 = vunpack.c.l.b16 %v782
    %v911 = vpack.c.b16 %v904, %v903
    %v912 = vpack.c.b16 %v906, %v905
    %v913 = vpack.c.b16 %v908, %v907
    %v914 = vpack.c.b16 %v910, %v909
    %919 = vmatprep.subr.bf16.mxu0 0
    %920 = vmatpush1.bf16.msra.mxu0 %v911
    %921 = vmatprep.subr.bf16.mxu0 0
    %922 = vmatpush1.bf16.msra.mxu0 %v912
    %923 = vmatprep.subr.bf16.mxu0 0
    %924 = vmatpush1.bf16.msra.mxu0 %v913
    %925 = vmatprep.subr.bf16.mxu0 0
    %926 = vmatpush1.bf16.msra.mxu0 %v914
    %927 = vmatprep.subr.bf16.mxu0 0
    %928 = vmatpush1.bf16.msra.mxu0 0
    %929 = vmatprep.subr.bf16.mxu0 0
    %930 = vmatpush1.bf16.msra.mxu0 0
    %931 = vmatprep.subr.bf16.mxu0 0
    %932 = vmatpush1.bf16.msra.mxu0 0
    %933 = vmatprep.subr.bf16.mxu0 0
    %934 = vmatpush1.bf16.msra.mxu0 0
    %935 = vmatprep.subr.bf16.mxu0 0
    %936 = vmatpush1.bf16.msra.mxu0 0
    %937 = vmatprep.subr.bf16.mxu0 0
    %938 = vmatpush1.bf16.msra.mxu0 0
    %939 = vmatprep.subr.bf16.mxu0 0
    %940 = vmatpush1.bf16.msra.mxu0 0
    %941 = vmatprep.subr.bf16.mxu0 0
    %942 = vmatpush1.bf16.msra.mxu0 0
    %943 = vmatprep.subr.bf16.mxu0 0
    %944 = vmatpush1.bf16.msra.mxu0 0
    %945 = vmatprep.subr.bf16.mxu0 0
    %946 = vmatpush1.bf16.msra.mxu0 0
    %947 = vmatprep.subr.bf16.mxu0 0
    %948 = vmatpush1.bf16.msra.mxu0 0
    %949 = vmatprep.subr.bf16.mxu0 0
    %950 = vmatpush1.bf16.msra.mxu0 0
    %951 = vmatprep.mubr.bf16.mxu0 0
    %952 = vmatmul.mubr.bf16.gmra.mrb[0].mxu0 %v282
    %v953 = vpop.f32.mrb[0].mxu0
    %v954 = vadd.f32 %v858, %v953
    %v955 = vpop.f32.mrb[0].mxu0
    %v956 = vpop.f32.mrb[0].mxu0
    %v957 = vpop.f32.mrb[0].mxu0
    %958 = vdwg.mxu0
    %v967 = vunpack.c.l.b16 %v783
    %v968 = vunpack.c.l.b16 %v784
    %v969 = vunpack.c.l.b16 %v785
    %v970 = vunpack.c.l.b16 %v786
    %v971 = vunpack.c.l.b16 %v787
    %v972 = vunpack.c.l.b16 %v788
    %v973 = vunpack.c.l.b16 %v789
    %v974 = vunpack.c.l.b16 %v790
    %v975 = vpack.c.b16 %v968, %v967
    %v976 = vpack.c.b16 %v970, %v969
    %v977 = vpack.c.b16 %v972, %v971
    %v978 = vpack.c.b16 %v974, %v973
    %983 = vmatprep.subr.bf16.mxu0 0
    %984 = vmatpush1.bf16.msra.mxu0 %v975
    %985 = vmatprep.subr.bf16.mxu0 0
    %986 = vmatpush1.bf16.msra.mxu0 %v976
    %987 = vmatprep.subr.bf16.mxu0 0
    %988 = vmatpush1.bf16.msra.mxu0 %v977
    %989 = vmatprep.subr.bf16.mxu0 0
    %990 = vmatpush1.bf16.msra.mxu0 %v978
    %991 = vmatprep.subr.bf16.mxu0 0
    %992 = vmatpush1.bf16.msra.mxu0 0
    %993 = vmatprep.subr.bf16.mxu0 0
    %994 = vmatpush1.bf16.msra.mxu0 0
    %995 = vmatprep.subr.bf16.mxu0 0
    %996 = vmatpush1.bf16.msra.mxu0 0
    %997 = vmatprep.subr.bf16.mxu0 0
    %998 = vmatpush1.bf16.msra.mxu0 0
    %999 = vmatprep.subr.bf16.mxu0 0
    %1000 = vmatpush1.bf16.msra.mxu0 0
    %1001 = vmatprep.subr.bf16.mxu0 0
    %1002 = vmatpush1.bf16.msra.mxu0 0
    %1003 = vmatprep.subr.bf16.mxu0 0
    %1004 = vmatpush1.bf16.msra.mxu0 0
    %1005 = vmatprep.subr.bf16.mxu0 0
    %1006 = vmatpush1.bf16.msra.mxu0 0
    %1007 = vmatprep.subr.bf16.mxu0 0
    %1008 = vmatpush1.bf16.msra.mxu0 0
    %1009 = vmatprep.subr.bf16.mxu0 0
    %1010 = vmatpush1.bf16.msra.mxu0 0
    %1011 = vmatprep.subr.bf16.mxu0 0
    %1012 = vmatpush1.bf16.msra.mxu0 0
    %1013 = vmatprep.subr.bf16.mxu0 0
    %1014 = vmatpush1.bf16.msra.mxu0 0
    %1015 = vmatprep.mubr.bf16.mxu0 0
    %1016 = vmatmul.mubr.bf16.gmra.mrb[0].mxu0 %v282
    %v1017 = vpop.f32.mrb[0].mxu0
    %v1018 = vadd.f32 %v862, %v1017
    %v1019 = vpop.f32.mrb[0].mxu0
    %v1020 = vpop.f32.mrb[0].mxu0
    %v1021 = vpop.f32.mrb[0].mxu0
    %1022 = vdwg.mxu0
    %v1031 = vunpack.c.l.b16 %v791
    %v1032 = vunpack.c.l.b16 %v792
    %v1033 = vunpack.c.l.b16 %v793
    %v1034 = vunpack.c.l.b16 %v794
    %v1035 = vunpack.c.l.b16 %v795
    %v1036 = vunpack.c.l.b16 %v796
    %v1037 = vunpack.c.l.b16 %v797
    %v1038 = vunpack.c.l.b16 %v798
    %v1039 = vpack.c.b16 %v1032, %v1031
    %v1040 = vpack.c.b16 %v1034, %v1033
    %v1041 = vpack.c.b16 %v1036, %v1035
    %v1042 = vpack.c.b16 %v1038, %v1037
    %1047 = vmatprep.subr.bf16.mxu0 0
    %1048 = vmatpush1.bf16.msra.mxu0 %v1039
    %1049 = vmatprep.subr.bf16.mxu0 0
    %1050 = vmatpush1.bf16.msra.mxu0 %v1040
    %1051 = vmatprep.subr.bf16.mxu0 0
    %1052 = vmatpush1.bf16.msra.mxu0 %v1041
    %1053 = vmatprep.subr.bf16.mxu0 0
    %1054 = vmatpush1.bf16.msra.mxu0 %v1042
    %1055 = vmatprep.subr.bf16.mxu0 0
    %1056 = vmatpush1.bf16.msra.mxu0 0
    %1057 = vmatprep.subr.bf16.mxu0 0
    %1058 = vmatpush1.bf16.msra.mxu0 0
    %1059 = vmatprep.subr.bf16.mxu0 0
    %1060 = vmatpush1.bf16.msra.mxu0 0
    %1061 = vmatprep.subr.bf16.mxu0 0
    %1062 = vmatpush1.bf16.msra.mxu0 0
    %1063 = vmatprep.subr.bf16.mxu0 0
    %1064 = vmatpush1.bf16.msra.mxu0 0
    %1065 = vmatprep.subr.bf16.mxu0 0
    %1066 = vmatpush1.bf16.msra.mxu0 0
    %1067 = vmatprep.subr.bf16.mxu0 0
    %1068 = vmatpush1.bf16.msra.mxu0 0
    %1069 = vmatprep.subr.bf16.mxu0 0
    %1070 = vmatpush1.bf16.msra.mxu0 0
    %1071 = vmatprep.subr.bf16.mxu0 0
    %1072 = vmatpush1.bf16.msra.mxu0 0
    %1073 = vmatprep.subr.bf16.mxu0 0
    %1074 = vmatpush1.bf16.msra.mxu0 0
    %1075 = vmatprep.subr.bf16.mxu0 0
    %1076 = vmatpush1.bf16.msra.mxu0 0
    %1077 = vmatprep.subr.bf16.mxu0 0
    %1078 = vmatpush1.bf16.msra.mxu0 0
    %1079 = vmatprep.mubr.bf16.mxu0 0
    %1080 = vmatmul.mubr.bf16.gmra.mrb[0].mxu0 %v282
    %v1081 = vpop.f32.mrb[0].mxu0
    %v1082 = vadd.f32 %v866, %v1081
    %v1083 = vpop.f32.mrb[0].mxu0
    %v1084 = vpop.f32.mrb[0].mxu0
    %v1085 = vpop.f32.mrb[0].mxu0
    %1086 = vdwg.mxu0
    %v1095 = vunpack.c.l.b16 %v799
    %v1096 = vunpack.c.l.b16 %v800
    %v1097 = vunpack.c.l.b16 %v801
    %v1098 = vunpack.c.l.b16 %v802
    %v1099 = vunpack.c.l.b16 %v803
    %v1100 = vunpack.c.l.b16 %v804
    %v1101 = vunpack.c.l.b16 %v805
    %v1102 = vunpack.c.l.b16 %v806
    %v1103 = vpack.c.b16 %v1096, %v1095
    %v1104 = vpack.c.b16 %v1098, %v1097
    %v1105 = vpack.c.b16 %v1100, %v1099
    %v1106 = vpack.c.b16 %v1102, %v1101
    %1111 = vmatprep.subr.bf16.mxu0 0
    %1112 = vmatpush1.bf16.msra.mxu0 %v1103
    %1113 = vmatprep.subr.bf16.mxu0 0
    %1114 = vmatpush1.bf16.msra.mxu0 %v1104
    %1115 = vmatprep.subr.bf16.mxu0 0
    %1116 = vmatpush1.bf16.msra.mxu0 %v1105
    %1117 = vmatprep.subr.bf16.mxu0 0
    %1118 = vmatpush1.bf16.msra.mxu0 %v1106
    %1119 = vmatprep.subr.bf16.mxu0 0
    %1120 = vmatpush1.bf16.msra.mxu0 0
    %1121 = vmatprep.subr.bf16.mxu0 0
    %1122 = vmatpush1.bf16.msra.mxu0 0
    %1123 = vmatprep.subr.bf16.mxu0 0
    %1124 = vmatpush1.bf16.msra.mxu0 0
    %1125 = vmatprep.subr.bf16.mxu0 0
    %1126 = vmatpush1.bf16.msra.mxu0 0
    %1127 = vmatprep.subr.bf16.mxu0 0
    %1128 = vmatpush1.bf16.msra.mxu0 0
    %1129 = vmatprep.subr.bf16.mxu0 0
    %1130 = vmatpush1.bf16.msra.mxu0 0
    %1131 = vmatprep.subr.bf16.mxu0 0
    %1132 = vmatpush1.bf16.msra.mxu0 0
    %1133 = vmatprep.subr.bf16.mxu0 0
    %1134 = vmatpush1.bf16.msra.mxu0 0
    %1135 = vmatprep.subr.bf16.mxu0 0
    %1136 = vmatpush1.bf16.msra.mxu0 0
    %1137 = vmatprep.subr.bf16.mxu0 0
    %1138 = vmatpush1.bf16.msra.mxu0 0
    %1139 = vmatprep.subr.bf16.mxu0 0
    %1140 = vmatpush1.bf16.msra.mxu0 0
    %1141 = vmatprep.subr.bf16.mxu0 0
    %1142 = vmatpush1.bf16.msra.mxu0 0
    %1143 = vmatprep.mubr.bf16.mxu0 0
    %1144 = vmatmul.mubr.bf16.gmra.mrb[0].mxu0 %v282
    %v1145 = vpop.f32.mrb[0].mxu0
    %v1146 = vadd.f32 %v870, %v1145
    %v1147 = vpop.f32.mrb[0].mxu0
    %v1148 = vpop.f32.mrb[0].mxu0
    %v1149 = vpop.f32.mrb[0].mxu0
    %1150 = vdwg.mxu0
    %v1159 = vunpack.c.l.b16 %v807
    %v1160 = vunpack.c.l.b16 %v808
    %v1161 = vunpack.c.l.b16 %v809
    %v1162 = vunpack.c.l.b16 %v810
    %v1163 = vunpack.c.l.b16 %v811
    %v1164 = vunpack.c.l.b16 %v812
    %v1165 = vunpack.c.l.b16 %v813
    %v1166 = vunpack.c.l.b16 %v814
    %v1167 = vpack.c.b16 %v1160, %v1159
    %v1168 = vpack.c.b16 %v1162, %v1161
    %v1169 = vpack.c.b16 %v1164, %v1163
    %v1170 = vpack.c.b16 %v1166, %v1165
    %1175 = vmatprep.subr.bf16.mxu0 0
    %1176 = vmatpush1.bf16.msra.mxu0 %v1167
    %1177 = vmatprep.subr.bf16.mxu0 0
    %1178 = vmatpush1.bf16.msra.mxu0 %v1168
    %1179 = vmatprep.subr.bf16.mxu0 0
    %1180 = vmatpush1.bf16.msra.mxu0 %v1169
    %1181 = vmatprep.subr.bf16.mxu0 0
    %1182 = vmatpush1.bf16.msra.mxu0 %v1170
    %1183 = vmatprep.subr.bf16.mxu0 0
    %1184 = vmatpush1.bf16.msra.mxu0 0
    %1185 = vmatprep.subr.bf16.mxu0 0
    %1186 = vmatpush1.bf16.msra.mxu0 0
    %1187 = vmatprep.subr.bf16.mxu0 0
    %1188 = vmatpush1.bf16.msra.mxu0 0
    %1189 = vmatprep.subr.bf16.mxu0 0
    %1190 = vmatpush1.bf16.msra.mxu0 0
    %1191 = vmatprep.subr.bf16.mxu0 0
    %1192 = vmatpush1.bf16.msra.mxu0 0
    %1193 = vmatprep.subr.bf16.mxu0 0
    %1194 = vmatpush1.bf16.msra.mxu0 0
    %1195 = vmatprep.subr.bf16.mxu0 0
    %1196 = vmatpush1.bf16.msra.mxu0 0
    %1197 = vmatprep.subr.bf16.mxu0 0
    %1198 = vmatpush1.bf16.msra.mxu0 0
    %1199 = vmatprep.subr.bf16.mxu0 0
    %1200 = vmatpush1.bf16.msra.mxu0 0
    %1201 = vmatprep.subr.bf16.mxu0 0
    %1202 = vmatpush1.bf16.msra.mxu0 0
    %1203 = vmatprep.subr.bf16.mxu0 0
    %1204 = vmatpush1.bf16.msra.mxu0 0
    %1205 = vmatprep.subr.bf16.mxu0 0
    %1206 = vmatpush1.bf16.msra.mxu0 0
    %1207 = vmatprep.mubr.bf16.mxu0 0
    %1208 = vmatmul.mubr.bf16.gmra.mrb[0].mxu0 %v541
    %v1209 = vpop.f32.mrb[0].mxu0
    %v1210 = vadd.f32 %v874, %v1209
    %v1211 = vpop.f32.mrb[0].mxu0
    %v1212 = vpop.f32.mrb[0].mxu0
    %v1213 = vpop.f32.mrb[0].mxu0
    %1214 = vdwg.mxu0
    %v1223 = vunpack.c.l.b16 %v815
    %v1224 = vunpack.c.l.b16 %v816
    %v1225 = vunpack.c.l.b16 %v817
    %v1226 = vunpack.c.l.b16 %v818
    %v1227 = vunpack.c.l.b16 %v819
    %v1228 = vunpack.c.l.b16 %v820
    %v1229 = vunpack.c.l.b16 %v821
    %v1230 = vunpack.c.l.b16 %v822
    %v1231 = vpack.c.b16 %v1224, %v1223
    %v1232 = vpack.c.b16 %v1226, %v1225
    %v1233 = vpack.c.b16 %v1228, %v1227
    %v1234 = vpack.c.b16 %v1230, %v1229
    %1239 = vmatprep.subr.bf16.mxu0 0
    %1240 = vmatpush1.bf16.msra.mxu0 %v1231
    %1241 = vmatprep.subr.bf16.mxu0 0
    %1242 = vmatpush1.bf16.msra.mxu0 %v1232
    %1243 = vmatprep.subr.bf16.mxu0 0
    %1244 = vmatpush1.bf16.msra.mxu0 %v1233
    %1245 = vmatprep.subr.bf16.mxu0 0
    %1246 = vmatpush1.bf16.msra.mxu0 %v1234
    %1247 = vmatprep.subr.bf16.mxu0 0
    %1248 = vmatpush1.bf16.msra.mxu0 0
    %1249 = vmatprep.subr.bf16.mxu0 0
    %1250 = vmatpush1.bf16.msra.mxu0 0
    %1251 = vmatprep.subr.bf16.mxu0 0
    %1252 = vmatpush1.bf16.msra.mxu0 0
    %1253 = vmatprep.subr.bf16.mxu0 0
    %1254 = vmatpush1.bf16.msra.mxu0 0
    %1255 = vmatprep.subr.bf16.mxu0 0
    %1256 = vmatpush1.bf16.msra.mxu0 0
    %1257 = vmatprep.subr.bf16.mxu0 0
    %1258 = vmatpush1.bf16.msra.mxu0 0
    %1259 = vmatprep.subr.bf16.mxu0 0
    %1260 = vmatpush1.bf16.msra.mxu0 0
    %1261 = vmatprep.subr.bf16.mxu0 0
    %1262 = vmatpush1.bf16.msra.mxu0 0
    %1263 = vmatprep.subr.bf16.mxu0 0
    %1264 = vmatpush1.bf16.msra.mxu0 0
    %1265 = vmatprep.subr.bf16.mxu0 0
    %1266 = vmatpush1.bf16.msra.mxu0 0
    %1267 = vmatprep.subr.bf16.mxu0 0
    %1268 = vmatpush1.bf16.msra.mxu0 0
    %1269 = vmatprep.subr.bf16.mxu0 0
    %1270 = vmatpush1.bf16.msra.mxu0 0
    %1271 = vmatprep.mubr.bf16.mxu0 0
    %1272 = vmatmul.mubr.bf16.gmra.mrb[0].mxu0 %v541
    %v1273 = vpop.f32.mrb[0].mxu0
    %v1274 = vadd.f32 %v878, %v1273
    %v1275 = vpop.f32.mrb[0].mxu0
    %v1276 = vpop.f32.mrb[0].mxu0
    %v1277 = vpop.f32.mrb[0].mxu0
    %1278 = vdwg.mxu0
    %v1287 = vunpack.c.l.b16 %v823
    %v1288 = vunpack.c.l.b16 %v824
    %v1289 = vunpack.c.l.b16 %v825
    %v1290 = vunpack.c.l.b16 %v826
    %v1291 = vunpack.c.l.b16 %v827
    %v1292 = vunpack.c.l.b16 %v828
    %v1293 = vunpack.c.l.b16 %v829
    %v1294 = vunpack.c.l.b16 %v830
    %v1295 = vpack.c.b16 %v1288, %v1287
    %v1296 = vpack.c.b16 %v1290, %v1289
    %v1297 = vpack.c.b16 %v1292, %v1291
    %v1298 = vpack.c.b16 %v1294, %v1293
    %1303 = vmatprep.subr.bf16.mxu0 0
    %1304 = vmatpush1.bf16.msra.mxu0 %v1295
    %1305 = vmatprep.subr.bf16.mxu0 0
    %1306 = vmatpush1.bf16.msra.mxu0 %v1296
    %1307 = vmatprep.subr.bf16.mxu0 0
    %1308 = vmatpush1.bf16.msra.mxu0 %v1297
    %1309 = vmatprep.subr.bf16.mxu0 0
    %1310 = vmatpush1.bf16.msra.mxu0 %v1298
    %1311 = vmatprep.subr.bf16.mxu0 0
    %1312 = vmatpush1.bf16.msra.mxu0 0
    %1313 = vmatprep.subr.bf16.mxu0 0
    %1314 = vmatpush1.bf16.msra.mxu0 0
    %1315 = vmatprep.subr.bf16.mxu0 0
    %1316 = vmatpush1.bf16.msra.mxu0 0
    %1317 = vmatprep.subr.bf16.mxu0 0
    %1318 = vmatpush1.bf16.msra.mxu0 0
    %1319 = vmatprep.subr.bf16.mxu0 0
    %1320 = vmatpush1.bf16.msra.mxu0 0
    %1321 = vmatprep.subr.bf16.mxu0 0
    %1322 = vmatpush1.bf16.msra.mxu0 0
    %1323 = vmatprep.subr.bf16.mxu0 0
    %1324 = vmatpush1.bf16.msra.mxu0 0
    %1325 = vmatprep.subr.bf16.mxu0 0
    %1326 = vmatpush1.bf16.msra.mxu0 0
    %1327 = vmatprep.subr.bf16.mxu0 0
    %1328 = vmatpush1.bf16.msra.mxu0 0
    %1329 = vmatprep.subr.bf16.mxu0 0
    %1330 = vmatpush1.bf16.msra.mxu0 0
    %1331 = vmatprep.subr.bf16.mxu0 0
    %1332 = vmatpush1.bf16.msra.mxu0 0
    %1333 = vmatprep.subr.bf16.mxu0 0
    %1334 = vmatpush1.bf16.msra.mxu0 0
    %1335 = vmatprep.mubr.bf16.mxu0 0
    %1336 = vmatmul.mubr.bf16.gmra.mrb[0].mxu0 %v541
    %v1337 = vpop.f32.mrb[0].mxu0
    %v1338 = vadd.f32 %v882, %v1337
    %v1339 = vpop.f32.mrb[0].mxu0
    %v1340 = vpop.f32.mrb[0].mxu0
    %v1341 = vpop.f32.mrb[0].mxu0
    %1342 = vdwg.mxu0
    %v1351 = vunpack.c.l.b16 %v831
    %v1352 = vunpack.c.l.b16 %v832
    %v1353 = vunpack.c.l.b16 %v833
    %v1354 = vunpack.c.l.b16 %v834
    %v1355 = vunpack.c.l.b16 %v835
    %v1356 = vunpack.c.l.b16 %v836
    %v1357 = vunpack.c.l.b16 %v837
    %v1358 = vunpack.c.l.b16 %v838
    %v1359 = vpack.c.b16 %v1352, %v1351
    %v1360 = vpack.c.b16 %v1354, %v1353
    %v1361 = vpack.c.b16 %v1356, %v1355
    %v1362 = vpack.c.b16 %v1358, %v1357
    %1367 = vmatprep.subr.bf16.mxu0 0
    %1368 = vmatpush1.bf16.msra.mxu0 %v1359
    %1369 = vmatprep.subr.bf16.mxu0 0
    %1370 = vmatpush1.bf16.msra.mxu0 %v1360
    %1371 = vmatprep.subr.bf16.mxu0 0
    %1372 = vmatpush1.bf16.msra.mxu0 %v1361
    %1373 = vmatprep.subr.bf16.mxu0 0
    %1374 = vmatpush1.bf16.msra.mxu0 %v1362
    %1375 = vmatprep.subr.bf16.mxu0 0
    %1376 = vmatpush1.bf16.msra.mxu0 0
    %1377 = vmatprep.subr.bf16.mxu0 0
    %1378 = vmatpush1.bf16.msra.mxu0 0
    %1379 = vmatprep.subr.bf16.mxu0 0
    %1380 = vmatpush1.bf16.msra.mxu0 0
    %1381 = vmatprep.subr.bf16.mxu0 0
    %1382 = vmatpush1.bf16.msra.mxu0 0
    %1383 = vmatprep.subr.bf16.mxu0 0
    %1384 = vmatpush1.bf16.msra.mxu0 0
    %1385 = vmatprep.subr.bf16.mxu0 0
    %1386 = vmatpush1.bf16.msra.mxu0 0
    %1387 = vmatprep.subr.bf16.mxu0 0
    %1388 = vmatpush1.bf16.msra.mxu0 0
    %1389 = vmatprep.subr.bf16.mxu0 0
    %1390 = vmatpush1.bf16.msra.mxu0 0
    %1391 = vmatprep.subr.bf16.mxu0 0
    %1392 = vmatpush1.bf16.msra.mxu0 0
    %1393 = vmatprep.subr.bf16.mxu0 0
    %1394 = vmatpush1.bf16.msra.mxu0 0
    %1395 = vmatprep.subr.bf16.mxu0 0
    %1396 = vmatpush1.bf16.msra.mxu0 0
    %1397 = vmatprep.subr.bf16.mxu0 0
    %1398 = vmatpush1.bf16.msra.mxu0 0
    %1399 = vmatprep.mubr.bf16.mxu0 0
    %1400 = vmatmul.mubr.bf16.gmra.mrb[0].mxu0 %v541
    %v1401 = vpop.f32.mrb[0].mxu0
    %v1402 = vadd.f32 %v886, %v1401
    %v1403 = vpop.f32.mrb[0].mxu0
    %v1404 = vpop.f32.mrb[0].mxu0
    %v1405 = vpop.f32.mrb[0].mxu0
    %1406 = vdwg.mxu0
    %v1407 = vld [vmem:[%s6] sm:$0xf]
    %v1408 = vld [vmem:[%s6 + $0x4] sm:$0xf]
    %v1409 = vld [vmem:[%s6 + $0x8] sm:$0xf]
    %v1410 = vld [vmem:[%s6 + $0xc] sm:$0xf]
    %v1411 = vld [vmem:[%s6 + $0x10] sm:$0xf]
    %v1412 = vld [vmem:[%s6 + $0x14] sm:$0xf]
    %v1413 = vld [vmem:[%s6 + $0x18] sm:$0xf]
    %v1414 = vld [vmem:[%s6 + $0x1c] sm:$0xf]
    %v1415 = vld [vmem:[%s6 + $0x20] sm:$0xf]
    %v1416 = vld [vmem:[%s6 + $0x24] sm:$0xf]
    %v1417 = vld [vmem:[%s6 + $0x28] sm:$0xf]
    %v1418 = vld [vmem:[%s6 + $0x2c] sm:$0xf]
    %v1419 = vld [vmem:[%s6 + $0x30] sm:$0xf]
    %v1420 = vld [vmem:[%s6 + $0x34] sm:$0xf]
    %v1421 = vld [vmem:[%s6 + $0x38] sm:$0xf]
    %v1422 = vld [vmem:[%s6 + $0x3c] sm:$0xf]
    %v1423 = vld [vmem:[%s6 + $0x40] sm:$0xf]
    %v1424 = vld [vmem:[%s6 + $0x44] sm:$0xf]
    %v1425 = vld [vmem:[%s6 + $0x48] sm:$0xf]
    %v1426 = vld [vmem:[%s6 + $0x4c] sm:$0xf]
    %v1427 = vld [vmem:[%s6 + $0x50] sm:$0xf]
    %v1428 = vld [vmem:[%s6 + $0x54] sm:$0xf]
    %v1429 = vld [vmem:[%s6 + $0x58] sm:$0xf]
    %v1430 = vld [vmem:[%s6 + $0x5c] sm:$0xf]
    %v1431 = vld [vmem:[%s6 + $0x60] sm:$0xf]
    %v1432 = vld [vmem:[%s6 + $0x64] sm:$0xf]
    %v1433 = vld [vmem:[%s6 + $0x68] sm:$0xf]
    %v1434 = vld [vmem:[%s6 + $0x6c] sm:$0xf]
    %v1435 = vld [vmem:[%s6 + $0x70] sm:$0xf]
    %v1436 = vld [vmem:[%s6 + $0x74] sm:$0xf]
    %v1437 = vld [vmem:[%s6 + $0x78] sm:$0xf]
    %v1438 = vld [vmem:[%s6 + $0x7c] sm:$0xf]
    %v1439 = vld [vmem:[%s6 + $0x80] sm:$0xf]
    %v1440 = vld [vmem:[%s6 + $0x84] sm:$0xf]
    %v1441 = vld [vmem:[%s6 + $0x88] sm:$0xf]
    %v1442 = vld [vmem:[%s6 + $0x8c] sm:$0xf]
    %v1443 = vld [vmem:[%s6 + $0x90] sm:$0xf]
    %v1444 = vld [vmem:[%s6 + $0x94] sm:$0xf]
    %v1445 = vld [vmem:[%s6 + $0x98] sm:$0xf]
    %v1446 = vld [vmem:[%s6 + $0x9c] sm:$0xf]
    %v1447 = vld [vmem:[%s6 + $0xa0] sm:$0xf]
    %v1448 = vld [vmem:[%s6 + $0xa4] sm:$0xf]
    %v1449 = vld [vmem:[%s6 + $0xa8] sm:$0xf]
    %v1450 = vld [vmem:[%s6 + $0xac] sm:$0xf]
    %v1451 = vld [vmem:[%s6 + $0xb0] sm:$0xf]
    %v1452 = vld [vmem:[%s6 + $0xb4] sm:$0xf]
    %v1453 = vld [vmem:[%s6 + $0xb8] sm:$0xf]
    %v1454 = vld [vmem:[%s6 + $0xbc] sm:$0xf]
    %v1455 = vld [vmem:[%s6 + $0xc0] sm:$0xf]
    %v1456 = vld [vmem:[%s6 + $0xc4] sm:$0xf]
    %v1457 = vld [vmem:[%s6 + $0xc8] sm:$0xf]
    %v1458 = vld [vmem:[%s6 + $0xcc] sm:$0xf]
    %v1459 = vld [vmem:[%s6 + $0xd0] sm:$0xf]
    %v1460 = vld [vmem:[%s6 + $0xd4] sm:$0xf]
    %v1461 = vld [vmem:[%s6 + $0xd8] sm:$0xf]
    %v1462 = vld [vmem:[%s6 + $0xdc] sm:$0xf]
    %v1463 = vld [vmem:[%s6 + $0xe0] sm:$0xf]
    %v1464 = vld [vmem:[%s6 + $0xe4] sm:$0xf]
    %v1465 = vld [vmem:[%s6 + $0xe8] sm:$0xf]
    %v1466 = vld [vmem:[%s6 + $0xec] sm:$0xf]
    %v1467 = vld [vmem:[%s6 + $0xf0] sm:$0xf]
    %v1468 = vld [vmem:[%s6 + $0xf4] sm:$0xf]
    %v1469 = vld [vmem:[%s6 + $0xf8] sm:$0xf]
    %v1470 = vld [vmem:[%s6 + $0xfc] sm:$0xf]
    %v1471 = vld [vmem:[%s9] sm:$0x1]
    %v1472 = vld [vmem:[%s9 + $0x1] sm:$0x1]
    %v1473 = vld [vmem:[%s9 + $0x2] sm:$0x1]
    %v1474 = vld [vmem:[%s9 + $0x3] sm:$0x1]
    %v1475 = vld [vmem:[%s9 + $0x4] sm:$0x1]
    %v1476 = vld [vmem:[%s9 + $0x5] sm:$0x1]
    %v1477 = vld [vmem:[%s9 + $0x6] sm:$0x1]
    %v1478 = vld [vmem:[%s9 + $0x7] sm:$0x1]
    %v1487 = vlaneseq
    %v1488 = vshrl.u32 %v1487, 7
    %v1489 = vsub.s32 0, %v1488
    %v1490 = vrot.slane %v1471, %v1489
    %v1491 = vlaneseq
    %v1492 = vshrl.u32 %v1491, 7
    %v1493 = vsub.s32 0, %v1492
    %v1494 = vrot.slane %v1472, %v1493
    %v1495 = vlaneseq
    %v1496 = vshrl.u32 %v1495, 7
    %v1497 = vsub.s32 0, %v1496
    %v1498 = vrot.slane %v1473, %v1497
    %v1499 = vlaneseq
    %v1500 = vshrl.u32 %v1499, 7
    %v1501 = vsub.s32 0, %v1500
    %v1502 = vrot.slane %v1474, %v1501
    %v1503 = vlaneseq
    %v1504 = vshrl.u32 %v1503, 7
    %v1505 = vsub.s32 0, %v1504
    %v1506 = vrot.slane %v1475, %v1505
    %v1507 = vlaneseq
    %v1508 = vshrl.u32 %v1507, 7
    %v1509 = vsub.s32 0, %v1508
    %v1510 = vrot.slane %v1476, %v1509
    %v1511 = vlaneseq
    %v1512 = vshrl.u32 %v1511, 7
    %v1513 = vsub.s32 0, %v1512
    %v1514 = vrot.slane %v1477, %v1513
    %v1515 = vlaneseq
    %v1516 = vshrl.u32 %v1515, 7
    %v1517 = vsub.s32 0, %v1516
    %v1518 = vrot.slane %v1478, %v1517
    %v1535 = vunpack.c.l.b16 %v1407
    %v1536 = vunpack.c.l.b16 %v1408
    %v1537 = vunpack.c.l.b16 %v1409
    %v1538 = vunpack.c.l.b16 %v1410
    %v1539 = vunpack.c.l.b16 %v1411
    %v1540 = vunpack.c.l.b16 %v1412
    %v1541 = vunpack.c.l.b16 %v1413
    %v1542 = vunpack.c.l.b16 %v1414
    %v1543 = vpack.c.b16 %v1536, %v1535
    %v1544 = vpack.c.b16 %v1538, %v1537
    %v1545 = vpack.c.b16 %v1540, %v1539
    %v1546 = vpack.c.b16 %v1542, %v1541
    %1551 = vmatprep.subr.bf16.mxu0 0
    %1552 = vmatpush1.bf16.msra.mxu0 %v1543
    %1553 = vmatprep.subr.bf16.mxu0 0
    %1554 = vmatpush1.bf16.msra.mxu0 %v1544
    %1555 = vmatprep.subr.bf16.mxu0 0
    %1556 = vmatpush1.bf16.msra.mxu0 %v1545
    %1557 = vmatprep.subr.bf16.mxu0 0
    %1558 = vmatpush1.bf16.msra.mxu0 %v1546
    %1559 = vmatprep.subr.bf16.mxu0 0
    %1560 = vmatpush1.bf16.msra.mxu0 0
    %1561 = vmatprep.subr.bf16.mxu0 0
    %1562 = vmatpush1.bf16.msra.mxu0 0
    %1563 = vmatprep.subr.bf16.mxu0 0
    %1564 = vmatpush1.bf16.msra.mxu0 0
    %1565 = vmatprep.subr.bf16.mxu0 0
    %1566 = vmatpush1.bf16.msra.mxu0 0
    %1567 = vmatprep.subr.bf16.mxu0 0
    %1568 = vmatpush1.bf16.msra.mxu0 0
    %1569 = vmatprep.subr.bf16.mxu0 0
    %1570 = vmatpush1.bf16.msra.mxu0 0
    %1571 = vmatprep.subr.bf16.mxu0 0
    %1572 = vmatpush1.bf16.msra.mxu0 0
    %1573 = vmatprep.subr.bf16.mxu0 0
    %1574 = vmatpush1.bf16.msra.mxu0 0
    %1575 = vmatprep.subr.bf16.mxu0 0
    %1576 = vmatpush1.bf16.msra.mxu0 0
    %1577 = vmatprep.subr.bf16.mxu0 0
    %1578 = vmatpush1.bf16.msra.mxu0 0
    %1579 = vmatprep.subr.bf16.mxu0 0
    %1580 = vmatpush1.bf16.msra.mxu0 0
    %1581 = vmatprep.subr.bf16.mxu0 0
    %1582 = vmatpush1.bf16.msra.mxu0 0
    %1583 = vmatprep.mubr.bf16.mxu0 0
    %1584 = vmatmul.mubr.bf16.gmra.mrb[0].mxu0 %v282
    %v1585 = vpop.f32.mrb[0].mxu0
    %v1586 = vadd.f32 %v1490, %v1585
    %v1587 = vpop.f32.mrb[0].mxu0
    %v1588 = vpop.f32.mrb[0].mxu0
    %v1589 = vpop.f32.mrb[0].mxu0
    %1590 = vdwg.mxu0
    %v1599 = vunpack.c.l.b16 %v1415
    %v1600 = vunpack.c.l.b16 %v1416
    %v1601 = vunpack.c.l.b16 %v1417
    %v1602 = vunpack.c.l.b16 %v1418
    %v1603 = vunpack.c.l.b16 %v1419
    %v1604 = vunpack.c.l.b16 %v1420
    %v1605 = vunpack.c.l.b16 %v1421
    %v1606 = vunpack.c.l.b16 %v1422
    %v1607 = vpack.c.b16 %v1600, %v1599
    %v1608 = vpack.c.b16 %v1602, %v1601
    %v1609 = vpack.c.b16 %v1604, %v1603
    %v1610 = vpack.c.b16 %v1606, %v1605
    %1615 = vmatprep.subr.bf16.mxu0 0
    %1616 = vmatpush1.bf16.msra.mxu0 %v1607
    %1617 = vmatprep.subr.bf16.mxu0 0
    %1618 = vmatpush1.bf16.msra.mxu0 %v1608
    %1619 = vmatprep.subr.bf16.mxu0 0
    %1620 = vmatpush1.bf16.msra.mxu0 %v1609
    %1621 = vmatprep.subr.bf16.mxu0 0
    %1622 = vmatpush1.bf16.msra.mxu0 %v1610
    %1623 = vmatprep.subr.bf16.mxu0 0
    %1624 = vmatpush1.bf16.msra.mxu0 0
    %1625 = vmatprep.subr.bf16.mxu0 0
    %1626 = vmatpush1.bf16.msra.mxu0 0
    %1627 = vmatprep.subr.bf16.mxu0 0
    %1628 = vmatpush1.bf16.msra.mxu0 0
    %1629 = vmatprep.subr.bf16.mxu0 0
    %1630 = vmatpush1.bf16.msra.mxu0 0
    %1631 = vmatprep.subr.bf16.mxu0 0
    %1632 = vmatpush1.bf16.msra.mxu0 0
    %1633 = vmatprep.subr.bf16.mxu0 0
    %1634 = vmatpush1.bf16.msra.mxu0 0
    %1635 = vmatprep.subr.bf16.mxu0 0
    %1636 = vmatpush1.bf16.msra.mxu0 0
    %1637 = vmatprep.subr.bf16.mxu0 0
    %1638 = vmatpush1.bf16.msra.mxu0 0
    %1639 = vmatprep.subr.bf16.mxu0 0
    %1640 = vmatpush1.bf16.msra.mxu0 0
    %1641 = vmatprep.subr.bf16.mxu0 0
    %1642 = vmatpush1.bf16.msra.mxu0 0
    %1643 = vmatprep.subr.bf16.mxu0 0
    %1644 = vmatpush1.bf16.msra.mxu0 0
    %1645 = vmatprep.subr.bf16.mxu0 0
    %1646 = vmatpush1.bf16.msra.mxu0 0
    %1647 = vmatprep.mubr.bf16.mxu0 0
    %1648 = vmatmul.mubr.bf16.gmra.mrb[0].mxu0 %v282
    %v1649 = vpop.f32.mrb[0].mxu0
    %v1650 = vadd.f32 %v1494, %v1649
    %v1651 = vpop.f32.mrb[0].mxu0
    %v1652 = vpop.f32.mrb[0].mxu0
    %v1653 = vpop.f32.mrb[0].mxu0
    %1654 = vdwg.mxu0
    %v1663 = vunpack.c.l.b16 %v1423
    %v1664 = vunpack.c.l.b16 %v1424
    %v1665 = vunpack.c.l.b16 %v1425
    %v1666 = vunpack.c.l.b16 %v1426
    %v1667 = vunpack.c.l.b16 %v1427
    %v1668 = vunpack.c.l.b16 %v1428
    %v1669 = vunpack.c.l.b16 %v1429
    %v1670 = vunpack.c.l.b16 %v1430
    %v1671 = vpack.c.b16 %v1664, %v1663
    %v1672 = vpack.c.b16 %v1666, %v1665
    %v1673 = vpack.c.b16 %v1668, %v1667
    %v1674 = vpack.c.b16 %v1670, %v1669
    %1679 = vmatprep.subr.bf16.mxu0 0
    %1680 = vmatpush1.bf16.msra.mxu0 %v1671
    %1681 = vmatprep.subr.bf16.mxu0 0
    %1682 = vmatpush1.bf16.msra.mxu0 %v1672
    %1683 = vmatprep.subr.bf16.mxu0 0
    %1684 = vmatpush1.bf16.msra.mxu0 %v1673
    %1685 = vmatprep.subr.bf16.mxu0 0
    %1686 = vmatpush1.bf16.msra.mxu0 %v1674
    %1687 = vmatprep.subr.bf16.mxu0 0
    %1688 = vmatpush1.bf16.msra.mxu0 0
    %1689 = vmatprep.subr.bf16.mxu0 0
    %1690 = vmatpush1.bf16.msra.mxu0 0
    %1691 = vmatprep.subr.bf16.mxu0 0
    %1692 = vmatpush1.bf16.msra.mxu0 0
    %1693 = vmatprep.subr.bf16.mxu0 0
    %1694 = vmatpush1.bf16.msra.mxu0 0
    %1695 = vmatprep.subr.bf16.mxu0 0
    %1696 = vmatpush1.bf16.msra.mxu0 0
    %1697 = vmatprep.subr.bf16.mxu0 0
    %1698 = vmatpush1.bf16.msra.mxu0 0
    %1699 = vmatprep.subr.bf16.mxu0 0
    %1700 = vmatpush1.bf16.msra.mxu0 0
    %1701 = vmatprep.subr.bf16.mxu0 0
    %1702 = vmatpush1.bf16.msra.mxu0 0
    %1703 = vmatprep.subr.bf16.mxu0 0
    %1704 = vmatpush1.bf16.msra.mxu0 0
    %1705 = vmatprep.subr.bf16.mxu0 0
    %1706 = vmatpush1.bf16.msra.mxu0 0
    %1707 = vmatprep.subr.bf16.mxu0 0
    %1708 = vmatpush1.bf16.msra.mxu0 0
    %1709 = vmatprep.subr.bf16.mxu0 0
    %1710 = vmatpush1.bf16.msra.mxu0 0
    %1711 = vmatprep.mubr.bf16.mxu0 0
    %1712 = vmatmul.mubr.bf16.gmra.mrb[0].mxu0 %v282
    %v1713 = vpop.f32.mrb[0].mxu0
    %v1714 = vadd.f32 %v1498, %v1713
    %v1715 = vpop.f32.mrb[0].mxu0
    %v1716 = vpop.f32.mrb[0].mxu0
    %v1717 = vpop.f32.mrb[0].mxu0
    %1718 = vdwg.mxu0
    %v1727 = vunpack.c.l.b16 %v1431
    %v1728 = vunpack.c.l.b16 %v1432
    %v1729 = vunpack.c.l.b16 %v1433
    %v1730 = vunpack.c.l.b16 %v1434
    %v1731 = vunpack.c.l.b16 %v1435
    %v1732 = vunpack.c.l.b16 %v1436
    %v1733 = vunpack.c.l.b16 %v1437
    %v1734 = vunpack.c.l.b16 %v1438
    %v1735 = vpack.c.b16 %v1728, %v1727
    %v1736 = vpack.c.b16 %v1730, %v1729
    %v1737 = vpack.c.b16 %v1732, %v1731
    %v1738 = vpack.c.b16 %v1734, %v1733
    %1743 = vmatprep.subr.bf16.mxu0 0
    %1744 = vmatpush1.bf16.msra.mxu0 %v1735
    %1745 = vmatprep.subr.bf16.mxu0 0
    %1746 = vmatpush1.bf16.msra.mxu0 %v1736
    %1747 = vmatprep.subr.bf16.mxu0 0
    %1748 = vmatpush1.bf16.msra.mxu0 %v1737
    %1749 = vmatprep.subr.bf16.mxu0 0
    %1750 = vmatpush1.bf16.msra.mxu0 %v1738
    %1751 = vmatprep.subr.bf16.mxu0 0
    %1752 = vmatpush1.bf16.msra.mxu0 0
    %1753 = vmatprep.subr.bf16.mxu0 0
    %1754 = vmatpush1.bf16.msra.mxu0 0
    %1755 = vmatprep.subr.bf16.mxu0 0
    %1756 = vmatpush1.bf16.msra.mxu0 0
    %1757 = vmatprep.subr.bf16.mxu0 0
    %1758 = vmatpush1.bf16.msra.mxu0 0
    %1759 = vmatprep.subr.bf16.mxu0 0
    %1760 = vmatpush1.bf16.msra.mxu0 0
    %1761 = vmatprep.subr.bf16.mxu0 0
    %1762 = vmatpush1.bf16.msra.mxu0 0
    %1763 = vmatprep.subr.bf16.mxu0 0
    %1764 = vmatpush1.bf16.msra.mxu0 0
    %1765 = vmatprep.subr.bf16.mxu0 0
    %1766 = vmatpush1.bf16.msra.mxu0 0
    %1767 = vmatprep.subr.bf16.mxu0 0
    %1768 = vmatpush1.bf16.msra.mxu0 0
    %1769 = vmatprep.subr.bf16.mxu0 0
    %1770 = vmatpush1.bf16.msra.mxu0 0
    %1771 = vmatprep.subr.bf16.mxu0 0
    %1772 = vmatpush1.bf16.msra.mxu0 0
    %1773 = vmatprep.subr.bf16.mxu0 0
    %1774 = vmatpush1.bf16.msra.mxu0 0
    %1775 = vmatprep.mubr.bf16.mxu0 0
    %1776 = vmatmul.mubr.bf16.gmra.mrb[0].mxu0 %v282
    %v1777 = vpop.f32.mrb[0].mxu0
    %v1778 = vadd.f32 %v1502, %v1777
    %v1779 = vpop.f32.mrb[0].mxu0
    %v1780 = vpop.f32.mrb[0].mxu0
    %v1781 = vpop.f32.mrb[0].mxu0
    %1782 = vdwg.mxu0
    %v1791 = vunpack.c.l.b16 %v1439
    %v1792 = vunpack.c.l.b16 %v1440
    %v1793 = vunpack.c.l.b16 %v1441
    %v1794 = vunpack.c.l.b16 %v1442
    %v1795 = vunpack.c.l.b16 %v1443
    %v1796 = vunpack.c.l.b16 %v1444
    %v1797 = vunpack.c.l.b16 %v1445
    %v1798 = vunpack.c.l.b16 %v1446
    %v1799 = vpack.c.b16 %v1792, %v1791
    %v1800 = vpack.c.b16 %v1794, %v1793
    %v1801 = vpack.c.b16 %v1796, %v1795
    %v1802 = vpack.c.b16 %v1798, %v1797
    %1807 = vmatprep.subr.bf16.mxu0 0
    %1808 = vmatpush1.bf16.msra.mxu0 %v1799
    %1809 = vmatprep.subr.bf16.mxu0 0
    %1810 = vmatpush1.bf16.msra.mxu0 %v1800
    %1811 = vmatprep.subr.bf16.mxu0 0
    %1812 = vmatpush1.bf16.msra.mxu0 %v1801
    %1813 = vmatprep.subr.bf16.mxu0 0
    %1814 = vmatpush1.bf16.msra.mxu0 %v1802
    %1815 = vmatprep.subr.bf16.mxu0 0
    %1816 = vmatpush1.bf16.msra.mxu0 0
    %1817 = vmatprep.subr.bf16.mxu0 0
    %1818 = vmatpush1.bf16.msra.mxu0 0
    %1819 = vmatprep.subr.bf16.mxu0 0
    %1820 = vmatpush1.bf16.msra.mxu0 0
    %1821 = vmatprep.subr.bf16.mxu0 0
    %1822 = vmatpush1.bf16.msra.mxu0 0
    %1823 = vmatprep.subr.bf16.mxu0 0
    %1824 = vmatpush1.bf16.msra.mxu0 0
    %1825 = vmatprep.subr.bf16.mxu0 0
    %1826 = vmatpush1.bf16.msra.mxu0 0
    %1827 = vmatprep.subr.bf16.mxu0 0
    %1828 = vmatpush1.bf16.msra.mxu0 0
    %1829 = vmatprep.subr.bf16.mxu0 0
    %1830 = vmatpush1.bf16.msra.mxu0 0
    %1831 = vmatprep.subr.bf16.mxu0 0
    %1832 = vmatpush1.bf16.msra.mxu0 0
    %1833 = vmatprep.subr.bf16.mxu0 0
    %1834 = vmatpush1.bf16.msra.mxu0 0
    %1835 = vmatprep.subr.bf16.mxu0 0
    %1836 = vmatpush1.bf16.msra.mxu0 0
    %1837 = vmatprep.subr.bf16.mxu0 0
    %1838 = vmatpush1.bf16.msra.mxu0 0
    %1839 = vmatprep.mubr.bf16.mxu0 0
    %1840 = vmatmul.mubr.bf16.gmra.mrb[0].mxu0 %v541
    %v1841 = vpop.f32.mrb[0].mxu0
    %v1842 = vadd.f32 %v1506, %v1841
    %v1843 = vpop.f32.mrb[0].mxu0
    %v1844 = vpop.f32.mrb[0].mxu0
    %v1845 = vpop.f32.mrb[0].mxu0
    %1846 = vdwg.mxu0
    %v1855 = vunpack.c.l.b16 %v1447
    %v1856 = vunpack.c.l.b16 %v1448
    %v1857 = vunpack.c.l.b16 %v1449
    %v1858 = vunpack.c.l.b16 %v1450
    %v1859 = vunpack.c.l.b16 %v1451
    %v1860 = vunpack.c.l.b16 %v1452
    %v1861 = vunpack.c.l.b16 %v1453
    %v1862 = vunpack.c.l.b16 %v1454
    %v1863 = vpack.c.b16 %v1856, %v1855
    %v1864 = vpack.c.b16 %v1858, %v1857
    %v1865 = vpack.c.b16 %v1860, %v1859
    %v1866 = vpack.c.b16 %v1862, %v1861
    %1871 = vmatprep.subr.bf16.mxu0 0
    %1872 = vmatpush1.bf16.msra.mxu0 %v1863
    %1873 = vmatprep.subr.bf16.mxu0 0
    %1874 = vmatpush1.bf16.msra.mxu0 %v1864
    %1875 = vmatprep.subr.bf16.mxu0 0
    %1876 = vmatpush1.bf16.msra.mxu0 %v1865
    %1877 = vmatprep.subr.bf16.mxu0 0
    %1878 = vmatpush1.bf16.msra.mxu0 %v1866
    %1879 = vmatprep.subr.bf16.mxu0 0
    %1880 = vmatpush1.bf16.msra.mxu0 0
    %1881 = vmatprep.subr.bf16.mxu0 0
    %1882 = vmatpush1.bf16.msra.mxu0 0
    %1883 = vmatprep.subr.bf16.mxu0 0
    %1884 = vmatpush1.bf16.msra.mxu0 0
    %1885 = vmatprep.subr.bf16.mxu0 0
    %1886 = vmatpush1.bf16.msra.mxu0 0
    %1887 = vmatprep.subr.bf16.mxu0 0
    %1888 = vmatpush1.bf16.msra.mxu0 0
    %1889 = vmatprep.subr.bf16.mxu0 0
    %1890 = vmatpush1.bf16.msra.mxu0 0
    %1891 = vmatprep.subr.bf16.mxu0 0
    %1892 = vmatpush1.bf16.msra.mxu0 0
    %1893 = vmatprep.subr.bf16.mxu0 0
    %1894 = vmatpush1.bf16.msra.mxu0 0
    %1895 = vmatprep.subr.bf16.mxu0 0
    %1896 = vmatpush1.bf16.msra.mxu0 0
    %1897 = vmatprep.subr.bf16.mxu0 0
    %1898 = vmatpush1.bf16.msra.mxu0 0
    %1899 = vmatprep.subr.bf16.mxu0 0
    %1900 = vmatpush1.bf16.msra.mxu0 0
    %1901 = vmatprep.subr.bf16.mxu0 0
    %1902 = vmatpush1.bf16.msra.mxu0 0
    %1903 = vmatprep.mubr.bf16.mxu0 0
    %1904 = vmatmul.mubr.bf16.gmra.mrb[0].mxu0 %v541
    %v1905 = vpop.f32.mrb[0].mxu0
    %v1906 = vadd.f32 %v1510, %v1905
    %v1907 = vpop.f32.mrb[0].mxu0
    %v1908 = vpop.f32.mrb[0].mxu0
    %v1909 = vpop.f32.mrb[0].mxu0
    %1910 = vdwg.mxu0
    %v1919 = vunpack.c.l.b16 %v1455
    %v1920 = vunpack.c.l.b16 %v1456
    %v1921 = vunpack.c.l.b16 %v1457
    %v1922 = vunpack.c.l.b16 %v1458
    %v1923 = vunpack.c.l.b16 %v1459
    %v1924 = vunpack.c.l.b16 %v1460
    %v1925 = vunpack.c.l.b16 %v1461
    %v1926 = vunpack.c.l.b16 %v1462
    %v1927 = vpack.c.b16 %v1920, %v1919
    %v1928 = vpack.c.b16 %v1922, %v1921
    %v1929 = vpack.c.b16 %v1924, %v1923
    %v1930 = vpack.c.b16 %v1926, %v1925
    %1935 = vmatprep.subr.bf16.mxu0 0
    %1936 = vmatpush1.bf16.msra.mxu0 %v1927
    %1937 = vmatprep.subr.bf16.mxu0 0
    %1938 = vmatpush1.bf16.msra.mxu0 %v1928
    %1939 = vmatprep.subr.bf16.mxu0 0
    %1940 = vmatpush1.bf16.msra.mxu0 %v1929
    %1941 = vmatprep.subr.bf16.mxu0 0
    %1942 = vmatpush1.bf16.msra.mxu0 %v1930
    %1943 = vmatprep.subr.bf16.mxu0 0
    %1944 = vmatpush1.bf16.msra.mxu0 0
    %1945 = vmatprep.subr.bf16.mxu0 0
    %1946 = vmatpush1.bf16.msra.mxu0 0
    %1947 = vmatprep.subr.bf16.mxu0 0
    %1948 = vmatpush1.bf16.msra.mxu0 0
    %1949 = vmatprep.subr.bf16.mxu0 0
    %1950 = vmatpush1.bf16.msra.mxu0 0
    %1951 = vmatprep.subr.bf16.mxu0 0
    %1952 = vmatpush1.bf16.msra.mxu0 0
    %1953 = vmatprep.subr.bf16.mxu0 0
    %1954 = vmatpush1.bf16.msra.mxu0 0
    %1955 = vmatprep.subr.bf16.mxu0 0
    %1956 = vmatpush1.bf16.msra.mxu0 0
    %1957 = vmatprep.subr.bf16.mxu0 0
    %1958 = vmatpush1.bf16.msra.mxu0 0
    %1959 = vmatprep.subr.bf16.mxu0 0
    %1960 = vmatpush1.bf16.msra.mxu0 0
    %1961 = vmatprep.subr.bf16.mxu0 0
    %1962 = vmatpush1.bf16.msra.mxu0 0
    %1963 = vmatprep.subr.bf16.mxu0 0
    %1964 = vmatpush1.bf16.msra.mxu0 0
    %1965 = vmatprep.subr.bf16.mxu0 0
    %1966 = vmatpush1.bf16.msra.mxu0 0
    %1967 = vmatprep.mubr.bf16.mxu0 0
    %1968 = vmatmul.mubr.bf16.gmra.mrb[0].mxu0 %v541
    %v1969 = vpop.f32.mrb[0].mxu0
    %v1970 = vadd.f32 %v1514, %v1969
    %v1971 = vpop.f32.mrb[0].mxu0
    %v1972 = vpop.f32.mrb[0].mxu0
    %v1973 = vpop.f32.mrb[0].mxu0
    %1974 = vdwg.mxu0
    %v1983 = vunpack.c.l.b16 %v1463
    %v1984 = vunpack.c.l.b16 %v1464
    %v1985 = vunpack.c.l.b16 %v1465
    %v1986 = vunpack.c.l.b16 %v1466
    %v1987 = vunpack.c.l.b16 %v1467
    %v1988 = vunpack.c.l.b16 %v1468
    %v1989 = vunpack.c.l.b16 %v1469
    %v1990 = vunpack.c.l.b16 %v1470
    %v1991 = vpack.c.b16 %v1984, %v1983
    %v1992 = vpack.c.b16 %v1986, %v1985
    %v1993 = vpack.c.b16 %v1988, %v1987
    %v1994 = vpack.c.b16 %v1990, %v1989
    %1999 = vmatprep.subr.bf16.mxu0 0
    %2000 = vmatpush1.bf16.msra.mxu0 %v1991
    %2001 = vmatprep.subr.bf16.mxu0 0
    %2002 = vmatpush1.bf16.msra.mxu0 %v1992
    %2003 = vmatprep.subr.bf16.mxu0 0
    %2004 = vmatpush1.bf16.msra.mxu0 %v1993
    %2005 = vmatprep.subr.bf16.mxu0 0
    %2006 = vmatpush1.bf16.msra.mxu0 %v1994
    %2007 = vmatprep.subr.bf16.mxu0 0
    %2008 = vmatpush1.bf16.msra.mxu0 0
    %2009 = vmatprep.subr.bf16.mxu0 0
    %2010 = vmatpush1.bf16.msra.mxu0 0
    %2011 = vmatprep.subr.bf16.mxu0 0
    %2012 = vmatpush1.bf16.msra.mxu0 0
    %2013 = vmatprep.subr.bf16.mxu0 0
    %2014 = vmatpush1.bf16.msra.mxu0 0
    %2015 = vmatprep.subr.bf16.mxu0 0
    %2016 = vmatpush1.bf16.msra.mxu0 0
    %2017 = vmatprep.subr.bf16.mxu0 0
    %2018 = vmatpush1.bf16.msra.mxu0 0
    %2019 = vmatprep.subr.bf16.mxu0 0
    %2020 = vmatpush1.bf16.msra.mxu0 0
    %2021 = vmatprep.subr.bf16.mxu0 0
    %2022 = vmatpush1.bf16.msra.mxu0 0
    %2023 = vmatprep.subr.bf16.mxu0 0
    %2024 = vmatpush1.bf16.msra.mxu0 0
    %2025 = vmatprep.subr.bf16.mxu0 0
    %2026 = vmatpush1.bf16.msra.mxu0 0
    %2027 = vmatprep.subr.bf16.mxu0 0
    %2028 = vmatpush1.bf16.msra.mxu0 0
    %2029 = vmatprep.subr.bf16.mxu0 0
    %2030 = vmatpush1.bf16.msra.mxu0 0
    %2031 = vmatprep.mubr.bf16.mxu0 0
    %2032 = vmatmul.mubr.bf16.gmra.mrb[0].mxu0 %v541
    %v2033 = vpop.f32.mrb[0].mxu0
    %v2034 = vadd.f32 %v1518, %v2033
    %v2035 = vpop.f32.mrb[0].mxu0
    %v2036 = vpop.f32.mrb[0].mxu0
    %v2037 = vpop.f32.mrb[0].mxu0
    %2038 = vdwg.mxu0
    %v2039 = vpack.c.bf16 %v319, %v319
    %v2040 = vpack.c.bf16 %v383, %v383
    %v2041 = vpack.c.bf16 %v447, %v447
    %v2042 = vpack.c.bf16 %v511, %v511
    %v2043 = vpack.c.bf16 %v578, %v578
    %v2044 = vpack.c.bf16 %v642, %v642
    %v2045 = vpack.c.bf16 %v706, %v706
    %v2046 = vpack.c.bf16 %v770, %v770
    %v2047 = vpack.c.bf16 %v954, %v954
    %v2048 = vpack.c.bf16 %v1018, %v1018
    %v2049 = vpack.c.bf16 %v1082, %v1082
    %v2050 = vpack.c.bf16 %v1146, %v1146
    %v2051 = vpack.c.bf16 %v1210, %v1210
    %v2052 = vpack.c.bf16 %v1274, %v1274
    %v2053 = vpack.c.bf16 %v1338, %v1338
    %v2054 = vpack.c.bf16 %v1402, %v1402
    %vm2055 = vcmask 130048
    %v2057 = vsel %vm2055, %v2039, 0
    %v2060 = vsel %vm2055, %v2047, 0
    %2062 = vmatprep.subr.bf16.mxu0 0
    %2063 = vmatpush1.bf16.xpose.msra.mxu0 %v2060
    %2064 = vmatprep.subr.bf16.mxu0 0
    %2065 = vmatpush1.bf16.xpose.msra.mxu0 0
    %2066 = vmatprep.subr.bf16.mxu0 0
    %2067 = vmatpush1.bf16.xpose.msra.mxu0 0
    %2068 = vmatprep.subr.bf16.mxu0 0
    %2069 = vmatpush1.bf16.xpose.msra.mxu0 0
    %2070 = vmatprep.subr.bf16.mxu0 0
    %2071 = vmatpush1.bf16.xpose.msra.mxu0 0
    %2072 = vmatprep.subr.bf16.mxu0 0
    %2073 = vmatpush1.bf16.xpose.msra.mxu0 0
    %2074 = vmatprep.subr.bf16.mxu0 0
    %2075 = vmatpush1.bf16.xpose.msra.mxu0 0
    %2076 = vmatprep.subr.bf16.mxu0 0
    %2077 = vmatpush1.bf16.xpose.msra.mxu0 0
    %2078 = vmatprep.subr.bf16.mxu0 0
    %2079 = vmatpush1.bf16.xpose.msra.mxu0 0
    %2080 = vmatprep.subr.bf16.mxu0 0
    %2081 = vmatpush1.bf16.xpose.msra.mxu0 0
    %2082 = vmatprep.subr.bf16.mxu0 0
    %2083 = vmatpush1.bf16.xpose.msra.mxu0 0
    %2084 = vmatprep.subr.bf16.mxu0 0
    %2085 = vmatpush1.bf16.xpose.msra.mxu0 0
    %2086 = vmatprep.subr.bf16.mxu0 0
    %2087 = vmatpush1.bf16.xpose.msra.mxu0 0
    %2088 = vmatprep.subr.bf16.mxu0 0
    %2089 = vmatpush1.bf16.xpose.msra.mxu0 0
    %2090 = vmatprep.subr.bf16.mxu0 0
    %2091 = vmatpush1.bf16.xpose.msra.mxu0 0
    %2092 = vmatprep.subr.bf16.mxu0 0
    %2093 = vmatpush1.bf16.xpose.msra.mxu0 0
    %2094 = vmatprep.mubr.bf16.mxu0 0
    %2095 = vmatmul.mubr.bf16.gmra.mrb[0].mxu0 %v2057
    %v2096 = vpop.f32.mrb[0].mxu0
    %v2097 = vadd.f32 0.0, %v2096
    %v2098 = vpop.f32.mrb[0].mxu0
    %v2099 = vpop.f32.mrb[0].mxu0
    %v2100 = vpop.f32.mrb[0].mxu0
    %2101 = vdwg.mxu0
    %v2103 = vsel %vm2055, %v2040, 0
    %v2106 = vsel %vm2055, %v2048, 0
    %2108 = vmatprep.subr.bf16.mxu0 0
    %2109 = vmatpush1.bf16.xpose.msra.mxu0 %v2106
    %2110 = vmatprep.subr.bf16.mxu0 0
    %2111 = vmatpush1.bf16.xpose.msra.mxu0 0
    %2112 = vmatprep.subr.bf16.mxu0 0
    %2113 = vmatpush1.bf16.xpose.msra.mxu0 0
    %2114 = vmatprep.subr.bf16.mxu0 0
    %2115 = vmatpush1.bf16.xpose.msra.mxu0 0
    %2116 = vmatprep.subr.bf16.mxu0 0
    %2117 = vmatpush1.bf16.xpose.msra.mxu0 0
    %2118 = vmatprep.subr.bf16.mxu0 0
    %2119 = vmatpush1.bf16.xpose.msra.mxu0 0
    %2120 = vmatprep.subr.bf16.mxu0 0
    %2121 = vmatpush1.bf16.xpose.msra.mxu0 0
    %2122 = vmatprep.subr.bf16.mxu0 0
    %2123 = vmatpush1.bf16.xpose.msra.mxu0 0
    %2124 = vmatprep.subr.bf16.mxu0 0
    %2125 = vmatpush1.bf16.xpose.msra.mxu0 0
    %2126 = vmatprep.subr.bf16.mxu0 0
    %2127 = vmatpush1.bf16.xpose.msra.mxu0 0
    %2128 = vmatprep.subr.bf16.mxu0 0
    %2129 = vmatpush1.bf16.xpose.msra.mxu0 0
    %2130 = vmatprep.subr.bf16.mxu0 0
    %2131 = vmatpush1.bf16.xpose.msra.mxu0 0
    %2132 = vmatprep.subr.bf16.mxu0 0
    %2133 = vmatpush1.bf16.xpose.msra.mxu0 0
    %2134 = vmatprep.subr.bf16.mxu0 0
    %2135 = vmatpush1.bf16.xpose.msra.mxu0 0
    %2136 = vmatprep.subr.bf16.mxu0 0
    %2137 = vmatpush1.bf16.xpose.msra.mxu0 0
    %2138 = vmatprep.subr.bf16.mxu0 0
    %2139 = vmatpush1.bf16.xpose.msra.mxu0 0
    %2140 = vmatprep.mubr.bf16.mxu0 0
    %2141 = vmatmul.mubr.bf16.gmra.mrb[0].mxu0 %v2103
    %v2142 = vpop.f32.mrb[0].mxu0
    %v2143 = vadd.f32 0.0, %v2142
    %v2144 = vpop.f32.mrb[0].mxu0
    %v2145 = vpop.f32.mrb[0].mxu0
    %v2146 = vpop.f32.mrb[0].mxu0
    %2147 = vdwg.mxu0
    %v2149 = vsel %vm2055, %v2041, 0
    %v2152 = vsel %vm2055, %v2049, 0
    %2154 = vmatprep.subr.bf16.mxu0 0
    %2155 = vmatpush1.bf16.xpose.msra.mxu0 %v2152
    %2156 = vmatprep.subr.bf16.mxu0 0
    %2157 = vmatpush1.bf16.xpose.msra.mxu0 0
    %2158 = vmatprep.subr.bf16.mxu0 0
    %2159 = vmatpush1.bf16.xpose.msra.mxu0 0
    %2160 = vmatprep.subr.bf16.mxu0 0
    %2161 = vmatpush1.bf16.xpose.msra.mxu0 0
    %2162 = vmatprep.subr.bf16.mxu0 0
    %2163 = vmatpush1.bf16.xpose.msra.mxu0 0
    %2164 = vmatprep.subr.bf16.mxu0 0
    %2165 = vmatpush1.bf16.xpose.msra.mxu0 0
    %2166 = vmatprep.subr.bf16.mxu0 0
    %2167 = vmatpush1.bf16.xpose.msra.mxu0 0
    %2168 = vmatprep.subr.bf16.mxu0 0
    %2169 = vmatpush1.bf16.xpose.msra.mxu0 0
    %2170 = vmatprep.subr.bf16.mxu0 0
    %2171 = vmatpush1.bf16.xpose.msra.mxu0 0
    %2172 = vmatprep.subr.bf16.mxu0 0
    %2173 = vmatpush1.bf16.xpose.msra.mxu0 0
    %2174 = vmatprep.subr.bf16.mxu0 0
    %2175 = vmatpush1.bf16.xpose.msra.mxu0 0
    %2176 = vmatprep.subr.bf16.mxu0 0
    %2177 = vmatpush1.bf16.xpose.msra.mxu0 0
    %2178 = vmatprep.subr.bf16.mxu0 0
    %2179 = vmatpush1.bf16.xpose.msra.mxu0 0
    %2180 = vmatprep.subr.bf16.mxu0 0
    %2181 = vmatpush1.bf16.xpose.msra.mxu0 0
    %2182 = vmatprep.subr.bf16.mxu0 0
    %2183 = vmatpush1.bf16.xpose.msra.mxu0 0
    %2184 = vmatprep.subr.bf16.mxu0 0
    %2185 = vmatpush1.bf16.xpose.msra.mxu0 0
    %2186 = vmatprep.mubr.bf16.mxu0 0
    %2187 = vmatmul.mubr.bf16.gmra.mrb[0].mxu0 %v2149
    %v2188 = vpop.f32.mrb[0].mxu0
    %v2189 = vadd.f32 0.0, %v2188
    %v2190 = vpop.f32.mrb[0].mxu0
    %v2191 = vpop.f32.mrb[0].mxu0
    %v2192 = vpop.f32.mrb[0].mxu0
    %2193 = vdwg.mxu0
    %v2195 = vsel %vm2055, %v2042, 0
    %v2198 = vsel %vm2055, %v2050, 0
    %2200 = vmatprep.subr.bf16.mxu0 0
    %2201 = vmatpush1.bf16.xpose.msra.mxu0 %v2198
    %2202 = vmatprep.subr.bf16.mxu0 0
    %2203 = vmatpush1.bf16.xpose.msra.mxu0 0
    %2204 = vmatprep.subr.bf16.mxu0 0
    %2205 = vmatpush1.bf16.xpose.msra.mxu0 0
    %2206 = vmatprep.subr.bf16.mxu0 0
    %2207 = vmatpush1.bf16.xpose.msra.mxu0 0
    %2208 = vmatprep.subr.bf16.mxu0 0
    %2209 = vmatpush1.bf16.xpose.msra.mxu0 0
    %2210 = vmatprep.subr.bf16.mxu0 0
    %2211 = vmatpush1.bf16.xpose.msra.mxu0 0
    %2212 = vmatprep.subr.bf16.mxu0 0
    %2213 = vmatpush1.bf16.xpose.msra.mxu0 0
    %2214 = vmatprep.subr.bf16.mxu0 0
    %2215 = vmatpush1.bf16.xpose.msra.mxu0 0
    %2216 = vmatprep.subr.bf16.mxu0 0
    %2217 = vmatpush1.bf16.xpose.msra.mxu0 0
    %2218 = vmatprep.subr.bf16.mxu0 0
    %2219 = vmatpush1.bf16.xpose.msra.mxu0 0
    %2220 = vmatprep.subr.bf16.mxu0 0
    %2221 = vmatpush1.bf16.xpose.msra.mxu0 0
    %2222 = vmatprep.subr.bf16.mxu0 0
    %2223 = vmatpush1.bf16.xpose.msra.mxu0 0
    %2224 = vmatprep.subr.bf16.mxu0 0
    %2225 = vmatpush1.bf16.xpose.msra.mxu0 0
    %2226 = vmatprep.subr.bf16.mxu0 0
    %2227 = vmatpush1.bf16.xpose.msra.mxu0 0
    %2228 = vmatprep.subr.bf16.mxu0 0
    %2229 = vmatpush1.bf16.xpose.msra.mxu0 0
    %2230 = vmatprep.subr.bf16.mxu0 0
    %2231 = vmatpush1.bf16.xpose.msra.mxu0 0
    %2232 = vmatprep.mubr.bf16.mxu0 0
    %2233 = vmatmul.mubr.bf16.gmra.mrb[0].mxu0 %v2195
    %v2234 = vpop.f32.mrb[0].mxu0
    %v2235 = vadd.f32 0.0, %v2234
    %v2236 = vpop.f32.mrb[0].mxu0
    %v2237 = vpop.f32.mrb[0].mxu0
    %v2238 = vpop.f32.mrb[0].mxu0
    %2239 = vdwg.mxu0
    %v2241 = vsel %vm2055, %v2043, 0
    %v2244 = vsel %vm2055, %v2051, 0
    %2246 = vmatprep.subr.bf16.mxu0 0
    %2247 = vmatpush1.bf16.xpose.msra.mxu0 %v2244
    %2248 = vmatprep.subr.bf16.mxu0 0
    %2249 = vmatpush1.bf16.xpose.msra.mxu0 0
    %2250 = vmatprep.subr.bf16.mxu0 0
    %2251 = vmatpush1.bf16.xpose.msra.mxu0 0
    %2252 = vmatprep.subr.bf16.mxu0 0
    %2253 = vmatpush1.bf16.xpose.msra.mxu0 0
    %2254 = vmatprep.subr.bf16.mxu0 0
    %2255 = vmatpush1.bf16.xpose.msra.mxu0 0
    %2256 = vmatprep.subr.bf16.mxu0 0
    %2257 = vmatpush1.bf16.xpose.msra.mxu0 0
    %2258 = vmatprep.subr.bf16.mxu0 0
    %2259 = vmatpush1.bf16.xpose.msra.mxu0 0
    %2260 = vmatprep.subr.bf16.mxu0 0
    %2261 = vmatpush1.bf16.xpose.msra.mxu0 0
    %2262 = vmatprep.subr.bf16.mxu0 0
    %2263 = vmatpush1.bf16.xpose.msra.mxu0 0
    %2264 = vmatprep.subr.bf16.mxu0 0
    %2265 = vmatpush1.bf16.xpose.msra.mxu0 0
    %2266 = vmatprep.subr.bf16.mxu0 0
    %2267 = vmatpush1.bf16.xpose.msra.mxu0 0
    %2268 = vmatprep.subr.bf16.mxu0 0
    %2269 = vmatpush1.bf16.xpose.msra.mxu0 0
    %2270 = vmatprep.subr.bf16.mxu0 0
    %2271 = vmatpush1.bf16.xpose.msra.mxu0 0
    %2272 = vmatprep.subr.bf16.mxu0 0
    %2273 = vmatpush1.bf16.xpose.msra.mxu0 0
    %2274 = vmatprep.subr.bf16.mxu0 0
    %2275 = vmatpush1.bf16.xpose.msra.mxu0 0
    %2276 = vmatprep.subr.bf16.mxu0 0
    %2277 = vmatpush1.bf16.xpose.msra.mxu0 0
    %2278 = vmatprep.mubr.bf16.mxu0 0
    %2279 = vmatmul.mubr.bf16.gmra.mrb[0].mxu0 %v2241
    %v2280 = vpop.f32.mrb[0].mxu0
    %v2281 = vadd.f32 0.0, %v2280
    %v2282 = vpop.f32.mrb[0].mxu0
    %v2283 = vpop.f32.mrb[0].mxu0
    %v2284 = vpop.f32.mrb[0].mxu0
    %2285 = vdwg.mxu0
    %v2287 = vsel %vm2055, %v2044, 0
    %v2290 = vsel %vm2055, %v2052, 0
    %2292 = vmatprep.subr.bf16.mxu0 0
    %2293 = vmatpush1.bf16.xpose.msra.mxu0 %v2290
    %2294 = vmatprep.subr.bf16.mxu0 0
    %2295 = vmatpush1.bf16.xpose.msra.mxu0 0
    %2296 = vmatprep.subr.bf16.mxu0 0
    %2297 = vmatpush1.bf16.xpose.msra.mxu0 0
    %2298 = vmatprep.subr.bf16.mxu0 0
    %2299 = vmatpush1.bf16.xpose.msra.mxu0 0
    %2300 = vmatprep.subr.bf16.mxu0 0
    %2301 = vmatpush1.bf16.xpose.msra.mxu0 0
    %2302 = vmatprep.subr.bf16.mxu0 0
    %2303 = vmatpush1.bf16.xpose.msra.mxu0 0
    %2304 = vmatprep.subr.bf16.mxu0 0
    %2305 = vmatpush1.bf16.xpose.msra.mxu0 0
    %2306 = vmatprep.subr.bf16.mxu0 0
    %2307 = vmatpush1.bf16.xpose.msra.mxu0 0
    %2308 = vmatprep.subr.bf16.mxu0 0
    %2309 = vmatpush1.bf16.xpose.msra.mxu0 0
    %2310 = vmatprep.subr.bf16.mxu0 0
    %2311 = vmatpush1.bf16.xpose.msra.mxu0 0
    %2312 = vmatprep.subr.bf16.mxu0 0
    %2313 = vmatpush1.bf16.xpose.msra.mxu0 0
    %2314 = vmatprep.subr.bf16.mxu0 0
    %2315 = vmatpush1.bf16.xpose.msra.mxu0 0
    %2316 = vmatprep.subr.bf16.mxu0 0
    %2317 = vmatpush1.bf16.xpose.msra.mxu0 0
    %2318 = vmatprep.subr.bf16.mxu0 0
    %2319 = vmatpush1.bf16.xpose.msra.mxu0 0
    %2320 = vmatprep.subr.bf16.mxu0 0
    %2321 = vmatpush1.bf16.xpose.msra.mxu0 0
    %2322 = vmatprep.subr.bf16.mxu0 0
    %2323 = vmatpush1.bf16.xpose.msra.mxu0 0
    %2324 = vmatprep.mubr.bf16.mxu0 0
    %2325 = vmatmul.mubr.bf16.gmra.mrb[0].mxu0 %v2287
    %v2326 = vpop.f32.mrb[0].mxu0
    %v2327 = vadd.f32 0.0, %v2326
    %v2328 = vpop.f32.mrb[0].mxu0
    %v2329 = vpop.f32.mrb[0].mxu0
    %v2330 = vpop.f32.mrb[0].mxu0
    %2331 = vdwg.mxu0
    %v2333 = vsel %vm2055, %v2045, 0
    %v2336 = vsel %vm2055, %v2053, 0
    %2338 = vmatprep.subr.bf16.mxu0 0
    %2339 = vmatpush1.bf16.xpose.msra.mxu0 %v2336
    %2340 = vmatprep.subr.bf16.mxu0 0
    %2341 = vmatpush1.bf16.xpose.msra.mxu0 0
    %2342 = vmatprep.subr.bf16.mxu0 0
    %2343 = vmatpush1.bf16.xpose.msra.mxu0 0
    %2344 = vmatprep.subr.bf16.mxu0 0
    %2345 = vmatpush1.bf16.xpose.msra.mxu0 0
    %2346 = vmatprep.subr.bf16.mxu0 0
    %2347 = vmatpush1.bf16.xpose.msra.mxu0 0
    %2348 = vmatprep.subr.bf16.mxu0 0
    %2349 = vmatpush1.bf16.xpose.msra.mxu0 0
    %2350 = vmatprep.subr.bf16.mxu0 0
    %2351 = vmatpush1.bf16.xpose.msra.mxu0 0
    %2352 = vmatprep.subr.bf16.mxu0 0
    %2353 = vmatpush1.bf16.xpose.msra.mxu0 0
    %2354 = vmatprep.subr.bf16.mxu0 0
    %2355 = vmatpush1.bf16.xpose.msra.mxu0 0
    %2356 = vmatprep.subr.bf16.mxu0 0
    %2357 = vmatpush1.bf16.xpose.msra.mxu0 0
    %2358 = vmatprep.subr.bf16.mxu0 0
    %2359 = vmatpush1.bf16.xpose.msra.mxu0 0
    %2360 = vmatprep.subr.bf16.mxu0 0
    %2361 = vmatpush1.bf16.xpose.msra.mxu0 0
    %2362 = vmatprep.subr.bf16.mxu0 0
    %2363 = vmatpush1.bf16.xpose.msra.mxu0 0
    %2364 = vmatprep.subr.bf16.mxu0 0
    %2365 = vmatpush1.bf16.xpose.msra.mxu0 0
    %2366 = vmatprep.subr.bf16.mxu0 0
    %2367 = vmatpush1.bf16.xpose.msra.mxu0 0
    %2368 = vmatprep.subr.bf16.mxu0 0
    %2369 = vmatpush1.bf16.xpose.msra.mxu0 0
    %2370 = vmatprep.mubr.bf16.mxu0 0
    %2371 = vmatmul.mubr.bf16.gmra.mrb[0].mxu0 %v2333
    %v2372 = vpop.f32.mrb[0].mxu0
    %v2373 = vadd.f32 0.0, %v2372
    %v2374 = vpop.f32.mrb[0].mxu0
    %v2375 = vpop.f32.mrb[0].mxu0
    %v2376 = vpop.f32.mrb[0].mxu0
    %2377 = vdwg.mxu0
    %v2379 = vsel %vm2055, %v2046, 0
    %v2382 = vsel %vm2055, %v2054, 0
    %2384 = vmatprep.subr.bf16.mxu0 0
    %2385 = vmatpush1.bf16.xpose.msra.mxu0 %v2382
    %2386 = vmatprep.subr.bf16.mxu0 0
    %2387 = vmatpush1.bf16.xpose.msra.mxu0 0
    %2388 = vmatprep.subr.bf16.mxu0 0
    %2389 = vmatpush1.bf16.xpose.msra.mxu0 0
    %2390 = vmatprep.subr.bf16.mxu0 0
    %2391 = vmatpush1.bf16.xpose.msra.mxu0 0
    %2392 = vmatprep.subr.bf16.mxu0 0
    %2393 = vmatpush1.bf16.xpose.msra.mxu0 0
    %2394 = vmatprep.subr.bf16.mxu0 0
    %2395 = vmatpush1.bf16.xpose.msra.mxu0 0
    %2396 = vmatprep.subr.bf16.mxu0 0
    %2397 = vmatpush1.bf16.xpose.msra.mxu0 0
    %2398 = vmatprep.subr.bf16.mxu0 0
    %2399 = vmatpush1.bf16.xpose.msra.mxu0 0
    %2400 = vmatprep.subr.bf16.mxu0 0
    %2401 = vmatpush1.bf16.xpose.msra.mxu0 0
    %2402 = vmatprep.subr.bf16.mxu0 0
    %2403 = vmatpush1.bf16.xpose.msra.mxu0 0
    %2404 = vmatprep.subr.bf16.mxu0 0
    %2405 = vmatpush1.bf16.xpose.msra.mxu0 0
    %2406 = vmatprep.subr.bf16.mxu0 0
    %2407 = vmatpush1.bf16.xpose.msra.mxu0 0
    %2408 = vmatprep.subr.bf16.mxu0 0
    %2409 = vmatpush1.bf16.xpose.msra.mxu0 0
    %2410 = vmatprep.subr.bf16.mxu0 0
    %2411 = vmatpush1.bf16.xpose.msra.mxu0 0
    %2412 = vmatprep.subr.bf16.mxu0 0
    %2413 = vmatpush1.bf16.xpose.msra.mxu0 0
    %2414 = vmatprep.subr.bf16.mxu0 0
    %2415 = vmatpush1.bf16.xpose.msra.mxu0 0
    %2416 = vmatprep.mubr.bf16.mxu0 0
    %2417 = vmatmul.mubr.bf16.gmra.mrb[0].mxu0 %v2379
    %v2418 = vpop.f32.mrb[0].mxu0
    %v2419 = vadd.f32 0.0, %v2418
    %v2420 = vpop.f32.mrb[0].mxu0
    %v2421 = vpop.f32.mrb[0].mxu0
    %v2422 = vpop.f32.mrb[0].mxu0
    %2423 = vdwg.mxu0
    %v2424 = vmul.f32 %v2097, 0.25
    %v2425 = vmul.f32 %v2143, 0.25
    %v2426 = vmul.f32 %v2189, 0.25
    %v2427 = vmul.f32 %v2235, 0.25
    %v2428 = vmul.f32 %v2281, 0.25
    %v2429 = vmul.f32 %v2327, 0.25
    %v2430 = vmul.f32 %v2373, 0.25
    %v2431 = vmul.f32 %v2419, 0.25
    %v2440 = vlaneseq
    %v2441 = vshrl.u32 %v2440, 7
    %v2442 = vsub.s32 0, %v2441
    %v2443 = vrot.slane %v79, %v2442
    %v2444 = vlaneseq
    %v2445 = vshrl.u32 %v2444, 7
    %v2446 = vsub.s32 0, %v2445
    %v2447 = vrot.slane %v80, %v2446
    %v2448 = vlaneseq
    %v2449 = vshrl.u32 %v2448, 7
    %v2450 = vsub.s32 0, %v2449
    %v2451 = vrot.slane %v81, %v2450
    %v2452 = vlaneseq
    %v2453 = vshrl.u32 %v2452, 7
    %v2454 = vsub.s32 0, %v2453
    %v2455 = vrot.slane %v82, %v2454
    %v2456 = vlaneseq
    %v2457 = vshrl.u32 %v2456, 7
    %v2458 = vsub.s32 0, %v2457
    %v2459 = vrot.slane %v83, %v2458
    %v2460 = vlaneseq
    %v2461 = vshrl.u32 %v2460, 7
    %v2462 = vsub.s32 0, %v2461
    %v2463 = vrot.slane %v84, %v2462
    %v2464 = vlaneseq
    %v2465 = vshrl.u32 %v2464, 7
    %v2466 = vsub.s32 0, %v2465
    %v2467 = vrot.slane %v85, %v2466
    %v2468 = vlaneseq
    %v2469 = vshrl.u32 %v2468, 7
    %v2470 = vsub.s32 0, %v2469
    %v2471 = vrot.slane %v86, %v2470
    %v2480 = vadd.f32 %v2424, %v2443
    %v2481 = vadd.f32 %v2425, %v2447
    %v2482 = vadd.f32 %v2426, %v2451
    %v2483 = vadd.f32 %v2427, %v2455
    %v2484 = vadd.f32 %v2428, %v2459
    %v2485 = vadd.f32 %v2429, %v2463
    %v2486 = vadd.f32 %v2430, %v2467
    %v2487 = vadd.f32 %v2431, %v2471
    %vm2488 = vcmask 64512
    %v2489 = vsel %vm2488, %v2480, -inf
    %2490 = vmax.xlane.f32.xlu0 %v2489
    %v2491 = vpop.xlane.xlu0 %2490
    %v2492 = vsel %vm2488, %v2481, -inf
    %2493 = vmax.xlane.f32.xlu0 %v2492
    %v2494 = vpop.xlane.xlu0 %2493
    %v2495 = vsel %vm2488, %v2482, -inf
    %2496 = vmax.xlane.f32.xlu0 %v2495
    %v2497 = vpop.xlane.xlu0 %2496
    %v2498 = vsel %vm2488, %v2483, -inf
    %2499 = vmax.xlane.f32.xlu0 %v2498
    %v2500 = vpop.xlane.xlu0 %2499
    %v2501 = vsel %vm2488, %v2484, -inf
    %2502 = vmax.xlane.f32.xlu0 %v2501
    %v2503 = vpop.xlane.xlu0 %2502
    %v2504 = vsel %vm2488, %v2485, -inf
    %2505 = vmax.xlane.f32.xlu0 %v2504
    %v2506 = vpop.xlane.xlu0 %2505
    %v2507 = vsel %vm2488, %v2486, -inf
    %2508 = vmax.xlane.f32.xlu0 %v2507
    %v2509 = vpop.xlane.xlu0 %2508
    %v2510 = vsel %vm2488, %v2487, -inf
    %2511 = vmax.xlane.f32.xlu0 %v2510
    %v2512 = vpop.xlane.xlu0 %2511
    %v2513 = vsub.f32 %v2480, %v2491
    %v2514 = vsub.f32 %v2481, %v2494
    %v2515 = vsub.f32 %v2482, %v2497
    %v2516 = vsub.f32 %v2483, %v2500
    %v2517 = vsub.f32 %v2484, %v2503
    %v2518 = vsub.f32 %v2485, %v2506
    %v2519 = vsub.f32 %v2486, %v2509
    %v2520 = vsub.f32 %v2487, %v2512
    %v2521 = vmul.f32 %v2513, 1.442695
    %v2522 = vpow.pop %v2521
    %v2523 = vmul.f32 %v2514, 1.442695
    %v2524 = vpow.pop %v2523
    %v2525 = vmul.f32 %v2515, 1.442695
    %v2526 = vpow.pop %v2525
    %v2527 = vmul.f32 %v2516, 1.442695
    %v2528 = vpow.pop %v2527
    %v2529 = vmul.f32 %v2517, 1.442695
    %v2530 = vpow.pop %v2529
    %v2531 = vmul.f32 %v2518, 1.442695
    %v2532 = vpow.pop %v2531
    %v2533 = vmul.f32 %v2519, 1.442695
    %v2534 = vpow.pop %v2533
    %v2535 = vmul.f32 %v2520, 1.442695
    %v2536 = vpow.pop %v2535
    %v2537 = vsel %vm2488, %v2522, 0.0
    %2538 = vadd.xlane.f32.xlu0 %v2537
    %v2539 = vpop.xlane.xlu0 %2538
    %v2540 = vsel %vm2488, %v2524, 0.0
    %2541 = vadd.xlane.f32.xlu0 %v2540
    %v2542 = vpop.xlane.xlu0 %2541
    %v2543 = vsel %vm2488, %v2526, 0.0
    %2544 = vadd.xlane.f32.xlu0 %v2543
    %v2545 = vpop.xlane.xlu0 %2544
    %v2546 = vsel %vm2488, %v2528, 0.0
    %2547 = vadd.xlane.f32.xlu0 %v2546
    %v2548 = vpop.xlane.xlu0 %2547
    %v2549 = vsel %vm2488, %v2530, 0.0
    %2550 = vadd.xlane.f32.xlu0 %v2549
    %v2551 = vpop.xlane.xlu0 %2550
    %v2552 = vsel %vm2488, %v2532, 0.0
    %2553 = vadd.xlane.f32.xlu0 %v2552
    %v2554 = vpop.xlane.xlu0 %2553
    %v2555 = vsel %vm2488, %v2534, 0.0
    %2556 = vadd.xlane.f32.xlu0 %v2555
    %v2557 = vpop.xlane.xlu0 %2556
    %v2558 = vsel %vm2488, %v2536, 0.0
    %2559 = vadd.xlane.f32.xlu0 %v2558
    %v2560 = vpop.xlane.xlu0 %2559
    %v2561 = vrcp.pop %v2539
    %v2562 = vrcp.pop %v2542
    %v2563 = vrcp.pop %v2545
    %v2564 = vrcp.pop %v2548
    %v2565 = vrcp.pop %v2551
    %v2566 = vrcp.pop %v2554
    %v2567 = vrcp.pop %v2557
    %v2568 = vrcp.pop %v2560
    %v2569 = vmul.f32 %v2522, %v2561
    %v2570 = vmul.f32 %v2524, %v2562
    %v2571 = vmul.f32 %v2526, %v2563
    %v2572 = vmul.f32 %v2528, %v2564
    %v2573 = vmul.f32 %v2530, %v2565
    %v2574 = vmul.f32 %v2532, %v2566
    %v2575 = vmul.f32 %v2534, %v2567
    %v2576 = vmul.f32 %v2536, %v2568
    %v2577 = vpack.c.bf16 %v2569, %v2569
    %v2578 = vpack.c.bf16 %v2570, %v2570
    %v2579 = vpack.c.bf16 %v2571, %v2571
    %v2580 = vpack.c.bf16 %v2572, %v2572
    %v2581 = vpack.c.bf16 %v2573, %v2573
    %v2582 = vpack.c.bf16 %v2574, %v2574
    %v2583 = vpack.c.bf16 %v2575, %v2575
    %v2584 = vpack.c.bf16 %v2576, %v2576
    %v2585 = vpack.c.bf16 %v1586, %v1586
    %v2586 = vpack.c.bf16 %v1650, %v1650
    %v2587 = vpack.c.bf16 %v1714, %v1714
    %v2588 = vpack.c.bf16 %v1778, %v1778
    %v2589 = vpack.c.bf16 %v1842, %v1842
    %v2590 = vpack.c.bf16 %v1906, %v1906
    %v2591 = vpack.c.bf16 %v1970, %v1970
    %v2592 = vpack.c.bf16 %v2034, %v2034
    %v2594 = vsel %vm2488, %v2577, 0
    %vm2596 = vcmask 1043456
    %v2598 = vsel %vm2596, %v2585, 0
    %2600 = vmatprep.subr.bf16.mxu0 0
    %2601 = vmatpush1.bf16.msra.mxu0 %v2598
    %2602 = vmatprep.subr.bf16.mxu0 0
    %2603 = vmatpush1.bf16.msra.mxu0 0
    %2604 = vmatprep.subr.bf16.mxu0 0
    %2605 = vmatpush1.bf16.msra.mxu0 0
    %2606 = vmatprep.subr.bf16.mxu0 0
    %2607 = vmatpush1.bf16.msra.mxu0 0
    %2608 = vmatprep.subr.bf16.mxu0 0
    %2609 = vmatpush1.bf16.msra.mxu0 0
    %2610 = vmatprep.subr.bf16.mxu0 0
    %2611 = vmatpush1.bf16.msra.mxu0 0
    %2612 = vmatprep.subr.bf16.mxu0 0
    %2613 = vmatpush1.bf16.msra.mxu0 0
    %2614 = vmatprep.subr.bf16.mxu0 0
    %2615 = vmatpush1.bf16.msra.mxu0 0
    %2616 = vmatprep.subr.bf16.mxu0 0
    %2617 = vmatpush1.bf16.msra.mxu0 0
    %2618 = vmatprep.subr.bf16.mxu0 0
    %2619 = vmatpush1.bf16.msra.mxu0 0
    %2620 = vmatprep.subr.bf16.mxu0 0
    %2621 = vmatpush1.bf16.msra.mxu0 0
    %2622 = vmatprep.subr.bf16.mxu0 0
    %2623 = vmatpush1.bf16.msra.mxu0 0
    %2624 = vmatprep.subr.bf16.mxu0 0
    %2625 = vmatpush1.bf16.msra.mxu0 0
    %2626 = vmatprep.subr.bf16.mxu0 0
    %2627 = vmatpush1.bf16.msra.mxu0 0
    %2628 = vmatprep.subr.bf16.mxu0 0
    %2629 = vmatpush1.bf16.msra.mxu0 0
    %2630 = vmatprep.subr.bf16.mxu0 0
    %2631 = vmatpush1.bf16.msra.mxu0 0
    %2632 = vmatprep.mubr.bf16.mxu0 0
    %2633 = vmatmul.mubr.bf16.gmra.mrb[0].mxu0 %v2594
    %v2634 = vpop.f32.mrb[0].mxu0
    %v2635 = vadd.f32 0.0, %v2634
    %v2636 = vpop.f32.mrb[0].mxu0
    %v2637 = vpop.f32.mrb[0].mxu0
    %v2638 = vpop.f32.mrb[0].mxu0
    %2639 = vdwg.mxu0
    %v2641 = vsel %vm2488, %v2578, 0
    %v2644 = vsel %vm2596, %v2586, 0
    %2646 = vmatprep.subr.bf16.mxu0 0
    %2647 = vmatpush1.bf16.msra.mxu0 %v2644
    %2648 = vmatprep.subr.bf16.mxu0 0
    %2649 = vmatpush1.bf16.msra.mxu0 0
    %2650 = vmatprep.subr.bf16.mxu0 0
    %2651 = vmatpush1.bf16.msra.mxu0 0
    %2652 = vmatprep.subr.bf16.mxu0 0
    %2653 = vmatpush1.bf16.msra.mxu0 0
    %2654 = vmatprep.subr.bf16.mxu0 0
    %2655 = vmatpush1.bf16.msra.mxu0 0
    %2656 = vmatprep.subr.bf16.mxu0 0
    %2657 = vmatpush1.bf16.msra.mxu0 0
    %2658 = vmatprep.subr.bf16.mxu0 0
    %2659 = vmatpush1.bf16.msra.mxu0 0
    %2660 = vmatprep.subr.bf16.mxu0 0
    %2661 = vmatpush1.bf16.msra.mxu0 0
    %2662 = vmatprep.subr.bf16.mxu0 0
    %2663 = vmatpush1.bf16.msra.mxu0 0
    %2664 = vmatprep.subr.bf16.mxu0 0
    %2665 = vmatpush1.bf16.msra.mxu0 0
    %2666 = vmatprep.subr.bf16.mxu0 0
    %2667 = vmatpush1.bf16.msra.mxu0 0
    %2668 = vmatprep.subr.bf16.mxu0 0
    %2669 = vmatpush1.bf16.msra.mxu0 0
    %2670 = vmatprep.subr.bf16.mxu0 0
    %2671 = vmatpush1.bf16.msra.mxu0 0
    %2672 = vmatprep.subr.bf16.mxu0 0
    %2673 = vmatpush1.bf16.msra.mxu0 0
    %2674 = vmatprep.subr.bf16.mxu0 0
    %2675 = vmatpush1.bf16.msra.mxu0 0
    %2676 = vmatprep.subr.bf16.mxu0 0
    %2677 = vmatpush1.bf16.msra.mxu0 0
    %2678 = vmatprep.mubr.bf16.mxu0 0
    %2679 = vmatmul.mubr.bf16.gmra.mrb[0].mxu0 %v2641
    %v2680 = vpop.f32.mrb[0].mxu0
    %v2681 = vadd.f32 0.0, %v2680
    %v2682 = vpop.f32.mrb[0].mxu0
    %v2683 = vpop.f32.mrb[0].mxu0
    %v2684 = vpop.f32.mrb[0].mxu0
    %2685 = vdwg.mxu0
    %v2687 = vsel %vm2488, %v2579, 0
    %v2690 = vsel %vm2596, %v2587, 0
    %2692 = vmatprep.subr.bf16.mxu0 0
    %2693 = vmatpush1.bf16.msra.mxu0 %v2690
    %2694 = vmatprep.subr.bf16.mxu0 0
    %2695 = vmatpush1.bf16.msra.mxu0 0
    %2696 = vmatprep.subr.bf16.mxu0 0
    %2697 = vmatpush1.bf16.msra.mxu0 0
    %2698 = vmatprep.subr.bf16.mxu0 0
    %2699 = vmatpush1.bf16.msra.mxu0 0
    %2700 = vmatprep.subr.bf16.mxu0 0
    %2701 = vmatpush1.bf16.msra.mxu0 0
    %2702 = vmatprep.subr.bf16.mxu0 0
    %2703 = vmatpush1.bf16.msra.mxu0 0
    %2704 = vmatprep.subr.bf16.mxu0 0
    %2705 = vmatpush1.bf16.msra.mxu0 0
    %2706 = vmatprep.subr.bf16.mxu0 0
    %2707 = vmatpush1.bf16.msra.mxu0 0
    %2708 = vmatprep.subr.bf16.mxu0 0
    %2709 = vmatpush1.bf16.msra.mxu0 0
    %2710 = vmatprep.subr.bf16.mxu0 0
    %2711 = vmatpush1.bf16.msra.mxu0 0
    %2712 = vmatprep.subr.bf16.mxu0 0
    %2713 = vmatpush1.bf16.msra.mxu0 0
    %2714 = vmatprep.subr.bf16.mxu0 0
    %2715 = vmatpush1.bf16.msra.mxu0 0
    %2716 = vmatprep.subr.bf16.mxu0 0
    %2717 = vmatpush1.bf16.msra.mxu0 0
    %2718 = vmatprep.subr.bf16.mxu0 0
    %2719 = vmatpush1.bf16.msra.mxu0 0
    %2720 = vmatprep.subr.bf16.mxu0 0
    %2721 = vmatpush1.bf16.msra.mxu0 0
    %2722 = vmatprep.subr.bf16.mxu0 0
    %2723 = vmatpush1.bf16.msra.mxu0 0
    %2724 = vmatprep.mubr.bf16.mxu0 0
    %2725 = vmatmul.mubr.bf16.gmra.mrb[0].mxu0 %v2687
    %v2726 = vpop.f32.mrb[0].mxu0
    %v2727 = vadd.f32 0.0, %v2726
    %v2728 = vpop.f32.mrb[0].mxu0
    %v2729 = vpop.f32.mrb[0].mxu0
    %v2730 = vpop.f32.mrb[0].mxu0
    %2731 = vdwg.mxu0
    %v2733 = vsel %vm2488, %v2580, 0
    %v2736 = vsel %vm2596, %v2588, 0
    %2738 = vmatprep.subr.bf16.mxu0 0
    %2739 = vmatpush1.bf16.msra.mxu0 %v2736
    %2740 = vmatprep.subr.bf16.mxu0 0
    %2741 = vmatpush1.bf16.msra.mxu0 0
    %2742 = vmatprep.subr.bf16.mxu0 0
    %2743 = vmatpush1.bf16.msra.mxu0 0
    %2744 = vmatprep.subr.bf16.mxu0 0
    %2745 = vmatpush1.bf16.msra.mxu0 0
    %2746 = vmatprep.subr.bf16.mxu0 0
    %2747 = vmatpush1.bf16.msra.mxu0 0
    %2748 = vmatprep.subr.bf16.mxu0 0
    %2749 = vmatpush1.bf16.msra.mxu0 0
    %2750 = vmatprep.subr.bf16.mxu0 0
    %2751 = vmatpush1.bf16.msra.mxu0 0
    %2752 = vmatprep.subr.bf16.mxu0 0
    %2753 = vmatpush1.bf16.msra.mxu0 0
    %2754 = vmatprep.subr.bf16.mxu0 0
    %2755 = vmatpush1.bf16.msra.mxu0 0
    %2756 = vmatprep.subr.bf16.mxu0 0
    %2757 = vmatpush1.bf16.msra.mxu0 0
    %2758 = vmatprep.subr.bf16.mxu0 0
    %2759 = vmatpush1.bf16.msra.mxu0 0
    %2760 = vmatprep.subr.bf16.mxu0 0
    %2761 = vmatpush1.bf16.msra.mxu0 0
    %2762 = vmatprep.subr.bf16.mxu0 0
    %2763 = vmatpush1.bf16.msra.mxu0 0
    %2764 = vmatprep.subr.bf16.mxu0 0
    %2765 = vmatpush1.bf16.msra.mxu0 0
    %2766 = vmatprep.subr.bf16.mxu0 0
    %2767 = vmatpush1.bf16.msra.mxu0 0
    %2768 = vmatprep.subr.bf16.mxu0 0
    %2769 = vmatpush1.bf16.msra.mxu0 0
    %2770 = vmatprep.mubr.bf16.mxu0 0
    %2771 = vmatmul.mubr.bf16.gmra.mrb[0].mxu0 %v2733
    %v2772 = vpop.f32.mrb[0].mxu0
    %v2773 = vadd.f32 0.0, %v2772
    %v2774 = vpop.f32.mrb[0].mxu0
    %v2775 = vpop.f32.mrb[0].mxu0
    %v2776 = vpop.f32.mrb[0].mxu0
    %2777 = vdwg.mxu0
    %v2779 = vsel %vm2488, %v2581, 0
    %v2782 = vsel %vm2596, %v2589, 0
    %2784 = vmatprep.subr.bf16.mxu0 0
    %2785 = vmatpush1.bf16.msra.mxu0 %v2782
    %2786 = vmatprep.subr.bf16.mxu0 0
    %2787 = vmatpush1.bf16.msra.mxu0 0
    %2788 = vmatprep.subr.bf16.mxu0 0
    %2789 = vmatpush1.bf16.msra.mxu0 0
    %2790 = vmatprep.subr.bf16.mxu0 0
    %2791 = vmatpush1.bf16.msra.mxu0 0
    %2792 = vmatprep.subr.bf16.mxu0 0
    %2793 = vmatpush1.bf16.msra.mxu0 0
    %2794 = vmatprep.subr.bf16.mxu0 0
    %2795 = vmatpush1.bf16.msra.mxu0 0
    %2796 = vmatprep.subr.bf16.mxu0 0
    %2797 = vmatpush1.bf16.msra.mxu0 0
    %2798 = vmatprep.subr.bf16.mxu0 0
    %2799 = vmatpush1.bf16.msra.mxu0 0
    %2800 = vmatprep.subr.bf16.mxu0 0
    %2801 = vmatpush1.bf16.msra.mxu0 0
    %2802 = vmatprep.subr.bf16.mxu0 0
    %2803 = vmatpush1.bf16.msra.mxu0 0
    %2804 = vmatprep.subr.bf16.mxu0 0
    %2805 = vmatpush1.bf16.msra.mxu0 0
    %2806 = vmatprep.subr.bf16.mxu0 0
    %2807 = vmatpush1.bf16.msra.mxu0 0
    %2808 = vmatprep.subr.bf16.mxu0 0
    %2809 = vmatpush1.bf16.msra.mxu0 0
    %2810 = vmatprep.subr.bf16.mxu0 0
    %2811 = vmatpush1.bf16.msra.mxu0 0
    %2812 = vmatprep.subr.bf16.mxu0 0
    %2813 = vmatpush1.bf16.msra.mxu0 0
    %2814 = vmatprep.subr.bf16.mxu0 0
    %2815 = vmatpush1.bf16.msra.mxu0 0
    %2816 = vmatprep.mubr.bf16.mxu0 0
    %2817 = vmatmul.mubr.bf16.gmra.mrb[0].mxu0 %v2779
    %v2818 = vpop.f32.mrb[0].mxu0
    %v2819 = vadd.f32 0.0, %v2818
    %v2820 = vpop.f32.mrb[0].mxu0
    %v2821 = vpop.f32.mrb[0].mxu0
    %v2822 = vpop.f32.mrb[0].mxu0
    %2823 = vdwg.mxu0
    %v2825 = vsel %vm2488, %v2582, 0
    %v2828 = vsel %vm2596, %v2590, 0
    %2830 = vmatprep.subr.bf16.mxu0 0
    %2831 = vmatpush1.bf16.msra.mxu0 %v2828
    %2832 = vmatprep.subr.bf16.mxu0 0
    %2833 = vmatpush1.bf16.msra.mxu0 0
    %2834 = vmatprep.subr.bf16.mxu0 0
    %2835 = vmatpush1.bf16.msra.mxu0 0
    %2836 = vmatprep.subr.bf16.mxu0 0
    %2837 = vmatpush1.bf16.msra.mxu0 0
    %2838 = vmatprep.subr.bf16.mxu0 0
    %2839 = vmatpush1.bf16.msra.mxu0 0
    %2840 = vmatprep.subr.bf16.mxu0 0
    %2841 = vmatpush1.bf16.msra.mxu0 0
    %2842 = vmatprep.subr.bf16.mxu0 0
    %2843 = vmatpush1.bf16.msra.mxu0 0
    %2844 = vmatprep.subr.bf16.mxu0 0
    %2845 = vmatpush1.bf16.msra.mxu0 0
    %2846 = vmatprep.subr.bf16.mxu0 0
    %2847 = vmatpush1.bf16.msra.mxu0 0
    %2848 = vmatprep.subr.bf16.mxu0 0
    %2849 = vmatpush1.bf16.msra.mxu0 0
    %2850 = vmatprep.subr.bf16.mxu0 0
    %2851 = vmatpush1.bf16.msra.mxu0 0
    %2852 = vmatprep.subr.bf16.mxu0 0
    %2853 = vmatpush1.bf16.msra.mxu0 0
    %2854 = vmatprep.subr.bf16.mxu0 0
    %2855 = vmatpush1.bf16.msra.mxu0 0
    %2856 = vmatprep.subr.bf16.mxu0 0
    %2857 = vmatpush1.bf16.msra.mxu0 0
    %2858 = vmatprep.subr.bf16.mxu0 0
    %2859 = vmatpush1.bf16.msra.mxu0 0
    %2860 = vmatprep.subr.bf16.mxu0 0
    %2861 = vmatpush1.bf16.msra.mxu0 0
    %2862 = vmatprep.mubr.bf16.mxu0 0
    %2863 = vmatmul.mubr.bf16.gmra.mrb[0].mxu0 %v2825
    %v2864 = vpop.f32.mrb[0].mxu0
    %v2865 = vadd.f32 0.0, %v2864
    %v2866 = vpop.f32.mrb[0].mxu0
    %v2867 = vpop.f32.mrb[0].mxu0
    %v2868 = vpop.f32.mrb[0].mxu0
    %2869 = vdwg.mxu0
    %v2871 = vsel %vm2488, %v2583, 0
    %v2874 = vsel %vm2596, %v2591, 0
    %2876 = vmatprep.subr.bf16.mxu0 0
    %2877 = vmatpush1.bf16.msra.mxu0 %v2874
    %2878 = vmatprep.subr.bf16.mxu0 0
    %2879 = vmatpush1.bf16.msra.mxu0 0
    %2880 = vmatprep.subr.bf16.mxu0 0
    %2881 = vmatpush1.bf16.msra.mxu0 0
    %2882 = vmatprep.subr.bf16.mxu0 0
    %2883 = vmatpush1.bf16.msra.mxu0 0
    %2884 = vmatprep.subr.bf16.mxu0 0
    %2885 = vmatpush1.bf16.msra.mxu0 0
    %2886 = vmatprep.subr.bf16.mxu0 0
    %2887 = vmatpush1.bf16.msra.mxu0 0
    %2888 = vmatprep.subr.bf16.mxu0 0
    %2889 = vmatpush1.bf16.msra.mxu0 0
    %2890 = vmatprep.subr.bf16.mxu0 0
    %2891 = vmatpush1.bf16.msra.mxu0 0
    %2892 = vmatprep.subr.bf16.mxu0 0
    %2893 = vmatpush1.bf16.msra.mxu0 0
    %2894 = vmatprep.subr.bf16.mxu0 0
    %2895 = vmatpush1.bf16.msra.mxu0 0
    %2896 = vmatprep.subr.bf16.mxu0 0
    %2897 = vmatpush1.bf16.msra.mxu0 0
    %2898 = vmatprep.subr.bf16.mxu0 0
    %2899 = vmatpush1.bf16.msra.mxu0 0
    %2900 = vmatprep.subr.bf16.mxu0 0
    %2901 = vmatpush1.bf16.msra.mxu0 0
    %2902 = vmatprep.subr.bf16.mxu0 0
    %2903 = vmatpush1.bf16.msra.mxu0 0
    %2904 = vmatprep.subr.bf16.mxu0 0
    %2905 = vmatpush1.bf16.msra.mxu0 0
    %2906 = vmatprep.subr.bf16.mxu0 0
    %2907 = vmatpush1.bf16.msra.mxu0 0
    %2908 = vmatprep.mubr.bf16.mxu0 0
    %2909 = vmatmul.mubr.bf16.gmra.mrb[0].mxu0 %v2871
    %v2910 = vpop.f32.mrb[0].mxu0
    %v2911 = vadd.f32 0.0, %v2910
    %v2912 = vpop.f32.mrb[0].mxu0
    %v2913 = vpop.f32.mrb[0].mxu0
    %v2914 = vpop.f32.mrb[0].mxu0
    %2915 = vdwg.mxu0
    %v2917 = vsel %vm2488, %v2584, 0
    %v2920 = vsel %vm2596, %v2592, 0
    %2922 = vmatprep.subr.bf16.mxu0 0
    %2923 = vmatpush1.bf16.msra.mxu0 %v2920
    %2924 = vmatprep.subr.bf16.mxu0 0
    %2925 = vmatpush1.bf16.msra.mxu0 0
    %2926 = vmatprep.subr.bf16.mxu0 0
    %2927 = vmatpush1.bf16.msra.mxu0 0
    %2928 = vmatprep.subr.bf16.mxu0 0
    %2929 = vmatpush1.bf16.msra.mxu0 0
    %2930 = vmatprep.subr.bf16.mxu0 0
    %2931 = vmatpush1.bf16.msra.mxu0 0
    %2932 = vmatprep.subr.bf16.mxu0 0
    %2933 = vmatpush1.bf16.msra.mxu0 0
    %2934 = vmatprep.subr.bf16.mxu0 0
    %2935 = vmatpush1.bf16.msra.mxu0 0
    %2936 = vmatprep.subr.bf16.mxu0 0
    %2937 = vmatpush1.bf16.msra.mxu0 0
    %2938 = vmatprep.subr.bf16.mxu0 0
    %2939 = vmatpush1.bf16.msra.mxu0 0
    %2940 = vmatprep.subr.bf16.mxu0 0
    %2941 = vmatpush1.bf16.msra.mxu0 0
    %2942 = vmatprep.subr.bf16.mxu0 0
    %2943 = vmatpush1.bf16.msra.mxu0 0
    %2944 = vmatprep.subr.bf16.mxu0 0
    %2945 = vmatpush1.bf16.msra.mxu0 0
    %2946 = vmatprep.subr.bf16.mxu0 0
    %2947 = vmatpush1.bf16.msra.mxu0 0
    %2948 = vmatprep.subr.bf16.mxu0 0
    %2949 = vmatpush1.bf16.msra.mxu0 0
    %2950 = vmatprep.subr.bf16.mxu0 0
    %2951 = vmatpush1.bf16.msra.mxu0 0
    %2952 = vmatprep.subr.bf16.mxu0 0
    %2953 = vmatpush1.bf16.msra.mxu0 0
    %2954 = vmatprep.mubr.bf16.mxu0 0
    %2955 = vmatmul.mubr.bf16.gmra.mrb[0].mxu0 %v2917
    %v2956 = vpop.f32.mrb[0].mxu0
    %v2957 = vadd.f32 0.0, %v2956
    %v2958 = vpop.f32.mrb[0].mxu0
    %v2959 = vpop.f32.mrb[0].mxu0
    %v2960 = vpop.f32.mrb[0].mxu0
    %2961 = vdwg.mxu0
    %v2962 = vpack.c.bf16 %v2635, %v2635
    %v2963 = vpack.c.bf16 %v2681, %v2681
    %v2964 = vpack.c.bf16 %v2727, %v2727
    %v2965 = vpack.c.bf16 %v2773, %v2773
    %v2966 = vpack.c.bf16 %v2819, %v2819
    %v2967 = vpack.c.bf16 %v2865, %v2865
    %v2968 = vpack.c.bf16 %v2911, %v2911
    %v2969 = vpack.c.bf16 %v2957, %v2957
    %v2970 = vld [vmem:[%s10] sm:$0xf]
    %v2971 = vld [vmem:[%s10 + $0x4] sm:$0xf]
    %v2972 = vld [vmem:[%s10 + $0x8] sm:$0xf]
    %v2973 = vld [vmem:[%s10 + $0xc] sm:$0xf]
    %v2974 = vld [vmem:[%s10 + $0x10] sm:$0xf]
    %v2975 = vld [vmem:[%s10 + $0x14] sm:$0xf]
    %v2976 = vld [vmem:[%s10 + $0x18] sm:$0xf]
    %v2977 = vld [vmem:[%s10 + $0x1c] sm:$0xf]
    %v2978 = vld [vmem:[%s10 + $0x20] sm:$0xf]
    %v2979 = vld [vmem:[%s10 + $0x24] sm:$0xf]
    %v2980 = vld [vmem:[%s10 + $0x28] sm:$0xf]
    %v2981 = vld [vmem:[%s10 + $0x2c] sm:$0xf]
    %v2982 = vld [vmem:[%s10 + $0x30] sm:$0xf]
    %v2983 = vld [vmem:[%s10 + $0x34] sm:$0xf]
    %v2984 = vld [vmem:[%s10 + $0x38] sm:$0xf]
    %v2985 = vld [vmem:[%s10 + $0x3c] sm:$0xf]
    %v2988 = vunpack.c.l.b16 %v2970
    %v2989 = vunpack.c.l.b16 %v2971
    %v2990 = vpack.c.b16 %v2989, %v2988
    %v2993 = vsel %vm2055, %v2962, 0
    %2995 = vmatprep.subr.bf16.mxu0 0
    %2996 = vmatpush1.bf16.msra.mxu0 %v2990
    %2997 = vmatprep.subr.bf16.mxu0 0
    %2998 = vmatpush1.bf16.msra.mxu0 0
    %2999 = vmatprep.subr.bf16.mxu0 0
    %3000 = vmatpush1.bf16.msra.mxu0 0
    %3001 = vmatprep.subr.bf16.mxu0 0
    %3002 = vmatpush1.bf16.msra.mxu0 0
    %3003 = vmatprep.subr.bf16.mxu0 0
    %3004 = vmatpush1.bf16.msra.mxu0 0
    %3005 = vmatprep.subr.bf16.mxu0 0
    %3006 = vmatpush1.bf16.msra.mxu0 0
    %3007 = vmatprep.subr.bf16.mxu0 0
    %3008 = vmatpush1.bf16.msra.mxu0 0
    %3009 = vmatprep.subr.bf16.mxu0 0
    %3010 = vmatpush1.bf16.msra.mxu0 0
    %3011 = vmatprep.subr.bf16.mxu0 0
    %3012 = vmatpush1.bf16.msra.mxu0 0
    %3013 = vmatprep.subr.bf16.mxu0 0
    %3014 = vmatpush1.bf16.msra.mxu0 0
    %3015 = vmatprep.subr.bf16.mxu0 0
    %3016 = vmatpush1.bf16.msra.mxu0 0
    %3017 = vmatprep.subr.bf16.mxu0 0
    %3018 = vmatpush1.bf16.msra.mxu0 0
    %3019 = vmatprep.subr.bf16.mxu0 0
    %3020 = vmatpush1.bf16.msra.mxu0 0
    %3021 = vmatprep.subr.bf16.mxu0 0
    %3022 = vmatpush1.bf16.msra.mxu0 0
    %3023 = vmatprep.subr.bf16.mxu0 0
    %3024 = vmatpush1.bf16.msra.mxu0 0
    %3025 = vmatprep.subr.bf16.mxu0 0
    %3026 = vmatpush1.bf16.msra.mxu0 0
    %3027 = vmatprep.mubr.bf16.mxu0 0
    %3028 = vmatmul.mubr.bf16.gmra.mrb[0].mxu0 %v2993
    %v3029 = vpop.f32.mrb[0].mxu0
    %v3030 = vadd.f32 0.0, %v3029
    %v3031 = vpop.f32.mrb[0].mxu0
    %v3032 = vpop.f32.mrb[0].mxu0
    %v3033 = vpop.f32.mrb[0].mxu0
    %3034 = vdwg.mxu0
    %v3037 = vunpack.c.l.b16 %v2972
    %v3038 = vunpack.c.l.b16 %v2973
    %v3039 = vpack.c.b16 %v3038, %v3037
    %v3042 = vsel %vm2055, %v2963, 0
    %3044 = vmatprep.subr.bf16.mxu0 0
    %3045 = vmatpush1.bf16.msra.mxu0 %v3039
    %3046 = vmatprep.subr.bf16.mxu0 0
    %3047 = vmatpush1.bf16.msra.mxu0 0
    %3048 = vmatprep.subr.bf16.mxu0 0
    %3049 = vmatpush1.bf16.msra.mxu0 0
    %3050 = vmatprep.subr.bf16.mxu0 0
    %3051 = vmatpush1.bf16.msra.mxu0 0
    %3052 = vmatprep.subr.bf16.mxu0 0
    %3053 = vmatpush1.bf16.msra.mxu0 0
    %3054 = vmatprep.subr.bf16.mxu0 0
    %3055 = vmatpush1.bf16.msra.mxu0 0
    %3056 = vmatprep.subr.bf16.mxu0 0
    %3057 = vmatpush1.bf16.msra.mxu0 0
    %3058 = vmatprep.subr.bf16.mxu0 0
    %3059 = vmatpush1.bf16.msra.mxu0 0
    %3060 = vmatprep.subr.bf16.mxu0 0
    %3061 = vmatpush1.bf16.msra.mxu0 0
    %3062 = vmatprep.subr.bf16.mxu0 0
    %3063 = vmatpush1.bf16.msra.mxu0 0
    %3064 = vmatprep.subr.bf16.mxu0 0
    %3065 = vmatpush1.bf16.msra.mxu0 0
    %3066 = vmatprep.subr.bf16.mxu0 0
    %3067 = vmatpush1.bf16.msra.mxu0 0
    %3068 = vmatprep.subr.bf16.mxu0 0
    %3069 = vmatpush1.bf16.msra.mxu0 0
    %3070 = vmatprep.subr.bf16.mxu0 0
    %3071 = vmatpush1.bf16.msra.mxu0 0
    %3072 = vmatprep.subr.bf16.mxu0 0
    %3073 = vmatpush1.bf16.msra.mxu0 0
    %3074 = vmatprep.subr.bf16.mxu0 0
    %3075 = vmatpush1.bf16.msra.mxu0 0
    %3076 = vmatprep.mubr.bf16.mxu0 0
    %3077 = vmatmul.mubr.bf16.gmra.mrb[0].mxu0 %v3042
    %v3078 = vpop.f32.mrb[0].mxu0
    %v3079 = vadd.f32 0.0, %v3078
    %v3080 = vpop.f32.mrb[0].mxu0
    %v3081 = vpop.f32.mrb[0].mxu0
    %v3082 = vpop.f32.mrb[0].mxu0
    %3083 = vdwg.mxu0
    %v3086 = vunpack.c.l.b16 %v2974
    %v3087 = vunpack.c.l.b16 %v2975
    %v3088 = vpack.c.b16 %v3087, %v3086
    %v3091 = vsel %vm2055, %v2964, 0
    %3093 = vmatprep.subr.bf16.mxu0 0
    %3094 = vmatpush1.bf16.msra.mxu0 %v3088
    %3095 = vmatprep.subr.bf16.mxu0 0
    %3096 = vmatpush1.bf16.msra.mxu0 0
    %3097 = vmatprep.subr.bf16.mxu0 0
    %3098 = vmatpush1.bf16.msra.mxu0 0
    %3099 = vmatprep.subr.bf16.mxu0 0
    %3100 = vmatpush1.bf16.msra.mxu0 0
    %3101 = vmatprep.subr.bf16.mxu0 0
    %3102 = vmatpush1.bf16.msra.mxu0 0
    %3103 = vmatprep.subr.bf16.mxu0 0
    %3104 = vmatpush1.bf16.msra.mxu0 0
    %3105 = vmatprep.subr.bf16.mxu0 0
    %3106 = vmatpush1.bf16.msra.mxu0 0
    %3107 = vmatprep.subr.bf16.mxu0 0
    %3108 = vmatpush1.bf16.msra.mxu0 0
    %3109 = vmatprep.subr.bf16.mxu0 0
    %3110 = vmatpush1.bf16.msra.mxu0 0
    %3111 = vmatprep.subr.bf16.mxu0 0
    %3112 = vmatpush1.bf16.msra.mxu0 0
    %3113 = vmatprep.subr.bf16.mxu0 0
    %3114 = vmatpush1.bf16.msra.mxu0 0
    %3115 = vmatprep.subr.bf16.mxu0 0
    %3116 = vmatpush1.bf16.msra.mxu0 0
    %3117 = vmatprep.subr.bf16.mxu0 0
    %3118 = vmatpush1.bf16.msra.mxu0 0
    %3119 = vmatprep.subr.bf16.mxu0 0
    %3120 = vmatpush1.bf16.msra.mxu0 0
    %3121 = vmatprep.subr.bf16.mxu0 0
    %3122 = vmatpush1.bf16.msra.mxu0 0
    %3123 = vmatprep.subr.bf16.mxu0 0
    %3124 = vmatpush1.bf16.msra.mxu0 0
    %3125 = vmatprep.mubr.bf16.mxu0 0
    %3126 = vmatmul.mubr.bf16.gmra.mrb[0].mxu0 %v3091
    %v3127 = vpop.f32.mrb[0].mxu0
    %v3128 = vadd.f32 0.0, %v3127
    %v3129 = vpop.f32.mrb[0].mxu0
    %v3130 = vpop.f32.mrb[0].mxu0
    %v3131 = vpop.f32.mrb[0].mxu0
    %3132 = vdwg.mxu0
    %v3135 = vunpack.c.l.b16 %v2976
    %v3136 = vunpack.c.l.b16 %v2977
    %v3137 = vpack.c.b16 %v3136, %v3135
    %v3140 = vsel %vm2055, %v2965, 0
    %3142 = vmatprep.subr.bf16.mxu0 0
    %3143 = vmatpush1.bf16.msra.mxu0 %v3137
    %3144 = vmatprep.subr.bf16.mxu0 0
    %3145 = vmatpush1.bf16.msra.mxu0 0
    %3146 = vmatprep.subr.bf16.mxu0 0
    %3147 = vmatpush1.bf16.msra.mxu0 0
    %3148 = vmatprep.subr.bf16.mxu0 0
    %3149 = vmatpush1.bf16.msra.mxu0 0
    %3150 = vmatprep.subr.bf16.mxu0 0
    %3151 = vmatpush1.bf16.msra.mxu0 0
    %3152 = vmatprep.subr.bf16.mxu0 0
    %3153 = vmatpush1.bf16.msra.mxu0 0
    %3154 = vmatprep.subr.bf16.mxu0 0
    %3155 = vmatpush1.bf16.msra.mxu0 0
    %3156 = vmatprep.subr.bf16.mxu0 0
    %3157 = vmatpush1.bf16.msra.mxu0 0
    %3158 = vmatprep.subr.bf16.mxu0 0
    %3159 = vmatpush1.bf16.msra.mxu0 0
    %3160 = vmatprep.subr.bf16.mxu0 0
    %3161 = vmatpush1.bf16.msra.mxu0 0
    %3162 = vmatprep.subr.bf16.mxu0 0
    %3163 = vmatpush1.bf16.msra.mxu0 0
    %3164 = vmatprep.subr.bf16.mxu0 0
    %3165 = vmatpush1.bf16.msra.mxu0 0
    %3166 = vmatprep.subr.bf16.mxu0 0
    %3167 = vmatpush1.bf16.msra.mxu0 0
    %3168 = vmatprep.subr.bf16.mxu0 0
    %3169 = vmatpush1.bf16.msra.mxu0 0
    %3170 = vmatprep.subr.bf16.mxu0 0
    %3171 = vmatpush1.bf16.msra.mxu0 0
    %3172 = vmatprep.subr.bf16.mxu0 0
    %3173 = vmatpush1.bf16.msra.mxu0 0
    %3174 = vmatprep.mubr.bf16.mxu0 0
    %3175 = vmatmul.mubr.bf16.gmra.mrb[0].mxu0 %v3140
    %v3176 = vpop.f32.mrb[0].mxu0
    %v3177 = vadd.f32 0.0, %v3176
    %v3178 = vpop.f32.mrb[0].mxu0
    %v3179 = vpop.f32.mrb[0].mxu0
    %v3180 = vpop.f32.mrb[0].mxu0
    %3181 = vdwg.mxu0
    %v3184 = vunpack.c.l.b16 %v2978
    %v3185 = vunpack.c.l.b16 %v2979
    %v3186 = vpack.c.b16 %v3185, %v3184
    %v3189 = vsel %vm2055, %v2966, 0
    %3191 = vmatprep.subr.bf16.mxu0 0
    %3192 = vmatpush1.bf16.msra.mxu0 %v3186
    %3193 = vmatprep.subr.bf16.mxu0 0
    %3194 = vmatpush1.bf16.msra.mxu0 0
    %3195 = vmatprep.subr.bf16.mxu0 0
    %3196 = vmatpush1.bf16.msra.mxu0 0
    %3197 = vmatprep.subr.bf16.mxu0 0
    %3198 = vmatpush1.bf16.msra.mxu0 0
    %3199 = vmatprep.subr.bf16.mxu0 0
    %3200 = vmatpush1.bf16.msra.mxu0 0
    %3201 = vmatprep.subr.bf16.mxu0 0
    %3202 = vmatpush1.bf16.msra.mxu0 0
    %3203 = vmatprep.subr.bf16.mxu0 0
    %3204 = vmatpush1.bf16.msra.mxu0 0
    %3205 = vmatprep.subr.bf16.mxu0 0
    %3206 = vmatpush1.bf16.msra.mxu0 0
    %3207 = vmatprep.subr.bf16.mxu0 0
    %3208 = vmatpush1.bf16.msra.mxu0 0
    %3209 = vmatprep.subr.bf16.mxu0 0
    %3210 = vmatpush1.bf16.msra.mxu0 0
    %3211 = vmatprep.subr.bf16.mxu0 0
    %3212 = vmatpush1.bf16.msra.mxu0 0
    %3213 = vmatprep.subr.bf16.mxu0 0
    %3214 = vmatpush1.bf16.msra.mxu0 0
    %3215 = vmatprep.subr.bf16.mxu0 0
    %3216 = vmatpush1.bf16.msra.mxu0 0
    %3217 = vmatprep.subr.bf16.mxu0 0
    %3218 = vmatpush1.bf16.msra.mxu0 0
    %3219 = vmatprep.subr.bf16.mxu0 0
    %3220 = vmatpush1.bf16.msra.mxu0 0
    %3221 = vmatprep.subr.bf16.mxu0 0
    %3222 = vmatpush1.bf16.msra.mxu0 0
    %3223 = vmatprep.mubr.bf16.mxu0 0
    %3224 = vmatmul.mubr.bf16.gmra.mrb[0].mxu0 %v3189
    %v3225 = vpop.f32.mrb[0].mxu0
    %v3226 = vadd.f32 0.0, %v3225
    %v3227 = vpop.f32.mrb[0].mxu0
    %v3228 = vpop.f32.mrb[0].mxu0
    %v3229 = vpop.f32.mrb[0].mxu0
    %3230 = vdwg.mxu0
    %v3233 = vunpack.c.l.b16 %v2980
    %v3234 = vunpack.c.l.b16 %v2981
    %v3235 = vpack.c.b16 %v3234, %v3233
    %v3238 = vsel %vm2055, %v2967, 0
    %3240 = vmatprep.subr.bf16.mxu0 0
    %3241 = vmatpush1.bf16.msra.mxu0 %v3235
    %3242 = vmatprep.subr.bf16.mxu0 0
    %3243 = vmatpush1.bf16.msra.mxu0 0
    %3244 = vmatprep.subr.bf16.mxu0 0
    %3245 = vmatpush1.bf16.msra.mxu0 0
    %3246 = vmatprep.subr.bf16.mxu0 0
    %3247 = vmatpush1.bf16.msra.mxu0 0
    %3248 = vmatprep.subr.bf16.mxu0 0
    %3249 = vmatpush1.bf16.msra.mxu0 0
    %3250 = vmatprep.subr.bf16.mxu0 0
    %3251 = vmatpush1.bf16.msra.mxu0 0
    %3252 = vmatprep.subr.bf16.mxu0 0
    %3253 = vmatpush1.bf16.msra.mxu0 0
    %3254 = vmatprep.subr.bf16.mxu0 0
    %3255 = vmatpush1.bf16.msra.mxu0 0
    %3256 = vmatprep.subr.bf16.mxu0 0
    %3257 = vmatpush1.bf16.msra.mxu0 0
    %3258 = vmatprep.subr.bf16.mxu0 0
    %3259 = vmatpush1.bf16.msra.mxu0 0
    %3260 = vmatprep.subr.bf16.mxu0 0
    %3261 = vmatpush1.bf16.msra.mxu0 0
    %3262 = vmatprep.subr.bf16.mxu0 0
    %3263 = vmatpush1.bf16.msra.mxu0 0
    %3264 = vmatprep.subr.bf16.mxu0 0
    %3265 = vmatpush1.bf16.msra.mxu0 0
    %3266 = vmatprep.subr.bf16.mxu0 0
    %3267 = vmatpush1.bf16.msra.mxu0 0
    %3268 = vmatprep.subr.bf16.mxu0 0
    %3269 = vmatpush1.bf16.msra.mxu0 0
    %3270 = vmatprep.subr.bf16.mxu0 0
    %3271 = vmatpush1.bf16.msra.mxu0 0
    %3272 = vmatprep.mubr.bf16.mxu0 0
    %3273 = vmatmul.mubr.bf16.gmra.mrb[0].mxu0 %v3238
    %v3274 = vpop.f32.mrb[0].mxu0
    %v3275 = vadd.f32 0.0, %v3274
    %v3276 = vpop.f32.mrb[0].mxu0
    %v3277 = vpop.f32.mrb[0].mxu0
    %v3278 = vpop.f32.mrb[0].mxu0
    %3279 = vdwg.mxu0
    %v3282 = vunpack.c.l.b16 %v2982
    %v3283 = vunpack.c.l.b16 %v2983
    %v3284 = vpack.c.b16 %v3283, %v3282
    %v3287 = vsel %vm2055, %v2968, 0
    %3289 = vmatprep.subr.bf16.mxu0 0
    %3290 = vmatpush1.bf16.msra.mxu0 %v3284
    %3291 = vmatprep.subr.bf16.mxu0 0
    %3292 = vmatpush1.bf16.msra.mxu0 0
    %3293 = vmatprep.subr.bf16.mxu0 0
    %3294 = vmatpush1.bf16.msra.mxu0 0
    %3295 = vmatprep.subr.bf16.mxu0 0
    %3296 = vmatpush1.bf16.msra.mxu0 0
    %3297 = vmatprep.subr.bf16.mxu0 0
    %3298 = vmatpush1.bf16.msra.mxu0 0
    %3299 = vmatprep.subr.bf16.mxu0 0
    %3300 = vmatpush1.bf16.msra.mxu0 0
    %3301 = vmatprep.subr.bf16.mxu0 0
    %3302 = vmatpush1.bf16.msra.mxu0 0
    %3303 = vmatprep.subr.bf16.mxu0 0
    %3304 = vmatpush1.bf16.msra.mxu0 0
    %3305 = vmatprep.subr.bf16.mxu0 0
    %3306 = vmatpush1.bf16.msra.mxu0 0
    %3307 = vmatprep.subr.bf16.mxu0 0
    %3308 = vmatpush1.bf16.msra.mxu0 0
    %3309 = vmatprep.subr.bf16.mxu0 0
    %3310 = vmatpush1.bf16.msra.mxu0 0
    %3311 = vmatprep.subr.bf16.mxu0 0
    %3312 = vmatpush1.bf16.msra.mxu0 0
    %3313 = vmatprep.subr.bf16.mxu0 0
    %3314 = vmatpush1.bf16.msra.mxu0 0
    %3315 = vmatprep.subr.bf16.mxu0 0
    %3316 = vmatpush1.bf16.msra.mxu0 0
    %3317 = vmatprep.subr.bf16.mxu0 0
    %3318 = vmatpush1.bf16.msra.mxu0 0
    %3319 = vmatprep.subr.bf16.mxu0 0
    %3320 = vmatpush1.bf16.msra.mxu0 0
    %3321 = vmatprep.mubr.bf16.mxu0 0
    %3322 = vmatmul.mubr.bf16.gmra.mrb[0].mxu0 %v3287
    %v3323 = vpop.f32.mrb[0].mxu0
    %v3324 = vadd.f32 0.0, %v3323
    %v3325 = vpop.f32.mrb[0].mxu0
    %v3326 = vpop.f32.mrb[0].mxu0
    %v3327 = vpop.f32.mrb[0].mxu0
    %3328 = vdwg.mxu0
    %v3331 = vunpack.c.l.b16 %v2984
    %v3332 = vunpack.c.l.b16 %v2985
    %v3333 = vpack.c.b16 %v3332, %v3331
    %v3336 = vsel %vm2055, %v2969, 0
    %3338 = vmatprep.subr.bf16.mxu0 0
    %3339 = vmatpush1.bf16.msra.mxu0 %v3333
    %3340 = vmatprep.subr.bf16.mxu0 0
    %3341 = vmatpush1.bf16.msra.mxu0 0
    %3342 = vmatprep.subr.bf16.mxu0 0
    %3343 = vmatpush1.bf16.msra.mxu0 0
    %3344 = vmatprep.subr.bf16.mxu0 0
    %3345 = vmatpush1.bf16.msra.mxu0 0
    %3346 = vmatprep.subr.bf16.mxu0 0
    %3347 = vmatpush1.bf16.msra.mxu0 0
    %3348 = vmatprep.subr.bf16.mxu0 0
    %3349 = vmatpush1.bf16.msra.mxu0 0
    %3350 = vmatprep.subr.bf16.mxu0 0
    %3351 = vmatpush1.bf16.msra.mxu0 0
    %3352 = vmatprep.subr.bf16.mxu0 0
    %3353 = vmatpush1.bf16.msra.mxu0 0
    %3354 = vmatprep.subr.bf16.mxu0 0
    %3355 = vmatpush1.bf16.msra.mxu0 0
    %3356 = vmatprep.subr.bf16.mxu0 0
    %3357 = vmatpush1.bf16.msra.mxu0 0
    %3358 = vmatprep.subr.bf16.mxu0 0
    %3359 = vmatpush1.bf16.msra.mxu0 0
    %3360 = vmatprep.subr.bf16.mxu0 0
    %3361 = vmatpush1.bf16.msra.mxu0 0
    %3362 = vmatprep.subr.bf16.mxu0 0
    %3363 = vmatpush1.bf16.msra.mxu0 0
    %3364 = vmatprep.subr.bf16.mxu0 0
    %3365 = vmatpush1.bf16.msra.mxu0 0
    %3366 = vmatprep.subr.bf16.mxu0 0
    %3367 = vmatpush1.bf16.msra.mxu0 0
    %3368 = vmatprep.subr.bf16.mxu0 0
    %3369 = vmatpush1.bf16.msra.mxu0 0
    %3370 = vmatprep.mubr.bf16.mxu0 0
    %3371 = vmatmul.mubr.bf16.gmra.mrb[0].mxu0 %v3336
    %v3372 = vpop.f32.mrb[0].mxu0
    %v3373 = vadd.f32 0.0, %v3372
    %v3374 = vpop.f32.mrb[0].mxu0
    %v3375 = vpop.f32.mrb[0].mxu0
    %v3376 = vpop.f32.mrb[0].mxu0
    %3377 = vdwg.mxu0
    %v3378 = vsel %vm91, %v3030, 0.0
    %v3379 = vsel %vm91, %v3079, 0.0
    %v3380 = vadd.f32 %v3378, %v3379
    %v3381 = vsel %vm91, %v3128, 0.0
    %v3382 = vadd.f32 %v3380, %v3381
    %v3383 = vsel %vm91, %v3177, 0.0
    %v3384 = vadd.f32 %v3382, %v3383
    %v3385 = vsel %vm91, %v3226, 0.0
    %v3386 = vsel %vm91, %v3275, 0.0
    %v3387 = vadd.f32 %v3385, %v3386
    %v3388 = vsel %vm91, %v3324, 0.0
    %v3389 = vadd.f32 %v3387, %v3388
    %v3390 = vsel %vm91, %v3373, 0.0
    %v3391 = vadd.f32 %v3389, %v3390
    %v3392 = vld [vmem:[%s11] sm:$0x1]
    %v3394 = vlaneseq
    %v3395 = vshrl.u32 %v3394, 7
    %v3396 = vsub.s32 0, %v3395
    %v3397 = vrot.slane %v3392, %v3396
    %v3399 = vadd.f32 %v3384, %v3397
    %v3400 = vadd.f32 %v3391, %v3397
    %v3401 = vadd.f32 %v3399, %v133
    %v3402 = vadd.f32 %v3400, %v134
    %v3403 = vld [vmem:[%s12] sm:$0x1]
    %v3404 = vld [vmem:[%s13] sm:$0x1]
    %v3405 = vsel %vm91, %v3401, 0.0
    %3406 = vadd.xlane.f32.xlu0 %v3405
    %v3407 = vpop.xlane.xlu0 %3406
    %v3408 = vsel %vm91, %v3402, 0.0
    %3409 = vadd.xlane.f32.xlu0 %v3408
    %v3410 = vpop.xlane.xlu0 %3409
    %v3411 = vmul.f32 %v3407, %v98
    %v3412 = vmul.f32 %v3410, %v98
    %v3413 = vsub.f32 %v3401, %v3411
    %v3414 = vsub.f32 %v3402, %v3412
    %v3415 = vmul.f32 %v3413, %v3413
    %v3416 = vmul.f32 %v3414, %v3414
    %v3417 = vsel %vm91, %v3415, 0.0
    %3418 = vadd.xlane.f32.xlu0 %v3417
    %v3419 = vpop.xlane.xlu0 %3418
    %v3420 = vsel %vm91, %v3416, 0.0
    %3421 = vadd.xlane.f32.xlu0 %v3420
    %v3422 = vpop.xlane.xlu0 %3421
    %v3423 = vmul.f32 %v3419, %v98
    %v3424 = vmul.f32 %v3422, %v98
    %v3425 = vadd.f32 %v3423, 1e-05
    %v3426 = vadd.f32 %v3424, 1e-05
    %v3427 = vrsqrt.pop %v3425
    %v3428 = vrsqrt.pop %v3426
    %v3429 = vmul.f32 %v3413, %v3427
    %v3430 = vmul.f32 %v3414, %v3428
    %v3432 = vlaneseq
    %v3433 = vshrl.u32 %v3432, 7
    %v3434 = vsub.s32 0, %v3433
    %v3435 = vrot.slane %v3403, %v3434
    %v3437 = vmul.f32 %v3429, %v3435
    %v3438 = vmul.f32 %v3430, %v3435
    %v3440 = vlaneseq
    %v3441 = vshrl.u32 %v3440, 7
    %v3442 = vsub.s32 0, %v3441
    %v3443 = vrot.slane %v3404, %v3442
    %v3445 = vadd.f32 %v3437, %v3443
    %v3446 = vadd.f32 %v3438, %v3443
    %v3447 = vpack.c.bf16 %v3446, %v3445
    %v3448 = vld [vmem:[%s14] sm:$0xf]
    %v3449 = vld [vmem:[%s14 + $0x4] sm:$0xf]
    %v3450 = vld [vmem:[%s14 + $0x8] sm:$0xf]
    %v3451 = vld [vmem:[%s14 + $0xc] sm:$0xf]
    %v3452 = vld [vmem:[%s14 + $0x10] sm:$0xf]
    %v3453 = vld [vmem:[%s14 + $0x14] sm:$0xf]
    %v3454 = vld [vmem:[%s14 + $0x18] sm:$0xf]
    %v3455 = vld [vmem:[%s14 + $0x1c] sm:$0xf]
    %v3456 = vld [vmem:[%s15] sm:$0x1]
    %v3458 = vlaneseq
    %v3459 = vshrl.u32 %v3458, 7
    %v3460 = vsub.s32 0, %v3459
    %v3461 = vrot.slane %v3456, %v3460
    %v3471 = vunpack.c.l.b16 %v3448
    %v3472 = vunpack.c.l.b16 %v3449
    %v3473 = vunpack.c.l.b16 %v3450
    %v3474 = vunpack.c.l.b16 %v3451
    %v3475 = vunpack.c.l.b16 %v3452
    %v3476 = vunpack.c.l.b16 %v3453
    %v3477 = vunpack.c.l.b16 %v3454
    %v3478 = vunpack.c.l.b16 %v3455
    %v3479 = vpack.c.b16 %v3472, %v3471
    %v3480 = vpack.c.b16 %v3474, %v3473
    %v3481 = vpack.c.b16 %v3476, %v3475
    %v3482 = vpack.c.b16 %v3478, %v3477
    %v3488 = vsel %vm91, %v3447, 0
    %3490 = vmatprep.subr.bf16.mxu0 0
    %3491 = vmatpush1.bf16.msra.mxu0 %v3479
    %3492 = vmatprep.subr.bf16.mxu0 0
    %3493 = vmatpush1.bf16.msra.mxu0 %v3480
    %3494 = vmatprep.subr.bf16.mxu0 0
    %3495 = vmatpush1.bf16.msra.mxu0 %v3481
    %3496 = vmatprep.subr.bf16.mxu0 0
    %3497 = vmatpush1.bf16.msra.mxu0 %v3482
    %3498 = vmatprep.subr.bf16.mxu0 0
    %3499 = vmatpush1.bf16.msra.mxu0 0
    %3500 = vmatprep.subr.bf16.mxu0 0
    %3501 = vmatpush1.bf16.msra.mxu0 0
    %3502 = vmatprep.subr.bf16.mxu0 0
    %3503 = vmatpush1.bf16.msra.mxu0 0
    %3504 = vmatprep.subr.bf16.mxu0 0
    %3505 = vmatpush1.bf16.msra.mxu0 0
    %3506 = vmatprep.subr.bf16.mxu0 0
    %3507 = vmatpush1.bf16.msra.mxu0 0
    %3508 = vmatprep.subr.bf16.mxu0 0
    %3509 = vmatpush1.bf16.msra.mxu0 0
    %3510 = vmatprep.subr.bf16.mxu0 0
    %3511 = vmatpush1.bf16.msra.mxu0 0
    %3512 = vmatprep.subr.bf16.mxu0 0
    %3513 = vmatpush1.bf16.msra.mxu0 0
    %3514 = vmatprep.subr.bf16.mxu0 0
    %3515 = vmatpush1.bf16.msra.mxu0 0
    %3516 = vmatprep.subr.bf16.mxu0 0
    %3517 = vmatpush1.bf16.msra.mxu0 0
    %3518 = vmatprep.subr.bf16.mxu0 0
    %3519 = vmatpush1.bf16.msra.mxu0 0
    %3520 = vmatprep.subr.bf16.mxu0 0
    %3521 = vmatpush1.bf16.msra.mxu0 0
    %3522 = vmatprep.mubr.bf16.mxu0 0
    %3523 = vmatmul.mubr.bf16.gmra.mrb[0].mxu0 %v3488
    %v3524 = vpop.f32.mrb[0].mxu0
    %v3525 = vadd.f32 %v3461, %v3524
    %v3526 = vpop.f32.mrb[0].mxu0
    %v3527 = vpop.f32.mrb[0].mxu0
    %v3528 = vadd.f32 %v3461, %v3527
    %v3529 = vpop.f32.mrb[0].mxu0
    %3530 = vdwg.mxu0
    %v3531 = vmul.f32 %v3525, 0.5
    %v3532 = vmul.f32 %v3528, 0.5
    %v3533 = vmul.f32 %v3525, 0.044715
    %v3534 = vmul.f32 %v3528, 0.044715
    %v3535 = vmul.f32 %v3533, %v3525
    %v3536 = vmul.f32 %v3534, %v3528
    %v3537 = vmul.f32 %v3535, %v3525
    %v3538 = vmul.f32 %v3536, %v3528
    %v3539 = vadd.f32 %v3525, %v3537
    %v3540 = vadd.f32 %v3528, %v3538
    %v3541 = vmul.f32 %v3539, 0.7978846
    %v3542 = vmul.f32 %v3540, 0.7978846
    %v3543 = vtanh.pop %v3541
    %v3544 = vtanh.pop %v3542
    %v3545 = vadd.f32 %v3543, 1.0
    %v3546 = vadd.f32 %v3544, 1.0
    %v3547 = vmul.f32 %v3531, %v3545
    %v3548 = vmul.f32 %v3532, %v3546
    %v3549 = vpack.c.bf16 %v3548, %v3547
    %v3550 = vld [vmem:[%s16] sm:$0xf]
    %v3551 = vld [vmem:[%s16 + $0x4] sm:$0xf]
    %v3552 = vld [vmem:[%s16 + $0x8] sm:$0xf]
    %v3553 = vld [vmem:[%s16 + $0xc] sm:$0xf]
    %v3554 = vld [vmem:[%s16 + $0x10] sm:$0xf]
    %v3555 = vld [vmem:[%s16 + $0x14] sm:$0xf]
    %v3556 = vld [vmem:[%s16 + $0x18] sm:$0xf]
    %v3557 = vld [vmem:[%s16 + $0x1c] sm:$0xf]
    %v3558 = vld [vmem:[%s16 + $0x20] sm:$0xf]
    %v3559 = vld [vmem:[%s16 + $0x24] sm:$0xf]
    %v3560 = vld [vmem:[%s16 + $0x28] sm:$0xf]
    %v3561 = vld [vmem:[%s16 + $0x2c] sm:$0xf]
    %v3562 = vld [vmem:[%s16 + $0x30] sm:$0xf]
    %v3563 = vld [vmem:[%s16 + $0x34] sm:$0xf]
    %v3564 = vld [vmem:[%s16 + $0x38] sm:$0xf]
    %v3565 = vld [vmem:[%s16 + $0x3c] sm:$0xf]
    %v3566 = vld [vmem:[%s17] sm:$0x1]
    %v3568 = vlaneseq
    %v3569 = vshrl.u32 %v3568, 7
    %v3570 = vsub.s32 0, %v3569
    %v3571 = vrot.slane %v3566, %v3570
    %v3589 = vunpack.c.l.b16 %v3550
    %v3590 = vunpack.c.l.b16 %v3551
    %v3591 = vunpack.c.l.b16 %v3552
    %v3592 = vunpack.c.l.b16 %v3553
    %v3593 = vunpack.c.l.b16 %v3554
    %v3594 = vunpack.c.l.b16 %v3555
    %v3595 = vunpack.c.l.b16 %v3556
    %v3596 = vunpack.c.l.b16 %v3557
    %v3597 = vunpack.c.l.b16 %v3558
    %v3598 = vunpack.c.l.b16 %v3559
    %v3599 = vunpack.c.l.b16 %v3560
    %v3600 = vunpack.c.l.b16 %v3561
    %v3601 = vunpack.c.l.b16 %v3562
    %v3602 = vunpack.c.l.b16 %v3563
    %v3603 = vunpack.c.l.b16 %v3564
    %v3604 = vunpack.c.l.b16 %v3565
    %v3605 = vpack.c.b16 %v3590, %v3589
    %v3606 = vpack.c.b16 %v3592, %v3591
    %v3607 = vpack.c.b16 %v3594, %v3593
    %v3608 = vpack.c.b16 %v3596, %v3595
    %v3609 = vpack.c.b16 %v3598, %v3597
    %v3610 = vpack.c.b16 %v3600, %v3599
    %v3611 = vpack.c.b16 %v3602, %v3601
    %v3612 = vpack.c.b16 %v3604, %v3603
    %3621 = vmatprep.subr.bf16.mxu0 0
    %3622 = vmatpush1.bf16.msra.mxu0 %v3605
    %3623 = vmatprep.subr.bf16.mxu0 0
    %3624 = vmatpush1.bf16.msra.mxu0 %v3606
    %3625 = vmatprep.subr.bf16.mxu0 0
    %3626 = vmatpush1.bf16.msra.mxu0 %v3607
    %3627 = vmatprep.subr.bf16.mxu0 0
    %3628 = vmatpush1.bf16.msra.mxu0 %v3608
    %3629 = vmatprep.subr.bf16.mxu0 0
    %3630 = vmatpush1.bf16.msra.mxu0 %v3609
    %3631 = vmatprep.subr.bf16.mxu0 0
    %3632 = vmatpush1.bf16.msra.mxu0 %v3610
    %3633 = vmatprep.subr.bf16.mxu0 0
    %3634 = vmatpush1.bf16.msra.mxu0 %v3611
    %3635 = vmatprep.subr.bf16.mxu0 0
    %3636 = vmatpush1.bf16.msra.mxu0 %v3612
    %3637 = vmatprep.subr.bf16.mxu0 0
    %3638 = vmatpush1.bf16.msra.mxu0 0
    %3639 = vmatprep.subr.bf16.mxu0 0
    %3640 = vmatpush1.bf16.msra.mxu0 0
    %3641 = vmatprep.subr.bf16.mxu0 0
    %3642 = vmatpush1.bf16.msra.mxu0 0
    %3643 = vmatprep.subr.bf16.mxu0 0
    %3644 = vmatpush1.bf16.msra.mxu0 0
    %3645 = vmatprep.subr.bf16.mxu0 0
    %3646 = vmatpush1.bf16.msra.mxu0 0
    %3647 = vmatprep.subr.bf16.mxu0 0
    %3648 = vmatpush1.bf16.msra.mxu0 0
    %3649 = vmatprep.subr.bf16.mxu0 0
    %3650 = vmatpush1.bf16.msra.mxu0 0
    %3651 = vmatprep.subr.bf16.mxu0 0
    %3652 = vmatpush1.bf16.msra.mxu0 0
    %3653 = vmatprep.mubr.bf16.mxu0 0
    %3654 = vmatmul.mubr.bf16.gmra.mrb[0].mxu0 %v3549
    %v3655 = vpop.f32.mrb[0].mxu0
    %v3656 = vadd.f32 %v3571, %v3655
    %v3657 = vpop.f32.mrb[0].mxu0
    %v3658 = vpop.f32.mrb[0].mxu0
    %v3659 = vadd.f32 %v3571, %v3658
    %v3660 = vpop.f32.mrb[0].mxu0
    %3661 = vdwg.mxu0
    %v3662 = vadd.f32 %v3656, %v3445
    %v3663 = vadd.f32 %v3659, %v3446
    %v3664 = vld [vmem:[%s18] sm:$0x1]
    %v3665 = vld [vmem:[%s19] sm:$0x1]
    %v3666 = vsel %vm91, %v3662, 0.0
    %3667 = vadd.xlane.f32.xlu0 %v3666
    %v3668 = vpop.xlane.xlu0 %3667
    %v3669 = vsel %vm91, %v3663, 0.0
    %3670 = vadd.xlane.f32.xlu0 %v3669
    %v3671 = vpop.xlane.xlu0 %3670
    %v3672 = vmul.f32 %v3668, %v98
    %v3673 = vmul.f32 %v3671, %v98
    %v3674 = vsub.f32 %v3662, %v3672
    %v3675 = vsub.f32 %v3663, %v3673
    %v3676 = vmul.f32 %v3674, %v3674
    %v3677 = vmul.f32 %v3675, %v3675
    %v3678 = vsel %vm91, %v3676, 0.0
    %3679 = vadd.xlane.f32.xlu0 %v3678
    %v3680 = vpop.xlane.xlu0 %3679
    %v3681 = vsel %vm91, %v3677, 0.0
    %3682 = vadd.xlane.f32.xlu0 %v3681
    %v3683 = vpop.xlane.xlu0 %3682
    %v3684 = vmul.f32 %v3680, %v98
    %v3685 = vmul.f32 %v3683, %v98
    %v3686 = vadd.f32 %v3684, 1e-05
    %v3687 = vadd.f32 %v3685, 1e-05
    %v3688 = vrsqrt.pop %v3686
    %v3689 = vrsqrt.pop %v3687
    %v3690 = vmul.f32 %v3674, %v3688
    %v3691 = vmul.f32 %v3675, %v3689
    %v3693 = vlaneseq
    %v3694 = vshrl.u32 %v3693, 7
    %v3695 = vsub.s32 0, %v3694
    %v3696 = vrot.slane %v3664, %v3695
    %v3698 = vmul.f32 %v3690, %v3696
    %v3699 = vmul.f32 %v3691, %v3696
    %v3701 = vlaneseq
    %v3702 = vshrl.u32 %v3701, 7
    %v3703 = vsub.s32 0, %v3702
    %v3704 = vrot.slane %v3665, %v3703
    %v3706 = vadd.f32 %v3698, %v3704
    %v3707 = vadd.f32 %v3699, %v3704
    %v3708 = vpack.c.bf16 %v3706, %v3706
    %v3709 = vpack.c.bf16 %v3707, %v3707
    %s3710 = scalar_lea.vmem %s4, 256
    %v3711 = vld [vmem:[%s3710] sm:$0xf]
    %v3712 = vld [vmem:[%s3710 + $0x4] sm:$0xf]
    %v3713 = vld [vmem:[%s3710 + $0x8] sm:$0xf]
    %v3714 = vld [vmem:[%s3710 + $0xc] sm:$0xf]
    %v3715 = vld [vmem:[%s3710 + $0x10] sm:$0xf]
    %v3716 = vld [vmem:[%s3710 + $0x14] sm:$0xf]
    %v3717 = vld [vmem:[%s3710 + $0x18] sm:$0xf]
    %v3718 = vld [vmem:[%s3710 + $0x1c] sm:$0xf]
    %v3719 = vld [vmem:[%s3710 + $0x20] sm:$0xf]
    %v3720 = vld [vmem:[%s3710 + $0x24] sm:$0xf]
    %v3721 = vld [vmem:[%s3710 + $0x28] sm:$0xf]
    %v3722 = vld [vmem:[%s3710 + $0x2c] sm:$0xf]
    %v3723 = vld [vmem:[%s3710 + $0x30] sm:$0xf]
    %v3724 = vld [vmem:[%s3710 + $0x34] sm:$0xf]
    %v3725 = vld [vmem:[%s3710 + $0x38] sm:$0xf]
    %v3726 = vld [vmem:[%s3710 + $0x3c] sm:$0xf]
    %v3727 = vld [vmem:[%s3710 + $0x40] sm:$0xf]
    %v3728 = vld [vmem:[%s3710 + $0x44] sm:$0xf]
    %v3729 = vld [vmem:[%s3710 + $0x48] sm:$0xf]
    %v3730 = vld [vmem:[%s3710 + $0x4c] sm:$0xf]
    %v3731 = vld [vmem:[%s3710 + $0x50] sm:$0xf]
    %v3732 = vld [vmem:[%s3710 + $0x54] sm:$0xf]
    %v3733 = vld [vmem:[%s3710 + $0x58] sm:$0xf]
    %v3734 = vld [vmem:[%s3710 + $0x5c] sm:$0xf]
    %v3735 = vld [vmem:[%s3710 + $0x60] sm:$0xf]
    %v3736 = vld [vmem:[%s3710 + $0x64] sm:$0xf]
    %v3737 = vld [vmem:[%s3710 + $0x68] sm:$0xf]
    %v3738 = vld [vmem:[%s3710 + $0x6c] sm:$0xf]
    %v3739 = vld [vmem:[%s3710 + $0x70] sm:$0xf]
    %v3740 = vld [vmem:[%s3710 + $0x74] sm:$0xf]
    %v3741 = vld [vmem:[%s3710 + $0x78] sm:$0xf]
    %v3742 = vld [vmem:[%s3710 + $0x7c] sm:$0xf]
    %v3743 = vld [vmem:[%s3710 + $0x80] sm:$0xf]
    %v3744 = vld [vmem:[%s3710 + $0x84] sm:$0xf]
    %v3745 = vld [vmem:[%s3710 + $0x88] sm:$0xf]
    %v3746 = vld [vmem:[%s3710 + $0x8c] sm:$0xf]
    %v3747 = vld [vmem:[%s3710 + $0x90] sm:$0xf]
    %v3748 = vld [vmem:[%s3710 + $0x94] sm:$0xf]
    %v3749 = vld [vmem:[%s3710 + $0x98] sm:$0xf]
    %v3750 = vld [vmem:[%s3710 + $0x9c] sm:$0xf]
    %v3751 = vld [vmem:[%s3710 + $0xa0] sm:$0xf]
    %v3752 = vld [vmem:[%s3710 + $0xa4] sm:$0xf]
    %v3753 = vld [vmem:[%s3710 + $0xa8] sm:$0xf]
    %v3754 = vld [vmem:[%s3710 + $0xac] sm:$0xf]
    %v3755 = vld [vmem:[%s3710 + $0xb0] sm:$0xf]
    %v3756 = vld [vmem:[%s3710 + $0xb4] sm:$0xf]
    %v3757 = vld [vmem:[%s3710 + $0xb8] sm:$0xf]
    %v3758 = vld [vmem:[%s3710 + $0xbc] sm:$0xf]
    %v3759 = vld [vmem:[%s3710 + $0xc0] sm:$0xf]
    %v3760 = vld [vmem:[%s3710 + $0xc4] sm:$0xf]
    %v3761 = vld [vmem:[%s3710 + $0xc8] sm:$0xf]
    %v3762 = vld [vmem:[%s3710 + $0xcc] sm:$0xf]
    %v3763 = vld [vmem:[%s3710 + $0xd0] sm:$0xf]
    %v3764 = vld [vmem:[%s3710 + $0xd4] sm:$0xf]
    %v3765 = vld [vmem:[%s3710 + $0xd8] sm:$0xf]
    %v3766 = vld [vmem:[%s3710 + $0xdc] sm:$0xf]
    %v3767 = vld [vmem:[%s3710 + $0xe0] sm:$0xf]
    %v3768 = vld [vmem:[%s3710 + $0xe4] sm:$0xf]
    %v3769 = vld [vmem:[%s3710 + $0xe8] sm:$0xf]
    %v3770 = vld [vmem:[%s3710 + $0xec] sm:$0xf]
    %v3771 = vld [vmem:[%s3710 + $0xf0] sm:$0xf]
    %v3772 = vld [vmem:[%s3710 + $0xf4] sm:$0xf]
    %v3773 = vld [vmem:[%s3710 + $0xf8] sm:$0xf]
    %v3774 = vld [vmem:[%s3710 + $0xfc] sm:$0xf]
    %s3775 = scalar_lea.vmem %s7, 8
    %v3776 = vld [vmem:[%s3775] sm:$0x1]
    %v3777 = vld [vmem:[%s3775 + $0x1] sm:$0x1]
    %v3778 = vld [vmem:[%s3775 + $0x2] sm:$0x1]
    %v3779 = vld [vmem:[%s3775 + $0x3] sm:$0x1]
    %v3780 = vld [vmem:[%s3775 + $0x4] sm:$0x1]
    %v3781 = vld [vmem:[%s3775 + $0x5] sm:$0x1]
    %v3782 = vld [vmem:[%s3775 + $0x6] sm:$0x1]
    %v3783 = vld [vmem:[%s3775 + $0x7] sm:$0x1]
    %v3792 = vlaneseq
    %v3793 = vshrl.u32 %v3792, 7
    %v3794 = vsub.s32 0, %v3793
    %v3795 = vrot.slane %v3776, %v3794
    %v3796 = vlaneseq
    %v3797 = vshrl.u32 %v3796, 7
    %v3798 = vsub.s32 0, %v3797
    %v3799 = vrot.slane %v3777, %v3798
    %v3800 = vlaneseq
    %v3801 = vshrl.u32 %v3800, 7
    %v3802 = vsub.s32 0, %v3801
    %v3803 = vrot.slane %v3778, %v3802
    %v3804 = vlaneseq
    %v3805 = vshrl.u32 %v3804, 7
    %v3806 = vsub.s32 0, %v3805
    %v3807 = vrot.slane %v3779, %v3806
    %v3808 = vlaneseq
    %v3809 = vshrl.u32 %v3808, 7
    %v3810 = vsub.s32 0, %v3809
    %v3811 = vrot.slane %v3780, %v3810
    %v3812 = vlaneseq
    %v3813 = vshrl.u32 %v3812, 7
    %v3814 = vsub.s32 0, %v3813
    %v3815 = vrot.slane %v3781, %v3814
    %v3816 = vlaneseq
    %v3817 = vshrl.u32 %v3816, 7
    %v3818 = vsub.s32 0, %v3817
    %v3819 = vrot.slane %v3782, %v3818
    %v3820 = vlaneseq
    %v3821 = vshrl.u32 %v3820, 7
    %v3822 = vsub.s32 0, %v3821
    %v3823 = vrot.slane %v3783, %v3822
    %v3840 = vunpack.c.l.b16 %v3711
    %v3841 = vunpack.c.l.b16 %v3712
    %v3842 = vunpack.c.l.b16 %v3713
    %v3843 = vunpack.c.l.b16 %v3714
    %v3844 = vunpack.c.l.b16 %v3715
    %v3845 = vunpack.c.l.b16 %v3716
    %v3846 = vunpack.c.l.b16 %v3717
    %v3847 = vunpack.c.l.b16 %v3718
    %v3848 = vpack.c.b16 %v3841, %v3840
    %v3849 = vpack.c.b16 %v3843, %v3842
    %v3850 = vpack.c.b16 %v3845, %v3844
    %v3851 = vpack.c.b16 %v3847, %v3846
    %v3857 = vsel %vm91, %v3708, 0
    %3859 = vmatprep.subr.bf16.mxu0 0
    %3860 = vmatpush1.bf16.msra.mxu0 %v3848
    %3861 = vmatprep.subr.bf16.mxu0 0
    %3862 = vmatpush1.bf16.msra.mxu0 %v3849
    %3863 = vmatprep.subr.bf16.mxu0 0
    %3864 = vmatpush1.bf16.msra.mxu0 %v3850
    %3865 = vmatprep.subr.bf16.mxu0 0
    %3866 = vmatpush1.bf16.msra.mxu0 %v3851
    %3867 = vmatprep.subr.bf16.mxu0 0
    %3868 = vmatpush1.bf16.msra.mxu0 0
    %3869 = vmatprep.subr.bf16.mxu0 0
    %3870 = vmatpush1.bf16.msra.mxu0 0
    %3871 = vmatprep.subr.bf16.mxu0 0
    %3872 = vmatpush1.bf16.msra.mxu0 0
    %3873 = vmatprep.subr.bf16.mxu0 0
    %3874 = vmatpush1.bf16.msra.mxu0 0
    %3875 = vmatprep.subr.bf16.mxu0 0
    %3876 = vmatpush1.bf16.msra.mxu0 0
    %3877 = vmatprep.subr.bf16.mxu0 0
    %3878 = vmatpush1.bf16.msra.mxu0 0
    %3879 = vmatprep.subr.bf16.mxu0 0
    %3880 = vmatpush1.bf16.msra.mxu0 0
    %3881 = vmatprep.subr.bf16.mxu0 0
    %3882 = vmatpush1.bf16.msra.mxu0 0
    %3883 = vmatprep.subr.bf16.mxu0 0
    %3884 = vmatpush1.bf16.msra.mxu0 0
    %3885 = vmatprep.subr.bf16.mxu0 0
    %3886 = vmatpush1.bf16.msra.mxu0 0
    %3887 = vmatprep.subr.bf16.mxu0 0
    %3888 = vmatpush1.bf16.msra.mxu0 0
    %3889 = vmatprep.subr.bf16.mxu0 0
    %3890 = vmatpush1.bf16.msra.mxu0 0
    %3891 = vmatprep.mubr.bf16.mxu0 0
    %3892 = vmatmul.mubr.bf16.gmra.mrb[0].mxu0 %v3857
    %v3893 = vpop.f32.mrb[0].mxu0
    %v3894 = vadd.f32 %v3795, %v3893
    %v3895 = vpop.f32.mrb[0].mxu0
    %v3896 = vpop.f32.mrb[0].mxu0
    %v3897 = vpop.f32.mrb[0].mxu0
    %3898 = vdwg.mxu0
    %v3907 = vunpack.c.l.b16 %v3719
    %v3908 = vunpack.c.l.b16 %v3720
    %v3909 = vunpack.c.l.b16 %v3721
    %v3910 = vunpack.c.l.b16 %v3722
    %v3911 = vunpack.c.l.b16 %v3723
    %v3912 = vunpack.c.l.b16 %v3724
    %v3913 = vunpack.c.l.b16 %v3725
    %v3914 = vunpack.c.l.b16 %v3726
    %v3915 = vpack.c.b16 %v3908, %v3907
    %v3916 = vpack.c.b16 %v3910, %v3909
    %v3917 = vpack.c.b16 %v3912, %v3911
    %v3918 = vpack.c.b16 %v3914, %v3913
    %3923 = vmatprep.subr.bf16.mxu0 0
    %3924 = vmatpush1.bf16.msra.mxu0 %v3915
    %3925 = vmatprep.subr.bf16.mxu0 0
    %3926 = vmatpush1.bf16.msra.mxu0 %v3916
    %3927 = vmatprep.subr.bf16.mxu0 0
    %3928 = vmatpush1.bf16.msra.mxu0 %v3917
    %3929 = vmatprep.subr.bf16.mxu0 0
    %3930 = vmatpush1.bf16.msra.mxu0 %v3918
    %3931 = vmatprep.subr.bf16.mxu0 0
    %3932 = vmatpush1.bf16.msra.mxu0 0
    %3933 = vmatprep.subr.bf16.mxu0 0
    %3934 = vmatpush1.bf16.msra.mxu0 0
    %3935 = vmatprep.subr.bf16.mxu0 0
    %3936 = vmatpush1.bf16.msra.mxu0 0
    %3937 = vmatprep.subr.bf16.mxu0 0
    %3938 = vmatpush1.bf16.msra.mxu0 0
    %3939 = vmatprep.subr.bf16.mxu0 0
    %3940 = vmatpush1.bf16.msra.mxu0 0
    %3941 = vmatprep.subr.bf16.mxu0 0
    %3942 = vmatpush1.bf16.msra.mxu0 0
    %3943 = vmatprep.subr.bf16.mxu0 0
    %3944 = vmatpush1.bf16.msra.mxu0 0
    %3945 = vmatprep.subr.bf16.mxu0 0
    %3946 = vmatpush1.bf16.msra.mxu0 0
    %3947 = vmatprep.subr.bf16.mxu0 0
    %3948 = vmatpush1.bf16.msra.mxu0 0
    %3949 = vmatprep.subr.bf16.mxu0 0
    %3950 = vmatpush1.bf16.msra.mxu0 0
    %3951 = vmatprep.subr.bf16.mxu0 0
    %3952 = vmatpush1.bf16.msra.mxu0 0
    %3953 = vmatprep.subr.bf16.mxu0 0
    %3954 = vmatpush1.bf16.msra.mxu0 0
    %3955 = vmatprep.mubr.bf16.mxu0 0
    %3956 = vmatmul.mubr.bf16.gmra.mrb[0].mxu0 %v3857
    %v3957 = vpop.f32.mrb[0].mxu0
    %v3958 = vadd.f32 %v3799, %v3957
    %v3959 = vpop.f32.mrb[0].mxu0
    %v3960 = vpop.f32.mrb[0].mxu0
    %v3961 = vpop.f32.mrb[0].mxu0
    %3962 = vdwg.mxu0
    %v3971 = vunpack.c.l.b16 %v3727
    %v3972 = vunpack.c.l.b16 %v3728
    %v3973 = vunpack.c.l.b16 %v3729
    %v3974 = vunpack.c.l.b16 %v3730
    %v3975 = vunpack.c.l.b16 %v3731
    %v3976 = vunpack.c.l.b16 %v3732
    %v3977 = vunpack.c.l.b16 %v3733
    %v3978 = vunpack.c.l.b16 %v3734
    %v3979 = vpack.c.b16 %v3972, %v3971
    %v3980 = vpack.c.b16 %v3974, %v3973
    %v3981 = vpack.c.b16 %v3976, %v3975
    %v3982 = vpack.c.b16 %v3978, %v3977
    %3987 = vmatprep.subr.bf16.mxu0 0
    %3988 = vmatpush1.bf16.msra.mxu0 %v3979
    %3989 = vmatprep.subr.bf16.mxu0 0
    %3990 = vmatpush1.bf16.msra.mxu0 %v3980
    %3991 = vmatprep.subr.bf16.mxu0 0
    %3992 = vmatpush1.bf16.msra.mxu0 %v3981
    %3993 = vmatprep.subr.bf16.mxu0 0
    %3994 = vmatpush1.bf16.msra.mxu0 %v3982
    %3995 = vmatprep.subr.bf16.mxu0 0
    %3996 = vmatpush1.bf16.msra.mxu0 0
    %3997 = vmatprep.subr.bf16.mxu0 0
    %3998 = vmatpush1.bf16.msra.mxu0 0
    %3999 = vmatprep.subr.bf16.mxu0 0
    %4000 = vmatpush1.bf16.msra.mxu0 0
    %4001 = vmatprep.subr.bf16.mxu0 0
    %4002 = vmatpush1.bf16.msra.mxu0 0
    %4003 = vmatprep.subr.bf16.mxu0 0
    %4004 = vmatpush1.bf16.msra.mxu0 0
    %4005 = vmatprep.subr.bf16.mxu0 0
    %4006 = vmatpush1.bf16.msra.mxu0 0
    %4007 = vmatprep.subr.bf16.mxu0 0
    %4008 = vmatpush1.bf16.msra.mxu0 0
    %4009 = vmatprep.subr.bf16.mxu0 0
    %4010 = vmatpush1.bf16.msra.mxu0 0
    %4011 = vmatprep.subr.bf16.mxu0 0
    %4012 = vmatpush1.bf16.msra.mxu0 0
    %4013 = vmatprep.subr.bf16.mxu0 0
    %4014 = vmatpush1.bf16.msra.mxu0 0
    %4015 = vmatprep.subr.bf16.mxu0 0
    %4016 = vmatpush1.bf16.msra.mxu0 0
    %4017 = vmatprep.subr.bf16.mxu0 0
    %4018 = vmatpush1.bf16.msra.mxu0 0
    %4019 = vmatprep.mubr.bf16.mxu0 0
    %4020 = vmatmul.mubr.bf16.gmra.mrb[0].mxu0 %v3857
    %v4021 = vpop.f32.mrb[0].mxu0
    %v4022 = vadd.f32 %v3803, %v4021
    %v4023 = vpop.f32.mrb[0].mxu0
    %v4024 = vpop.f32.mrb[0].mxu0
    %v4025 = vpop.f32.mrb[0].mxu0
    %4026 = vdwg.mxu0
    %v4035 = vunpack.c.l.b16 %v3735
    %v4036 = vunpack.c.l.b16 %v3736
    %v4037 = vunpack.c.l.b16 %v3737
    %v4038 = vunpack.c.l.b16 %v3738
    %v4039 = vunpack.c.l.b16 %v3739
    %v4040 = vunpack.c.l.b16 %v3740
    %v4041 = vunpack.c.l.b16 %v3741
    %v4042 = vunpack.c.l.b16 %v3742
    %v4043 = vpack.c.b16 %v4036, %v4035
    %v4044 = vpack.c.b16 %v4038, %v4037
    %v4045 = vpack.c.b16 %v4040, %v4039
    %v4046 = vpack.c.b16 %v4042, %v4041
    %4051 = vmatprep.subr.bf16.mxu0 0
    %4052 = vmatpush1.bf16.msra.mxu0 %v4043
    %4053 = vmatprep.subr.bf16.mxu0 0
    %4054 = vmatpush1.bf16.msra.mxu0 %v4044
    %4055 = vmatprep.subr.bf16.mxu0 0
    %4056 = vmatpush1.bf16.msra.mxu0 %v4045
    %4057 = vmatprep.subr.bf16.mxu0 0
    %4058 = vmatpush1.bf16.msra.mxu0 %v4046
    %4059 = vmatprep.subr.bf16.mxu0 0
    %4060 = vmatpush1.bf16.msra.mxu0 0
    %4061 = vmatprep.subr.bf16.mxu0 0
    %4062 = vmatpush1.bf16.msra.mxu0 0
    %4063 = vmatprep.subr.bf16.mxu0 0
    %4064 = vmatpush1.bf16.msra.mxu0 0
    %4065 = vmatprep.subr.bf16.mxu0 0
    %4066 = vmatpush1.bf16.msra.mxu0 0
    %4067 = vmatprep.subr.bf16.mxu0 0
    %4068 = vmatpush1.bf16.msra.mxu0 0
    %4069 = vmatprep.subr.bf16.mxu0 0
    %4070 = vmatpush1.bf16.msra.mxu0 0
    %4071 = vmatprep.subr.bf16.mxu0 0
    %4072 = vmatpush1.bf16.msra.mxu0 0
    %4073 = vmatprep.subr.bf16.mxu0 0
    %4074 = vmatpush1.bf16.msra.mxu0 0
    %4075 = vmatprep.subr.bf16.mxu0 0
    %4076 = vmatpush1.bf16.msra.mxu0 0
    %4077 = vmatprep.subr.bf16.mxu0 0
    %4078 = vmatpush1.bf16.msra.mxu0 0
    %4079 = vmatprep.subr.bf16.mxu0 0
    %4080 = vmatpush1.bf16.msra.mxu0 0
    %4081 = vmatprep.subr.bf16.mxu0 0
    %4082 = vmatpush1.bf16.msra.mxu0 0
    %4083 = vmatprep.mubr.bf16.mxu0 0
    %4084 = vmatmul.mubr.bf16.gmra.mrb[0].mxu0 %v3857
    %v4085 = vpop.f32.mrb[0].mxu0
    %v4086 = vadd.f32 %v3807, %v4085
    %v4087 = vpop.f32.mrb[0].mxu0
    %v4088 = vpop.f32.mrb[0].mxu0
    %v4089 = vpop.f32.mrb[0].mxu0
    %4090 = vdwg.mxu0
    %v4099 = vunpack.c.l.b16 %v3743
    %v4100 = vunpack.c.l.b16 %v3744
    %v4101 = vunpack.c.l.b16 %v3745
    %v4102 = vunpack.c.l.b16 %v3746
    %v4103 = vunpack.c.l.b16 %v3747
    %v4104 = vunpack.c.l.b16 %v3748
    %v4105 = vunpack.c.l.b16 %v3749
    %v4106 = vunpack.c.l.b16 %v3750
    %v4107 = vpack.c.b16 %v4100, %v4099
    %v4108 = vpack.c.b16 %v4102, %v4101
    %v4109 = vpack.c.b16 %v4104, %v4103
    %v4110 = vpack.c.b16 %v4106, %v4105
    %v4116 = vsel %vm91, %v3709, 0
    %4118 = vmatprep.subr.bf16.mxu0 0
    %4119 = vmatpush1.bf16.msra.mxu0 %v4107
    %4120 = vmatprep.subr.bf16.mxu0 0
    %4121 = vmatpush1.bf16.msra.mxu0 %v4108
    %4122 = vmatprep.subr.bf16.mxu0 0
    %4123 = vmatpush1.bf16.msra.mxu0 %v4109
    %4124 = vmatprep.subr.bf16.mxu0 0
    %4125 = vmatpush1.bf16.msra.mxu0 %v4110
    %4126 = vmatprep.subr.bf16.mxu0 0
    %4127 = vmatpush1.bf16.msra.mxu0 0
    %4128 = vmatprep.subr.bf16.mxu0 0
    %4129 = vmatpush1.bf16.msra.mxu0 0
    %4130 = vmatprep.subr.bf16.mxu0 0
    %4131 = vmatpush1.bf16.msra.mxu0 0
    %4132 = vmatprep.subr.bf16.mxu0 0
    %4133 = vmatpush1.bf16.msra.mxu0 0
    %4134 = vmatprep.subr.bf16.mxu0 0
    %4135 = vmatpush1.bf16.msra.mxu0 0
    %4136 = vmatprep.subr.bf16.mxu0 0
    %4137 = vmatpush1.bf16.msra.mxu0 0
    %4138 = vmatprep.subr.bf16.mxu0 0
    %4139 = vmatpush1.bf16.msra.mxu0 0
    %4140 = vmatprep.subr.bf16.mxu0 0
    %4141 = vmatpush1.bf16.msra.mxu0 0
    %4142 = vmatprep.subr.bf16.mxu0 0
    %4143 = vmatpush1.bf16.msra.mxu0 0
    %4144 = vmatprep.subr.bf16.mxu0 0
    %4145 = vmatpush1.bf16.msra.mxu0 0
    %4146 = vmatprep.subr.bf16.mxu0 0
    %4147 = vmatpush1.bf16.msra.mxu0 0
    %4148 = vmatprep.subr.bf16.mxu0 0
    %4149 = vmatpush1.bf16.msra.mxu0 0
    %4150 = vmatprep.mubr.bf16.mxu0 0
    %4151 = vmatmul.mubr.bf16.gmra.mrb[0].mxu0 %v4116
    %v4152 = vpop.f32.mrb[0].mxu0
    %v4153 = vadd.f32 %v3811, %v4152
    %v4154 = vpop.f32.mrb[0].mxu0
    %v4155 = vpop.f32.mrb[0].mxu0
    %v4156 = vpop.f32.mrb[0].mxu0
    %4157 = vdwg.mxu0
    %v4166 = vunpack.c.l.b16 %v3751
    %v4167 = vunpack.c.l.b16 %v3752
    %v4168 = vunpack.c.l.b16 %v3753
    %v4169 = vunpack.c.l.b16 %v3754
    %v4170 = vunpack.c.l.b16 %v3755
    %v4171 = vunpack.c.l.b16 %v3756
    %v4172 = vunpack.c.l.b16 %v3757
    %v4173 = vunpack.c.l.b16 %v3758
    %v4174 = vpack.c.b16 %v4167, %v4166
    %v4175 = vpack.c.b16 %v4169, %v4168
    %v4176 = vpack.c.b16 %v4171, %v4170
    %v4177 = vpack.c.b16 %v4173, %v4172
    %4182 = vmatprep.subr.bf16.mxu0 0
    %4183 = vmatpush1.bf16.msra.mxu0 %v4174
    %4184 = vmatprep.subr.bf16.mxu0 0
    %4185 = vmatpush1.bf16.msra.mxu0 %v4175
    %4186 = vmatprep.subr.bf16.mxu0 0
    %4187 = vmatpush1.bf16.msra.mxu0 %v4176
    %4188 = vmatprep.subr.bf16.mxu0 0
    %4189 = vmatpush1.bf16.msra.mxu0 %v4177
    %4190 = vmatprep.subr.bf16.mxu0 0
    %4191 = vmatpush1.bf16.msra.mxu0 0
    %4192 = vmatprep.subr.bf16.mxu0 0
    %4193 = vmatpush1.bf16.msra.mxu0 0
    %4194 = vmatprep.subr.bf16.mxu0 0
    %4195 = vmatpush1.bf16.msra.mxu0 0
    %4196 = vmatprep.subr.bf16.mxu0 0
    %4197 = vmatpush1.bf16.msra.mxu0 0
    %4198 = vmatprep.subr.bf16.mxu0 0
    %4199 = vmatpush1.bf16.msra.mxu0 0
    %4200 = vmatprep.subr.bf16.mxu0 0
    %4201 = vmatpush1.bf16.msra.mxu0 0
    %4202 = vmatprep.subr.bf16.mxu0 0
    %4203 = vmatpush1.bf16.msra.mxu0 0
    %4204 = vmatprep.subr.bf16.mxu0 0
    %4205 = vmatpush1.bf16.msra.mxu0 0
    %4206 = vmatprep.subr.bf16.mxu0 0
    %4207 = vmatpush1.bf16.msra.mxu0 0
    %4208 = vmatprep.subr.bf16.mxu0 0
    %4209 = vmatpush1.bf16.msra.mxu0 0
    %4210 = vmatprep.subr.bf16.mxu0 0
    %4211 = vmatpush1.bf16.msra.mxu0 0
    %4212 = vmatprep.subr.bf16.mxu0 0
    %4213 = vmatpush1.bf16.msra.mxu0 0
    %4214 = vmatprep.mubr.bf16.mxu0 0
    %4215 = vmatmul.mubr.bf16.gmra.mrb[0].mxu0 %v4116
    %v4216 = vpop.f32.mrb[0].mxu0
    %v4217 = vadd.f32 %v3815, %v4216
    %v4218 = vpop.f32.mrb[0].mxu0
    %v4219 = vpop.f32.mrb[0].mxu0
    %v4220 = vpop.f32.mrb[0].mxu0
    %4221 = vdwg.mxu0
    %v4230 = vunpack.c.l.b16 %v3759
    %v4231 = vunpack.c.l.b16 %v3760
    %v4232 = vunpack.c.l.b16 %v3761
    %v4233 = vunpack.c.l.b16 %v3762
    %v4234 = vunpack.c.l.b16 %v3763
    %v4235 = vunpack.c.l.b16 %v3764
    %v4236 = vunpack.c.l.b16 %v3765
    %v4237 = vunpack.c.l.b16 %v3766
    %v4238 = vpack.c.b16 %v4231, %v4230
    %v4239 = vpack.c.b16 %v4233, %v4232
    %v4240 = vpack.c.b16 %v4235, %v4234
    %v4241 = vpack.c.b16 %v4237, %v4236
    %4246 = vmatprep.subr.bf16.mxu0 0
    %4247 = vmatpush1.bf16.msra.mxu0 %v4238
    %4248 = vmatprep.subr.bf16.mxu0 0
    %4249 = vmatpush1.bf16.msra.mxu0 %v4239
    %4250 = vmatprep.subr.bf16.mxu0 0
    %4251 = vmatpush1.bf16.msra.mxu0 %v4240
    %4252 = vmatprep.subr.bf16.mxu0 0
    %4253 = vmatpush1.bf16.msra.mxu0 %v4241
    %4254 = vmatprep.subr.bf16.mxu0 0
    %4255 = vmatpush1.bf16.msra.mxu0 0
    %4256 = vmatprep.subr.bf16.mxu0 0
    %4257 = vmatpush1.bf16.msra.mxu0 0
    %4258 = vmatprep.subr.bf16.mxu0 0
    %4259 = vmatpush1.bf16.msra.mxu0 0
    %4260 = vmatprep.subr.bf16.mxu0 0
    %4261 = vmatpush1.bf16.msra.mxu0 0
    %4262 = vmatprep.subr.bf16.mxu0 0
    %4263 = vmatpush1.bf16.msra.mxu0 0
    %4264 = vmatprep.subr.bf16.mxu0 0
    %4265 = vmatpush1.bf16.msra.mxu0 0
    %4266 = vmatprep.subr.bf16.mxu0 0
    %4267 = vmatpush1.bf16.msra.mxu0 0
    %4268 = vmatprep.subr.bf16.mxu0 0
    %4269 = vmatpush1.bf16.msra.mxu0 0
    %4270 = vmatprep.subr.bf16.mxu0 0
    %4271 = vmatpush1.bf16.msra.mxu0 0
    %4272 = vmatprep.subr.bf16.mxu0 0
    %4273 = vmatpush1.bf16.msra.mxu0 0
    %4274 = vmatprep.subr.bf16.mxu0 0
    %4275 = vmatpush1.bf16.msra.mxu0 0
    %4276 = vmatprep.subr.bf16.mxu0 0
    %4277 = vmatpush1.bf16.msra.mxu0 0
    %4278 = vmatprep.mubr.bf16.mxu0 0
    %4279 = vmatmul.mubr.bf16.gmra.mrb[0].mxu0 %v4116
    %v4280 = vpop.f32.mrb[0].mxu0
    %v4281 = vadd.f32 %v3819, %v4280
    %v4282 = vpop.f32.mrb[0].mxu0
    %v4283 = vpop.f32.mrb[0].mxu0
    %v4284 = vpop.f32.mrb[0].mxu0
    %4285 = vdwg.mxu0
    %v4294 = vunpack.c.l.b16 %v3767
    %v4295 = vunpack.c.l.b16 %v3768
    %v4296 = vunpack.c.l.b16 %v3769
    %v4297 = vunpack.c.l.b16 %v3770
    %v4298 = vunpack.c.l.b16 %v3771
    %v4299 = vunpack.c.l.b16 %v3772
    %v4300 = vunpack.c.l.b16 %v3773
    %v4301 = vunpack.c.l.b16 %v3774
    %v4302 = vpack.c.b16 %v4295, %v4294
    %v4303 = vpack.c.b16 %v4297, %v4296
    %v4304 = vpack.c.b16 %v4299, %v4298
    %v4305 = vpack.c.b16 %v4301, %v4300
    %4310 = vmatprep.subr.bf16.mxu0 0
    %4311 = vmatpush1.bf16.msra.mxu0 %v4302
    %4312 = vmatprep.subr.bf16.mxu0 0
    %4313 = vmatpush1.bf16.msra.mxu0 %v4303
    %4314 = vmatprep.subr.bf16.mxu0 0
    %4315 = vmatpush1.bf16.msra.mxu0 %v4304
    %4316 = vmatprep.subr.bf16.mxu0 0
    %4317 = vmatpush1.bf16.msra.mxu0 %v4305
    %4318 = vmatprep.subr.bf16.mxu0 0
    %4319 = vmatpush1.bf16.msra.mxu0 0
    %4320 = vmatprep.subr.bf16.mxu0 0
    %4321 = vmatpush1.bf16.msra.mxu0 0
    %4322 = vmatprep.subr.bf16.mxu0 0
    %4323 = vmatpush1.bf16.msra.mxu0 0
    %4324 = vmatprep.subr.bf16.mxu0 0
    %4325 = vmatpush1.bf16.msra.mxu0 0
    %4326 = vmatprep.subr.bf16.mxu0 0
    %4327 = vmatpush1.bf16.msra.mxu0 0
    %4328 = vmatprep.subr.bf16.mxu0 0
    %4329 = vmatpush1.bf16.msra.mxu0 0
    %4330 = vmatprep.subr.bf16.mxu0 0
    %4331 = vmatpush1.bf16.msra.mxu0 0
    %4332 = vmatprep.subr.bf16.mxu0 0
    %4333 = vmatpush1.bf16.msra.mxu0 0
    %4334 = vmatprep.subr.bf16.mxu0 0
    %4335 = vmatpush1.bf16.msra.mxu0 0
    %4336 = vmatprep.subr.bf16.mxu0 0
    %4337 = vmatpush1.bf16.msra.mxu0 0
    %4338 = vmatprep.subr.bf16.mxu0 0
    %4339 = vmatpush1.bf16.msra.mxu0 0
    %4340 = vmatprep.subr.bf16.mxu0 0
    %4341 = vmatpush1.bf16.msra.mxu0 0
    %4342 = vmatprep.mubr.bf16.mxu0 0
    %4343 = vmatmul.mubr.bf16.gmra.mrb[0].mxu0 %v4116
    %v4344 = vpop.f32.mrb[0].mxu0
    %v4345 = vadd.f32 %v3823, %v4344
    %v4346 = vpop.f32.mrb[0].mxu0
    %v4347 = vpop.f32.mrb[0].mxu0
    %v4348 = vpop.f32.mrb[0].mxu0
    %4349 = vdwg.mxu0
    %s4350 = scalar_lea.vmem %s5, 256
    %v4351 = vld [vmem:[%s4350] sm:$0xf]
    %v4352 = vld [vmem:[%s4350 + $0x4] sm:$0xf]
    %v4353 = vld [vmem:[%s4350 + $0x8] sm:$0xf]
    %v4354 = vld [vmem:[%s4350 + $0xc] sm:$0xf]
    %v4355 = vld [vmem:[%s4350 + $0x10] sm:$0xf]
    %v4356 = vld [vmem:[%s4350 + $0x14] sm:$0xf]
    %v4357 = vld [vmem:[%s4350 + $0x18] sm:$0xf]
    %v4358 = vld [vmem:[%s4350 + $0x1c] sm:$0xf]
    %v4359 = vld [vmem:[%s4350 + $0x20] sm:$0xf]
    %v4360 = vld [vmem:[%s4350 + $0x24] sm:$0xf]
    %v4361 = vld [vmem:[%s4350 + $0x28] sm:$0xf]
    %v4362 = vld [vmem:[%s4350 + $0x2c] sm:$0xf]
    %v4363 = vld [vmem:[%s4350 + $0x30] sm:$0xf]
    %v4364 = vld [vmem:[%s4350 + $0x34] sm:$0xf]
    %v4365 = vld [vmem:[%s4350 + $0x38] sm:$0xf]
    %v4366 = vld [vmem:[%s4350 + $0x3c] sm:$0xf]
    %v4367 = vld [vmem:[%s4350 + $0x40] sm:$0xf]
    %v4368 = vld [vmem:[%s4350 + $0x44] sm:$0xf]
    %v4369 = vld [vmem:[%s4350 + $0x48] sm:$0xf]
    %v4370 = vld [vmem:[%s4350 + $0x4c] sm:$0xf]
    %v4371 = vld [vmem:[%s4350 + $0x50] sm:$0xf]
    %v4372 = vld [vmem:[%s4350 + $0x54] sm:$0xf]
    %v4373 = vld [vmem:[%s4350 + $0x58] sm:$0xf]
    %v4374 = vld [vmem:[%s4350 + $0x5c] sm:$0xf]
    %v4375 = vld [vmem:[%s4350 + $0x60] sm:$0xf]
    %v4376 = vld [vmem:[%s4350 + $0x64] sm:$0xf]
    %v4377 = vld [vmem:[%s4350 + $0x68] sm:$0xf]
    %v4378 = vld [vmem:[%s4350 + $0x6c] sm:$0xf]
    %v4379 = vld [vmem:[%s4350 + $0x70] sm:$0xf]
    %v4380 = vld [vmem:[%s4350 + $0x74] sm:$0xf]
    %v4381 = vld [vmem:[%s4350 + $0x78] sm:$0xf]
    %v4382 = vld [vmem:[%s4350 + $0x7c] sm:$0xf]
    %v4383 = vld [vmem:[%s4350 + $0x80] sm:$0xf]
    %v4384 = vld [vmem:[%s4350 + $0x84] sm:$0xf]
    %v4385 = vld [vmem:[%s4350 + $0x88] sm:$0xf]
    %v4386 = vld [vmem:[%s4350 + $0x8c] sm:$0xf]
    %v4387 = vld [vmem:[%s4350 + $0x90] sm:$0xf]
    %v4388 = vld [vmem:[%s4350 + $0x94] sm:$0xf]
    %v4389 = vld [vmem:[%s4350 + $0x98] sm:$0xf]
    %v4390 = vld [vmem:[%s4350 + $0x9c] sm:$0xf]
    %v4391 = vld [vmem:[%s4350 + $0xa0] sm:$0xf]
    %v4392 = vld [vmem:[%s4350 + $0xa4] sm:$0xf]
    %v4393 = vld [vmem:[%s4350 + $0xa8] sm:$0xf]
    %v4394 = vld [vmem:[%s4350 + $0xac] sm:$0xf]
    %v4395 = vld [vmem:[%s4350 + $0xb0] sm:$0xf]
    %v4396 = vld [vmem:[%s4350 + $0xb4] sm:$0xf]
    %v4397 = vld [vmem:[%s4350 + $0xb8] sm:$0xf]
    %v4398 = vld [vmem:[%s4350 + $0xbc] sm:$0xf]
    %v4399 = vld [vmem:[%s4350 + $0xc0] sm:$0xf]
    %v4400 = vld [vmem:[%s4350 + $0xc4] sm:$0xf]
    %v4401 = vld [vmem:[%s4350 + $0xc8] sm:$0xf]
    %v4402 = vld [vmem:[%s4350 + $0xcc] sm:$0xf]
    %v4403 = vld [vmem:[%s4350 + $0xd0] sm:$0xf]
    %v4404 = vld [vmem:[%s4350 + $0xd4] sm:$0xf]
    %v4405 = vld [vmem:[%s4350 + $0xd8] sm:$0xf]
    %v4406 = vld [vmem:[%s4350 + $0xdc] sm:$0xf]
    %v4407 = vld [vmem:[%s4350 + $0xe0] sm:$0xf]
    %v4408 = vld [vmem:[%s4350 + $0xe4] sm:$0xf]
    %v4409 = vld [vmem:[%s4350 + $0xe8] sm:$0xf]
    %v4410 = vld [vmem:[%s4350 + $0xec] sm:$0xf]
    %v4411 = vld [vmem:[%s4350 + $0xf0] sm:$0xf]
    %v4412 = vld [vmem:[%s4350 + $0xf4] sm:$0xf]
    %v4413 = vld [vmem:[%s4350 + $0xf8] sm:$0xf]
    %v4414 = vld [vmem:[%s4350 + $0xfc] sm:$0xf]
    %s4415 = scalar_lea.vmem %s8, 8
    %v4416 = vld [vmem:[%s4415] sm:$0x1]
    %v4417 = vld [vmem:[%s4415 + $0x1] sm:$0x1]
    %v4418 = vld [vmem:[%s4415 + $0x2] sm:$0x1]
    %v4419 = vld [vmem:[%s4415 + $0x3] sm:$0x1]
    %v4420 = vld [vmem:[%s4415 + $0x4] sm:$0x1]
    %v4421 = vld [vmem:[%s4415 + $0x5] sm:$0x1]
    %v4422 = vld [vmem:[%s4415 + $0x6] sm:$0x1]
    %v4423 = vld [vmem:[%s4415 + $0x7] sm:$0x1]
    %v4432 = vlaneseq
    %v4433 = vshrl.u32 %v4432, 7
    %v4434 = vsub.s32 0, %v4433
    %v4435 = vrot.slane %v4416, %v4434
    %v4436 = vlaneseq
    %v4437 = vshrl.u32 %v4436, 7
    %v4438 = vsub.s32 0, %v4437
    %v4439 = vrot.slane %v4417, %v4438
    %v4440 = vlaneseq
    %v4441 = vshrl.u32 %v4440, 7
    %v4442 = vsub.s32 0, %v4441
    %v4443 = vrot.slane %v4418, %v4442
    %v4444 = vlaneseq
    %v4445 = vshrl.u32 %v4444, 7
    %v4446 = vsub.s32 0, %v4445
    %v4447 = vrot.slane %v4419, %v4446
    %v4448 = vlaneseq
    %v4449 = vshrl.u32 %v4448, 7
    %v4450 = vsub.s32 0, %v4449
    %v4451 = vrot.slane %v4420, %v4450
    %v4452 = vlaneseq
    %v4453 = vshrl.u32 %v4452, 7
    %v4454 = vsub.s32 0, %v4453
    %v4455 = vrot.slane %v4421, %v4454
    %v4456 = vlaneseq
    %v4457 = vshrl.u32 %v4456, 7
    %v4458 = vsub.s32 0, %v4457
    %v4459 = vrot.slane %v4422, %v4458
    %v4460 = vlaneseq
    %v4461 = vshrl.u32 %v4460, 7
    %v4462 = vsub.s32 0, %v4461
    %v4463 = vrot.slane %v4423, %v4462
    %v4480 = vunpack.c.l.b16 %v4351
    %v4481 = vunpack.c.l.b16 %v4352
    %v4482 = vunpack.c.l.b16 %v4353
    %v4483 = vunpack.c.l.b16 %v4354
    %v4484 = vunpack.c.l.b16 %v4355
    %v4485 = vunpack.c.l.b16 %v4356
    %v4486 = vunpack.c.l.b16 %v4357
    %v4487 = vunpack.c.l.b16 %v4358
    %v4488 = vpack.c.b16 %v4481, %v4480
    %v4489 = vpack.c.b16 %v4483, %v4482
    %v4490 = vpack.c.b16 %v4485, %v4484
    %v4491 = vpack.c.b16 %v4487, %v4486
    %4496 = vmatprep.subr.bf16.mxu0 0
    %4497 = vmatpush1.bf16.msra.mxu0 %v4488
    %4498 = vmatprep.subr.bf16.mxu0 0
    %4499 = vmatpush1.bf16.msra.mxu0 %v4489
    %4500 = vmatprep.subr.bf16.mxu0 0
    %4501 = vmatpush1.bf16.msra.mxu0 %v4490
    %4502 = vmatprep.subr.bf16.mxu0 0
    %4503 = vmatpush1.bf16.msra.mxu0 %v4491
    %4504 = vmatprep.subr.bf16.mxu0 0
    %4505 = vmatpush1.bf16.msra.mxu0 0
    %4506 = vmatprep.subr.bf16.mxu0 0
    %4507 = vmatpush1.bf16.msra.mxu0 0
    %4508 = vmatprep.subr.bf16.mxu0 0
    %4509 = vmatpush1.bf16.msra.mxu0 0
    %4510 = vmatprep.subr.bf16.mxu0 0
    %4511 = vmatpush1.bf16.msra.mxu0 0
    %4512 = vmatprep.subr.bf16.mxu0 0
    %4513 = vmatpush1.bf16.msra.mxu0 0
    %4514 = vmatprep.subr.bf16.mxu0 0
    %4515 = vmatpush1.bf16.msra.mxu0 0
    %4516 = vmatprep.subr.bf16.mxu0 0
    %4517 = vmatpush1.bf16.msra.mxu0 0
    %4518 = vmatprep.subr.bf16.mxu0 0
    %4519 = vmatpush1.bf16.msra.mxu0 0
    %4520 = vmatprep.subr.bf16.mxu0 0
    %4521 = vmatpush1.bf16.msra.mxu0 0
    %4522 = vmatprep.subr.bf16.mxu0 0
    %4523 = vmatpush1.bf16.msra.mxu0 0
    %4524 = vmatprep.subr.bf16.mxu0 0
    %4525 = vmatpush1.bf16.msra.mxu0 0
    %4526 = vmatprep.subr.bf16.mxu0 0
    %4527 = vmatpush1.bf16.msra.mxu0 0
    %4528 = vmatprep.mubr.bf16.mxu0 0
    %4529 = vmatmul.mubr.bf16.gmra.mrb[0].mxu0 %v3857
    %v4530 = vpop.f32.mrb[0].mxu0
    %v4531 = vadd.f32 %v4435, %v4530
    %v4532 = vpop.f32.mrb[0].mxu0
    %v4533 = vpop.f32.mrb[0].mxu0
    %v4534 = vpop.f32.mrb[0].mxu0
    %4535 = vdwg.mxu0
    %v4544 = vunpack.c.l.b16 %v4359
    %v4545 = vunpack.c.l.b16 %v4360
    %v4546 = vunpack.c.l.b16 %v4361
    %v4547 = vunpack.c.l.b16 %v4362
    %v4548 = vunpack.c.l.b16 %v4363
    %v4549 = vunpack.c.l.b16 %v4364
    %v4550 = vunpack.c.l.b16 %v4365
    %v4551 = vunpack.c.l.b16 %v4366
    %v4552 = vpack.c.b16 %v4545, %v4544
    %v4553 = vpack.c.b16 %v4547, %v4546
    %v4554 = vpack.c.b16 %v4549, %v4548
    %v4555 = vpack.c.b16 %v4551, %v4550
    %4560 = vmatprep.subr.bf16.mxu0 0
    %4561 = vmatpush1.bf16.msra.mxu0 %v4552
    %4562 = vmatprep.subr.bf16.mxu0 0
    %4563 = vmatpush1.bf16.msra.mxu0 %v4553
    %4564 = vmatprep.subr.bf16.mxu0 0
    %4565 = vmatpush1.bf16.msra.mxu0 %v4554
    %4566 = vmatprep.subr.bf16.mxu0 0
    %4567 = vmatpush1.bf16.msra.mxu0 %v4555
    %4568 = vmatprep.subr.bf16.mxu0 0
    %4569 = vmatpush1.bf16.msra.mxu0 0
    %4570 = vmatprep.subr.bf16.mxu0 0
    %4571 = vmatpush1.bf16.msra.mxu0 0
    %4572 = vmatprep.subr.bf16.mxu0 0
    %4573 = vmatpush1.bf16.msra.mxu0 0
    %4574 = vmatprep.subr.bf16.mxu0 0
    %4575 = vmatpush1.bf16.msra.mxu0 0
    %4576 = vmatprep.subr.bf16.mxu0 0
    %4577 = vmatpush1.bf16.msra.mxu0 0
    %4578 = vmatprep.subr.bf16.mxu0 0
    %4579 = vmatpush1.bf16.msra.mxu0 0
    %4580 = vmatprep.subr.bf16.mxu0 0
    %4581 = vmatpush1.bf16.msra.mxu0 0
    %4582 = vmatprep.subr.bf16.mxu0 0
    %4583 = vmatpush1.bf16.msra.mxu0 0
    %4584 = vmatprep.subr.bf16.mxu0 0
    %4585 = vmatpush1.bf16.msra.mxu0 0
    %4586 = vmatprep.subr.bf16.mxu0 0
    %4587 = vmatpush1.bf16.msra.mxu0 0
    %4588 = vmatprep.subr.bf16.mxu0 0
    %4589 = vmatpush1.bf16.msra.mxu0 0
    %4590 = vmatprep.subr.bf16.mxu0 0
    %4591 = vmatpush1.bf16.msra.mxu0 0
    %4592 = vmatprep.mubr.bf16.mxu0 0
    %4593 = vmatmul.mubr.bf16.gmra.mrb[0].mxu0 %v3857
    %v4594 = vpop.f32.mrb[0].mxu0
    %v4595 = vadd.f32 %v4439, %v4594
    %v4596 = vpop.f32.mrb[0].mxu0
    %v4597 = vpop.f32.mrb[0].mxu0
    %v4598 = vpop.f32.mrb[0].mxu0
    %4599 = vdwg.mxu0
    %v4608 = vunpack.c.l.b16 %v4367
    %v4609 = vunpack.c.l.b16 %v4368
    %v4610 = vunpack.c.l.b16 %v4369
    %v4611 = vunpack.c.l.b16 %v4370
    %v4612 = vunpack.c.l.b16 %v4371
    %v4613 = vunpack.c.l.b16 %v4372
    %v4614 = vunpack.c.l.b16 %v4373
    %v4615 = vunpack.c.l.b16 %v4374
    %v4616 = vpack.c.b16 %v4609, %v4608
    %v4617 = vpack.c.b16 %v4611, %v4610
    %v4618 = vpack.c.b16 %v4613, %v4612
    %v4619 = vpack.c.b16 %v4615, %v4614
    %4624 = vmatprep.subr.bf16.mxu0 0
    %4625 = vmatpush1.bf16.msra.mxu0 %v4616
    %4626 = vmatprep.subr.bf16.mxu0 0
    %4627 = vmatpush1.bf16.msra.mxu0 %v4617
    %4628 = vmatprep.subr.bf16.mxu0 0
    %4629 = vmatpush1.bf16.msra.mxu0 %v4618
    %4630 = vmatprep.subr.bf16.mxu0 0
    %4631 = vmatpush1.bf16.msra.mxu0 %v4619
    %4632 = vmatprep.subr.bf16.mxu0 0
    %4633 = vmatpush1.bf16.msra.mxu0 0
    %4634 = vmatprep.subr.bf16.mxu0 0
    %4635 = vmatpush1.bf16.msra.mxu0 0
    %4636 = vmatprep.subr.bf16.mxu0 0
    %4637 = vmatpush1.bf16.msra.mxu0 0
    %4638 = vmatprep.subr.bf16.mxu0 0
    %4639 = vmatpush1.bf16.msra.mxu0 0
    %4640 = vmatprep.subr.bf16.mxu0 0
    %4641 = vmatpush1.bf16.msra.mxu0 0
    %4642 = vmatprep.subr.bf16.mxu0 0
    %4643 = vmatpush1.bf16.msra.mxu0 0
    %4644 = vmatprep.subr.bf16.mxu0 0
    %4645 = vmatpush1.bf16.msra.mxu0 0
    %4646 = vmatprep.subr.bf16.mxu0 0
    %4647 = vmatpush1.bf16.msra.mxu0 0
    %4648 = vmatprep.subr.bf16.mxu0 0
    %4649 = vmatpush1.bf16.msra.mxu0 0
    %4650 = vmatprep.subr.bf16.mxu0 0
    %4651 = vmatpush1.bf16.msra.mxu0 0
    %4652 = vmatprep.subr.bf16.mxu0 0
    %4653 = vmatpush1.bf16.msra.mxu0 0
    %4654 = vmatprep.subr.bf16.mxu0 0
    %4655 = vmatpush1.bf16.msra.mxu0 0
    %4656 = vmatprep.mubr.bf16.mxu0 0
    %4657 = vmatmul.mubr.bf16.gmra.mrb[0].mxu0 %v3857
    %v4658 = vpop.f32.mrb[0].mxu0
    %v4659 = vadd.f32 %v4443, %v4658
    %v4660 = vpop.f32.mrb[0].mxu0
    %v4661 = vpop.f32.mrb[0].mxu0
    %v4662 = vpop.f32.mrb[0].mxu0
    %4663 = vdwg.mxu0
    %v4672 = vunpack.c.l.b16 %v4375
    %v4673 = vunpack.c.l.b16 %v4376
    %v4674 = vunpack.c.l.b16 %v4377
    %v4675 = vunpack.c.l.b16 %v4378
    %v4676 = vunpack.c.l.b16 %v4379
    %v4677 = vunpack.c.l.b16 %v4380
    %v4678 = vunpack.c.l.b16 %v4381
    %v4679 = vunpack.c.l.b16 %v4382
    %v4680 = vpack.c.b16 %v4673, %v4672
    %v4681 = vpack.c.b16 %v4675, %v4674
    %v4682 = vpack.c.b16 %v4677, %v4676
    %v4683 = vpack.c.b16 %v4679, %v4678
    %4688 = vmatprep.subr.bf16.mxu0 0
    %4689 = vmatpush1.bf16.msra.mxu0 %v4680
    %4690 = vmatprep.subr.bf16.mxu0 0
    %4691 = vmatpush1.bf16.msra.mxu0 %v4681
    %4692 = vmatprep.subr.bf16.mxu0 0
    %4693 = vmatpush1.bf16.msra.mxu0 %v4682
    %4694 = vmatprep.subr.bf16.mxu0 0
    %4695 = vmatpush1.bf16.msra.mxu0 %v4683
    %4696 = vmatprep.subr.bf16.mxu0 0
    %4697 = vmatpush1.bf16.msra.mxu0 0
    %4698 = vmatprep.subr.bf16.mxu0 0
    %4699 = vmatpush1.bf16.msra.mxu0 0
    %4700 = vmatprep.subr.bf16.mxu0 0
    %4701 = vmatpush1.bf16.msra.mxu0 0
    %4702 = vmatprep.subr.bf16.mxu0 0
    %4703 = vmatpush1.bf16.msra.mxu0 0
    %4704 = vmatprep.subr.bf16.mxu0 0
    %4705 = vmatpush1.bf16.msra.mxu0 0
    %4706 = vmatprep.subr.bf16.mxu0 0
    %4707 = vmatpush1.bf16.msra.mxu0 0
    %4708 = vmatprep.subr.bf16.mxu0 0
    %4709 = vmatpush1.bf16.msra.mxu0 0
    %4710 = vmatprep.subr.bf16.mxu0 0
    %4711 = vmatpush1.bf16.msra.mxu0 0
    %4712 = vmatprep.subr.bf16.mxu0 0
    %4713 = vmatpush1.bf16.msra.mxu0 0
    %4714 = vmatprep.subr.bf16.mxu0 0
    %4715 = vmatpush1.bf16.msra.mxu0 0
    %4716 = vmatprep.subr.bf16.mxu0 0
    %4717 = vmatpush1.bf16.msra.mxu0 0
    %4718 = vmatprep.subr.bf16.mxu0 0
    %4719 = vmatpush1.bf16.msra.mxu0 0
    %4720 = vmatprep.mubr.bf16.mxu0 0
    %4721 = vmatmul.mubr.bf16.gmra.mrb[0].mxu0 %v3857
    %v4722 = vpop.f32.mrb[0].mxu0
    %v4723 = vadd.f32 %v4447, %v4722
    %v4724 = vpop.f32.mrb[0].mxu0
    %v4725 = vpop.f32.mrb[0].mxu0
    %v4726 = vpop.f32.mrb[0].mxu0
    %4727 = vdwg.mxu0
    %v4736 = vunpack.c.l.b16 %v4383
    %v4737 = vunpack.c.l.b16 %v4384
    %v4738 = vunpack.c.l.b16 %v4385
    %v4739 = vunpack.c.l.b16 %v4386
    %v4740 = vunpack.c.l.b16 %v4387
    %v4741 = vunpack.c.l.b16 %v4388
    %v4742 = vunpack.c.l.b16 %v4389
    %v4743 = vunpack.c.l.b16 %v4390
    %v4744 = vpack.c.b16 %v4737, %v4736
    %v4745 = vpack.c.b16 %v4739, %v4738
    %v4746 = vpack.c.b16 %v4741, %v4740
    %v4747 = vpack.c.b16 %v4743, %v4742
    %4752 = vmatprep.subr.bf16.mxu0 0
    %4753 = vmatpush1.bf16.msra.mxu0 %v4744
    %4754 = vmatprep.subr.bf16.mxu0 0
    %4755 = vmatpush1.bf16.msra.mxu0 %v4745
    %4756 = vmatprep.subr.bf16.mxu0 0
    %4757 = vmatpush1.bf16.msra.mxu0 %v4746
    %4758 = vmatprep.subr.bf16.mxu0 0
    %4759 = vmatpush1.bf16.msra.mxu0 %v4747
    %4760 = vmatprep.subr.bf16.mxu0 0
    %4761 = vmatpush1.bf16.msra.mxu0 0
    %4762 = vmatprep.subr.bf16.mxu0 0
    %4763 = vmatpush1.bf16.msra.mxu0 0
    %4764 = vmatprep.subr.bf16.mxu0 0
    %4765 = vmatpush1.bf16.msra.mxu0 0
    %4766 = vmatprep.subr.bf16.mxu0 0
    %4767 = vmatpush1.bf16.msra.mxu0 0
    %4768 = vmatprep.subr.bf16.mxu0 0
    %4769 = vmatpush1.bf16.msra.mxu0 0
    %4770 = vmatprep.subr.bf16.mxu0 0
    %4771 = vmatpush1.bf16.msra.mxu0 0
    %4772 = vmatprep.subr.bf16.mxu0 0
    %4773 = vmatpush1.bf16.msra.mxu0 0
    %4774 = vmatprep.subr.bf16.mxu0 0
    %4775 = vmatpush1.bf16.msra.mxu0 0
    %4776 = vmatprep.subr.bf16.mxu0 0
    %4777 = vmatpush1.bf16.msra.mxu0 0
    %4778 = vmatprep.subr.bf16.mxu0 0
    %4779 = vmatpush1.bf16.msra.mxu0 0
    %4780 = vmatprep.subr.bf16.mxu0 0
    %4781 = vmatpush1.bf16.msra.mxu0 0
    %4782 = vmatprep.subr.bf16.mxu0 0
    %4783 = vmatpush1.bf16.msra.mxu0 0
    %4784 = vmatprep.mubr.bf16.mxu0 0
    %4785 = vmatmul.mubr.bf16.gmra.mrb[0].mxu0 %v4116
    %v4786 = vpop.f32.mrb[0].mxu0
    %v4787 = vadd.f32 %v4451, %v4786
    %v4788 = vpop.f32.mrb[0].mxu0
    %v4789 = vpop.f32.mrb[0].mxu0
    %v4790 = vpop.f32.mrb[0].mxu0
    %4791 = vdwg.mxu0
    %v4800 = vunpack.c.l.b16 %v4391
    %v4801 = vunpack.c.l.b16 %v4392
    %v4802 = vunpack.c.l.b16 %v4393
    %v4803 = vunpack.c.l.b16 %v4394
    %v4804 = vunpack.c.l.b16 %v4395
    %v4805 = vunpack.c.l.b16 %v4396
    %v4806 = vunpack.c.l.b16 %v4397
    %v4807 = vunpack.c.l.b16 %v4398
    %v4808 = vpack.c.b16 %v4801, %v4800
    %v4809 = vpack.c.b16 %v4803, %v4802
    %v4810 = vpack.c.b16 %v4805, %v4804
    %v4811 = vpack.c.b16 %v4807, %v4806
    %4816 = vmatprep.subr.bf16.mxu0 0
    %4817 = vmatpush1.bf16.msra.mxu0 %v4808
    %4818 = vmatprep.subr.bf16.mxu0 0
    %4819 = vmatpush1.bf16.msra.mxu0 %v4809
    %4820 = vmatprep.subr.bf16.mxu0 0
    %4821 = vmatpush1.bf16.msra.mxu0 %v4810
    %4822 = vmatprep.subr.bf16.mxu0 0
    %4823 = vmatpush1.bf16.msra.mxu0 %v4811
    %4824 = vmatprep.subr.bf16.mxu0 0
    %4825 = vmatpush1.bf16.msra.mxu0 0
    %4826 = vmatprep.subr.bf16.mxu0 0
    %4827 = vmatpush1.bf16.msra.mxu0 0
    %4828 = vmatprep.subr.bf16.mxu0 0
    %4829 = vmatpush1.bf16.msra.mxu0 0
    %4830 = vmatprep.subr.bf16.mxu0 0
    %4831 = vmatpush1.bf16.msra.mxu0 0
    %4832 = vmatprep.subr.bf16.mxu0 0
    %4833 = vmatpush1.bf16.msra.mxu0 0
    %4834 = vmatprep.subr.bf16.mxu0 0
    %4835 = vmatpush1.bf16.msra.mxu0 0
    %4836 = vmatprep.subr.bf16.mxu0 0
    %4837 = vmatpush1.bf16.msra.mxu0 0
    %4838 = vmatprep.subr.bf16.mxu0 0
    %4839 = vmatpush1.bf16.msra.mxu0 0
    %4840 = vmatprep.subr.bf16.mxu0 0
    %4841 = vmatpush1.bf16.msra.mxu0 0
    %4842 = vmatprep.subr.bf16.mxu0 0
    %4843 = vmatpush1.bf16.msra.mxu0 0
    %4844 = vmatprep.subr.bf16.mxu0 0
    %4845 = vmatpush1.bf16.msra.mxu0 0
    %4846 = vmatprep.subr.bf16.mxu0 0
    %4847 = vmatpush1.bf16.msra.mxu0 0
    %4848 = vmatprep.mubr.bf16.mxu0 0
    %4849 = vmatmul.mubr.bf16.gmra.mrb[0].mxu0 %v4116
    %v4850 = vpop.f32.mrb[0].mxu0
    %v4851 = vadd.f32 %v4455, %v4850
    %v4852 = vpop.f32.mrb[0].mxu0
    %v4853 = vpop.f32.mrb[0].mxu0
    %v4854 = vpop.f32.mrb[0].mxu0
    %4855 = vdwg.mxu0
    %v4864 = vunpack.c.l.b16 %v4399
    %v4865 = vunpack.c.l.b16 %v4400
    %v4866 = vunpack.c.l.b16 %v4401
    %v4867 = vunpack.c.l.b16 %v4402
    %v4868 = vunpack.c.l.b16 %v4403
    %v4869 = vunpack.c.l.b16 %v4404
    %v4870 = vunpack.c.l.b16 %v4405
    %v4871 = vunpack.c.l.b16 %v4406
    %v4872 = vpack.c.b16 %v4865, %v4864
    %v4873 = vpack.c.b16 %v4867, %v4866
    %v4874 = vpack.c.b16 %v4869, %v4868
    %v4875 = vpack.c.b16 %v4871, %v4870
    %4880 = vmatprep.subr.bf16.mxu0 0
    %4881 = vmatpush1.bf16.msra.mxu0 %v4872
    %4882 = vmatprep.subr.bf16.mxu0 0
    %4883 = vmatpush1.bf16.msra.mxu0 %v4873
    %4884 = vmatprep.subr.bf16.mxu0 0
    %4885 = vmatpush1.bf16.msra.mxu0 %v4874
    %4886 = vmatprep.subr.bf16.mxu0 0
    %4887 = vmatpush1.bf16.msra.mxu0 %v4875
    %4888 = vmatprep.subr.bf16.mxu0 0
    %4889 = vmatpush1.bf16.msra.mxu0 0
    %4890 = vmatprep.subr.bf16.mxu0 0
    %4891 = vmatpush1.bf16.msra.mxu0 0
    %4892 = vmatprep.subr.bf16.mxu0 0
    %4893 = vmatpush1.bf16.msra.mxu0 0
    %4894 = vmatprep.subr.bf16.mxu0 0
    %4895 = vmatpush1.bf16.msra.mxu0 0
    %4896 = vmatprep.subr.bf16.mxu0 0
    %4897 = vmatpush1.bf16.msra.mxu0 0
    %4898 = vmatprep.subr.bf16.mxu0 0
    %4899 = vmatpush1.bf16.msra.mxu0 0
    %4900 = vmatprep.subr.bf16.mxu0 0
    %4901 = vmatpush1.bf16.msra.mxu0 0
    %4902 = vmatprep.subr.bf16.mxu0 0
    %4903 = vmatpush1.bf16.msra.mxu0 0
    %4904 = vmatprep.subr.bf16.mxu0 0
    %4905 = vmatpush1.bf16.msra.mxu0 0
    %4906 = vmatprep.subr.bf16.mxu0 0
    %4907 = vmatpush1.bf16.msra.mxu0 0
    %4908 = vmatprep.subr.bf16.mxu0 0
    %4909 = vmatpush1.bf16.msra.mxu0 0
    %4910 = vmatprep.subr.bf16.mxu0 0
    %4911 = vmatpush1.bf16.msra.mxu0 0
    %4912 = vmatprep.mubr.bf16.mxu0 0
    %4913 = vmatmul.mubr.bf16.gmra.mrb[0].mxu0 %v4116
    %v4914 = vpop.f32.mrb[0].mxu0
    %v4915 = vadd.f32 %v4459, %v4914
    %v4916 = vpop.f32.mrb[0].mxu0
    %v4917 = vpop.f32.mrb[0].mxu0
    %v4918 = vpop.f32.mrb[0].mxu0
    %4919 = vdwg.mxu0
    %v4928 = vunpack.c.l.b16 %v4407
    %v4929 = vunpack.c.l.b16 %v4408
    %v4930 = vunpack.c.l.b16 %v4409
    %v4931 = vunpack.c.l.b16 %v4410
    %v4932 = vunpack.c.l.b16 %v4411
    %v4933 = vunpack.c.l.b16 %v4412
    %v4934 = vunpack.c.l.b16 %v4413
    %v4935 = vunpack.c.l.b16 %v4414
    %v4936 = vpack.c.b16 %v4929, %v4928
    %v4937 = vpack.c.b16 %v4931, %v4930
    %v4938 = vpack.c.b16 %v4933, %v4932
    %v4939 = vpack.c.b16 %v4935, %v4934
    %4944 = vmatprep.subr.bf16.mxu0 0
    %4945 = vmatpush1.bf16.msra.mxu0 %v4936
    %4946 = vmatprep.subr.bf16.mxu0 0
    %4947 = vmatpush1.bf16.msra.mxu0 %v4937
    %4948 = vmatprep.subr.bf16.mxu0 0
    %4949 = vmatpush1.bf16.msra.mxu0 %v4938
    %4950 = vmatprep.subr.bf16.mxu0 0
    %4951 = vmatpush1.bf16.msra.mxu0 %v4939
    %4952 = vmatprep.subr.bf16.mxu0 0
    %4953 = vmatpush1.bf16.msra.mxu0 0
    %4954 = vmatprep.subr.bf16.mxu0 0
    %4955 = vmatpush1.bf16.msra.mxu0 0
    %4956 = vmatprep.subr.bf16.mxu0 0
    %4957 = vmatpush1.bf16.msra.mxu0 0
    %4958 = vmatprep.subr.bf16.mxu0 0
    %4959 = vmatpush1.bf16.msra.mxu0 0
    %4960 = vmatprep.subr.bf16.mxu0 0
    %4961 = vmatpush1.bf16.msra.mxu0 0
    %4962 = vmatprep.subr.bf16.mxu0 0
    %4963 = vmatpush1.bf16.msra.mxu0 0
    %4964 = vmatprep.subr.bf16.mxu0 0
    %4965 = vmatpush1.bf16.msra.mxu0 0
    %4966 = vmatprep.subr.bf16.mxu0 0
    %4967 = vmatpush1.bf16.msra.mxu0 0
    %4968 = vmatprep.subr.bf16.mxu0 0
    %4969 = vmatpush1.bf16.msra.mxu0 0
    %4970 = vmatprep.subr.bf16.mxu0 0
    %4971 = vmatpush1.bf16.msra.mxu0 0
    %4972 = vmatprep.subr.bf16.mxu0 0
    %4973 = vmatpush1.bf16.msra.mxu0 0
    %4974 = vmatprep.subr.bf16.mxu0 0
    %4975 = vmatpush1.bf16.msra.mxu0 0
    %4976 = vmatprep.mubr.bf16.mxu0 0
    %4977 = vmatmul.mubr.bf16.gmra.mrb[0].mxu0 %v4116
    %v4978 = vpop.f32.mrb[0].mxu0
    %v4979 = vadd.f32 %v4463, %v4978
    %v4980 = vpop.f32.mrb[0].mxu0
    %v4981 = vpop.f32.mrb[0].mxu0
    %v4982 = vpop.f32.mrb[0].mxu0
    %4983 = vdwg.mxu0
    %s4984 = scalar_lea.vmem %s6, 256
    %v4985 = vld [vmem:[%s4984] sm:$0xf]
    %v4986 = vld [vmem:[%s4984 + $0x4] sm:$0xf]
    %v4987 = vld [vmem:[%s4984 + $0x8] sm:$0xf]
    %v4988 = vld [vmem:[%s4984 + $0xc] sm:$0xf]
    %v4989 = vld [vmem:[%s4984 + $0x10] sm:$0xf]
    %v4990 = vld [vmem:[%s4984 + $0x14] sm:$0xf]
    %v4991 = vld [vmem:[%s4984 + $0x18] sm:$0xf]
    %v4992 = vld [vmem:[%s4984 + $0x1c] sm:$0xf]
    %v4993 = vld [vmem:[%s4984 + $0x20] sm:$0xf]
    %v4994 = vld [vmem:[%s4984 + $0x24] sm:$0xf]
    %v4995 = vld [vmem:[%s4984 + $0x28] sm:$0xf]
    %v4996 = vld [vmem:[%s4984 + $0x2c] sm:$0xf]
    %v4997 = vld [vmem:[%s4984 + $0x30] sm:$0xf]
    %v4998 = vld [vmem:[%s4984 + $0x34] sm:$0xf]
    %v4999 = vld [vmem:[%s4984 + $0x38] sm:$0xf]
    %v5000 = vld [vmem:[%s4984 + $0x3c] sm:$0xf]
    %v5001 = vld [vmem:[%s4984 + $0x40] sm:$0xf]
    %v5002 = vld [vmem:[%s4984 + $0x44] sm:$0xf]
    %v5003 = vld [vmem:[%s4984 + $0x48] sm:$0xf]
    %v5004 = vld [vmem:[%s4984 + $0x4c] sm:$0xf]
    %v5005 = vld [vmem:[%s4984 + $0x50] sm:$0xf]
    %v5006 = vld [vmem:[%s4984 + $0x54] sm:$0xf]
    %v5007 = vld [vmem:[%s4984 + $0x58] sm:$0xf]
    %v5008 = vld [vmem:[%s4984 + $0x5c] sm:$0xf]
    %v5009 = vld [vmem:[%s4984 + $0x60] sm:$0xf]
    %v5010 = vld [vmem:[%s4984 + $0x64] sm:$0xf]
    %v5011 = vld [vmem:[%s4984 + $0x68] sm:$0xf]
    %v5012 = vld [vmem:[%s4984 + $0x6c] sm:$0xf]
    %v5013 = vld [vmem:[%s4984 + $0x70] sm:$0xf]
    %v5014 = vld [vmem:[%s4984 + $0x74] sm:$0xf]
    %v5015 = vld [vmem:[%s4984 + $0x78] sm:$0xf]
    %v5016 = vld [vmem:[%s4984 + $0x7c] sm:$0xf]
    %v5017 = vld [vmem:[%s4984 + $0x80] sm:$0xf]
    %v5018 = vld [vmem:[%s4984 + $0x84] sm:$0xf]
    %v5019 = vld [vmem:[%s4984 + $0x88] sm:$0xf]
    %v5020 = vld [vmem:[%s4984 + $0x8c] sm:$0xf]
    %v5021 = vld [vmem:[%s4984 + $0x90] sm:$0xf]
    %v5022 = vld [vmem:[%s4984 + $0x94] sm:$0xf]
    %v5023 = vld [vmem:[%s4984 + $0x98] sm:$0xf]
    %v5024 = vld [vmem:[%s4984 + $0x9c] sm:$0xf]
    %v5025 = vld [vmem:[%s4984 + $0xa0] sm:$0xf]
    %v5026 = vld [vmem:[%s4984 + $0xa4] sm:$0xf]
    %v5027 = vld [vmem:[%s4984 + $0xa8] sm:$0xf]
    %v5028 = vld [vmem:[%s4984 + $0xac] sm:$0xf]
    %v5029 = vld [vmem:[%s4984 + $0xb0] sm:$0xf]
    %v5030 = vld [vmem:[%s4984 + $0xb4] sm:$0xf]
    %v5031 = vld [vmem:[%s4984 + $0xb8] sm:$0xf]
    %v5032 = vld [vmem:[%s4984 + $0xbc] sm:$0xf]
    %v5033 = vld [vmem:[%s4984 + $0xc0] sm:$0xf]
    %v5034 = vld [vmem:[%s4984 + $0xc4] sm:$0xf]
    %v5035 = vld [vmem:[%s4984 + $0xc8] sm:$0xf]
    %v5036 = vld [vmem:[%s4984 + $0xcc] sm:$0xf]
    %v5037 = vld [vmem:[%s4984 + $0xd0] sm:$0xf]
    %v5038 = vld [vmem:[%s4984 + $0xd4] sm:$0xf]
    %v5039 = vld [vmem:[%s4984 + $0xd8] sm:$0xf]
    %v5040 = vld [vmem:[%s4984 + $0xdc] sm:$0xf]
    %v5041 = vld [vmem:[%s4984 + $0xe0] sm:$0xf]
    %v5042 = vld [vmem:[%s4984 + $0xe4] sm:$0xf]
    %v5043 = vld [vmem:[%s4984 + $0xe8] sm:$0xf]
    %v5044 = vld [vmem:[%s4984 + $0xec] sm:$0xf]
    %v5045 = vld [vmem:[%s4984 + $0xf0] sm:$0xf]
    %v5046 = vld [vmem:[%s4984 + $0xf4] sm:$0xf]
    %v5047 = vld [vmem:[%s4984 + $0xf8] sm:$0xf]
    %v5048 = vld [vmem:[%s4984 + $0xfc] sm:$0xf]
    %s5049 = scalar_lea.vmem %s9, 8
    %v5050 = vld [vmem:[%s5049] sm:$0x1]
    %v5051 = vld [vmem:[%s5049 + $0x1] sm:$0x1]
    %v5052 = vld [vmem:[%s5049 + $0x2] sm:$0x1]
    %v5053 = vld [vmem:[%s5049 + $0x3] sm:$0x1]
    %v5054 = vld [vmem:[%s5049 + $0x4] sm:$0x1]
    %v5055 = vld [vmem:[%s5049 + $0x5] sm:$0x1]
    %v5056 = vld [vmem:[%s5049 + $0x6] sm:$0x1]
    %v5057 = vld [vmem:[%s5049 + $0x7] sm:$0x1]
    %v5066 = vlaneseq
    %v5067 = vshrl.u32 %v5066, 7
    %v5068 = vsub.s32 0, %v5067
    %v5069 = vrot.slane %v5050, %v5068
    %v5070 = vlaneseq
    %v5071 = vshrl.u32 %v5070, 7
    %v5072 = vsub.s32 0, %v5071
    %v5073 = vrot.slane %v5051, %v5072
    %v5074 = vlaneseq
    %v5075 = vshrl.u32 %v5074, 7
    %v5076 = vsub.s32 0, %v5075
    %v5077 = vrot.slane %v5052, %v5076
    %v5078 = vlaneseq
    %v5079 = vshrl.u32 %v5078, 7
    %v5080 = vsub.s32 0, %v5079
    %v5081 = vrot.slane %v5053, %v5080
    %v5082 = vlaneseq
    %v5083 = vshrl.u32 %v5082, 7
    %v5084 = vsub.s32 0, %v5083
    %v5085 = vrot.slane %v5054, %v5084
    %v5086 = vlaneseq
    %v5087 = vshrl.u32 %v5086, 7
    %v5088 = vsub.s32 0, %v5087
    %v5089 = vrot.slane %v5055, %v5088
    %v5090 = vlaneseq
    %v5091 = vshrl.u32 %v5090, 7
    %v5092 = vsub.s32 0, %v5091
    %v5093 = vrot.slane %v5056, %v5092
    %v5094 = vlaneseq
    %v5095 = vshrl.u32 %v5094, 7
    %v5096 = vsub.s32 0, %v5095
    %v5097 = vrot.slane %v5057, %v5096
    %v5114 = vunpack.c.l.b16 %v4985
    %v5115 = vunpack.c.l.b16 %v4986
    %v5116 = vunpack.c.l.b16 %v4987
    %v5117 = vunpack.c.l.b16 %v4988
    %v5118 = vunpack.c.l.b16 %v4989
    %v5119 = vunpack.c.l.b16 %v4990
    %v5120 = vunpack.c.l.b16 %v4991
    %v5121 = vunpack.c.l.b16 %v4992
    %v5122 = vpack.c.b16 %v5115, %v5114
    %v5123 = vpack.c.b16 %v5117, %v5116
    %v5124 = vpack.c.b16 %v5119, %v5118
    %v5125 = vpack.c.b16 %v5121, %v5120
    %5130 = vmatprep.subr.bf16.mxu0 0
    %5131 = vmatpush1.bf16.msra.mxu0 %v5122
    %5132 = vmatprep.subr.bf16.mxu0 0
    %5133 = vmatpush1.bf16.msra.mxu0 %v5123
    %5134 = vmatprep.subr.bf16.mxu0 0
    %5135 = vmatpush1.bf16.msra.mxu0 %v5124
    %5136 = vmatprep.subr.bf16.mxu0 0
    %5137 = vmatpush1.bf16.msra.mxu0 %v5125
    %5138 = vmatprep.subr.bf16.mxu0 0
    %5139 = vmatpush1.bf16.msra.mxu0 0
    %5140 = vmatprep.subr.bf16.mxu0 0
    %5141 = vmatpush1.bf16.msra.mxu0 0
    %5142 = vmatprep.subr.bf16.mxu0 0
    %5143 = vmatpush1.bf16.msra.mxu0 0
    %5144 = vmatprep.subr.bf16.mxu0 0
    %5145 = vmatpush1.bf16.msra.mxu0 0
    %5146 = vmatprep.subr.bf16.mxu0 0
    %5147 = vmatpush1.bf16.msra.mxu0 0
    %5148 = vmatprep.subr.bf16.mxu0 0
    %5149 = vmatpush1.bf16.msra.mxu0 0
    %5150 = vmatprep.subr.bf16.mxu0 0
    %5151 = vmatpush1.bf16.msra.mxu0 0
    %5152 = vmatprep.subr.bf16.mxu0 0
    %5153 = vmatpush1.bf16.msra.mxu0 0
    %5154 = vmatprep.subr.bf16.mxu0 0
    %5155 = vmatpush1.bf16.msra.mxu0 0
    %5156 = vmatprep.subr.bf16.mxu0 0
    %5157 = vmatpush1.bf16.msra.mxu0 0
    %5158 = vmatprep.subr.bf16.mxu0 0
    %5159 = vmatpush1.bf16.msra.mxu0 0
    %5160 = vmatprep.subr.bf16.mxu0 0
    %5161 = vmatpush1.bf16.msra.mxu0 0
    %5162 = vmatprep.mubr.bf16.mxu0 0
    %5163 = vmatmul.mubr.bf16.gmra.mrb[0].mxu0 %v3857
    %v5164 = vpop.f32.mrb[0].mxu0
    %v5165 = vadd.f32 %v5069, %v5164
    %v5166 = vpop.f32.mrb[0].mxu0
    %v5167 = vpop.f32.mrb[0].mxu0
    %v5168 = vpop.f32.mrb[0].mxu0
    %5169 = vdwg.mxu0
    %v5178 = vunpack.c.l.b16 %v4993
    %v5179 = vunpack.c.l.b16 %v4994
    %v5180 = vunpack.c.l.b16 %v4995
    %v5181 = vunpack.c.l.b16 %v4996
    %v5182 = vunpack.c.l.b16 %v4997
    %v5183 = vunpack.c.l.b16 %v4998
    %v5184 = vunpack.c.l.b16 %v4999
    %v5185 = vunpack.c.l.b16 %v5000
    %v5186 = vpack.c.b16 %v5179, %v5178
    %v5187 = vpack.c.b16 %v5181, %v5180
    %v5188 = vpack.c.b16 %v5183, %v5182
    %v5189 = vpack.c.b16 %v5185, %v5184
    %5194 = vmatprep.subr.bf16.mxu0 0
    %5195 = vmatpush1.bf16.msra.mxu0 %v5186
    %5196 = vmatprep.subr.bf16.mxu0 0
    %5197 = vmatpush1.bf16.msra.mxu0 %v5187
    %5198 = vmatprep.subr.bf16.mxu0 0
    %5199 = vmatpush1.bf16.msra.mxu0 %v5188
    %5200 = vmatprep.subr.bf16.mxu0 0
    %5201 = vmatpush1.bf16.msra.mxu0 %v5189
    %5202 = vmatprep.subr.bf16.mxu0 0
    %5203 = vmatpush1.bf16.msra.mxu0 0
    %5204 = vmatprep.subr.bf16.mxu0 0
    %5205 = vmatpush1.bf16.msra.mxu0 0
    %5206 = vmatprep.subr.bf16.mxu0 0
    %5207 = vmatpush1.bf16.msra.mxu0 0
    %5208 = vmatprep.subr.bf16.mxu0 0
    %5209 = vmatpush1.bf16.msra.mxu0 0
    %5210 = vmatprep.subr.bf16.mxu0 0
    %5211 = vmatpush1.bf16.msra.mxu0 0
    %5212 = vmatprep.subr.bf16.mxu0 0
    %5213 = vmatpush1.bf16.msra.mxu0 0
    %5214 = vmatprep.subr.bf16.mxu0 0
    %5215 = vmatpush1.bf16.msra.mxu0 0
    %5216 = vmatprep.subr.bf16.mxu0 0
    %5217 = vmatpush1.bf16.msra.mxu0 0
    %5218 = vmatprep.subr.bf16.mxu0 0
    %5219 = vmatpush1.bf16.msra.mxu0 0
    %5220 = vmatprep.subr.bf16.mxu0 0
    %5221 = vmatpush1.bf16.msra.mxu0 0
    %5222 = vmatprep.subr.bf16.mxu0 0
    %5223 = vmatpush1.bf16.msra.mxu0 0
    %5224 = vmatprep.subr.bf16.mxu0 0
    %5225 = vmatpush1.bf16.msra.mxu0 0
    %5226 = vmatprep.mubr.bf16.mxu0 0
    %5227 = vmatmul.mubr.bf16.gmra.mrb[0].mxu0 %v3857
    %v5228 = vpop.f32.mrb[0].mxu0
    %v5229 = vadd.f32 %v5073, %v5228
    %v5230 = vpop.f32.mrb[0].mxu0
    %v5231 = vpop.f32.mrb[0].mxu0
    %v5232 = vpop.f32.mrb[0].mxu0
    %5233 = vdwg.mxu0
    %v5242 = vunpack.c.l.b16 %v5001
    %v5243 = vunpack.c.l.b16 %v5002
    %v5244 = vunpack.c.l.b16 %v5003
    %v5245 = vunpack.c.l.b16 %v5004
    %v5246 = vunpack.c.l.b16 %v5005
    %v5247 = vunpack.c.l.b16 %v5006
    %v5248 = vunpack.c.l.b16 %v5007
    %v5249 = vunpack.c.l.b16 %v5008
    %v5250 = vpack.c.b16 %v5243, %v5242
    %v5251 = vpack.c.b16 %v5245, %v5244
    %v5252 = vpack.c.b16 %v5247, %v5246
    %v5253 = vpack.c.b16 %v5249, %v5248
    %5258 = vmatprep.subr.bf16.mxu0 0
    %5259 = vmatpush1.bf16.msra.mxu0 %v5250
    %5260 = vmatprep.subr.bf16.mxu0 0
    %5261 = vmatpush1.bf16.msra.mxu0 %v5251
    %5262 = vmatprep.subr.bf16.mxu0 0
    %5263 = vmatpush1.bf16.msra.mxu0 %v5252
    %5264 = vmatprep.subr.bf16.mxu0 0
    %5265 = vmatpush1.bf16.msra.mxu0 %v5253
    %5266 = vmatprep.subr.bf16.mxu0 0
    %5267 = vmatpush1.bf16.msra.mxu0 0
    %5268 = vmatprep.subr.bf16.mxu0 0
    %5269 = vmatpush1.bf16.msra.mxu0 0
    %5270 = vmatprep.subr.bf16.mxu0 0
    %5271 = vmatpush1.bf16.msra.mxu0 0
    %5272 = vmatprep.subr.bf16.mxu0 0
    %5273 = vmatpush1.bf16.msra.mxu0 0
    %5274 = vmatprep.subr.bf16.mxu0 0
    %5275 = vmatpush1.bf16.msra.mxu0 0
    %5276 = vmatprep.subr.bf16.mxu0 0
    %5277 = vmatpush1.bf16.msra.mxu0 0
    %5278 = vmatprep.subr.bf16.mxu0 0
    %5279 = vmatpush1.bf16.msra.mxu0 0
    %5280 = vmatprep.subr.bf16.mxu0 0
    %5281 = vmatpush1.bf16.msra.mxu0 0
    %5282 = vmatprep.subr.bf16.mxu0 0
    %5283 = vmatpush1.bf16.msra.mxu0 0
    %5284 = vmatprep.subr.bf16.mxu0 0
    %5285 = vmatpush1.bf16.msra.mxu0 0
    %5286 = vmatprep.subr.bf16.mxu0 0
    %5287 = vmatpush1.bf16.msra.mxu0 0
    %5288 = vmatprep.subr.bf16.mxu0 0
    %5289 = vmatpush1.bf16.msra.mxu0 0
    %5290 = vmatprep.mubr.bf16.mxu0 0
    %5291 = vmatmul.mubr.bf16.gmra.mrb[0].mxu0 %v3857
    %v5292 = vpop.f32.mrb[0].mxu0
    %v5293 = vadd.f32 %v5077, %v5292
    %v5294 = vpop.f32.mrb[0].mxu0
    %v5295 = vpop.f32.mrb[0].mxu0
    %v5296 = vpop.f32.mrb[0].mxu0
    %5297 = vdwg.mxu0
    %v5306 = vunpack.c.l.b16 %v5009
    %v5307 = vunpack.c.l.b16 %v5010
    %v5308 = vunpack.c.l.b16 %v5011
    %v5309 = vunpack.c.l.b16 %v5012
    %v5310 = vunpack.c.l.b16 %v5013
    %v5311 = vunpack.c.l.b16 %v5014
    %v5312 = vunpack.c.l.b16 %v5015
    %v5313 = vunpack.c.l.b16 %v5016
    %v5314 = vpack.c.b16 %v5307, %v5306
    %v5315 = vpack.c.b16 %v5309, %v5308
    %v5316 = vpack.c.b16 %v5311, %v5310
    %v5317 = vpack.c.b16 %v5313, %v5312
    %5322 = vmatprep.subr.bf16.mxu0 0
    %5323 = vmatpush1.bf16.msra.mxu0 %v5314
    %5324 = vmatprep.subr.bf16.mxu0 0
    %5325 = vmatpush1.bf16.msra.mxu0 %v5315
    %5326 = vmatprep.subr.bf16.mxu0 0
    %5327 = vmatpush1.bf16.msra.mxu0 %v5316
    %5328 = vmatprep.subr.bf16.mxu0 0
    %5329 = vmatpush1.bf16.msra.mxu0 %v5317
    %5330 = vmatprep.subr.bf16.mxu0 0
    %5331 = vmatpush1.bf16.msra.mxu0 0
    %5332 = vmatprep.subr.bf16.mxu0 0
    %5333 = vmatpush1.bf16.msra.mxu0 0
    %5334 = vmatprep.subr.bf16.mxu0 0
    %5335 = vmatpush1.bf16.msra.mxu0 0
    %5336 = vmatprep.subr.bf16.mxu0 0
    %5337 = vmatpush1.bf16.msra.mxu0 0
    %5338 = vmatprep.subr.bf16.mxu0 0
    %5339 = vmatpush1.bf16.msra.mxu0 0
    %5340 = vmatprep.subr.bf16.mxu0 0
    %5341 = vmatpush1.bf16.msra.mxu0 0
    %5342 = vmatprep.subr.bf16.mxu0 0
    %5343 = vmatpush1.bf16.msra.mxu0 0
    %5344 = vmatprep.subr.bf16.mxu0 0
    %5345 = vmatpush1.bf16.msra.mxu0 0
    %5346 = vmatprep.subr.bf16.mxu0 0
    %5347 = vmatpush1.bf16.msra.mxu0 0
    %5348 = vmatprep.subr.bf16.mxu0 0
    %5349 = vmatpush1.bf16.msra.mxu0 0
    %5350 = vmatprep.subr.bf16.mxu0 0
    %5351 = vmatpush1.bf16.msra.mxu0 0
    %5352 = vmatprep.subr.bf16.mxu0 0
    %5353 = vmatpush1.bf16.msra.mxu0 0
    %5354 = vmatprep.mubr.bf16.mxu0 0
    %5355 = vmatmul.mubr.bf16.gmra.mrb[0].mxu0 %v3857
    %v5356 = vpop.f32.mrb[0].mxu0
    %v5357 = vadd.f32 %v5081, %v5356
    %v5358 = vpop.f32.mrb[0].mxu0
    %v5359 = vpop.f32.mrb[0].mxu0
    %v5360 = vpop.f32.mrb[0].mxu0
    %5361 = vdwg.mxu0
    %v5370 = vunpack.c.l.b16 %v5017
    %v5371 = vunpack.c.l.b16 %v5018
    %v5372 = vunpack.c.l.b16 %v5019
    %v5373 = vunpack.c.l.b16 %v5020
    %v5374 = vunpack.c.l.b16 %v5021
    %v5375 = vunpack.c.l.b16 %v5022
    %v5376 = vunpack.c.l.b16 %v5023
    %v5377 = vunpack.c.l.b16 %v5024
    %v5378 = vpack.c.b16 %v5371, %v5370
    %v5379 = vpack.c.b16 %v5373, %v5372
    %v5380 = vpack.c.b16 %v5375, %v5374
    %v5381 = vpack.c.b16 %v5377, %v5376
    %5386 = vmatprep.subr.bf16.mxu0 0
    %5387 = vmatpush1.bf16.msra.mxu0 %v5378
    %5388 = vmatprep.subr.bf16.mxu0 0
    %5389 = vmatpush1.bf16.msra.mxu0 %v5379
    %5390 = vmatprep.subr.bf16.mxu0 0
    %5391 = vmatpush1.bf16.msra.mxu0 %v5380
    %5392 = vmatprep.subr.bf16.mxu0 0
    %5393 = vmatpush1.bf16.msra.mxu0 %v5381
    %5394 = vmatprep.subr.bf16.mxu0 0
    %5395 = vmatpush1.bf16.msra.mxu0 0
    %5396 = vmatprep.subr.bf16.mxu0 0
    %5397 = vmatpush1.bf16.msra.mxu0 0
    %5398 = vmatprep.subr.bf16.mxu0 0
    %5399 = vmatpush1.bf16.msra.mxu0 0
    %5400 = vmatprep.subr.bf16.mxu0 0
    %5401 = vmatpush1.bf16.msra.mxu0 0
    %5402 = vmatprep.subr.bf16.mxu0 0
    %5403 = vmatpush1.bf16.msra.mxu0 0
    %5404 = vmatprep.subr.bf16.mxu0 0
    %5405 = vmatpush1.bf16.msra.mxu0 0
    %5406 = vmatprep.subr.bf16.mxu0 0
    %5407 = vmatpush1.bf16.msra.mxu0 0
    %5408 = vmatprep.subr.bf16.mxu0 0
    %5409 = vmatpush1.bf16.msra.mxu0 0
    %5410 = vmatprep.subr.bf16.mxu0 0
    %5411 = vmatpush1.bf16.msra.mxu0 0
    %5412 = vmatprep.subr.bf16.mxu0 0
    %5413 = vmatpush1.bf16.msra.mxu0 0
    %5414 = vmatprep.subr.bf16.mxu0 0
    %5415 = vmatpush1.bf16.msra.mxu0 0
    %5416 = vmatprep.subr.bf16.mxu0 0
    %5417 = vmatpush1.bf16.msra.mxu0 0
    %5418 = vmatprep.mubr.bf16.mxu0 0
    %5419 = vmatmul.mubr.bf16.gmra.mrb[0].mxu0 %v4116
    %v5420 = vpop.f32.mrb[0].mxu0
    %v5421 = vadd.f32 %v5085, %v5420
    %v5422 = vpop.f32.mrb[0].mxu0
    %v5423 = vpop.f32.mrb[0].mxu0
    %v5424 = vpop.f32.mrb[0].mxu0
    %5425 = vdwg.mxu0
    %v5434 = vunpack.c.l.b16 %v5025
    %v5435 = vunpack.c.l.b16 %v5026
    %v5436 = vunpack.c.l.b16 %v5027
    %v5437 = vunpack.c.l.b16 %v5028
    %v5438 = vunpack.c.l.b16 %v5029
    %v5439 = vunpack.c.l.b16 %v5030
    %v5440 = vunpack.c.l.b16 %v5031
    %v5441 = vunpack.c.l.b16 %v5032
    %v5442 = vpack.c.b16 %v5435, %v5434
    %v5443 = vpack.c.b16 %v5437, %v5436
    %v5444 = vpack.c.b16 %v5439, %v5438
    %v5445 = vpack.c.b16 %v5441, %v5440
    %5450 = vmatprep.subr.bf16.mxu0 0
    %5451 = vmatpush1.bf16.msra.mxu0 %v5442
    %5452 = vmatprep.subr.bf16.mxu0 0
    %5453 = vmatpush1.bf16.msra.mxu0 %v5443
    %5454 = vmatprep.subr.bf16.mxu0 0
    %5455 = vmatpush1.bf16.msra.mxu0 %v5444
    %5456 = vmatprep.subr.bf16.mxu0 0
    %5457 = vmatpush1.bf16.msra.mxu0 %v5445
    %5458 = vmatprep.subr.bf16.mxu0 0
    %5459 = vmatpush1.bf16.msra.mxu0 0
    %5460 = vmatprep.subr.bf16.mxu0 0
    %5461 = vmatpush1.bf16.msra.mxu0 0
    %5462 = vmatprep.subr.bf16.mxu0 0
    %5463 = vmatpush1.bf16.msra.mxu0 0
    %5464 = vmatprep.subr.bf16.mxu0 0
    %5465 = vmatpush1.bf16.msra.mxu0 0
    %5466 = vmatprep.subr.bf16.mxu0 0
    %5467 = vmatpush1.bf16.msra.mxu0 0
    %5468 = vmatprep.subr.bf16.mxu0 0
    %5469 = vmatpush1.bf16.msra.mxu0 0
    %5470 = vmatprep.subr.bf16.mxu0 0
    %5471 = vmatpush1.bf16.msra.mxu0 0
    %5472 = vmatprep.subr.bf16.mxu0 0
    %5473 = vmatpush1.bf16.msra.mxu0 0
    %5474 = vmatprep.subr.bf16.mxu0 0
    %5475 = vmatpush1.bf16.msra.mxu0 0
    %5476 = vmatprep.subr.bf16.mxu0 0
    %5477 = vmatpush1.bf16.msra.mxu0 0
    %5478 = vmatprep.subr.bf16.mxu0 0
    %5479 = vmatpush1.bf16.msra.mxu0 0
    %5480 = vmatprep.subr.bf16.mxu0 0
    %5481 = vmatpush1.bf16.msra.mxu0 0
    %5482 = vmatprep.mubr.bf16.mxu0 0
    %5483 = vmatmul.mubr.bf16.gmra.mrb[0].mxu0 %v4116
    %v5484 = vpop.f32.mrb[0].mxu0
    %v5485 = vadd.f32 %v5089, %v5484
    %v5486 = vpop.f32.mrb[0].mxu0
    %v5487 = vpop.f32.mrb[0].mxu0
    %v5488 = vpop.f32.mrb[0].mxu0
    %5489 = vdwg.mxu0
    %v5498 = vunpack.c.l.b16 %v5033
    %v5499 = vunpack.c.l.b16 %v5034
    %v5500 = vunpack.c.l.b16 %v5035
    %v5501 = vunpack.c.l.b16 %v5036
    %v5502 = vunpack.c.l.b16 %v5037
    %v5503 = vunpack.c.l.b16 %v5038
    %v5504 = vunpack.c.l.b16 %v5039
    %v5505 = vunpack.c.l.b16 %v5040
    %v5506 = vpack.c.b16 %v5499, %v5498
    %v5507 = vpack.c.b16 %v5501, %v5500
    %v5508 = vpack.c.b16 %v5503, %v5502
    %v5509 = vpack.c.b16 %v5505, %v5504
    %5514 = vmatprep.subr.bf16.mxu0 0
    %5515 = vmatpush1.bf16.msra.mxu0 %v5506
    %5516 = vmatprep.subr.bf16.mxu0 0
    %5517 = vmatpush1.bf16.msra.mxu0 %v5507
    %5518 = vmatprep.subr.bf16.mxu0 0
    %5519 = vmatpush1.bf16.msra.mxu0 %v5508
    %5520 = vmatprep.subr.bf16.mxu0 0
    %5521 = vmatpush1.bf16.msra.mxu0 %v5509
    %5522 = vmatprep.subr.bf16.mxu0 0
    %5523 = vmatpush1.bf16.msra.mxu0 0
    %5524 = vmatprep.subr.bf16.mxu0 0
    %5525 = vmatpush1.bf16.msra.mxu0 0
    %5526 = vmatprep.subr.bf16.mxu0 0
    %5527 = vmatpush1.bf16.msra.mxu0 0
    %5528 = vmatprep.subr.bf16.mxu0 0
    %5529 = vmatpush1.bf16.msra.mxu0 0
    %5530 = vmatprep.subr.bf16.mxu0 0
    %5531 = vmatpush1.bf16.msra.mxu0 0
    %5532 = vmatprep.subr.bf16.mxu0 0
    %5533 = vmatpush1.bf16.msra.mxu0 0
    %5534 = vmatprep.subr.bf16.mxu0 0
    %5535 = vmatpush1.bf16.msra.mxu0 0
    %5536 = vmatprep.subr.bf16.mxu0 0
    %5537 = vmatpush1.bf16.msra.mxu0 0
    %5538 = vmatprep.subr.bf16.mxu0 0
    %5539 = vmatpush1.bf16.msra.mxu0 0
    %5540 = vmatprep.subr.bf16.mxu0 0
    %5541 = vmatpush1.bf16.msra.mxu0 0
    %5542 = vmatprep.subr.bf16.mxu0 0
    %5543 = vmatpush1.bf16.msra.mxu0 0
    %5544 = vmatprep.subr.bf16.mxu0 0
    %5545 = vmatpush1.bf16.msra.mxu0 0
    %5546 = vmatprep.mubr.bf16.mxu0 0
    %5547 = vmatmul.mubr.bf16.gmra.mrb[0].mxu0 %v4116
    %v5548 = vpop.f32.mrb[0].mxu0
    %v5549 = vadd.f32 %v5093, %v5548
    %v5550 = vpop.f32.mrb[0].mxu0
    %v5551 = vpop.f32.mrb[0].mxu0
    %v5552 = vpop.f32.mrb[0].mxu0
    %5553 = vdwg.mxu0
    %v5562 = vunpack.c.l.b16 %v5041
    %v5563 = vunpack.c.l.b16 %v5042
    %v5564 = vunpack.c.l.b16 %v5043
    %v5565 = vunpack.c.l.b16 %v5044
    %v5566 = vunpack.c.l.b16 %v5045
    %v5567 = vunpack.c.l.b16 %v5046
    %v5568 = vunpack.c.l.b16 %v5047
    %v5569 = vunpack.c.l.b16 %v5048
    %v5570 = vpack.c.b16 %v5563, %v5562
    %v5571 = vpack.c.b16 %v5565, %v5564
    %v5572 = vpack.c.b16 %v5567, %v5566
    %v5573 = vpack.c.b16 %v5569, %v5568
    %5578 = vmatprep.subr.bf16.mxu0 0
    %5579 = vmatpush1.bf16.msra.mxu0 %v5570
    %5580 = vmatprep.subr.bf16.mxu0 0
    %5581 = vmatpush1.bf16.msra.mxu0 %v5571
    %5582 = vmatprep.subr.bf16.mxu0 0
    %5583 = vmatpush1.bf16.msra.mxu0 %v5572
    %5584 = vmatprep.subr.bf16.mxu0 0
    %5585 = vmatpush1.bf16.msra.mxu0 %v5573
    %5586 = vmatprep.subr.bf16.mxu0 0
    %5587 = vmatpush1.bf16.msra.mxu0 0
    %5588 = vmatprep.subr.bf16.mxu0 0
    %5589 = vmatpush1.bf16.msra.mxu0 0
    %5590 = vmatprep.subr.bf16.mxu0 0
    %5591 = vmatpush1.bf16.msra.mxu0 0
    %5592 = vmatprep.subr.bf16.mxu0 0
    %5593 = vmatpush1.bf16.msra.mxu0 0
    %5594 = vmatprep.subr.bf16.mxu0 0
    %5595 = vmatpush1.bf16.msra.mxu0 0
    %5596 = vmatprep.subr.bf16.mxu0 0
    %5597 = vmatpush1.bf16.msra.mxu0 0
    %5598 = vmatprep.subr.bf16.mxu0 0
    %5599 = vmatpush1.bf16.msra.mxu0 0
    %5600 = vmatprep.subr.bf16.mxu0 0
    %5601 = vmatpush1.bf16.msra.mxu0 0
    %5602 = vmatprep.subr.bf16.mxu0 0
    %5603 = vmatpush1.bf16.msra.mxu0 0
    %5604 = vmatprep.subr.bf16.mxu0 0
    %5605 = vmatpush1.bf16.msra.mxu0 0
    %5606 = vmatprep.subr.bf16.mxu0 0
    %5607 = vmatpush1.bf16.msra.mxu0 0
    %5608 = vmatprep.subr.bf16.mxu0 0
    %5609 = vmatpush1.bf16.msra.mxu0 0
    %5610 = vmatprep.mubr.bf16.mxu0 0
    %5611 = vmatmul.mubr.bf16.gmra.mrb[0].mxu0 %v4116
    %v5612 = vpop.f32.mrb[0].mxu0
    %v5613 = vadd.f32 %v5097, %v5612
    %v5614 = vpop.f32.mrb[0].mxu0
    %v5615 = vpop.f32.mrb[0].mxu0
    %v5616 = vpop.f32.mrb[0].mxu0
    %5617 = vdwg.mxu0
    %v5618 = vpack.c.bf16 %v3894, %v3894
    %v5619 = vpack.c.bf16 %v3958, %v3958
    %v5620 = vpack.c.bf16 %v4022, %v4022
    %v5621 = vpack.c.bf16 %v4086, %v4086
    %v5622 = vpack.c.bf16 %v4153, %v4153
    %v5623 = vpack.c.bf16 %v4217, %v4217
    %v5624 = vpack.c.bf16 %v4281, %v4281
    %v5625 = vpack.c.bf16 %v4345, %v4345
    %v5626 = vpack.c.bf16 %v4531, %v4531
    %v5627 = vpack.c.bf16 %v4595, %v4595
    %v5628 = vpack.c.bf16 %v4659, %v4659
    %v5629 = vpack.c.bf16 %v4723, %v4723
    %v5630 = vpack.c.bf16 %v4787, %v4787
    %v5631 = vpack.c.bf16 %v4851, %v4851
    %v5632 = vpack.c.bf16 %v4915, %v4915
    %v5633 = vpack.c.bf16 %v4979, %v4979
    %v5635 = vsel %vm2055, %v5618, 0
    %v5638 = vsel %vm2055, %v5626, 0
    %5640 = vmatprep.subr.bf16.mxu0 0
    %5641 = vmatpush1.bf16.xpose.msra.mxu0 %v5638
    %5642 = vmatprep.subr.bf16.mxu0 0
    %5643 = vmatpush1.bf16.xpose.msra.mxu0 0
    %5644 = vmatprep.subr.bf16.mxu0 0
    %5645 = vmatpush1.bf16.xpose.msra.mxu0 0
    %5646 = vmatprep.subr.bf16.mxu0 0
    %5647 = vmatpush1.bf16.xpose.msra.mxu0 0
    %5648 = vmatprep.subr.bf16.mxu0 0
    %5649 = vmatpush1.bf16.xpose.msra.mxu0 0
    %5650 = vmatprep.subr.bf16.mxu0 0
    %5651 = vmatpush1.bf16.xpose.msra.mxu0 0
    %5652 = vmatprep.subr.bf16.mxu0 0
    %5653 = vmatpush1.bf16.xpose.msra.mxu0 0
    %5654 = vmatprep.subr.bf16.mxu0 0
    %5655 = vmatpush1.bf16.xpose.msra.mxu0 0
    %5656 = vmatprep.subr.bf16.mxu0 0
    %5657 = vmatpush1.bf16.xpose.msra.mxu0 0
    %5658 = vmatprep.subr.bf16.mxu0 0
    %5659 = vmatpush1.bf16.xpose.msra.mxu0 0
    %5660 = vmatprep.subr.bf16.mxu0 0
    %5661 = vmatpush1.bf16.xpose.msra.mxu0 0
    %5662 = vmatprep.subr.bf16.mxu0 0
    %5663 = vmatpush1.bf16.xpose.msra.mxu0 0
    %5664 = vmatprep.subr.bf16.mxu0 0
    %5665 = vmatpush1.bf16.xpose.msra.mxu0 0
    %5666 = vmatprep.subr.bf16.mxu0 0
    %5667 = vmatpush1.bf16.xpose.msra.mxu0 0
    %5668 = vmatprep.subr.bf16.mxu0 0
    %5669 = vmatpush1.bf16.xpose.msra.mxu0 0
    %5670 = vmatprep.subr.bf16.mxu0 0
    %5671 = vmatpush1.bf16.xpose.msra.mxu0 0
    %5672 = vmatprep.mubr.bf16.mxu0 0
    %5673 = vmatmul.mubr.bf16.gmra.mrb[0].mxu0 %v5635
    %v5674 = vpop.f32.mrb[0].mxu0
    %v5675 = vadd.f32 0.0, %v5674
    %v5676 = vpop.f32.mrb[0].mxu0
    %v5677 = vpop.f32.mrb[0].mxu0
    %v5678 = vpop.f32.mrb[0].mxu0
    %5679 = vdwg.mxu0
    %v5681 = vsel %vm2055, %v5619, 0
    %v5684 = vsel %vm2055, %v5627, 0
    %5686 = vmatprep.subr.bf16.mxu0 0
    %5687 = vmatpush1.bf16.xpose.msra.mxu0 %v5684
    %5688 = vmatprep.subr.bf16.mxu0 0
    %5689 = vmatpush1.bf16.xpose.msra.mxu0 0
    %5690 = vmatprep.subr.bf16.mxu0 0
    %5691 = vmatpush1.bf16.xpose.msra.mxu0 0
    %5692 = vmatprep.subr.bf16.mxu0 0
    %5693 = vmatpush1.bf16.xpose.msra.mxu0 0
    %5694 = vmatprep.subr.bf16.mxu0 0
    %5695 = vmatpush1.bf16.xpose.msra.mxu0 0
    %5696 = vmatprep.subr.bf16.mxu0 0
    %5697 = vmatpush1.bf16.xpose.msra.mxu0 0
    %5698 = vmatprep.subr.bf16.mxu0 0
    %5699 = vmatpush1.bf16.xpose.msra.mxu0 0
    %5700 = vmatprep.subr.bf16.mxu0 0
    %5701 = vmatpush1.bf16.xpose.msra.mxu0 0
    %5702 = vmatprep.subr.bf16.mxu0 0
    %5703 = vmatpush1.bf16.xpose.msra.mxu0 0
    %5704 = vmatprep.subr.bf16.mxu0 0
    %5705 = vmatpush1.bf16.xpose.msra.mxu0 0
    %5706 = vmatprep.subr.bf16.mxu0 0
    %5707 = vmatpush1.bf16.xpose.msra.mxu0 0
    %5708 = vmatprep.subr.bf16.mxu0 0
    %5709 = vmatpush1.bf16.xpose.msra.mxu0 0
    %5710 = vmatprep.subr.bf16.mxu0 0
    %5711 = vmatpush1.bf16.xpose.msra.mxu0 0
    %5712 = vmatprep.subr.bf16.mxu0 0
    %5713 = vmatpush1.bf16.xpose.msra.mxu0 0
    %5714 = vmatprep.subr.bf16.mxu0 0
    %5715 = vmatpush1.bf16.xpose.msra.mxu0 0
    %5716 = vmatprep.subr.bf16.mxu0 0
    %5717 = vmatpush1.bf16.xpose.msra.mxu0 0
    %5718 = vmatprep.mubr.bf16.mxu0 0
    %5719 = vmatmul.mubr.bf16.gmra.mrb[0].mxu0 %v5681
    %v5720 = vpop.f32.mrb[0].mxu0
    %v5721 = vadd.f32 0.0, %v5720
    %v5722 = vpop.f32.mrb[0].mxu0
    %v5723 = vpop.f32.mrb[0].mxu0
    %v5724 = vpop.f32.mrb[0].mxu0
    %5725 = vdwg.mxu0
    %v5727 = vsel %vm2055, %v5620, 0
    %v5730 = vsel %vm2055, %v5628, 0
    %5732 = vmatprep.subr.bf16.mxu0 0
    %5733 = vmatpush1.bf16.xpose.msra.mxu0 %v5730
    %5734 = vmatprep.subr.bf16.mxu0 0
    %5735 = vmatpush1.bf16.xpose.msra.mxu0 0
    %5736 = vmatprep.subr.bf16.mxu0 0
    %5737 = vmatpush1.bf16.xpose.msra.mxu0 0
    %5738 = vmatprep.subr.bf16.mxu0 0
    %5739 = vmatpush1.bf16.xpose.msra.mxu0 0
    %5740 = vmatprep.subr.bf16.mxu0 0
    %5741 = vmatpush1.bf16.xpose.msra.mxu0 0
    %5742 = vmatprep.subr.bf16.mxu0 0
    %5743 = vmatpush1.bf16.xpose.msra.mxu0 0
    %5744 = vmatprep.subr.bf16.mxu0 0
    %5745 = vmatpush1.bf16.xpose.msra.mxu0 0
    %5746 = vmatprep.subr.bf16.mxu0 0
    %5747 = vmatpush1.bf16.xpose.msra.mxu0 0
    %5748 = vmatprep.subr.bf16.mxu0 0
    %5749 = vmatpush1.bf16.xpose.msra.mxu0 0
    %5750 = vmatprep.subr.bf16.mxu0 0
    %5751 = vmatpush1.bf16.xpose.msra.mxu0 0
    %5752 = vmatprep.subr.bf16.mxu0 0
    %5753 = vmatpush1.bf16.xpose.msra.mxu0 0
    %5754 = vmatprep.subr.bf16.mxu0 0
    %5755 = vmatpush1.bf16.xpose.msra.mxu0 0
    %5756 = vmatprep.subr.bf16.mxu0 0
    %5757 = vmatpush1.bf16.xpose.msra.mxu0 0
    %5758 = vmatprep.subr.bf16.mxu0 0
    %5759 = vmatpush1.bf16.xpose.msra.mxu0 0
    %5760 = vmatprep.subr.bf16.mxu0 0
    %5761 = vmatpush1.bf16.xpose.msra.mxu0 0
    %5762 = vmatprep.subr.bf16.mxu0 0
    %5763 = vmatpush1.bf16.xpose.msra.mxu0 0
    %5764 = vmatprep.mubr.bf16.mxu0 0
    %5765 = vmatmul.mubr.bf16.gmra.mrb[0].mxu0 %v5727
    %v5766 = vpop.f32.mrb[0].mxu0
    %v5767 = vadd.f32 0.0, %v5766
    %v5768 = vpop.f32.mrb[0].mxu0
    %v5769 = vpop.f32.mrb[0].mxu0
    %v5770 = vpop.f32.mrb[0].mxu0
    %5771 = vdwg.mxu0
    %v5773 = vsel %vm2055, %v5621, 0
    %v5776 = vsel %vm2055, %v5629, 0
    %5778 = vmatprep.subr.bf16.mxu0 0
    %5779 = vmatpush1.bf16.xpose.msra.mxu0 %v5776
    %5780 = vmatprep.subr.bf16.mxu0 0
    %5781 = vmatpush1.bf16.xpose.msra.mxu0 0
    %5782 = vmatprep.subr.bf16.mxu0 0
    %5783 = vmatpush1.bf16.xpose.msra.mxu0 0
    %5784 = vmatprep.subr.bf16.mxu0 0
    %5785 = vmatpush1.bf16.xpose.msra.mxu0 0
    %5786 = vmatprep.subr.bf16.mxu0 0
    %5787 = vmatpush1.bf16.xpose.msra.mxu0 0
    %5788 = vmatprep.subr.bf16.mxu0 0
    %5789 = vmatpush1.bf16.xpose.msra.mxu0 0
    %5790 = vmatprep.subr.bf16.mxu0 0
    %5791 = vmatpush1.bf16.xpose.msra.mxu0 0
    %5792 = vmatprep.subr.bf16.mxu0 0
    %5793 = vmatpush1.bf16.xpose.msra.mxu0 0
    %5794 = vmatprep.subr.bf16.mxu0 0
    %5795 = vmatpush1.bf16.xpose.msra.mxu0 0
    %5796 = vmatprep.subr.bf16.mxu0 0
    %5797 = vmatpush1.bf16.xpose.msra.mxu0 0
    %5798 = vmatprep.subr.bf16.mxu0 0
    %5799 = vmatpush1.bf16.xpose.msra.mxu0 0
    %5800 = vmatprep.subr.bf16.mxu0 0
    %5801 = vmatpush1.bf16.xpose.msra.mxu0 0
    %5802 = vmatprep.subr.bf16.mxu0 0
    %5803 = vmatpush1.bf16.xpose.msra.mxu0 0
    %5804 = vmatprep.subr.bf16.mxu0 0
    %5805 = vmatpush1.bf16.xpose.msra.mxu0 0
    %5806 = vmatprep.subr.bf16.mxu0 0
    %5807 = vmatpush1.bf16.xpose.msra.mxu0 0
    %5808 = vmatprep.subr.bf16.mxu0 0
    %5809 = vmatpush1.bf16.xpose.msra.mxu0 0
    %5810 = vmatprep.mubr.bf16.mxu0 0
    %5811 = vmatmul.mubr.bf16.gmra.mrb[0].mxu0 %v5773
    %v5812 = vpop.f32.mrb[0].mxu0
    %v5813 = vadd.f32 0.0, %v5812
    %v5814 = vpop.f32.mrb[0].mxu0
    %v5815 = vpop.f32.mrb[0].mxu0
    %v5816 = vpop.f32.mrb[0].mxu0
    %5817 = vdwg.mxu0
    %v5819 = vsel %vm2055, %v5622, 0
    %v5822 = vsel %vm2055, %v5630, 0
    %5824 = vmatprep.subr.bf16.mxu0 0
    %5825 = vmatpush1.bf16.xpose.msra.mxu0 %v5822
    %5826 = vmatprep.subr.bf16.mxu0 0
    %5827 = vmatpush1.bf16.xpose.msra.mxu0 0
    %5828 = vmatprep.subr.bf16.mxu0 0
    %5829 = vmatpush1.bf16.xpose.msra.mxu0 0
    %5830 = vmatprep.subr.bf16.mxu0 0
    %5831 = vmatpush1.bf16.xpose.msra.mxu0 0
    %5832 = vmatprep.subr.bf16.mxu0 0
    %5833 = vmatpush1.bf16.xpose.msra.mxu0 0
    %5834 = vmatprep.subr.bf16.mxu0 0
    %5835 = vmatpush1.bf16.xpose.msra.mxu0 0
    %5836 = vmatprep.subr.bf16.mxu0 0
    %5837 = vmatpush1.bf16.xpose.msra.mxu0 0
    %5838 = vmatprep.subr.bf16.mxu0 0
    %5839 = vmatpush1.bf16.xpose.msra.mxu0 0
    %5840 = vmatprep.subr.bf16.mxu0 0
    %5841 = vmatpush1.bf16.xpose.msra.mxu0 0
    %5842 = vmatprep.subr.bf16.mxu0 0
    %5843 = vmatpush1.bf16.xpose.msra.mxu0 0
    %5844 = vmatprep.subr.bf16.mxu0 0
    %5845 = vmatpush1.bf16.xpose.msra.mxu0 0
    %5846 = vmatprep.subr.bf16.mxu0 0
    %5847 = vmatpush1.bf16.xpose.msra.mxu0 0
    %5848 = vmatprep.subr.bf16.mxu0 0
    %5849 = vmatpush1.bf16.xpose.msra.mxu0 0
    %5850 = vmatprep.subr.bf16.mxu0 0
    %5851 = vmatpush1.bf16.xpose.msra.mxu0 0
    %5852 = vmatprep.subr.bf16.mxu0 0
    %5853 = vmatpush1.bf16.xpose.msra.mxu0 0
    %5854 = vmatprep.subr.bf16.mxu0 0
    %5855 = vmatpush1.bf16.xpose.msra.mxu0 0
    %5856 = vmatprep.mubr.bf16.mxu0 0
    %5857 = vmatmul.mubr.bf16.gmra.mrb[0].mxu0 %v5819
    %v5858 = vpop.f32.mrb[0].mxu0
    %v5859 = vadd.f32 0.0, %v5858
    %v5860 = vpop.f32.mrb[0].mxu0
    %v5861 = vpop.f32.mrb[0].mxu0
    %v5862 = vpop.f32.mrb[0].mxu0
    %5863 = vdwg.mxu0
    %v5865 = vsel %vm2055, %v5623, 0
    %v5868 = vsel %vm2055, %v5631, 0
    %5870 = vmatprep.subr.bf16.mxu0 0
    %5871 = vmatpush1.bf16.xpose.msra.mxu0 %v5868
    %5872 = vmatprep.subr.bf16.mxu0 0
    %5873 = vmatpush1.bf16.xpose.msra.mxu0 0
    %5874 = vmatprep.subr.bf16.mxu0 0
    %5875 = vmatpush1.bf16.xpose.msra.mxu0 0
    %5876 = vmatprep.subr.bf16.mxu0 0
    %5877 = vmatpush1.bf16.xpose.msra.mxu0 0
    %5878 = vmatprep.subr.bf16.mxu0 0
    %5879 = vmatpush1.bf16.xpose.msra.mxu0 0
    %5880 = vmatprep.subr.bf16.mxu0 0
    %5881 = vmatpush1.bf16.xpose.msra.mxu0 0
    %5882 = vmatprep.subr.bf16.mxu0 0
    %5883 = vmatpush1.bf16.xpose.msra.mxu0 0
    %5884 = vmatprep.subr.bf16.mxu0 0
    %5885 = vmatpush1.bf16.xpose.msra.mxu0 0
    %5886 = vmatprep.subr.bf16.mxu0 0
    %5887 = vmatpush1.bf16.xpose.msra.mxu0 0
    %5888 = vmatprep.subr.bf16.mxu0 0
    %5889 = vmatpush1.bf16.xpose.msra.mxu0 0
    %5890 = vmatprep.subr.bf16.mxu0 0
    %5891 = vmatpush1.bf16.xpose.msra.mxu0 0
    %5892 = vmatprep.subr.bf16.mxu0 0
    %5893 = vmatpush1.bf16.xpose.msra.mxu0 0
    %5894 = vmatprep.subr.bf16.mxu0 0
    %5895 = vmatpush1.bf16.xpose.msra.mxu0 0
    %5896 = vmatprep.subr.bf16.mxu0 0
    %5897 = vmatpush1.bf16.xpose.msra.mxu0 0
    %5898 = vmatprep.subr.bf16.mxu0 0
    %5899 = vmatpush1.bf16.xpose.msra.mxu0 0
    %5900 = vmatprep.subr.bf16.mxu0 0
    %5901 = vmatpush1.bf16.xpose.msra.mxu0 0
    %5902 = vmatprep.mubr.bf16.mxu0 0
    %5903 = vmatmul.mubr.bf16.gmra.mrb[0].mxu0 %v5865
    %v5904 = vpop.f32.mrb[0].mxu0
    %v5905 = vadd.f32 0.0, %v5904
    %v5906 = vpop.f32.mrb[0].mxu0
    %v5907 = vpop.f32.mrb[0].mxu0
    %v5908 = vpop.f32.mrb[0].mxu0
    %5909 = vdwg.mxu0
    %v5911 = vsel %vm2055, %v5624, 0
    %v5914 = vsel %vm2055, %v5632, 0
    %5916 = vmatprep.subr.bf16.mxu0 0
    %5917 = vmatpush1.bf16.xpose.msra.mxu0 %v5914
    %5918 = vmatprep.subr.bf16.mxu0 0
    %5919 = vmatpush1.bf16.xpose.msra.mxu0 0
    %5920 = vmatprep.subr.bf16.mxu0 0
    %5921 = vmatpush1.bf16.xpose.msra.mxu0 0
    %5922 = vmatprep.subr.bf16.mxu0 0
    %5923 = vmatpush1.bf16.xpose.msra.mxu0 0
    %5924 = vmatprep.subr.bf16.mxu0 0
    %5925 = vmatpush1.bf16.xpose.msra.mxu0 0
    %5926 = vmatprep.subr.bf16.mxu0 0
    %5927 = vmatpush1.bf16.xpose.msra.mxu0 0
    %5928 = vmatprep.subr.bf16.mxu0 0
    %5929 = vmatpush1.bf16.xpose.msra.mxu0 0
    %5930 = vmatprep.subr.bf16.mxu0 0
    %5931 = vmatpush1.bf16.xpose.msra.mxu0 0
    %5932 = vmatprep.subr.bf16.mxu0 0
    %5933 = vmatpush1.bf16.xpose.msra.mxu0 0
    %5934 = vmatprep.subr.bf16.mxu0 0
    %5935 = vmatpush1.bf16.xpose.msra.mxu0 0
    %5936 = vmatprep.subr.bf16.mxu0 0
    %5937 = vmatpush1.bf16.xpose.msra.mxu0 0
    %5938 = vmatprep.subr.bf16.mxu0 0
    %5939 = vmatpush1.bf16.xpose.msra.mxu0 0
    %5940 = vmatprep.subr.bf16.mxu0 0
    %5941 = vmatpush1.bf16.xpose.msra.mxu0 0
    %5942 = vmatprep.subr.bf16.mxu0 0
    %5943 = vmatpush1.bf16.xpose.msra.mxu0 0
    %5944 = vmatprep.subr.bf16.mxu0 0
    %5945 = vmatpush1.bf16.xpose.msra.mxu0 0
    %5946 = vmatprep.subr.bf16.mxu0 0
    %5947 = vmatpush1.bf16.xpose.msra.mxu0 0
    %5948 = vmatprep.mubr.bf16.mxu0 0
    %5949 = vmatmul.mubr.bf16.gmra.mrb[0].mxu0 %v5911
    %v5950 = vpop.f32.mrb[0].mxu0
    %v5951 = vadd.f32 0.0, %v5950
    %v5952 = vpop.f32.mrb[0].mxu0
    %v5953 = vpop.f32.mrb[0].mxu0
    %v5954 = vpop.f32.mrb[0].mxu0
    %5955 = vdwg.mxu0
    %v5957 = vsel %vm2055, %v5625, 0
    %v5960 = vsel %vm2055, %v5633, 0
    %5962 = vmatprep.subr.bf16.mxu0 0
    %5963 = vmatpush1.bf16.xpose.msra.mxu0 %v5960
    %5964 = vmatprep.subr.bf16.mxu0 0
    %5965 = vmatpush1.bf16.xpose.msra.mxu0 0
    %5966 = vmatprep.subr.bf16.mxu0 0
    %5967 = vmatpush1.bf16.xpose.msra.mxu0 0
    %5968 = vmatprep.subr.bf16.mxu0 0
    %5969 = vmatpush1.bf16.xpose.msra.mxu0 0
    %5970 = vmatprep.subr.bf16.mxu0 0
    %5971 = vmatpush1.bf16.xpose.msra.mxu0 0
    %5972 = vmatprep.subr.bf16.mxu0 0
    %5973 = vmatpush1.bf16.xpose.msra.mxu0 0
    %5974 = vmatprep.subr.bf16.mxu0 0
    %5975 = vmatpush1.bf16.xpose.msra.mxu0 0
    %5976 = vmatprep.subr.bf16.mxu0 0
    %5977 = vmatpush1.bf16.xpose.msra.mxu0 0
    %5978 = vmatprep.subr.bf16.mxu0 0
    %5979 = vmatpush1.bf16.xpose.msra.mxu0 0
    %5980 = vmatprep.subr.bf16.mxu0 0
    %5981 = vmatpush1.bf16.xpose.msra.mxu0 0
    %5982 = vmatprep.subr.bf16.mxu0 0
    %5983 = vmatpush1.bf16.xpose.msra.mxu0 0
    %5984 = vmatprep.subr.bf16.mxu0 0
    %5985 = vmatpush1.bf16.xpose.msra.mxu0 0
    %5986 = vmatprep.subr.bf16.mxu0 0
    %5987 = vmatpush1.bf16.xpose.msra.mxu0 0
    %5988 = vmatprep.subr.bf16.mxu0 0
    %5989 = vmatpush1.bf16.xpose.msra.mxu0 0
    %5990 = vmatprep.subr.bf16.mxu0 0
    %5991 = vmatpush1.bf16.xpose.msra.mxu0 0
    %5992 = vmatprep.subr.bf16.mxu0 0
    %5993 = vmatpush1.bf16.xpose.msra.mxu0 0
    %5994 = vmatprep.mubr.bf16.mxu0 0
    %5995 = vmatmul.mubr.bf16.gmra.mrb[0].mxu0 %v5957
    %v5996 = vpop.f32.mrb[0].mxu0
    %v5997 = vadd.f32 0.0, %v5996
    %v5998 = vpop.f32.mrb[0].mxu0
    %v5999 = vpop.f32.mrb[0].mxu0
    %v6000 = vpop.f32.mrb[0].mxu0
    %6001 = vdwg.mxu0
    %v6002 = vmul.f32 %v5675, 0.25
    %v6003 = vmul.f32 %v5721, 0.25
    %v6004 = vmul.f32 %v5767, 0.25
    %v6005 = vmul.f32 %v5813, 0.25
    %v6006 = vmul.f32 %v5859, 0.25
    %v6007 = vmul.f32 %v5905, 0.25
    %v6008 = vmul.f32 %v5951, 0.25
    %v6009 = vmul.f32 %v5997, 0.25
    %v6010 = vadd.f32 %v6002, %v2443
    %v6011 = vadd.f32 %v6003, %v2447
    %v6012 = vadd.f32 %v6004, %v2451
    %v6013 = vadd.f32 %v6005, %v2455
    %v6014 = vadd.f32 %v6006, %v2459
    %v6015 = vadd.f32 %v6007, %v2463
    %v6016 = vadd.f32 %v6008, %v2467
    %v6017 = vadd.f32 %v6009, %v2471
    %v6018 = vsel %vm2488, %v6010, -inf
    %6019 = vmax.xlane.f32.xlu0 %v6018
    %v6020 = vpop.xlane.xlu0 %6019
    %v6021 = vsel %vm2488, %v6011, -inf
    %6022 = vmax.xlane.f32.xlu0 %v6021
    %v6023 = vpop.xlane.xlu0 %6022
    %v6024 = vsel %vm2488, %v6012, -inf
    %6025 = vmax.xlane.f32.xlu0 %v6024
    %v6026 = vpop.xlane.xlu0 %6025
    %v6027 = vsel %vm2488, %v6013, -inf
    %6028 = vmax.xlane.f32.xlu0 %v6027
    %v6029 = vpop.xlane.xlu0 %6028
    %v6030 = vsel %vm2488, %v6014, -inf
    %6031 = vmax.xlane.f32.xlu0 %v6030
    %v6032 = vpop.xlane.xlu0 %6031
    %v6033 = vsel %vm2488, %v6015, -inf
    %6034 = vmax.xlane.f32.xlu0 %v6033
    %v6035 = vpop.xlane.xlu0 %6034
    %v6036 = vsel %vm2488, %v6016, -inf
    %6037 = vmax.xlane.f32.xlu0 %v6036
    %v6038 = vpop.xlane.xlu0 %6037
    %v6039 = vsel %vm2488, %v6017, -inf
    %6040 = vmax.xlane.f32.xlu0 %v6039
    %v6041 = vpop.xlane.xlu0 %6040
    %v6042 = vsub.f32 %v6010, %v6020
    %v6043 = vsub.f32 %v6011, %v6023
    %v6044 = vsub.f32 %v6012, %v6026
    %v6045 = vsub.f32 %v6013, %v6029
    %v6046 = vsub.f32 %v6014, %v6032
    %v6047 = vsub.f32 %v6015, %v6035
    %v6048 = vsub.f32 %v6016, %v6038
    %v6049 = vsub.f32 %v6017, %v6041
    %v6050 = vmul.f32 %v6042, 1.442695
    %v6051 = vpow.pop %v6050
    %v6052 = vmul.f32 %v6043, 1.442695
    %v6053 = vpow.pop %v6052
    %v6054 = vmul.f32 %v6044, 1.442695
    %v6055 = vpow.pop %v6054
    %v6056 = vmul.f32 %v6045, 1.442695
    %v6057 = vpow.pop %v6056
    %v6058 = vmul.f32 %v6046, 1.442695
    %v6059 = vpow.pop %v6058
    %v6060 = vmul.f32 %v6047, 1.442695
    %v6061 = vpow.pop %v6060
    %v6062 = vmul.f32 %v6048, 1.442695
    %v6063 = vpow.pop %v6062
    %v6064 = vmul.f32 %v6049, 1.442695
    %v6065 = vpow.pop %v6064
    %v6066 = vsel %vm2488, %v6051, 0.0
    %6067 = vadd.xlane.f32.xlu0 %v6066
    %v6068 = vpop.xlane.xlu0 %6067
    %v6069 = vsel %vm2488, %v6053, 0.0
    %6070 = vadd.xlane.f32.xlu0 %v6069
    %v6071 = vpop.xlane.xlu0 %6070
    %v6072 = vsel %vm2488, %v6055, 0.0
    %6073 = vadd.xlane.f32.xlu0 %v6072
    %v6074 = vpop.xlane.xlu0 %6073
    %v6075 = vsel %vm2488, %v6057, 0.0
    %6076 = vadd.xlane.f32.xlu0 %v6075
    %v6077 = vpop.xlane.xlu0 %6076
    %v6078 = vsel %vm2488, %v6059, 0.0
    %6079 = vadd.xlane.f32.xlu0 %v6078
    %v6080 = vpop.xlane.xlu0 %6079
    %v6081 = vsel %vm2488, %v6061, 0.0
    %6082 = vadd.xlane.f32.xlu0 %v6081
    %v6083 = vpop.xlane.xlu0 %6082
    %v6084 = vsel %vm2488, %v6063, 0.0
    %6085 = vadd.xlane.f32.xlu0 %v6084
    %v6086 = vpop.xlane.xlu0 %6085
    %v6087 = vsel %vm2488, %v6065, 0.0
    %6088 = vadd.xlane.f32.xlu0 %v6087
    %v6089 = vpop.xlane.xlu0 %6088
    %v6090 = vrcp.pop %v6068
    %v6091 = vrcp.pop %v6071
    %v6092 = vrcp.pop %v6074
    %v6093 = vrcp.pop %v6077
    %v6094 = vrcp.pop %v6080
    %v6095 = vrcp.pop %v6083
    %v6096 = vrcp.pop %v6086
    %v6097 = vrcp.pop %v6089
    %v6098 = vmul.f32 %v6051, %v6090
    %v6099 = vmul.f32 %v6053, %v6091
    %v6100 = vmul.f32 %v6055, %v6092
    %v6101 = vmul.f32 %v6057, %v6093
    %v6102 = vmul.f32 %v6059, %v6094
    %v6103 = vmul.f32 %v6061, %v6095
    %v6104 = vmul.f32 %v6063, %v6096
    %v6105 = vmul.f32 %v6065, %v6097
    %v6106 = vpack.c.bf16 %v6098, %v6098
    %v6107 = vpack.c.bf16 %v6099, %v6099
    %v6108 = vpack.c.bf16 %v6100, %v6100
    %v6109 = vpack.c.bf16 %v6101, %v6101
    %v6110 = vpack.c.bf16 %v6102, %v6102
    %v6111 = vpack.c.bf16 %v6103, %v6103
    %v6112 = vpack.c.bf16 %v6104, %v6104
    %v6113 = vpack.c.bf16 %v6105, %v6105
    %v6114 = vpack.c.bf16 %v5165, %v5165
    %v6115 = vpack.c.bf16 %v5229, %v5229
    %v6116 = vpack.c.bf16 %v5293, %v5293
    %v6117 = vpack.c.bf16 %v5357, %v5357
    %v6118 = vpack.c.bf16 %v5421, %v5421
    %v6119 = vpack.c.bf16 %v5485, %v5485
    %v6120 = vpack.c.bf16 %v5549, %v5549
    %v6121 = vpack.c.bf16 %v5613, %v5613
    %v6123 = vsel %vm2488, %v6106, 0
    %v6126 = vsel %vm2596, %v6114, 0
    %6128 = vmatprep.subr.bf16.mxu0 0
    %6129 = vmatpush1.bf16.msra.mxu0 %v6126
    %6130 = vmatprep.subr.bf16.mxu0 0
    %6131 = vmatpush1.bf16.msra.mxu0 0
    %6132 = vmatprep.subr.bf16.mxu0 0
    %6133 = vmatpush1.bf16.msra.mxu0 0
    %6134 = vmatprep.subr.bf16.mxu0 0
    %6135 = vmatpush1.bf16.msra.mxu0 0
    %6136 = vmatprep.subr.bf16.mxu0 0
    %6137 = vmatpush1.bf16.msra.mxu0 0
    %6138 = vmatprep.subr.bf16.mxu0 0
    %6139 = vmatpush1.bf16.msra.mxu0 0
    %6140 = vmatprep.subr.bf16.mxu0 0
    %6141 = vmatpush1.bf16.msra.mxu0 0
    %6142 = vmatprep.subr.bf16.mxu0 0
    %6143 = vmatpush1.bf16.msra.mxu0 0
    %6144 = vmatprep.subr.bf16.mxu0 0
    %6145 = vmatpush1.bf16.msra.mxu0 0
    %6146 = vmatprep.subr.bf16.mxu0 0
    %6147 = vmatpush1.bf16.msra.mxu0 0
    %6148 = vmatprep.subr.bf16.mxu0 0
    %6149 = vmatpush1.bf16.msra.mxu0 0
    %6150 = vmatprep.subr.bf16.mxu0 0
    %6151 = vmatpush1.bf16.msra.mxu0 0
    %6152 = vmatprep.subr.bf16.mxu0 0
    %6153 = vmatpush1.bf16.msra.mxu0 0
    %6154 = vmatprep.subr.bf16.mxu0 0
    %6155 = vmatpush1.bf16.msra.mxu0 0
    %6156 = vmatprep.subr.bf16.mxu0 0
    %6157 = vmatpush1.bf16.msra.mxu0 0
    %6158 = vmatprep.subr.bf16.mxu0 0
    %6159 = vmatpush1.bf16.msra.mxu0 0
    %6160 = vmatprep.mubr.bf16.mxu0 0
    %6161 = vmatmul.mubr.bf16.gmra.mrb[0].mxu0 %v6123
    %v6162 = vpop.f32.mrb[0].mxu0
    %v6163 = vadd.f32 0.0, %v6162
    %v6164 = vpop.f32.mrb[0].mxu0
    %v6165 = vpop.f32.mrb[0].mxu0
    %v6166 = vpop.f32.mrb[0].mxu0
    %6167 = vdwg.mxu0
    %v6169 = vsel %vm2488, %v6107, 0
    %v6172 = vsel %vm2596, %v6115, 0
    %6174 = vmatprep.subr.bf16.mxu0 0
    %6175 = vmatpush1.bf16.msra.mxu0 %v6172
    %6176 = vmatprep.subr.bf16.mxu0 0
    %6177 = vmatpush1.bf16.msra.mxu0 0
    %6178 = vmatprep.subr.bf16.mxu0 0
    %6179 = vmatpush1.bf16.msra.mxu0 0
    %6180 = vmatprep.subr.bf16.mxu0 0
    %6181 = vmatpush1.bf16.msra.mxu0 0
    %6182 = vmatprep.subr.bf16.mxu0 0
    %6183 = vmatpush1.bf16.msra.mxu0 0
    %6184 = vmatprep.subr.bf16.mxu0 0
    %6185 = vmatpush1.bf16.msra.mxu0 0
    %6186 = vmatprep.subr.bf16.mxu0 0
    %6187 = vmatpush1.bf16.msra.mxu0 0
    %6188 = vmatprep.subr.bf16.mxu0 0
    %6189 = vmatpush1.bf16.msra.mxu0 0
    %6190 = vmatprep.subr.bf16.mxu0 0
    %6191 = vmatpush1.bf16.msra.mxu0 0
    %6192 = vmatprep.subr.bf16.mxu0 0
    %6193 = vmatpush1.bf16.msra.mxu0 0
    %6194 = vmatprep.subr.bf16.mxu0 0
    %6195 = vmatpush1.bf16.msra.mxu0 0
    %6196 = vmatprep.subr.bf16.mxu0 0
    %6197 = vmatpush1.bf16.msra.mxu0 0
    %6198 = vmatprep.subr.bf16.mxu0 0
    %6199 = vmatpush1.bf16.msra.mxu0 0
    %6200 = vmatprep.subr.bf16.mxu0 0
    %6201 = vmatpush1.bf16.msra.mxu0 0
    %6202 = vmatprep.subr.bf16.mxu0 0
    %6203 = vmatpush1.bf16.msra.mxu0 0
    %6204 = vmatprep.subr.bf16.mxu0 0
    %6205 = vmatpush1.bf16.msra.mxu0 0
    %6206 = vmatprep.mubr.bf16.mxu0 0
    %6207 = vmatmul.mubr.bf16.gmra.mrb[0].mxu0 %v6169
    %v6208 = vpop.f32.mrb[0].mxu0
    %v6209 = vadd.f32 0.0, %v6208
    %v6210 = vpop.f32.mrb[0].mxu0
    %v6211 = vpop.f32.mrb[0].mxu0
    %v6212 = vpop.f32.mrb[0].mxu0
    %6213 = vdwg.mxu0
    %v6215 = vsel %vm2488, %v6108, 0
    %v6218 = vsel %vm2596, %v6116, 0
    %6220 = vmatprep.subr.bf16.mxu0 0
    %6221 = vmatpush1.bf16.msra.mxu0 %v6218
    %6222 = vmatprep.subr.bf16.mxu0 0
    %6223 = vmatpush1.bf16.msra.mxu0 0
    %6224 = vmatprep.subr.bf16.mxu0 0
    %6225 = vmatpush1.bf16.msra.mxu0 0
    %6226 = vmatprep.subr.bf16.mxu0 0
    %6227 = vmatpush1.bf16.msra.mxu0 0
    %6228 = vmatprep.subr.bf16.mxu0 0
    %6229 = vmatpush1.bf16.msra.mxu0 0
    %6230 = vmatprep.subr.bf16.mxu0 0
    %6231 = vmatpush1.bf16.msra.mxu0 0
    %6232 = vmatprep.subr.bf16.mxu0 0
    %6233 = vmatpush1.bf16.msra.mxu0 0
    %6234 = vmatprep.subr.bf16.mxu0 0
    %6235 = vmatpush1.bf16.msra.mxu0 0
    %6236 = vmatprep.subr.bf16.mxu0 0
    %6237 = vmatpush1.bf16.msra.mxu0 0
    %6238 = vmatprep.subr.bf16.mxu0 0
    %6239 = vmatpush1.bf16.msra.mxu0 0
    %6240 = vmatprep.subr.bf16.mxu0 0
    %6241 = vmatpush1.bf16.msra.mxu0 0
    %6242 = vmatprep.subr.bf16.mxu0 0
    %6243 = vmatpush1.bf16.msra.mxu0 0
    %6244 = vmatprep.subr.bf16.mxu0 0
    %6245 = vmatpush1.bf16.msra.mxu0 0
    %6246 = vmatprep.subr.bf16.mxu0 0
    %6247 = vmatpush1.bf16.msra.mxu0 0
    %6248 = vmatprep.subr.bf16.mxu0 0
    %6249 = vmatpush1.bf16.msra.mxu0 0
    %6250 = vmatprep.subr.bf16.mxu0 0
    %6251 = vmatpush1.bf16.msra.mxu0 0
    %6252 = vmatprep.mubr.bf16.mxu0 0
    %6253 = vmatmul.mubr.bf16.gmra.mrb[0].mxu0 %v6215
    %v6254 = vpop.f32.mrb[0].mxu0
    %v6255 = vadd.f32 0.0, %v6254
    %v6256 = vpop.f32.mrb[0].mxu0
    %v6257 = vpop.f32.mrb[0].mxu0
    %v6258 = vpop.f32.mrb[0].mxu0
    %6259 = vdwg.mxu0
    %v6261 = vsel %vm2488, %v6109, 0
    %v6264 = vsel %vm2596, %v6117, 0
    %6266 = vmatprep.subr.bf16.mxu0 0
    %6267 = vmatpush1.bf16.msra.mxu0 %v6264
    %6268 = vmatprep.subr.bf16.mxu0 0
    %6269 = vmatpush1.bf16.msra.mxu0 0
    %6270 = vmatprep.subr.bf16.mxu0 0
    %6271 = vmatpush1.bf16.msra.mxu0 0
    %6272 = vmatprep.subr.bf16.mxu0 0
    %6273 = vmatpush1.bf16.msra.mxu0 0
    %6274 = vmatprep.subr.bf16.mxu0 0
    %6275 = vmatpush1.bf16.msra.mxu0 0
    %6276 = vmatprep.subr.bf16.mxu0 0
    %6277 = vmatpush1.bf16.msra.mxu0 0
    %6278 = vmatprep.subr.bf16.mxu0 0
    %6279 = vmatpush1.bf16.msra.mxu0 0
    %6280 = vmatprep.subr.bf16.mxu0 0
    %6281 = vmatpush1.bf16.msra.mxu0 0
    %6282 = vmatprep.subr.bf16.mxu0 0
    %6283 = vmatpush1.bf16.msra.mxu0 0
    %6284 = vmatprep.subr.bf16.mxu0 0
    %6285 = vmatpush1.bf16.msra.mxu0 0
    %6286 = vmatprep.subr.bf16.mxu0 0
    %6287 = vmatpush1.bf16.msra.mxu0 0
    %6288 = vmatprep.subr.bf16.mxu0 0
    %6289 = vmatpush1.bf16.msra.mxu0 0
    %6290 = vmatprep.subr.bf16.mxu0 0
    %6291 = vmatpush1.bf16.msra.mxu0 0
    %6292 = vmatprep.subr.bf16.mxu0 0
    %6293 = vmatpush1.bf16.msra.mxu0 0
    %6294 = vmatprep.subr.bf16.mxu0 0
    %6295 = vmatpush1.bf16.msra.mxu0 0
    %6296 = vmatprep.subr.bf16.mxu0 0
    %6297 = vmatpush1.bf16.msra.mxu0 0
    %6298 = vmatprep.mubr.bf16.mxu0 0
    %6299 = vmatmul.mubr.bf16.gmra.mrb[0].mxu0 %v6261
    %v6300 = vpop.f32.mrb[0].mxu0
    %v6301 = vadd.f32 0.0, %v6300
    %v6302 = vpop.f32.mrb[0].mxu0
    %v6303 = vpop.f32.mrb[0].mxu0
    %v6304 = vpop.f32.mrb[0].mxu0
    %6305 = vdwg.mxu0
    %v6307 = vsel %vm2488, %v6110, 0
    %v6310 = vsel %vm2596, %v6118, 0
    %6312 = vmatprep.subr.bf16.mxu0 0
    %6313 = vmatpush1.bf16.msra.mxu0 %v6310
    %6314 = vmatprep.subr.bf16.mxu0 0
    %6315 = vmatpush1.bf16.msra.mxu0 0
    %6316 = vmatprep.subr.bf16.mxu0 0
    %6317 = vmatpush1.bf16.msra.mxu0 0
    %6318 = vmatprep.subr.bf16.mxu0 0
    %6319 = vmatpush1.bf16.msra.mxu0 0
    %6320 = vmatprep.subr.bf16.mxu0 0
    %6321 = vmatpush1.bf16.msra.mxu0 0
    %6322 = vmatprep.subr.bf16.mxu0 0
    %6323 = vmatpush1.bf16.msra.mxu0 0
    %6324 = vmatprep.subr.bf16.mxu0 0
    %6325 = vmatpush1.bf16.msra.mxu0 0
    %6326 = vmatprep.subr.bf16.mxu0 0
    %6327 = vmatpush1.bf16.msra.mxu0 0
    %6328 = vmatprep.subr.bf16.mxu0 0
    %6329 = vmatpush1.bf16.msra.mxu0 0
    %6330 = vmatprep.subr.bf16.mxu0 0
    %6331 = vmatpush1.bf16.msra.mxu0 0
    %6332 = vmatprep.subr.bf16.mxu0 0
    %6333 = vmatpush1.bf16.msra.mxu0 0
    %6334 = vmatprep.subr.bf16.mxu0 0
    %6335 = vmatpush1.bf16.msra.mxu0 0
    %6336 = vmatprep.subr.bf16.mxu0 0
    %6337 = vmatpush1.bf16.msra.mxu0 0
    %6338 = vmatprep.subr.bf16.mxu0 0
    %6339 = vmatpush1.bf16.msra.mxu0 0
    %6340 = vmatprep.subr.bf16.mxu0 0
    %6341 = vmatpush1.bf16.msra.mxu0 0
    %6342 = vmatprep.subr.bf16.mxu0 0
    %6343 = vmatpush1.bf16.msra.mxu0 0
    %6344 = vmatprep.mubr.bf16.mxu0 0
    %6345 = vmatmul.mubr.bf16.gmra.mrb[0].mxu0 %v6307
    %v6346 = vpop.f32.mrb[0].mxu0
    %v6347 = vadd.f32 0.0, %v6346
    %v6348 = vpop.f32.mrb[0].mxu0
    %v6349 = vpop.f32.mrb[0].mxu0
    %v6350 = vpop.f32.mrb[0].mxu0
    %6351 = vdwg.mxu0
    %v6353 = vsel %vm2488, %v6111, 0
    %v6356 = vsel %vm2596, %v6119, 0
    %6358 = vmatprep.subr.bf16.mxu0 0
    %6359 = vmatpush1.bf16.msra.mxu0 %v6356
    %6360 = vmatprep.subr.bf16.mxu0 0
    %6361 = vmatpush1.bf16.msra.mxu0 0
    %6362 = vmatprep.subr.bf16.mxu0 0
    %6363 = vmatpush1.bf16.msra.mxu0 0
    %6364 = vmatprep.subr.bf16.mxu0 0
    %6365 = vmatpush1.bf16.msra.mxu0 0
    %6366 = vmatprep.subr.bf16.mxu0 0
    %6367 = vmatpush1.bf16.msra.mxu0 0
    %6368 = vmatprep.subr.bf16.mxu0 0
    %6369 = vmatpush1.bf16.msra.mxu0 0
    %6370 = vmatprep.subr.bf16.mxu0 0
    %6371 = vmatpush1.bf16.msra.mxu0 0
    %6372 = vmatprep.subr.bf16.mxu0 0
    %6373 = vmatpush1.bf16.msra.mxu0 0
    %6374 = vmatprep.subr.bf16.mxu0 0
    %6375 = vmatpush1.bf16.msra.mxu0 0
    %6376 = vmatprep.subr.bf16.mxu0 0
    %6377 = vmatpush1.bf16.msra.mxu0 0
    %6378 = vmatprep.subr.bf16.mxu0 0
    %6379 = vmatpush1.bf16.msra.mxu0 0
    %6380 = vmatprep.subr.bf16.mxu0 0
    %6381 = vmatpush1.bf16.msra.mxu0 0
    %6382 = vmatprep.subr.bf16.mxu0 0
    %6383 = vmatpush1.bf16.msra.mxu0 0
    %6384 = vmatprep.subr.bf16.mxu0 0
    %6385 = vmatpush1.bf16.msra.mxu0 0
    %6386 = vmatprep.subr.bf16.mxu0 0
    %6387 = vmatpush1.bf16.msra.mxu0 0
    %6388 = vmatprep.subr.bf16.mxu0 0
    %6389 = vmatpush1.bf16.msra.mxu0 0
    %6390 = vmatprep.mubr.bf16.mxu0 0
    %6391 = vmatmul.mubr.bf16.gmra.mrb[0].mxu0 %v6353
    %v6392 = vpop.f32.mrb[0].mxu0
    %v6393 = vadd.f32 0.0, %v6392
    %v6394 = vpop.f32.mrb[0].mxu0
    %v6395 = vpop.f32.mrb[0].mxu0
    %v6396 = vpop.f32.mrb[0].mxu0
    %6397 = vdwg.mxu0
    %v6399 = vsel %vm2488, %v6112, 0
    %v6402 = vsel %vm2596, %v6120, 0
    %6404 = vmatprep.subr.bf16.mxu0 0
    %6405 = vmatpush1.bf16.msra.mxu0 %v6402
    %6406 = vmatprep.subr.bf16.mxu0 0
    %6407 = vmatpush1.bf16.msra.mxu0 0
    %6408 = vmatprep.subr.bf16.mxu0 0
    %6409 = vmatpush1.bf16.msra.mxu0 0
    %6410 = vmatprep.subr.bf16.mxu0 0
    %6411 = vmatpush1.bf16.msra.mxu0 0
    %6412 = vmatprep.subr.bf16.mxu0 0
    %6413 = vmatpush1.bf16.msra.mxu0 0
    %6414 = vmatprep.subr.bf16.mxu0 0
    %6415 = vmatpush1.bf16.msra.mxu0 0
    %6416 = vmatprep.subr.bf16.mxu0 0
    %6417 = vmatpush1.bf16.msra.mxu0 0
    %6418 = vmatprep.subr.bf16.mxu0 0
    %6419 = vmatpush1.bf16.msra.mxu0 0
    %6420 = vmatprep.subr.bf16.mxu0 0
    %6421 = vmatpush1.bf16.msra.mxu0 0
    %6422 = vmatprep.subr.bf16.mxu0 0
    %6423 = vmatpush1.bf16.msra.mxu0 0
    %6424 = vmatprep.subr.bf16.mxu0 0
    %6425 = vmatpush1.bf16.msra.mxu0 0
    %6426 = vmatprep.subr.bf16.mxu0 0
    %6427 = vmatpush1.bf16.msra.mxu0 0
    %6428 = vmatprep.subr.bf16.mxu0 0
    %6429 = vmatpush1.bf16.msra.mxu0 0
    %6430 = vmatprep.subr.bf16.mxu0 0
    %6431 = vmatpush1.bf16.msra.mxu0 0
    %6432 = vmatprep.subr.bf16.mxu0 0
    %6433 = vmatpush1.bf16.msra.mxu0 0
    %6434 = vmatprep.subr.bf16.mxu0 0
    %6435 = vmatpush1.bf16.msra.mxu0 0
    %6436 = vmatprep.mubr.bf16.mxu0 0
    %6437 = vmatmul.mubr.bf16.gmra.mrb[0].mxu0 %v6399
    %v6438 = vpop.f32.mrb[0].mxu0
    %v6439 = vadd.f32 0.0, %v6438
    %v6440 = vpop.f32.mrb[0].mxu0
    %v6441 = vpop.f32.mrb[0].mxu0
    %v6442 = vpop.f32.mrb[0].mxu0
    %6443 = vdwg.mxu0
    %v6445 = vsel %vm2488, %v6113, 0
    %v6448 = vsel %vm2596, %v6121, 0
    %6450 = vmatprep.subr.bf16.mxu0 0
    %6451 = vmatpush1.bf16.msra.mxu0 %v6448
    %6452 = vmatprep.subr.bf16.mxu0 0
    %6453 = vmatpush1.bf16.msra.mxu0 0
    %6454 = vmatprep.subr.bf16.mxu0 0
    %6455 = vmatpush1.bf16.msra.mxu0 0
    %6456 = vmatprep.subr.bf16.mxu0 0
    %6457 = vmatpush1.bf16.msra.mxu0 0
    %6458 = vmatprep.subr.bf16.mxu0 0
    %6459 = vmatpush1.bf16.msra.mxu0 0
    %6460 = vmatprep.subr.bf16.mxu0 0
    %6461 = vmatpush1.bf16.msra.mxu0 0
    %6462 = vmatprep.subr.bf16.mxu0 0
    %6463 = vmatpush1.bf16.msra.mxu0 0
    %6464 = vmatprep.subr.bf16.mxu0 0
    %6465 = vmatpush1.bf16.msra.mxu0 0
    %6466 = vmatprep.subr.bf16.mxu0 0
    %6467 = vmatpush1.bf16.msra.mxu0 0
    %6468 = vmatprep.subr.bf16.mxu0 0
    %6469 = vmatpush1.bf16.msra.mxu0 0
    %6470 = vmatprep.subr.bf16.mxu0 0
    %6471 = vmatpush1.bf16.msra.mxu0 0
    %6472 = vmatprep.subr.bf16.mxu0 0
    %6473 = vmatpush1.bf16.msra.mxu0 0
    %6474 = vmatprep.subr.bf16.mxu0 0
    %6475 = vmatpush1.bf16.msra.mxu0 0
    %6476 = vmatprep.subr.bf16.mxu0 0
    %6477 = vmatpush1.bf16.msra.mxu0 0
    %6478 = vmatprep.subr.bf16.mxu0 0
    %6479 = vmatpush1.bf16.msra.mxu0 0
    %6480 = vmatprep.subr.bf16.mxu0 0
    %6481 = vmatpush1.bf16.msra.mxu0 0
    %6482 = vmatprep.mubr.bf16.mxu0 0
    %6483 = vmatmul.mubr.bf16.gmra.mrb[0].mxu0 %v6445
    %v6484 = vpop.f32.mrb[0].mxu0
    %v6485 = vadd.f32 0.0, %v6484
    %v6486 = vpop.f32.mrb[0].mxu0
    %v6487 = vpop.f32.mrb[0].mxu0
    %v6488 = vpop.f32.mrb[0].mxu0
    %6489 = vdwg.mxu0
    %v6490 = vpack.c.bf16 %v6163, %v6163
    %v6491 = vpack.c.bf16 %v6209, %v6209
    %v6492 = vpack.c.bf16 %v6255, %v6255
    %v6493 = vpack.c.bf16 %v6301, %v6301
    %v6494 = vpack.c.bf16 %v6347, %v6347
    %v6495 = vpack.c.bf16 %v6393, %v6393
    %v6496 = vpack.c.bf16 %v6439, %v6439
    %v6497 = vpack.c.bf16 %v6485, %v6485
    %s6498 = scalar_lea.vmem %s10, 64
    %v6499 = vld [vmem:[%s6498] sm:$0xf]
    %v6500 = vld [vmem:[%s6498 + $0x4] sm:$0xf]
    %v6501 = vld [vmem:[%s6498 + $0x8] sm:$0xf]
    %v6502 = vld [vmem:[%s6498 + $0xc] sm:$0xf]
    %v6503 = vld [vmem:[%s6498 + $0x10] sm:$0xf]
    %v6504 = vld [vmem:[%s6498 + $0x14] sm:$0xf]
    %v6505 = vld [vmem:[%s6498 + $0x18] sm:$0xf]
    %v6506 = vld [vmem:[%s6498 + $0x1c] sm:$0xf]
    %v6507 = vld [vmem:[%s6498 + $0x20] sm:$0xf]
    %v6508 = vld [vmem:[%s6498 + $0x24] sm:$0xf]
    %v6509 = vld [vmem:[%s6498 + $0x28] sm:$0xf]
    %v6510 = vld [vmem:[%s6498 + $0x2c] sm:$0xf]
    %v6511 = vld [vmem:[%s6498 + $0x30] sm:$0xf]
    %v6512 = vld [vmem:[%s6498 + $0x34] sm:$0xf]
    %v6513 = vld [vmem:[%s6498 + $0x38] sm:$0xf]
    %v6514 = vld [vmem:[%s6498 + $0x3c] sm:$0xf]
    %v6517 = vunpack.c.l.b16 %v6499
    %v6518 = vunpack.c.l.b16 %v6500
    %v6519 = vpack.c.b16 %v6518, %v6517
    %v6522 = vsel %vm2055, %v6490, 0
    %6524 = vmatprep.subr.bf16.mxu0 0
    %6525 = vmatpush1.bf16.msra.mxu0 %v6519
    %6526 = vmatprep.subr.bf16.mxu0 0
    %6527 = vmatpush1.bf16.msra.mxu0 0
    %6528 = vmatprep.subr.bf16.mxu0 0
    %6529 = vmatpush1.bf16.msra.mxu0 0
    %6530 = vmatprep.subr.bf16.mxu0 0
    %6531 = vmatpush1.bf16.msra.mxu0 0
    %6532 = vmatprep.subr.bf16.mxu0 0
    %6533 = vmatpush1.bf16.msra.mxu0 0
    %6534 = vmatprep.subr.bf16.mxu0 0
    %6535 = vmatpush1.bf16.msra.mxu0 0
    %6536 = vmatprep.subr.bf16.mxu0 0
    %6537 = vmatpush1.bf16.msra.mxu0 0
    %6538 = vmatprep.subr.bf16.mxu0 0
    %6539 = vmatpush1.bf16.msra.mxu0 0
    %6540 = vmatprep.subr.bf16.mxu0 0
    %6541 = vmatpush1.bf16.msra.mxu0 0
    %6542 = vmatprep.subr.bf16.mxu0 0
    %6543 = vmatpush1.bf16.msra.mxu0 0
    %6544 = vmatprep.subr.bf16.mxu0 0
    %6545 = vmatpush1.bf16.msra.mxu0 0
    %6546 = vmatprep.subr.bf16.mxu0 0
    %6547 = vmatpush1.bf16.msra.mxu0 0
    %6548 = vmatprep.subr.bf16.mxu0 0
    %6549 = vmatpush1.bf16.msra.mxu0 0
    %6550 = vmatprep.subr.bf16.mxu0 0
    %6551 = vmatpush1.bf16.msra.mxu0 0
    %6552 = vmatprep.subr.bf16.mxu0 0
    %6553 = vmatpush1.bf16.msra.mxu0 0
    %6554 = vmatprep.subr.bf16.mxu0 0
    %6555 = vmatpush1.bf16.msra.mxu0 0
    %6556 = vmatprep.mubr.bf16.mxu0 0
    %6557 = vmatmul.mubr.bf16.gmra.mrb[0].mxu0 %v6522
    %v6558 = vpop.f32.mrb[0].mxu0
    %v6559 = vadd.f32 0.0, %v6558
    %v6560 = vpop.f32.mrb[0].mxu0
    %v6561 = vpop.f32.mrb[0].mxu0
    %v6562 = vpop.f32.mrb[0].mxu0
    %6563 = vdwg.mxu0
    %v6566 = vunpack.c.l.b16 %v6501
    %v6567 = vunpack.c.l.b16 %v6502
    %v6568 = vpack.c.b16 %v6567, %v6566
    %v6571 = vsel %vm2055, %v6491, 0
    %6573 = vmatprep.subr.bf16.mxu0 0
    %6574 = vmatpush1.bf16.msra.mxu0 %v6568
    %6575 = vmatprep.subr.bf16.mxu0 0
    %6576 = vmatpush1.bf16.msra.mxu0 0
    %6577 = vmatprep.subr.bf16.mxu0 0
    %6578 = vmatpush1.bf16.msra.mxu0 0
    %6579 = vmatprep.subr.bf16.mxu0 0
    %6580 = vmatpush1.bf16.msra.mxu0 0
    %6581 = vmatprep.subr.bf16.mxu0 0
    %6582 = vmatpush1.bf16.msra.mxu0 0
    %6583 = vmatprep.subr.bf16.mxu0 0
    %6584 = vmatpush1.bf16.msra.mxu0 0
    %6585 = vmatprep.subr.bf16.mxu0 0
    %6586 = vmatpush1.bf16.msra.mxu0 0
    %6587 = vmatprep.subr.bf16.mxu0 0
    %6588 = vmatpush1.bf16.msra.mxu0 0
    %6589 = vmatprep.subr.bf16.mxu0 0
    %6590 = vmatpush1.bf16.msra.mxu0 0
    %6591 = vmatprep.subr.bf16.mxu0 0
    %6592 = vmatpush1.bf16.msra.mxu0 0
    %6593 = vmatprep.subr.bf16.mxu0 0
    %6594 = vmatpush1.bf16.msra.mxu0 0
    %6595 = vmatprep.subr.bf16.mxu0 0
    %6596 = vmatpush1.bf16.msra.mxu0 0
    %6597 = vmatprep.subr.bf16.mxu0 0
    %6598 = vmatpush1.bf16.msra.mxu0 0
    %6599 = vmatprep.subr.bf16.mxu0 0
    %6600 = vmatpush1.bf16.msra.mxu0 0
    %6601 = vmatprep.subr.bf16.mxu0 0
    %6602 = vmatpush1.bf16.msra.mxu0 0
    %6603 = vmatprep.subr.bf16.mxu0 0
    %6604 = vmatpush1.bf16.msra.mxu0 0
    %6605 = vmatprep.mubr.bf16.mxu0 0
    %6606 = vmatmul.mubr.bf16.gmra.mrb[0].mxu0 %v6571
    %v6607 = vpop.f32.mrb[0].mxu0
    %v6608 = vadd.f32 0.0, %v6607
    %v6609 = vpop.f32.mrb[0].mxu0
    %v6610 = vpop.f32.mrb[0].mxu0
    %v6611 = vpop.f32.mrb[0].mxu0
    %6612 = vdwg.mxu0
    %v6615 = vunpack.c.l.b16 %v6503
    %v6616 = vunpack.c.l.b16 %v6504
    %v6617 = vpack.c.b16 %v6616, %v6615
    %v6620 = vsel %vm2055, %v6492, 0
    %6622 = vmatprep.subr.bf16.mxu0 0
    %6623 = vmatpush1.bf16.msra.mxu0 %v6617
    %6624 = vmatprep.subr.bf16.mxu0 0
    %6625 = vmatpush1.bf16.msra.mxu0 0
    %6626 = vmatprep.subr.bf16.mxu0 0
    %6627 = vmatpush1.bf16.msra.mxu0 0
    %6628 = vmatprep.subr.bf16.mxu0 0
    %6629 = vmatpush1.bf16.msra.mxu0 0
    %6630 = vmatprep.subr.bf16.mxu0 0
    %6631 = vmatpush1.bf16.msra.mxu0 0
    %6632 = vmatprep.subr.bf16.mxu0 0
    %6633 = vmatpush1.bf16.msra.mxu0 0
    %6634 = vmatprep.subr.bf16.mxu0 0
    %6635 = vmatpush1.bf16.msra.mxu0 0
    %6636 = vmatprep.subr.bf16.mxu0 0
    %6637 = vmatpush1.bf16.msra.mxu0 0
    %6638 = vmatprep.subr.bf16.mxu0 0
    %6639 = vmatpush1.bf16.msra.mxu0 0
    %6640 = vmatprep.subr.bf16.mxu0 0
    %6641 = vmatpush1.bf16.msra.mxu0 0
    %6642 = vmatprep.subr.bf16.mxu0 0
    %6643 = vmatpush1.bf16.msra.mxu0 0
    %6644 = vmatprep.subr.bf16.mxu0 0
    %6645 = vmatpush1.bf16.msra.mxu0 0
    %6646 = vmatprep.subr.bf16.mxu0 0
    %6647 = vmatpush1.bf16.msra.mxu0 0
    %6648 = vmatprep.subr.bf16.mxu0 0
    %6649 = vmatpush1.bf16.msra.mxu0 0
    %6650 = vmatprep.subr.bf16.mxu0 0
    %6651 = vmatpush1.bf16.msra.mxu0 0
    %6652 = vmatprep.subr.bf16.mxu0 0
    %6653 = vmatpush1.bf16.msra.mxu0 0
    %6654 = vmatprep.mubr.bf16.mxu0 0
    %6655 = vmatmul.mubr.bf16.gmra.mrb[0].mxu0 %v6620
    %v6656 = vpop.f32.mrb[0].mxu0
    %v6657 = vadd.f32 0.0, %v6656
    %v6658 = vpop.f32.mrb[0].mxu0
    %v6659 = vpop.f32.mrb[0].mxu0
    %v6660 = vpop.f32.mrb[0].mxu0
    %6661 = vdwg.mxu0
    %v6664 = vunpack.c.l.b16 %v6505
    %v6665 = vunpack.c.l.b16 %v6506
    %v6666 = vpack.c.b16 %v6665, %v6664
    %v6669 = vsel %vm2055, %v6493, 0
    %6671 = vmatprep.subr.bf16.mxu0 0
    %6672 = vmatpush1.bf16.msra.mxu0 %v6666
    %6673 = vmatprep.subr.bf16.mxu0 0
    %6674 = vmatpush1.bf16.msra.mxu0 0
    %6675 = vmatprep.subr.bf16.mxu0 0
    %6676 = vmatpush1.bf16.msra.mxu0 0
    %6677 = vmatprep.subr.bf16.mxu0 0
    %6678 = vmatpush1.bf16.msra.mxu0 0
    %6679 = vmatprep.subr.bf16.mxu0 0
    %6680 = vmatpush1.bf16.msra.mxu0 0
    %6681 = vmatprep.subr.bf16.mxu0 0
    %6682 = vmatpush1.bf16.msra.mxu0 0
    %6683 = vmatprep.subr.bf16.mxu0 0
    %6684 = vmatpush1.bf16.msra.mxu0 0
    %6685 = vmatprep.subr.bf16.mxu0 0
    %6686 = vmatpush1.bf16.msra.mxu0 0
    %6687 = vmatprep.subr.bf16.mxu0 0
    %6688 = vmatpush1.bf16.msra.mxu0 0
    %6689 = vmatprep.subr.bf16.mxu0 0
    %6690 = vmatpush1.bf16.msra.mxu0 0
    %6691 = vmatprep.subr.bf16.mxu0 0
    %6692 = vmatpush1.bf16.msra.mxu0 0
    %6693 = vmatprep.subr.bf16.mxu0 0
    %6694 = vmatpush1.bf16.msra.mxu0 0
    %6695 = vmatprep.subr.bf16.mxu0 0
    %6696 = vmatpush1.bf16.msra.mxu0 0
    %6697 = vmatprep.subr.bf16.mxu0 0
    %6698 = vmatpush1.bf16.msra.mxu0 0
    %6699 = vmatprep.subr.bf16.mxu0 0
    %6700 = vmatpush1.bf16.msra.mxu0 0
    %6701 = vmatprep.subr.bf16.mxu0 0
    %6702 = vmatpush1.bf16.msra.mxu0 0
    %6703 = vmatprep.mubr.bf16.mxu0 0
    %6704 = vmatmul.mubr.bf16.gmra.mrb[0].mxu0 %v6669
    %v6705 = vpop.f32.mrb[0].mxu0
    %v6706 = vadd.f32 0.0, %v6705
    %v6707 = vpop.f32.mrb[0].mxu0
    %v6708 = vpop.f32.mrb[0].mxu0
    %v6709 = vpop.f32.mrb[0].mxu0
    %6710 = vdwg.mxu0
    %v6713 = vunpack.c.l.b16 %v6507
    %v6714 = vunpack.c.l.b16 %v6508
    %v6715 = vpack.c.b16 %v6714, %v6713
    %v6718 = vsel %vm2055, %v6494, 0
    %6720 = vmatprep.subr.bf16.mxu0 0
    %6721 = vmatpush1.bf16.msra.mxu0 %v6715
    %6722 = vmatprep.subr.bf16.mxu0 0
    %6723 = vmatpush1.bf16.msra.mxu0 0
    %6724 = vmatprep.subr.bf16.mxu0 0
    %6725 = vmatpush1.bf16.msra.mxu0 0
    %6726 = vmatprep.subr.bf16.mxu0 0
    %6727 = vmatpush1.bf16.msra.mxu0 0
    %6728 = vmatprep.subr.bf16.mxu0 0
    %6729 = vmatpush1.bf16.msra.mxu0 0
    %6730 = vmatprep.subr.bf16.mxu0 0
    %6731 = vmatpush1.bf16.msra.mxu0 0
    %6732 = vmatprep.subr.bf16.mxu0 0
    %6733 = vmatpush1.bf16.msra.mxu0 0
    %6734 = vmatprep.subr.bf16.mxu0 0
    %6735 = vmatpush1.bf16.msra.mxu0 0
    %6736 = vmatprep.subr.bf16.mxu0 0
    %6737 = vmatpush1.bf16.msra.mxu0 0
    %6738 = vmatprep.subr.bf16.mxu0 0
    %6739 = vmatpush1.bf16.msra.mxu0 0
    %6740 = vmatprep.subr.bf16.mxu0 0
    %6741 = vmatpush1.bf16.msra.mxu0 0
    %6742 = vmatprep.subr.bf16.mxu0 0
    %6743 = vmatpush1.bf16.msra.mxu0 0
    %6744 = vmatprep.subr.bf16.mxu0 0
    %6745 = vmatpush1.bf16.msra.mxu0 0
    %6746 = vmatprep.subr.bf16.mxu0 0
    %6747 = vmatpush1.bf16.msra.mxu0 0
    %6748 = vmatprep.subr.bf16.mxu0 0
    %6749 = vmatpush1.bf16.msra.mxu0 0
    %6750 = vmatprep.subr.bf16.mxu0 0
    %6751 = vmatpush1.bf16.msra.mxu0 0
    %6752 = vmatprep.mubr.bf16.mxu0 0
    %6753 = vmatmul.mubr.bf16.gmra.mrb[0].mxu0 %v6718
    %v6754 = vpop.f32.mrb[0].mxu0
    %v6755 = vadd.f32 0.0, %v6754
    %v6756 = vpop.f32.mrb[0].mxu0
    %v6757 = vpop.f32.mrb[0].mxu0
    %v6758 = vpop.f32.mrb[0].mxu0
    %6759 = vdwg.mxu0
    %v6762 = vunpack.c.l.b16 %v6509
    %v6763 = vunpack.c.l.b16 %v6510
    %v6764 = vpack.c.b16 %v6763, %v6762
    %v6767 = vsel %vm2055, %v6495, 0
    %6769 = vmatprep.subr.bf16.mxu0 0
    %6770 = vmatpush1.bf16.msra.mxu0 %v6764
    %6771 = vmatprep.subr.bf16.mxu0 0
    %6772 = vmatpush1.bf16.msra.mxu0 0
    %6773 = vmatprep.subr.bf16.mxu0 0
    %6774 = vmatpush1.bf16.msra.mxu0 0
    %6775 = vmatprep.subr.bf16.mxu0 0
    %6776 = vmatpush1.bf16.msra.mxu0 0
    %6777 = vmatprep.subr.bf16.mxu0 0
    %6778 = vmatpush1.bf16.msra.mxu0 0
    %6779 = vmatprep.subr.bf16.mxu0 0
    %6780 = vmatpush1.bf16.msra.mxu0 0
    %6781 = vmatprep.subr.bf16.mxu0 0
    %6782 = vmatpush1.bf16.msra.mxu0 0
    %6783 = vmatprep.subr.bf16.mxu0 0
    %6784 = vmatpush1.bf16.msra.mxu0 0
    %6785 = vmatprep.subr.bf16.mxu0 0
    %6786 = vmatpush1.bf16.msra.mxu0 0
    %6787 = vmatprep.subr.bf16.mxu0 0
    %6788 = vmatpush1.bf16.msra.mxu0 0
    %6789 = vmatprep.subr.bf16.mxu0 0
    %6790 = vmatpush1.bf16.msra.mxu0 0
    %6791 = vmatprep.subr.bf16.mxu0 0
    %6792 = vmatpush1.bf16.msra.mxu0 0
    %6793 = vmatprep.subr.bf16.mxu0 0
    %6794 = vmatpush1.bf16.msra.mxu0 0
    %6795 = vmatprep.subr.bf16.mxu0 0
    %6796 = vmatpush1.bf16.msra.mxu0 0
    %6797 = vmatprep.subr.bf16.mxu0 0
    %6798 = vmatpush1.bf16.msra.mxu0 0
    %6799 = vmatprep.subr.bf16.mxu0 0
    %6800 = vmatpush1.bf16.msra.mxu0 0
    %6801 = vmatprep.mubr.bf16.mxu0 0
    %6802 = vmatmul.mubr.bf16.gmra.mrb[0].mxu0 %v6767
    %v6803 = vpop.f32.mrb[0].mxu0
    %v6804 = vadd.f32 0.0, %v6803
    %v6805 = vpop.f32.mrb[0].mxu0
    %v6806 = vpop.f32.mrb[0].mxu0
    %v6807 = vpop.f32.mrb[0].mxu0
    %6808 = vdwg.mxu0
    %v6811 = vunpack.c.l.b16 %v6511
    %v6812 = vunpack.c.l.b16 %v6512
    %v6813 = vpack.c.b16 %v6812, %v6811
    %v6816 = vsel %vm2055, %v6496, 0
    %6818 = vmatprep.subr.bf16.mxu0 0
    %6819 = vmatpush1.bf16.msra.mxu0 %v6813
    %6820 = vmatprep.subr.bf16.mxu0 0
    %6821 = vmatpush1.bf16.msra.mxu0 0
    %6822 = vmatprep.subr.bf16.mxu0 0
    %6823 = vmatpush1.bf16.msra.mxu0 0
    %6824 = vmatprep.subr.bf16.mxu0 0
    %6825 = vmatpush1.bf16.msra.mxu0 0
    %6826 = vmatprep.subr.bf16.mxu0 0
    %6827 = vmatpush1.bf16.msra.mxu0 0
    %6828 = vmatprep.subr.bf16.mxu0 0
    %6829 = vmatpush1.bf16.msra.mxu0 0
    %6830 = vmatprep.subr.bf16.mxu0 0
    %6831 = vmatpush1.bf16.msra.mxu0 0
    %6832 = vmatprep.subr.bf16.mxu0 0
    %6833 = vmatpush1.bf16.msra.mxu0 0
    %6834 = vmatprep.subr.bf16.mxu0 0
    %6835 = vmatpush1.bf16.msra.mxu0 0
    %6836 = vmatprep.subr.bf16.mxu0 0
    %6837 = vmatpush1.bf16.msra.mxu0 0
    %6838 = vmatprep.subr.bf16.mxu0 0
    %6839 = vmatpush1.bf16.msra.mxu0 0
    %6840 = vmatprep.subr.bf16.mxu0 0
    %6841 = vmatpush1.bf16.msra.mxu0 0
    %6842 = vmatprep.subr.bf16.mxu0 0
    %6843 = vmatpush1.bf16.msra.mxu0 0
    %6844 = vmatprep.subr.bf16.mxu0 0
    %6845 = vmatpush1.bf16.msra.mxu0 0
    %6846 = vmatprep.subr.bf16.mxu0 0
    %6847 = vmatpush1.bf16.msra.mxu0 0
    %6848 = vmatprep.subr.bf16.mxu0 0
    %6849 = vmatpush1.bf16.msra.mxu0 0
    %6850 = vmatprep.mubr.bf16.mxu0 0
    %6851 = vmatmul.mubr.bf16.gmra.mrb[0].mxu0 %v6816
    %v6852 = vpop.f32.mrb[0].mxu0
    %v6853 = vadd.f32 0.0, %v6852
    %v6854 = vpop.f32.mrb[0].mxu0
    %v6855 = vpop.f32.mrb[0].mxu0
    %v6856 = vpop.f32.mrb[0].mxu0
    %6857 = vdwg.mxu0
    %v6860 = vunpack.c.l.b16 %v6513
    %v6861 = vunpack.c.l.b16 %v6514
    %v6862 = vpack.c.b16 %v6861, %v6860
    %v6865 = vsel %vm2055, %v6497, 0
    %6867 = vmatprep.subr.bf16.mxu0 0
    %6868 = vmatpush1.bf16.msra.mxu0 %v6862
    %6869 = vmatprep.subr.bf16.mxu0 0
    %6870 = vmatpush1.bf16.msra.mxu0 0
    %6871 = vmatprep.subr.bf16.mxu0 0
    %6872 = vmatpush1.bf16.msra.mxu0 0
    %6873 = vmatprep.subr.bf16.mxu0 0
    %6874 = vmatpush1.bf16.msra.mxu0 0
    %6875 = vmatprep.subr.bf16.mxu0 0
    %6876 = vmatpush1.bf16.msra.mxu0 0
    %6877 = vmatprep.subr.bf16.mxu0 0
    %6878 = vmatpush1.bf16.msra.mxu0 0
    %6879 = vmatprep.subr.bf16.mxu0 0
    %6880 = vmatpush1.bf16.msra.mxu0 0
    %6881 = vmatprep.subr.bf16.mxu0 0
    %6882 = vmatpush1.bf16.msra.mxu0 0
    %6883 = vmatprep.subr.bf16.mxu0 0
    %6884 = vmatpush1.bf16.msra.mxu0 0
    %6885 = vmatprep.subr.bf16.mxu0 0
    %6886 = vmatpush1.bf16.msra.mxu0 0
    %6887 = vmatprep.subr.bf16.mxu0 0
    %6888 = vmatpush1.bf16.msra.mxu0 0
    %6889 = vmatprep.subr.bf16.mxu0 0
    %6890 = vmatpush1.bf16.msra.mxu0 0
    %6891 = vmatprep.subr.bf16.mxu0 0
    %6892 = vmatpush1.bf16.msra.mxu0 0
    %6893 = vmatprep.subr.bf16.mxu0 0
    %6894 = vmatpush1.bf16.msra.mxu0 0
    %6895 = vmatprep.subr.bf16.mxu0 0
    %6896 = vmatpush1.bf16.msra.mxu0 0
    %6897 = vmatprep.subr.bf16.mxu0 0
    %6898 = vmatpush1.bf16.msra.mxu0 0
    %6899 = vmatprep.mubr.bf16.mxu0 0
    %6900 = vmatmul.mubr.bf16.gmra.mrb[0].mxu0 %v6865
    %v6901 = vpop.f32.mrb[0].mxu0
    %v6902 = vadd.f32 0.0, %v6901
    %v6903 = vpop.f32.mrb[0].mxu0
    %v6904 = vpop.f32.mrb[0].mxu0
    %v6905 = vpop.f32.mrb[0].mxu0
    %6906 = vdwg.mxu0
    %v6907 = vsel %vm91, %v6559, 0.0
    %v6908 = vsel %vm91, %v6608, 0.0
    %v6909 = vadd.f32 %v6907, %v6908
    %v6910 = vsel %vm91, %v6657, 0.0
    %v6911 = vadd.f32 %v6909, %v6910
    %v6912 = vsel %vm91, %v6706, 0.0
    %v6913 = vadd.f32 %v6911, %v6912
    %v6914 = vsel %vm91, %v6755, 0.0
    %v6915 = vsel %vm91, %v6804, 0.0
    %v6916 = vadd.f32 %v6914, %v6915
    %v6917 = vsel %vm91, %v6853, 0.0
    %v6918 = vadd.f32 %v6916, %v6917
    %v6919 = vsel %vm91, %v6902, 0.0
    %v6920 = vadd.f32 %v6918, %v6919
    %s6921 = scalar_lea.vmem %s11, 1
    %v6922 = vld [vmem:[%s6921] sm:$0x1]
    %v6924 = vlaneseq
    %v6925 = vshrl.u32 %v6924, 7
    %v6926 = vsub.s32 0, %v6925
    %v6927 = vrot.slane %v6922, %v6926
    %v6929 = vadd.f32 %v6913, %v6927
    %v6930 = vadd.f32 %v6920, %v6927
    %v6931 = vadd.f32 %v6929, %v3706
    %v6932 = vadd.f32 %v6930, %v3707
    %s6933 = scalar_lea.vmem %s12, 1
    %v6934 = vld [vmem:[%s6933] sm:$0x1]
    %s6935 = scalar_lea.vmem %s13, 1
    %v6936 = vld [vmem:[%s6935] sm:$0x1]
    %v6937 = vsel %vm91, %v6931, 0.0
    %6938 = vadd.xlane.f32.xlu0 %v6937
    %v6939 = vpop.xlane.xlu0 %6938
    %v6940 = vsel %vm91, %v6932, 0.0
    %6941 = vadd.xlane.f32.xlu0 %v6940
    %v6942 = vpop.xlane.xlu0 %6941
    %v6943 = vmul.f32 %v6939, %v98
    %v6944 = vmul.f32 %v6942, %v98
    %v6945 = vsub.f32 %v6931, %v6943
    %v6946 = vsub.f32 %v6932, %v6944
    %v6947 = vmul.f32 %v6945, %v6945
    %v6948 = vmul.f32 %v6946, %v6946
    %v6949 = vsel %vm91, %v6947, 0.0
    %6950 = vadd.xlane.f32.xlu0 %v6949
    %v6951 = vpop.xlane.xlu0 %6950
    %v6952 = vsel %vm91, %v6948, 0.0
    %6953 = vadd.xlane.f32.xlu0 %v6952
    %v6954 = vpop.xlane.xlu0 %6953
    %v6955 = vmul.f32 %v6951, %v98
    %v6956 = vmul.f32 %v6954, %v98
    %v6957 = vadd.f32 %v6955, 1e-05
    %v6958 = vadd.f32 %v6956, 1e-05
    %v6959 = vrsqrt.pop %v6957
    %v6960 = vrsqrt.pop %v6958
    %v6961 = vmul.f32 %v6945, %v6959
    %v6962 = vmul.f32 %v6946, %v6960
    %v6964 = vlaneseq
    %v6965 = vshrl.u32 %v6964, 7
    %v6966 = vsub.s32 0, %v6965
    %v6967 = vrot.slane %v6934, %v6966
    %v6969 = vmul.f32 %v6961, %v6967
    %v6970 = vmul.f32 %v6962, %v6967
    %v6972 = vlaneseq
    %v6973 = vshrl.u32 %v6972, 7
    %v6974 = vsub.s32 0, %v6973
    %v6975 = vrot.slane %v6936, %v6974
    %v6977 = vadd.f32 %v6969, %v6975
    %v6978 = vadd.f32 %v6970, %v6975
    %v6979 = vpack.c.bf16 %v6978, %v6977
    %s6980 = scalar_lea.vmem %s14, 32
    %v6981 = vld [vmem:[%s6980] sm:$0xf]
    %v6982 = vld [vmem:[%s6980 + $0x4] sm:$0xf]
    %v6983 = vld [vmem:[%s6980 + $0x8] sm:$0xf]
    %v6984 = vld [vmem:[%s6980 + $0xc] sm:$0xf]
    %v6985 = vld [vmem:[%s6980 + $0x10] sm:$0xf]
    %v6986 = vld [vmem:[%s6980 + $0x14] sm:$0xf]
    %v6987 = vld [vmem:[%s6980 + $0x18] sm:$0xf]
    %v6988 = vld [vmem:[%s6980 + $0x1c] sm:$0xf]
    %s6989 = scalar_lea.vmem %s15, 1
    %v6990 = vld [vmem:[%s6989] sm:$0x1]
    %v6992 = vlaneseq
    %v6993 = vshrl.u32 %v6992, 7
    %v6994 = vsub.s32 0, %v6993
    %v6995 = vrot.slane %v6990, %v6994
    %v7005 = vunpack.c.l.b16 %v6981
    %v7006 = vunpack.c.l.b16 %v6982
    %v7007 = vunpack.c.l.b16 %v6983
    %v7008 = vunpack.c.l.b16 %v6984
    %v7009 = vunpack.c.l.b16 %v6985
    %v7010 = vunpack.c.l.b16 %v6986
    %v7011 = vunpack.c.l.b16 %v6987
    %v7012 = vunpack.c.l.b16 %v6988
    %v7013 = vpack.c.b16 %v7006, %v7005
    %v7014 = vpack.c.b16 %v7008, %v7007
    %v7015 = vpack.c.b16 %v7010, %v7009
    %v7016 = vpack.c.b16 %v7012, %v7011
    %v7022 = vsel %vm91, %v6979, 0
    %7024 = vmatprep.subr.bf16.mxu0 0
    %7025 = vmatpush1.bf16.msra.mxu0 %v7013
    %7026 = vmatprep.subr.bf16.mxu0 0
    %7027 = vmatpush1.bf16.msra.mxu0 %v7014
    %7028 = vmatprep.subr.bf16.mxu0 0
    %7029 = vmatpush1.bf16.msra.mxu0 %v7015
    %7030 = vmatprep.subr.bf16.mxu0 0
    %7031 = vmatpush1.bf16.msra.mxu0 %v7016
    %7032 = vmatprep.subr.bf16.mxu0 0
    %7033 = vmatpush1.bf16.msra.mxu0 0
    %7034 = vmatprep.subr.bf16.mxu0 0
    %7035 = vmatpush1.bf16.msra.mxu0 0
    %7036 = vmatprep.subr.bf16.mxu0 0
    %7037 = vmatpush1.bf16.msra.mxu0 0
    %7038 = vmatprep.subr.bf16.mxu0 0
    %7039 = vmatpush1.bf16.msra.mxu0 0
    %7040 = vmatprep.subr.bf16.mxu0 0
    %7041 = vmatpush1.bf16.msra.mxu0 0
    %7042 = vmatprep.subr.bf16.mxu0 0
    %7043 = vmatpush1.bf16.msra.mxu0 0
    %7044 = vmatprep.subr.bf16.mxu0 0
    %7045 = vmatpush1.bf16.msra.mxu0 0
    %7046 = vmatprep.subr.bf16.mxu0 0
    %7047 = vmatpush1.bf16.msra.mxu0 0
    %7048 = vmatprep.subr.bf16.mxu0 0
    %7049 = vmatpush1.bf16.msra.mxu0 0
    %7050 = vmatprep.subr.bf16.mxu0 0
    %7051 = vmatpush1.bf16.msra.mxu0 0
    %7052 = vmatprep.subr.bf16.mxu0 0
    %7053 = vmatpush1.bf16.msra.mxu0 0
    %7054 = vmatprep.subr.bf16.mxu0 0
    %7055 = vmatpush1.bf16.msra.mxu0 0
    %7056 = vmatprep.mubr.bf16.mxu0 0
    %7057 = vmatmul.mubr.bf16.gmra.mrb[0].mxu0 %v7022
    %v7058 = vpop.f32.mrb[0].mxu0
    %v7059 = vadd.f32 %v6995, %v7058
    %v7060 = vpop.f32.mrb[0].mxu0
    %v7061 = vpop.f32.mrb[0].mxu0
    %v7062 = vadd.f32 %v6995, %v7061
    %v7063 = vpop.f32.mrb[0].mxu0
    %7064 = vdwg.mxu0
    %v7065 = vmul.f32 %v7059, 0.5
    %v7066 = vmul.f32 %v7062, 0.5
    %v7067 = vmul.f32 %v7059, 0.044715
    %v7068 = vmul.f32 %v7062, 0.044715
    %v7069 = vmul.f32 %v7067, %v7059
    %v7070 = vmul.f32 %v7068, %v7062
    %v7071 = vmul.f32 %v7069, %v7059
    %v7072 = vmul.f32 %v7070, %v7062
    %v7073 = vadd.f32 %v7059, %v7071
    %v7074 = vadd.f32 %v7062, %v7072
    %v7075 = vmul.f32 %v7073, 0.7978846
    %v7076 = vmul.f32 %v7074, 0.7978846
    %v7077 = vtanh.pop %v7075
    %v7078 = vtanh.pop %v7076
    %v7079 = vadd.f32 %v7077, 1.0
    %v7080 = vadd.f32 %v7078, 1.0
    %v7081 = vmul.f32 %v7065, %v7079
    %v7082 = vmul.f32 %v7066, %v7080
    %v7083 = vpack.c.bf16 %v7082, %v7081
    %s7084 = scalar_lea.vmem %s16, 64
    %v7085 = vld [vmem:[%s7084] sm:$0xf]
    %v7086 = vld [vmem:[%s7084 + $0x4] sm:$0xf]
    %v7087 = vld [vmem:[%s7084 + $0x8] sm:$0xf]
    %v7088 = vld [vmem:[%s7084 + $0xc] sm:$0xf]
    %v7089 = vld [vmem:[%s7084 + $0x10] sm:$0xf]
    %v7090 = vld [vmem:[%s7084 + $0x14] sm:$0xf]
    %v7091 = vld [vmem:[%s7084 + $0x18] sm:$0xf]
    %v7092 = vld [vmem:[%s7084 + $0x1c] sm:$0xf]
    %v7093 = vld [vmem:[%s7084 + $0x20] sm:$0xf]
    %v7094 = vld [vmem:[%s7084 + $0x24] sm:$0xf]
    %v7095 = vld [vmem:[%s7084 + $0x28] sm:$0xf]
    %v7096 = vld [vmem:[%s7084 + $0x2c] sm:$0xf]
    %v7097 = vld [vmem:[%s7084 + $0x30] sm:$0xf]
    %v7098 = vld [vmem:[%s7084 + $0x34] sm:$0xf]
    %v7099 = vld [vmem:[%s7084 + $0x38] sm:$0xf]
    %v7100 = vld [vmem:[%s7084 + $0x3c] sm:$0xf]
    %s7101 = scalar_lea.vmem %s17, 1
    %v7102 = vld [vmem:[%s7101] sm:$0x1]
    %v7104 = vlaneseq
    %v7105 = vshrl.u32 %v7104, 7
    %v7106 = vsub.s32 0, %v7105
    %v7107 = vrot.slane %v7102, %v7106
    %v7125 = vunpack.c.l.b16 %v7085
    %v7126 = vunpack.c.l.b16 %v7086
    %v7127 = vunpack.c.l.b16 %v7087
    %v7128 = vunpack.c.l.b16 %v7088
    %v7129 = vunpack.c.l.b16 %v7089
    %v7130 = vunpack.c.l.b16 %v7090
    %v7131 = vunpack.c.l.b16 %v7091
    %v7132 = vunpack.c.l.b16 %v7092
    %v7133 = vunpack.c.l.b16 %v7093
    %v7134 = vunpack.c.l.b16 %v7094
    %v7135 = vunpack.c.l.b16 %v7095
    %v7136 = vunpack.c.l.b16 %v7096
    %v7137 = vunpack.c.l.b16 %v7097
    %v7138 = vunpack.c.l.b16 %v7098
    %v7139 = vunpack.c.l.b16 %v7099
    %v7140 = vunpack.c.l.b16 %v7100
    %v7141 = vpack.c.b16 %v7126, %v7125
    %v7142 = vpack.c.b16 %v7128, %v7127
    %v7143 = vpack.c.b16 %v7130, %v7129
    %v7144 = vpack.c.b16 %v7132, %v7131
    %v7145 = vpack.c.b16 %v7134, %v7133
    %v7146 = vpack.c.b16 %v7136, %v7135
    %v7147 = vpack.c.b16 %v7138, %v7137
    %v7148 = vpack.c.b16 %v7140, %v7139
    %7157 = vmatprep.subr.bf16.mxu0 0
    %7158 = vmatpush1.bf16.msra.mxu0 %v7141
    %7159 = vmatprep.subr.bf16.mxu0 0
    %7160 = vmatpush1.bf16.msra.mxu0 %v7142
    %7161 = vmatprep.subr.bf16.mxu0 0
    %7162 = vmatpush1.bf16.msra.mxu0 %v7143
    %7163 = vmatprep.subr.bf16.mxu0 0
    %7164 = vmatpush1.bf16.msra.mxu0 %v7144
    %7165 = vmatprep.subr.bf16.mxu0 0
    %7166 = vmatpush1.bf16.msra.mxu0 %v7145
    %7167 = vmatprep.subr.bf16.mxu0 0
    %7168 = vmatpush1.bf16.msra.mxu0 %v7146
    %7169 = vmatprep.subr.bf16.mxu0 0
    %7170 = vmatpush1.bf16.msra.mxu0 %v7147
    %7171 = vmatprep.subr.bf16.mxu0 0
    %7172 = vmatpush1.bf16.msra.mxu0 %v7148
    %7173 = vmatprep.subr.bf16.mxu0 0
    %7174 = vmatpush1.bf16.msra.mxu0 0
    %7175 = vmatprep.subr.bf16.mxu0 0
    %7176 = vmatpush1.bf16.msra.mxu0 0
    %7177 = vmatprep.subr.bf16.mxu0 0
    %7178 = vmatpush1.bf16.msra.mxu0 0
    %7179 = vmatprep.subr.bf16.mxu0 0
    %7180 = vmatpush1.bf16.msra.mxu0 0
    %7181 = vmatprep.subr.bf16.mxu0 0
    %7182 = vmatpush1.bf16.msra.mxu0 0
    %7183 = vmatprep.subr.bf16.mxu0 0
    %7184 = vmatpush1.bf16.msra.mxu0 0
    %7185 = vmatprep.subr.bf16.mxu0 0
    %7186 = vmatpush1.bf16.msra.mxu0 0
    %7187 = vmatprep.subr.bf16.mxu0 0
    %7188 = vmatpush1.bf16.msra.mxu0 0
    %7189 = vmatprep.mubr.bf16.mxu0 0
    %7190 = vmatmul.mubr.bf16.gmra.mrb[0].mxu0 %v7083
    %v7191 = vpop.f32.mrb[0].mxu0
    %v7192 = vadd.f32 %v7107, %v7191
    %v7193 = vpop.f32.mrb[0].mxu0
    %v7194 = vpop.f32.mrb[0].mxu0
    %v7195 = vadd.f32 %v7107, %v7194
    %v7196 = vpop.f32.mrb[0].mxu0
    %7197 = vdwg.mxu0
    %v7198 = vadd.f32 %v7192, %v6977
    %v7199 = vadd.f32 %v7195, %v6978
    %s7200 = scalar_lea.vmem %s18, 1
    %v7201 = vld [vmem:[%s7200] sm:$0x1]
    %s7202 = scalar_lea.vmem %s19, 1
    %v7203 = vld [vmem:[%s7202] sm:$0x1]
    %v7204 = vsel %vm91, %v7198, 0.0
    %7205 = vadd.xlane.f32.xlu0 %v7204
    %v7206 = vpop.xlane.xlu0 %7205
    %v7207 = vsel %vm91, %v7199, 0.0
    %7208 = vadd.xlane.f32.xlu0 %v7207
    %v7209 = vpop.xlane.xlu0 %7208
    %v7210 = vmul.f32 %v7206, %v98
    %v7211 = vmul.f32 %v7209, %v98
    %v7212 = vsub.f32 %v7198, %v7210
    %v7213 = vsub.f32 %v7199, %v7211
    %v7214 = vmul.f32 %v7212, %v7212
    %v7215 = vmul.f32 %v7213, %v7213
    %v7216 = vsel %vm91, %v7214, 0.0
    %7217 = vadd.xlane.f32.xlu0 %v7216
    %v7218 = vpop.xlane.xlu0 %7217
    %v7219 = vsel %vm91, %v7215, 0.0
    %7220 = vadd.xlane.f32.xlu0 %v7219
    %v7221 = vpop.xlane.xlu0 %7220
    %v7222 = vmul.f32 %v7218, %v98
    %v7223 = vmul.f32 %v7221, %v98
    %v7224 = vadd.f32 %v7222, 1e-05
    %v7225 = vadd.f32 %v7223, 1e-05
    %v7226 = vrsqrt.pop %v7224
    %v7227 = vrsqrt.pop %v7225
    %v7228 = vmul.f32 %v7212, %v7226
    %v7229 = vmul.f32 %v7213, %v7227
    %v7231 = vlaneseq
    %v7232 = vshrl.u32 %v7231, 7
    %v7233 = vsub.s32 0, %v7232
    %v7234 = vrot.slane %v7201, %v7233
    %v7236 = vmul.f32 %v7228, %v7234
    %v7237 = vmul.f32 %v7229, %v7234
    %v7239 = vlaneseq
    %v7240 = vshrl.u32 %v7239, 7
    %v7241 = vsub.s32 0, %v7240
    %v7242 = vrot.slane %v7203, %v7241
    %v7244 = vadd.f32 %v7236, %v7242
    %v7245 = vadd.f32 %v7237, %v7242
    %v7246 = vpack.c.bf16 %v7244, %v7244
    %v7247 = vpack.c.bf16 %v7245, %v7245
    %v7248 = vld [vmem:[%s20] sm:$0xf]
    %v7249 = vld [vmem:[%s20 + $0x4] sm:$0xf]
    %v7250 = vld [vmem:[%s20 + $0x8] sm:$0xf]
    %v7251 = vld [vmem:[%s20 + $0xc] sm:$0xf]
    %v7252 = vld [vmem:[%s20 + $0x10] sm:$0xf]
    %v7253 = vld [vmem:[%s20 + $0x14] sm:$0xf]
    %v7254 = vld [vmem:[%s20 + $0x18] sm:$0xf]
    %v7255 = vld [vmem:[%s20 + $0x1c] sm:$0xf]
    %v7256 = vld [vmem:[%s21] sm:$0x1]
    %v7258 = vlaneseq
    %v7259 = vshrl.u32 %v7258, 7
    %v7260 = vsub.s32 0, %v7259
    %v7261 = vrot.slane %v7256, %v7260
    %v7265 = vunpack.c.l.b16 %v7246
    %v7266 = vunpack.c.l.b16 %v7247
    %v7267 = vrot.slane %v7266, 7
    %vm7268 = vcmask 1041409
    %v7269 = vsel %vm7268, %v7267, %v7265
    %v7270 = vpack.c.b16 %v7269, %v7269
    %v7279 = vunpack.c.l.b16 %v7248
    %v7280 = vunpack.c.l.b16 %v7249
    %v7281 = vunpack.c.l.b16 %v7250
    %v7282 = vunpack.c.l.b16 %v7251
    %v7283 = vunpack.c.l.b16 %v7252
    %v7284 = vunpack.c.l.b16 %v7253
    %v7285 = vunpack.c.l.b16 %v7254
    %v7286 = vunpack.c.l.b16 %v7255
    %v7287 = vpack.c.b16 %v7280, %v7279
    %v7288 = vpack.c.b16 %v7282, %v7281
    %v7289 = vpack.c.b16 %v7284, %v7283
    %v7290 = vpack.c.b16 %v7286, %v7285
    %v7296 = vsel %vm91, %v7270, 0
    %7298 = vmatprep.subr.bf16.mxu0 0
    %7299 = vmatpush1.bf16.msra.mxu0 %v7287
    %7300 = vmatprep.subr.bf16.mxu0 0
    %7301 = vmatpush1.bf16.msra.mxu0 %v7288
    %7302 = vmatprep.subr.bf16.mxu0 0
    %7303 = vmatpush1.bf16.msra.mxu0 %v7289
    %7304 = vmatprep.subr.bf16.mxu0 0
    %7305 = vmatpush1.bf16.msra.mxu0 %v7290
    %7306 = vmatprep.subr.bf16.mxu0 0
    %7307 = vmatpush1.bf16.msra.mxu0 0
    %7308 = vmatprep.subr.bf16.mxu0 0
    %7309 = vmatpush1.bf16.msra.mxu0 0
    %7310 = vmatprep.subr.bf16.mxu0 0
    %7311 = vmatpush1.bf16.msra.mxu0 0
    %7312 = vmatprep.subr.bf16.mxu0 0
    %7313 = vmatpush1.bf16.msra.mxu0 0
    %7314 = vmatprep.subr.bf16.mxu0 0
    %7315 = vmatpush1.bf16.msra.mxu0 0
    %7316 = vmatprep.subr.bf16.mxu0 0
    %7317 = vmatpush1.bf16.msra.mxu0 0
    %7318 = vmatprep.subr.bf16.mxu0 0
    %7319 = vmatpush1.bf16.msra.mxu0 0
    %7320 = vmatprep.subr.bf16.mxu0 0
    %7321 = vmatpush1.bf16.msra.mxu0 0
    %7322 = vmatprep.subr.bf16.mxu0 0
    %7323 = vmatpush1.bf16.msra.mxu0 0
    %7324 = vmatprep.subr.bf16.mxu0 0
    %7325 = vmatpush1.bf16.msra.mxu0 0
    %7326 = vmatprep.subr.bf16.mxu0 0
    %7327 = vmatpush1.bf16.msra.mxu0 0
    %7328 = vmatprep.subr.bf16.mxu0 0
    %7329 = vmatpush1.bf16.msra.mxu0 0
    %7330 = vmatprep.mubr.bf16.mxu0 0
    %7331 = vmatmul.mubr.bf16.gmra.mrb[0].mxu0 %v7296
    %v7332 = vpop.f32.mrb[0].mxu0
    %v7333 = vadd.f32 %v7261, %v7332
    %v7334 = vpop.f32.mrb[0].mxu0
    %v7335 = vpop.f32.mrb[0].mxu0
    %v7336 = vpop.f32.mrb[0].mxu0
    %7337 = vdwg.mxu0
    %v7338 = vtanh.pop %v7333
    %v7339 = vpack.c.bf16 %v7338, %v7338
    %v7340 = vld [vmem:[%s22] sm:$0xf]
    %v7341 = vld [vmem:[%s22 + $0x4] sm:$0xf]
    %v7342 = vld [vmem:[%s22 + $0x8] sm:$0xf]
    %v7343 = vld [vmem:[%s22 + $0xc] sm:$0xf]
    %v7344 = vld [vmem:[%s22 + $0x10] sm:$0xf]
    %v7345 = vld [vmem:[%s22 + $0x14] sm:$0xf]
    %v7346 = vld [vmem:[%s22 + $0x18] sm:$0xf]
    %v7347 = vld [vmem:[%s22 + $0x1c] sm:$0xf]
    %v7348 = vld [vmem:[%s23] sm:$0x1]
    %v7350 = vlaneseq
    %v7351 = vshrl.u32 %v7350, 7
    %v7352 = vsub.s32 0, %v7351
    %v7353 = vrot.slane %v7348, %v7352
    %v7363 = vunpack.c.l.b16 %v7340
    %v7364 = vunpack.c.l.b16 %v7341
    %v7365 = vunpack.c.l.b16 %v7342
    %v7366 = vunpack.c.l.b16 %v7343
    %v7367 = vunpack.c.l.b16 %v7344
    %v7368 = vunpack.c.l.b16 %v7345
    %v7369 = vunpack.c.l.b16 %v7346
    %v7370 = vunpack.c.l.b16 %v7347
    %v7371 = vpack.c.b16 %v7364, %v7363
    %v7372 = vpack.c.b16 %v7366, %v7365
    %v7373 = vpack.c.b16 %v7368, %v7367
    %v7374 = vpack.c.b16 %v7370, %v7369
    %v7380 = vsel %vm91, %v7339, 0
    %7382 = vmatprep.subr.bf16.mxu0 0
    %7383 = vmatpush1.bf16.msra.mxu0 %v7371
    %7384 = vmatprep.subr.bf16.mxu0 0
    %7385 = vmatpush1.bf16.msra.mxu0 %v7372
    %7386 = vmatprep.subr.bf16.mxu0 0
    %7387 = vmatpush1.bf16.msra.mxu0 %v7373
    %7388 = vmatprep.subr.bf16.mxu0 0
    %7389 = vmatpush1.bf16.msra.mxu0 %v7374
    %7390 = vmatprep.subr.bf16.mxu0 0
    %7391 = vmatpush1.bf16.msra.mxu0 0
    %7392 = vmatprep.subr.bf16.mxu0 0
    %7393 = vmatpush1.bf16.msra.mxu0 0
    %7394 = vmatprep.subr.bf16.mxu0 0
    %7395 = vmatpush1.bf16.msra.mxu0 0
    %7396 = vmatprep.subr.bf16.mxu0 0
    %7397 = vmatpush1.bf16.msra.mxu0 0
    %7398 = vmatprep.subr.bf16.mxu0 0
    %7399 = vmatpush1.bf16.msra.mxu0 0
    %7400 = vmatprep.subr.bf16.mxu0 0
    %7401 = vmatpush1.bf16.msra.mxu0 0
    %7402 = vmatprep.subr.bf16.mxu0 0
    %7403 = vmatpush1.bf16.msra.mxu0 0
    %7404 = vmatprep.subr.bf16.mxu0 0
    %7405 = vmatpush1.bf16.msra.mxu0 0
    %7406 = vmatprep.subr.bf16.mxu0 0
    %7407 = vmatpush1.bf16.msra.mxu0 0
    %7408 = vmatprep.subr.bf16.mxu0 0
    %7409 = vmatpush1.bf16.msra.mxu0 0
    %7410 = vmatprep.subr.bf16.mxu0 0
    %7411 = vmatpush1.bf16.msra.mxu0 0
    %7412 = vmatprep.subr.bf16.mxu0 0
    %7413 = vmatpush1.bf16.msra.mxu0 0
    %7414 = vmatprep.mubr.bf16.mxu0 0
    %7415 = vmatmul.mubr.bf16.gmra.mrb[0].mxu0 %v7380
    %v7416 = vpop.f32.mrb[0].mxu0
    %v7417 = vadd.f32 %v7353, %v7416
    %v7418 = vpop.f32.mrb[0].mxu0
    %v7419 = vpop.f32.mrb[0].mxu0
    %v7420 = vpop.f32.mrb[0].mxu0
    %7421 = vdwg.mxu0
    %7422 = vst [vmem:[#allocation2] sm:$0x3] %v7417
    // Predicated region
    $region98: #{radbert_classifier_forward.1} parent=1 // pred_check
      _
    $region99: #{radbert_classifier_forward.1} parent=1 // pred_check_branch
      %7424 = sbr.rel (0) target = $region101
    $region100: #{radbert_classifier_forward.1} parent=1 // pred_region
      %s7426 = ssub.s32 32, 32
      %7427 = vsyncadd [#allocation3], %s7426
      %s7429 = sshll.u32 [#allocation2], 4
      %s7430 = int_to_ptr.vmem [resolvable:$true] %s7429
      %7432 = dma.vmem_to_hbm [thread:$0]  %s7430, 32, %s24, [#allocation3]
    $region101: #{radbert_classifier_forward.1} parent=1 // pred_fallthru
      _
    // Predicated region
    $region102: #{radbert_classifier_forward.1} parent=1 // pred_check
      _
    $region103: #{radbert_classifier_forward.1} parent=1 // pred_check_branch
      %7434 = sbr.rel (0) target = $region105
    $region104: #{radbert_classifier_forward.1} parent=1 // pred_region
      %7435 = dma.done [#allocation3], 32
    $region105: #{radbert_classifier_forward.1} parent=1 // pred_fallthru
      _
    %7436 = vsyncpa [#allocation3], 1

</llo_original>
